<compile_context>
chip_gen: v7x
topology: tpu7x:2x2x1
jax: 0.10.0
libtpu: 0.0.40
codegen_flags: <defaults>
</compile_context>

<pallas_src>
import functools
import math

import jax
import jax.numpy as jnp
from jax import lax
from jax.experimental import pallas as pl
from jax.experimental.pallas import tpu as pltpu

# ----------------------------- model config (small) -----------------------------
IMG_SIZE    = 16
PATCH       = 4
IN_CH       = 3
EMBED_DIM   = 32
NUM_HEADS   = 4
NUM_LAYERS  = 2
FFN_DIM     = 2048          # torch TransformerEncoderLayer default dim_feedforward
FFN_TILE    = 256           # FFN hidden-dim chunk (sweep knob: 256 / 512 / 1024)
LN_EPS      = 1e-5

HP = IMG_SIZE // PATCH
N_PATCH = HP * HP                      # sequence length (num_patches) = 16
PPC = PATCH * PATCH * IN_CH            # flattened patch size = 48
OUT_PAD = 128                          # pad head output 48 -> 128 lanes (lane-dense stores)
HEAD_DIM = EMBED_DIM // NUM_HEADS
ATTN_SCALE = 1.0 / math.sqrt(HEAD_DIM)

# NT ("trans_b") matmul dimension numbers: A[m,k] . B[n,k] -> [m,n]
NT_DIMS = (((1,), (1,)), ((), ()))


def _layernorm(x, gamma, beta, eps=LN_EPS):
    mu = jnp.mean(x, axis=-1, keepdims=True)
    var = jnp.mean((x - mu) ** 2, axis=-1, keepdims=True)
    return (x - mu) * lax.rsqrt(var + eps) * gamma + beta


def vit_kernel(patches_ref, w_patch_ref, b_patch_ref, pos_ref,
               wqkv_ref, bqkv_ref, wo_ref, bo_ref, ln1_ref,
               w1_ref, b1_ref, w2_ref, b2_ref, ln2_ref,
               head_ln_ref, head_w_ref, head_b_ref, out_ref, *, bb):
    # One grid step == bb batch elements, flattened into rows = bb * N_PATCH.
    rows = bb * N_PATCH
    E = EMBED_DIM

    # --- patch embedding (Conv2d k=s=P == matmul over flattened patches) ---
    x = patches_ref[...].astype(jnp.bfloat16)                          # [R, PPC]
    h = jnp.dot(x, w_patch_ref[...], preferred_element_type=jnp.float32)
    h = h + b_patch_ref[...] + pos_ref[...]                            # [R, E] f32

    def split_heads(z):
        # [R, E] -> [H*bb, N, Dh].  Only sublane splits (N = 16, multiple of 8)
        # and a leading-axis stack of static lane slices -> no lane-dim reshape.
        z = z.reshape(bb, N_PATCH, E)
        z = jnp.stack([z[:, :, hh * HEAD_DIM:(hh + 1) * HEAD_DIM]
                       for hh in range(NUM_HEADS)], axis=0)            # [H, bb, N, Dh]
        return z.reshape(NUM_HEADS * bb, N_PATCH, HEAD_DIM)

    # --- transformer encoder layers (post-norm, ReLU FFN, eval mode) ---
    for l in range(NUM_LAYERS):
        hb = h.astype(jnp.bfloat16)

        # separate q/k/v projections: bf16 operands, f32 accumulation
        q = jnp.dot(hb, wqkv_ref[l, 0], preferred_element_type=jnp.float32) + bqkv_ref[l, 0]
        k = jnp.dot(hb, wqkv_ref[l, 1], preferred_element_type=jnp.float32) + bqkv_ref[l, 1]
        v = jnp.dot(hb, wqkv_ref[l, 2], preferred_element_type=jnp.float32) + bqkv_ref[l, 2]

        qh = split_heads(q).astype(jnp.bfloat16)
        kh = split_heads(k).astype(jnp.bfloat16)
        vh = split_heads(v).astype(jnp.bfloat16)

        # ONE batched score matmul ('bqd,bkd->bqk'), ONE softmax, ONE context matmul.
        s = lax.dot_general(qh, kh, (((2,), (2,)), ((0,), (0,))),
                            preferred_element_type=jnp.float32) * ATTN_SCALE
        s = s - jnp.max(s, axis=-1, keepdims=True)
        p = jnp.exp(s)
        # approx reciprocal: rows sum to ~1 (tiny deviation vs exact torch softmax)
        p = p * pl.reciprocal(jnp.sum(p, axis=-1, keepdims=True), approx=True)
        ctx = lax.dot_general(p.astype(jnp.bfloat16), vh, (((2,), (1,)), ((0,), (0,))),
                              preferred_element_type=jnp.float32)      # [H*bb, N, Dh]

        # merge heads back along lanes -> single [R,E]@[E,E] output projection
        ctx = ctx.reshape(NUM_HEADS, bb, N_PATCH, HEAD_DIM)
        ctx = jnp.concatenate([ctx[hh] for hh in range(NUM_HEADS)], axis=-1)
        ctx = ctx.reshape(rows, E).astype(jnp.bfloat16)
        attn = jnp.dot(ctx, wo_ref[l], preferred_element_type=jnp.float32) + bo_ref[l]

        h = _layernorm(h + attn, ln1_ref[l, 0:1, :], ln1_ref[l, 1:2, :])

        # --- FFN blocked over the 2048-wide hidden dim; w2 is lane-dense [E, F] ---
        hb2 = h.astype(jnp.bfloat16)

        def ffn_chunk(c, acc, l=l, hb2=hb2):
            c0 = pl.multiple_of(c * FFN_TILE, FFN_TILE)
            a = jnp.dot(hb2, w1_ref[l, :, pl.ds(c0, FFN_TILE)],
                        preferred_element_type=jnp.float32)
            a = jnp.maximum(a + b1_ref[l, :, pl.ds(c0, FFN_TILE)], 0.0)    # ReLU, f32
            return acc + lax.dot_general(
                a.astype(jnp.bfloat16), w2_ref[l, :, pl.ds(c0, FFN_TILE)],
                NT_DIMS, preferred_element_type=jnp.float32)

        ff = lax.fori_loop(0, FFN_DIM // FFN_TILE, ffn_chunk,
                           jnp.zeros((rows, E), jnp.float32), unroll=True)
        ff = ff + b2_ref[l]

        h = _layernorm(h + ff, ln2_ref[l, 0:1, :], ln2_ref[l, 1:2, :])

    # --- mlp head: LayerNorm + Linear(E -> P*P*C), output padded to 128 lanes ---
    h = _layernorm(h, head_ln_ref[0:1, :], head_ln_ref[1:2, :])
    y = jnp.dot(h.astype(jnp.bfloat16), head_w_ref[...],
                preferred_element_type=jnp.float32)
    y = y + head_b_ref[...]                                            # [R, OUT_PAD]

    out_ref[...] = y.astype(out_ref.dtype)


def _const_spec(shape):
    # Whole-array block whose index never changes across the grid (resident weight).
    n = len(shape)
    return pl.BlockSpec(shape, lambda b, n=n: (0,) * n)


def vit_diffusion_forward(x, t, params, *, batch_block=32):
    """x: [B, C, H, W] float32 (NCHW), t: unused (as in the PyTorch forward)."""
    del t  # the reference forward never uses t
    B, C, H, W = x.shape
    assert (C, H, W) == (IN_CH, IMG_SIZE, IMG_SIZE)

    # rows-per-step knob: cap bb at ceil(B/2) so the "parallel" grid always has
    # >= 2 steps (both v7x TensorCores busy); with large B the default gives
    # rows = 32*16 = 512 per step (fills v6e/v7x 256-row MXU tile).
    bb = max(1, min(batch_block, (B + 1) // 2))
    b_pad = ((B + bb - 1) // bb) * bb
    rows = bb * N_PATCH

    # im2col of the stride=P conv: per-patch element order is (c, ph, pw),
    # matching torch conv weight [E, C, P, P].reshape(E, -1).  The head output
    # is later un-patchified with (ph, pw, c) ordering, exactly matching the
    # torch view(B,hp,wp,P,P,C).permute(0,5,1,3,2,4) chain.
    patches = (x.reshape(B, C, HP, PATCH, HP, PATCH)
                 .transpose(0, 2, 4, 1, 3, 5)
                 .reshape(B, N_PATCH, PPC)).astype(jnp.float32)
    if b_pad != B:
        patches = jnp.pad(patches, ((0, b_pad - B), (0, 0), (0, 0)))
    patches = patches.reshape(b_pad * N_PATCH, PPC)

    bf16 = jnp.bfloat16
    # pos embedding pre-tiled to the bb-batched row layout; head linear padded
    # to 128 output lanes (zero columns) for lane-dense stores.
    pos_tiled = jnp.tile(params["pos"], (bb, 1))                       # [rows, E] f32
    head_w_pad = jnp.pad(params["head_w"], ((0, 0), (0, OUT_PAD - PPC))).astype(bf16)
    head_b_pad = jnp.pad(params["head_b"], ((0, 0), (0, OUT_PAD - PPC)))

    weight_args = [params["w_patch"].astype(bf16), params["b_patch"], pos_tiled,
                   params["wqkv"].astype(bf16), params["bqkv"],
                   params["wo"].astype(bf16), params["bo"], params["ln1"],
                   params["w1"].astype(bf16), params["b1"],
                   params["w2"].astype(bf16), params["b2"], params["ln2"],
                   params["head_ln"], head_w_pad, head_b_pad]

    in_specs = [pl.BlockSpec((rows, PPC), lambda b: (b, 0))]
    in_specs += [_const_spec(a.shape) for a in weight_args]

    out_flat = pl.pallas_call(
        functools.partial(vit_kernel, bb=bb),
        out_shape=jax.ShapeDtypeStruct((b_pad * N_PATCH, OUT_PAD), jnp.float32),
        grid_spec=pltpu.PrefetchScalarGridSpec(
            num_scalar_prefetch=0,
            grid=(b_pad // bb,),
            in_specs=in_specs,
            out_specs=pl.BlockSpec((rows, OUT_PAD), lambda b: (b, 0)),
        ),
        compiler_params=pltpu.CompilerParams(
            dimension_semantics=("parallel",),
            vmem_limit_bytes=32 << 20,     # working set is a few MiB; ample headroom
        ),
    )(patches, *weight_args)

    # strip padding and un-patchify exactly like the torch view/permute/view
    y = out_flat.reshape(b_pad, N_PATCH, OUT_PAD)[:B, :, :PPC]
    y = (y.reshape(B, HP, HP, PATCH, PATCH, C)
           .transpose(0, 5, 1, 3, 2, 4)
           .reshape(B, C, H, W))
    return y


def init_params(key):
    ks = jax.random.split(key, 16)

    def rnd(k, shape, scale=0.02):
        return (scale * jax.random.normal(k, shape)).astype(jnp.float32)

    L, E, F = NUM_LAYERS, EMBED_DIM, FFN_DIM
    ln_stack = jnp.stack([jnp.ones((L, E), jnp.float32),
                          jnp.zeros((L, E), jnp.float32)], axis=1)      # [L,2,E]
    return dict(
        w_patch=rnd(ks[0], (PPC, E)),          # conv weight [E,C,P,P] -> [PPC,E]
        b_patch=rnd(ks[1], (1, E)),
        pos=rnd(ks[2], (N_PATCH, E)),          # torch inits zeros; random but deterministic here
        wqkv=rnd(ks[3], (L, 3, E, E)),         # wqkv[l,i] = in_proj_weight[i*E:(i+1)*E].T
        bqkv=rnd(ks[4], (L, 3, 1, E)),
        wo=rnd(ks[5], (L, E, E)),              # out_proj.weight.T per layer
        bo=rnd(ks[6], (L, 1, E)),
        ln1=ln_stack,                          # [L,2,E]: row0=gamma, row1=beta
        w1=rnd(ks[7], (L, E, F)),              # linear1.weight.T
        b1=rnd(ks[8], (L, 1, F)),
        w2=rnd(ks[9], (L, E, F)),              # linear2.weight AS-IS (lane-dense, NT matmul)
        b2=rnd(ks[10], (L, 1, E)),
        ln2=ln_stack,
        head_ln=jnp.stack([jnp.ones((E,), jnp.float32),
                           jnp.zeros((E,), jnp.float32)], axis=0),      # [2,E]
        head_w=rnd(ks[11], (E, PPC)),
        head_b=rnd(ks[12], (1, PPC)),
    )


if __name__ == "__main__":
    key = jax.random.PRNGKey(0)
    k_x, k_t, k_p = jax.random.split(key, 3)

    B = 2
    x = jax.random.normal(k_x, (B, IN_CH, IMG_SIZE, IMG_SIZE), jnp.float32)
    t = jax.random.uniform(k_t, (B,), jnp.float32)      # unused by the forward
    params = init_params(k_p)

    fwd = jax.jit(functools.partial(vit_diffusion_forward, params=params))
    y = fwd(x, t)
    jax.block_until_ready(y)
    assert y.shape == (B, IN_CH, IMG_SIZE, IMG_SIZE), y.shape
    assert jnp.all(jnp.isfinite(y))
    print("KERNEL_OK")
</pallas_src>

<mosaic_0001>
module attributes {stable_mosaic.version = 11 : i64} {
  func.func @vit_kernel(%arg0: i32, %arg1: memref<16x48xf32, #tpu.memory_space<vmem>>, %arg2: memref<48x32xbf16, #tpu.memory_space<vmem>>, %arg3: memref<1x32xf32, #tpu.memory_space<vmem>>, %arg4: memref<16x32xf32, #tpu.memory_space<vmem>>, %arg5: memref<2x3x32x32xbf16, #tpu.memory_space<vmem>>, %arg6: memref<2x3x1x32xf32, #tpu.memory_space<vmem>>, %arg7: memref<2x32x32xbf16, #tpu.memory_space<vmem>>, %arg8: memref<2x1x32xf32, #tpu.memory_space<vmem>>, %arg9: memref<2x2x32xf32, #tpu.memory_space<vmem>>, %arg10: memref<2x32x2048xbf16, #tpu.memory_space<vmem>>, %arg11: memref<2x1x2048xf32, #tpu.memory_space<vmem>>, %arg12: memref<2x32x2048xbf16, #tpu.memory_space<vmem>>, %arg13: memref<2x1x32xf32, #tpu.memory_space<vmem>>, %arg14: memref<2x2x32xf32, #tpu.memory_space<vmem>>, %arg15: memref<2x32xf32, #tpu.memory_space<vmem>>, %arg16: memref<32x128xbf16, #tpu.memory_space<vmem>>, %arg17: memref<1x128xf32, #tpu.memory_space<vmem>>, %arg18: memref<16x128xf32, #tpu.memory_space<vmem>>) attributes {dimension_semantics = [#tpu.dimension_semantics<parallel>], iteration_bounds = array<i64: 2>, scalar_prefetch = 0 : i64, scratch_operands = 0 : i64, tpu.core_type = #tpu.core_type<tc>, window_params = [{transform_indices = @transform_0, window_bounds = array<i64: 16, 48>}, {pipeline_mode = #tpu.pipeline_mode<synchronous>, transform_indices = @transform_1, window_bounds = array<i64: 48, 32>}, {pipeline_mode = #tpu.pipeline_mode<synchronous>, transform_indices = @transform_2, window_bounds = array<i64: 1, 32>}, {pipeline_mode = #tpu.pipeline_mode<synchronous>, transform_indices = @transform_3, window_bounds = array<i64: 16, 32>}, {pipeline_mode = #tpu.pipeline_mode<synchronous>, transform_indices = @transform_4, window_bounds = array<i64: 2, 3, 32, 32>}, {pipeline_mode = #tpu.pipeline_mode<synchronous>, transform_indices = @transform_5, window_bounds = array<i64: 2, 3, 1, 32>}, {pipeline_mode = #tpu.pipeline_mode<synchronous>, transform_indices = @transform_6, window_bounds = array<i64: 2, 32, 32>}, {pipeline_mode = #tpu.pipeline_mode<synchronous>, transform_indices = @transform_7, window_bounds = array<i64: 2, 1, 32>}, {pipeline_mode = #tpu.pipeline_mode<synchronous>, transform_indices = @transform_8, window_bounds = array<i64: 2, 2, 32>}, {pipeline_mode = #tpu.pipeline_mode<synchronous>, transform_indices = @transform_9, window_bounds = array<i64: 2, 32, 2048>}, {pipeline_mode = #tpu.pipeline_mode<synchronous>, transform_indices = @transform_10, window_bounds = array<i64: 2, 1, 2048>}, {pipeline_mode = #tpu.pipeline_mode<synchronous>, transform_indices = @transform_11, window_bounds = array<i64: 2, 32, 2048>}, {pipeline_mode = #tpu.pipeline_mode<synchronous>, transform_indices = @transform_12, window_bounds = array<i64: 2, 1, 32>}, {pipeline_mode = #tpu.pipeline_mode<synchronous>, transform_indices = @transform_13, window_bounds = array<i64: 2, 2, 32>}, {pipeline_mode = #tpu.pipeline_mode<synchronous>, transform_indices = @transform_14, window_bounds = array<i64: 2, 32>}, {pipeline_mode = #tpu.pipeline_mode<synchronous>, transform_indices = @transform_15, window_bounds = array<i64: 32, 128>}, {pipeline_mode = #tpu.pipeline_mode<synchronous>, transform_indices = @transform_16, window_bounds = array<i64: 1, 128>}, {transform_indices = @transform_17, window_bounds = array<i64: 16, 128>}]} {
    %c0 = arith.constant 0 : index
    %c0_0 = arith.constant 0 : index
    %0 = vector.load %arg1[%c0, %c0_0] : memref<16x48xf32, #tpu.memory_space<vmem>>, vector<16x48xf32>
    %1 = arith.truncf %0 : vector<16x48xf32> to vector<16x48xbf16>
    %c0_1 = arith.constant 0 : index
    %c0_2 = arith.constant 0 : index
    %2 = vector.load %arg2[%c0_1, %c0_2] : memref<48x32xbf16, #tpu.memory_space<vmem>>, vector<48x32xbf16>
    %cst = arith.constant dense<0.000000e+00> : vector<16x32xf32>
    %3 = tpu.matmul %1, %2, %cst {dimension_numbers = #tpu.dot_dimension_numbers<[1], [0], [0], [1], [0, 0, 1, 1], [], []>} : vector<16x48xbf16>, vector<48x32xbf16>, vector<16x32xf32> -> vector<16x32xf32>
    %c0_3 = arith.constant 0 : index
    %c0_4 = arith.constant 0 : index
    %4 = vector.load %arg3[%c0_3, %c0_4] : memref<1x32xf32, #tpu.memory_space<vmem>>, vector<1x32xf32>
    %5 = vector.broadcast %4 : vector<1x32xf32> to vector<16x32xf32>
    %6 = arith.addf %3, %5 : vector<16x32xf32>
    %c0_5 = arith.constant 0 : index
    %c0_6 = arith.constant 0 : index
    %7 = vector.load %arg4[%c0_5, %c0_6] : memref<16x32xf32, #tpu.memory_space<vmem>>, vector<16x32xf32>
    %8 = arith.addf %6, %7 : vector<16x32xf32>
    %9 = arith.truncf %8 : vector<16x32xf32> to vector<16x32xbf16>
    %c0_7 = arith.constant 0 : index
    %c0_8 = arith.constant 0 : index
    %c0_9 = arith.constant 0 : index
    %c0_10 = arith.constant 0 : index
    %10 = vector.load %arg5[%c0_7, %c0_8, %c0_9, %c0_10] : memref<2x3x32x32xbf16, #tpu.memory_space<vmem>>, vector<1x1x32x32xbf16>
    %11 = vector.shape_cast %10 : vector<1x1x32x32xbf16> to vector<32x32xbf16>
    %cst_11 = arith.constant dense<0.000000e+00> : vector<16x32xf32>
    %12 = tpu.matmul %9, %11, %cst_11 {dimension_numbers = #tpu.dot_dimension_numbers<[1], [0], [0], [1], [0, 0, 1, 1], [], []>} : vector<16x32xbf16>, vector<32x32xbf16>, vector<16x32xf32> -> vector<16x32xf32>
    %c0_12 = arith.constant 0 : index
    %c0_13 = arith.constant 0 : index
    %c0_14 = arith.constant 0 : index
    %c0_15 = arith.constant 0 : index
    %13 = vector.load %arg6[%c0_12, %c0_13, %c0_14, %c0_15] : memref<2x3x1x32xf32, #tpu.memory_space<vmem>>, vector<1x1x1x32xf32>
    %14 = vector.shape_cast %13 : vector<1x1x1x32xf32> to vector<1x32xf32>
    %15 = vector.broadcast %14 : vector<1x32xf32> to vector<16x32xf32>
    %16 = arith.addf %12, %15 : vector<16x32xf32>
    %c0_16 = arith.constant 0 : index
    %c1 = arith.constant 1 : index
    %c0_17 = arith.constant 0 : index
    %c0_18 = arith.constant 0 : index
    %17 = vector.load %arg5[%c0_16, %c1, %c0_17, %c0_18] : memref<2x3x32x32xbf16, #tpu.memory_space<vmem>>, vector<1x1x32x32xbf16>
    %18 = vector.shape_cast %17 : vector<1x1x32x32xbf16> to vector<32x32xbf16>
    %cst_19 = arith.constant dense<0.000000e+00> : vector<16x32xf32>
    %19 = tpu.matmul %9, %18, %cst_19 {dimension_numbers = #tpu.dot_dimension_numbers<[1], [0], [0], [1], [0, 0, 1, 1], [], []>} : vector<16x32xbf16>, vector<32x32xbf16>, vector<16x32xf32> -> vector<16x32xf32>
    %c0_20 = arith.constant 0 : index
    %c1_21 = arith.constant 1 : index
    %c0_22 = arith.constant 0 : index
    %c0_23 = arith.constant 0 : index
    %20 = vector.load %arg6[%c0_20, %c1_21, %c0_22, %c0_23] : memref<2x3x1x32xf32, #tpu.memory_space<vmem>>, vector<1x1x1x32xf32>
    %21 = vector.shape_cast %20 : vector<1x1x1x32xf32> to vector<1x32xf32>
    %22 = vector.broadcast %21 : vector<1x32xf32> to vector<16x32xf32>
    %23 = arith.addf %19, %22 : vector<16x32xf32>
    %c0_24 = arith.constant 0 : index
    %c2 = arith.constant 2 : index
    %c0_25 = arith.constant 0 : index
    %c0_26 = arith.constant 0 : index
    %24 = vector.load %arg5[%c0_24, %c2, %c0_25, %c0_26] : memref<2x3x32x32xbf16, #tpu.memory_space<vmem>>, vector<1x1x32x32xbf16>
    %25 = vector.shape_cast %24 : vector<1x1x32x32xbf16> to vector<32x32xbf16>
    %cst_27 = arith.constant dense<0.000000e+00> : vector<16x32xf32>
    %26 = tpu.matmul %9, %25, %cst_27 {dimension_numbers = #tpu.dot_dimension_numbers<[1], [0], [0], [1], [0, 0, 1, 1], [], []>} : vector<16x32xbf16>, vector<32x32xbf16>, vector<16x32xf32> -> vector<16x32xf32>
    %c0_28 = arith.constant 0 : index
    %c2_29 = arith.constant 2 : index
    %c0_30 = arith.constant 0 : index
    %c0_31 = arith.constant 0 : index
    %27 = vector.load %arg6[%c0_28, %c2_29, %c0_30, %c0_31] : memref<2x3x1x32xf32, #tpu.memory_space<vmem>>, vector<1x1x1x32xf32>
    %28 = vector.shape_cast %27 : vector<1x1x1x32xf32> to vector<1x32xf32>
    %29 = vector.broadcast %28 : vector<1x32xf32> to vector<16x32xf32>
    %30 = arith.addf %26, %29 : vector<16x32xf32>
    %31 = vector.shape_cast %16 : vector<16x32xf32> to vector<1x16x32xf32>
    %32 = vector.extract_strided_slice %31 {offsets = [0, 0, 0], sizes = [1, 16, 8], strides = [1, 1, 1]} : vector<1x16x32xf32> to vector<1x16x8xf32>
    %33 = vector.extract_strided_slice %31 {offsets = [0, 0, 8], sizes = [1, 16, 8], strides = [1, 1, 1]} : vector<1x16x32xf32> to vector<1x16x8xf32>
    %34 = vector.extract_strided_slice %31 {offsets = [0, 0, 16], sizes = [1, 16, 8], strides = [1, 1, 1]} : vector<1x16x32xf32> to vector<1x16x8xf32>
    %35 = vector.extract_strided_slice %31 {offsets = [0, 0, 24], sizes = [1, 16, 8], strides = [1, 1, 1]} : vector<1x16x32xf32> to vector<1x16x8xf32>
    %36 = vector.shape_cast %32 : vector<1x16x8xf32> to vector<1x1x16x8xf32>
    %37 = vector.shape_cast %33 : vector<1x16x8xf32> to vector<1x1x16x8xf32>
    %38 = vector.shape_cast %34 : vector<1x16x8xf32> to vector<1x1x16x8xf32>
    %39 = vector.shape_cast %35 : vector<1x16x8xf32> to vector<1x1x16x8xf32>
    %40 = tpu.concatenate %36, %37, %38, %39 in 0 : vector<1x1x16x8xf32>, vector<1x1x16x8xf32>, vector<1x1x16x8xf32>, vector<1x1x16x8xf32> -> vector<4x1x16x8xf32>
    %41 = vector.shape_cast %40 : vector<4x1x16x8xf32> to vector<4x16x8xf32>
    %42 = arith.truncf %41 : vector<4x16x8xf32> to vector<4x16x8xbf16>
    %43 = vector.shape_cast %23 : vector<16x32xf32> to vector<1x16x32xf32>
    %44 = vector.extract_strided_slice %43 {offsets = [0, 0, 0], sizes = [1, 16, 8], strides = [1, 1, 1]} : vector<1x16x32xf32> to vector<1x16x8xf32>
    %45 = vector.extract_strided_slice %43 {offsets = [0, 0, 8], sizes = [1, 16, 8], strides = [1, 1, 1]} : vector<1x16x32xf32> to vector<1x16x8xf32>
    %46 = vector.extract_strided_slice %43 {offsets = [0, 0, 16], sizes = [1, 16, 8], strides = [1, 1, 1]} : vector<1x16x32xf32> to vector<1x16x8xf32>
    %47 = vector.extract_strided_slice %43 {offsets = [0, 0, 24], sizes = [1, 16, 8], strides = [1, 1, 1]} : vector<1x16x32xf32> to vector<1x16x8xf32>
    %48 = vector.shape_cast %44 : vector<1x16x8xf32> to vector<1x1x16x8xf32>
    %49 = vector.shape_cast %45 : vector<1x16x8xf32> to vector<1x1x16x8xf32>
    %50 = vector.shape_cast %46 : vector<1x16x8xf32> to vector<1x1x16x8xf32>
    %51 = vector.shape_cast %47 : vector<1x16x8xf32> to vector<1x1x16x8xf32>
    %52 = tpu.concatenate %48, %49, %50, %51 in 0 : vector<1x1x16x8xf32>, vector<1x1x16x8xf32>, vector<1x1x16x8xf32>, vector<1x1x16x8xf32> -> vector<4x1x16x8xf32>
    %53 = vector.shape_cast %52 : vector<4x1x16x8xf32> to vector<4x16x8xf32>
    %54 = arith.truncf %53 : vector<4x16x8xf32> to vector<4x16x8xbf16>
    %55 = vector.shape_cast %30 : vector<16x32xf32> to vector<1x16x32xf32>
    %56 = vector.extract_strided_slice %55 {offsets = [0, 0, 0], sizes = [1, 16, 8], strides = [1, 1, 1]} : vector<1x16x32xf32> to vector<1x16x8xf32>
    %57 = vector.extract_strided_slice %55 {offsets = [0, 0, 8], sizes = [1, 16, 8], strides = [1, 1, 1]} : vector<1x16x32xf32> to vector<1x16x8xf32>
    %58 = vector.extract_strided_slice %55 {offsets = [0, 0, 16], sizes = [1, 16, 8], strides = [1, 1, 1]} : vector<1x16x32xf32> to vector<1x16x8xf32>
    %59 = vector.extract_strided_slice %55 {offsets = [0, 0, 24], sizes = [1, 16, 8], strides = [1, 1, 1]} : vector<1x16x32xf32> to vector<1x16x8xf32>
    %60 = vector.shape_cast %56 : vector<1x16x8xf32> to vector<1x1x16x8xf32>
    %61 = vector.shape_cast %57 : vector<1x16x8xf32> to vector<1x1x16x8xf32>
    %62 = vector.shape_cast %58 : vector<1x16x8xf32> to vector<1x1x16x8xf32>
    %63 = vector.shape_cast %59 : vector<1x16x8xf32> to vector<1x1x16x8xf32>
    %64 = tpu.concatenate %60, %61, %62, %63 in 0 : vector<1x1x16x8xf32>, vector<1x1x16x8xf32>, vector<1x1x16x8xf32>, vector<1x1x16x8xf32> -> vector<4x1x16x8xf32>
    %65 = vector.shape_cast %64 : vector<4x1x16x8xf32> to vector<4x16x8xf32>
    %66 = arith.truncf %65 : vector<4x16x8xf32> to vector<4x16x8xbf16>
    %cst_32 = arith.constant dense<0.000000e+00> : vector<4x16x16xf32>
    %67 = tpu.matmul %42, %54, %cst_32 {dimension_numbers = #tpu.dot_dimension_numbers<[2], [2], [1], [1], [0, 0, 0, 1, 1, 1], [0], [0]>} : vector<4x16x8xbf16>, vector<4x16x8xbf16>, vector<4x16x16xf32> -> vector<4x16x16xf32>
    %cst_33 = arith.constant 0.353553385 : f32
    %68 = vector.broadcast %cst_33 : f32 to vector<4x16x16xf32>
    %69 = arith.mulf %67, %68 : vector<4x16x16xf32>
    %cst_34 = arith.constant dense<0xFF800000> : vector<4x16xf32>
    %70 = vector.multi_reduction <maximumf>, %69, %cst_34 [2] : vector<4x16x16xf32> to vector<4x16xf32>
    %71 = vector.shape_cast %70 : vector<4x16xf32> to vector<4x16x1xf32>
    %72 = vector.broadcast %71 : vector<4x16x1xf32> to vector<4x16x16xf32>
    %73 = arith.subf %69, %72 : vector<4x16x16xf32>
    %74 = math.exp %73 : vector<4x16x16xf32>
    %cst_35 = arith.constant dense<0.000000e+00> : vector<4x16xf32>
    %75 = vector.multi_reduction <add>, %74, %cst_35 [2] : vector<4x16x16xf32> to vector<4x16xf32>
    %76 = vector.shape_cast %75 : vector<4x16xf32> to vector<4x16x1xf32>
    %77 = tpu.reciprocal %76 {approx = true} : vector<4x16x1xf32> -> vector<4x16x1xf32>
    %78 = vector.broadcast %77 : vector<4x16x1xf32> to vector<4x16x16xf32>
    %79 = arith.mulf %74, %78 : vector<4x16x16xf32>
    %80 = arith.truncf %79 : vector<4x16x16xf32> to vector<4x16x16xbf16>
    %cst_36 = arith.constant dense<0.000000e+00> : vector<4x16x8xf32>
    %81 = tpu.matmul %80, %66, %cst_36 {dimension_numbers = #tpu.dot_dimension_numbers<[2], [1], [1], [2], [0, 0, 0, 1, 1, 2], [0], [0]>} : vector<4x16x16xbf16>, vector<4x16x8xbf16>, vector<4x16x8xf32> -> vector<4x16x8xf32>
    %82 = vector.shape_cast %81 : vector<4x16x8xf32> to vector<4x1x16x8xf32>
    %83 = vector.extract_strided_slice %82 {offsets = [0, 0, 0, 0], sizes = [1, 1, 16, 8], strides = [1, 1, 1, 1]} : vector<4x1x16x8xf32> to vector<1x1x16x8xf32>
    %84 = vector.shape_cast %83 : vector<1x1x16x8xf32> to vector<1x16x8xf32>
    %85 = vector.extract_strided_slice %82 {offsets = [1, 0, 0, 0], sizes = [1, 1, 16, 8], strides = [1, 1, 1, 1]} : vector<4x1x16x8xf32> to vector<1x1x16x8xf32>
    %86 = vector.shape_cast %85 : vector<1x1x16x8xf32> to vector<1x16x8xf32>
    %87 = vector.extract_strided_slice %82 {offsets = [2, 0, 0, 0], sizes = [1, 1, 16, 8], strides = [1, 1, 1, 1]} : vector<4x1x16x8xf32> to vector<1x1x16x8xf32>
    %88 = vector.shape_cast %87 : vector<1x1x16x8xf32> to vector<1x16x8xf32>
    %89 = vector.extract_strided_slice %82 {offsets = [3, 0, 0, 0], sizes = [1, 1, 16, 8], strides = [1, 1, 1, 1]} : vector<4x1x16x8xf32> to vector<1x1x16x8xf32>
    %90 = vector.shape_cast %89 : vector<1x1x16x8xf32> to vector<1x16x8xf32>
    %91 = tpu.concatenate %84, %86, %88, %90 in 2 : vector<1x16x8xf32>, vector<1x16x8xf32>, vector<1x16x8xf32>, vector<1x16x8xf32> -> vector<1x16x32xf32>
    %92 = vector.shape_cast %91 : vector<1x16x32xf32> to vector<16x32xf32>
    %93 = arith.truncf %92 : vector<16x32xf32> to vector<16x32xbf16>
    %c0_37 = arith.constant 0 : index
    %c0_38 = arith.constant 0 : index
    %c0_39 = arith.constant 0 : index
    %94 = vector.load %arg7[%c0_37, %c0_38, %c0_39] : memref<2x32x32xbf16, #tpu.memory_space<vmem>>, vector<1x32x32xbf16>
    %95 = vector.shape_cast %94 : vector<1x32x32xbf16> to vector<32x32xbf16>
    %cst_40 = arith.constant dense<0.000000e+00> : vector<16x32xf32>
    %96 = tpu.matmul %93, %95, %cst_40 {dimension_numbers = #tpu.dot_dimension_numbers<[1], [0], [0], [1], [0, 0, 1, 1], [], []>} : vector<16x32xbf16>, vector<32x32xbf16>, vector<16x32xf32> -> vector<16x32xf32>
    %c0_41 = arith.constant 0 : index
    %c0_42 = arith.constant 0 : index
    %c0_43 = arith.constant 0 : index
    %97 = vector.load %arg8[%c0_41, %c0_42, %c0_43] : memref<2x1x32xf32, #tpu.memory_space<vmem>>, vector<1x1x32xf32>
    %98 = vector.shape_cast %97 : vector<1x1x32xf32> to vector<1x32xf32>
    %99 = vector.broadcast %98 : vector<1x32xf32> to vector<16x32xf32>
    %100 = arith.addf %96, %99 : vector<16x32xf32>
    %101 = arith.addf %8, %100 : vector<16x32xf32>
    %c0_44 = arith.constant 0 : index
    %c0_45 = arith.constant 0 : index
    %c0_46 = arith.constant 0 : index
    %102 = vector.load %arg9[%c0_44, %c0_45, %c0_46] : memref<2x2x32xf32, #tpu.memory_space<vmem>>, vector<1x1x32xf32>
    %103 = vector.shape_cast %102 : vector<1x1x32xf32> to vector<1x32xf32>
    %c0_47 = arith.constant 0 : index
    %c1_48 = arith.constant 1 : index
    %c0_49 = arith.constant 0 : index
    %104 = vector.load %arg9[%c0_47, %c1_48, %c0_49] : memref<2x2x32xf32, #tpu.memory_space<vmem>>, vector<1x1x32xf32>
    %105 = vector.shape_cast %104 : vector<1x1x32xf32> to vector<1x32xf32>
    %cst_50 = arith.constant dense<0.000000e+00> : vector<16xf32>
    %106 = vector.multi_reduction <add>, %101, %cst_50 [1] : vector<16x32xf32> to vector<16xf32>
    %107 = vector.shape_cast %106 : vector<16xf32> to vector<16x1xf32>
    %cst_51 = arith.constant 3.200000e+01 : f32
    %108 = vector.broadcast %cst_51 : f32 to vector<16x1xf32>
    %109 = arith.divf %107, %108 : vector<16x1xf32>
    %110 = vector.broadcast %109 : vector<16x1xf32> to vector<16x32xf32>
    %111 = arith.subf %101, %110 : vector<16x32xf32>
    %112 = arith.mulf %111, %111 : vector<16x32xf32>
    %cst_52 = arith.constant dense<0.000000e+00> : vector<16xf32>
    %113 = vector.multi_reduction <add>, %112, %cst_52 [1] : vector<16x32xf32> to vector<16xf32>
    %114 = vector.shape_cast %113 : vector<16xf32> to vector<16x1xf32>
    %cst_53 = arith.constant 3.200000e+01 : f32
    %115 = vector.broadcast %cst_53 : f32 to vector<16x1xf32>
    %116 = arith.divf %114, %115 : vector<16x1xf32>
    %117 = vector.broadcast %109 : vector<16x1xf32> to vector<16x32xf32>
    %118 = arith.subf %101, %117 : vector<16x32xf32>
    %cst_54 = arith.constant 9.99999974E-6 : f32
    %119 = vector.broadcast %cst_54 : f32 to vector<16x1xf32>
    %120 = arith.addf %116, %119 : vector<16x1xf32>
    %121 = math.rsqrt %120 : vector<16x1xf32>
    %122 = vector.broadcast %121 : vector<16x1xf32> to vector<16x32xf32>
    %123 = arith.mulf %118, %122 : vector<16x32xf32>
    %124 = vector.broadcast %103 : vector<1x32xf32> to vector<16x32xf32>
    %125 = arith.mulf %123, %124 : vector<16x32xf32>
    %126 = vector.broadcast %105 : vector<1x32xf32> to vector<16x32xf32>
    %127 = arith.addf %125, %126 : vector<16x32xf32>
    %128 = arith.truncf %127 : vector<16x32xf32> to vector<16x32xbf16>
    %cst_55 = arith.constant 0.000000e+00 : f32
    %129 = vector.broadcast %cst_55 : f32 to vector<16x32xf32>
    %c0_i32 = arith.constant 0 : i32
    %c256_i32 = arith.constant 256 : i32
    %130 = arith.muli %c0_i32, %c256_i32 : i32
    %131 = tpu.assume_multiple %130, 256 : i32
    %c0_56 = arith.constant 0 : index
    %c0_57 = arith.constant 0 : index
    %132 = arith.index_cast %131 : i32 to index
    %133 = vector.load %arg10[%c0_56, %c0_57, %132] : memref<2x32x2048xbf16, #tpu.memory_space<vmem>>, vector<1x32x256xbf16>
    %134 = vector.shape_cast %133 : vector<1x32x256xbf16> to vector<32x256xbf16>
    %cst_58 = arith.constant dense<0.000000e+00> : vector<16x256xf32>
    %135 = tpu.matmul %128, %134, %cst_58 {dimension_numbers = #tpu.dot_dimension_numbers<[1], [0], [0], [1], [0, 0, 1, 1], [], []>} : vector<16x32xbf16>, vector<32x256xbf16>, vector<16x256xf32> -> vector<16x256xf32>
    %c0_59 = arith.constant 0 : index
    %c0_60 = arith.constant 0 : index
    %136 = arith.index_cast %131 : i32 to index
    %137 = vector.load %arg11[%c0_59, %c0_60, %136] : memref<2x1x2048xf32, #tpu.memory_space<vmem>>, vector<1x1x256xf32>
    %138 = vector.shape_cast %137 : vector<1x1x256xf32> to vector<1x256xf32>
    %139 = vector.broadcast %138 : vector<1x256xf32> to vector<16x256xf32>
    %140 = arith.addf %135, %139 : vector<16x256xf32>
    %cst_61 = arith.constant 0.000000e+00 : f32
    %141 = vector.broadcast %cst_61 : f32 to vector<16x256xf32>
    %142 = arith.maximumf %140, %141 : vector<16x256xf32>
    %143 = arith.truncf %142 : vector<16x256xf32> to vector<16x256xbf16>
    %c0_62 = arith.constant 0 : index
    %c0_63 = arith.constant 0 : index
    %144 = arith.index_cast %131 : i32 to index
    %145 = vector.load %arg12[%c0_62, %c0_63, %144] : memref<2x32x2048xbf16, #tpu.memory_space<vmem>>, vector<1x32x256xbf16>
    %146 = vector.shape_cast %145 : vector<1x32x256xbf16> to vector<32x256xbf16>
    %cst_64 = arith.constant dense<0.000000e+00> : vector<16x32xf32>
    %147 = tpu.matmul %143, %146, %cst_64 {dimension_numbers = #tpu.dot_dimension_numbers<[1], [1], [0], [0], [0, 0, 1, 0], [], []>} : vector<16x256xbf16>, vector<32x256xbf16>, vector<16x32xf32> -> vector<16x32xf32>
    %148 = arith.addf %129, %147 : vector<16x32xf32>
    %c1_i32 = arith.constant 1 : i32
    %c256_i32_65 = arith.constant 256 : i32
    %149 = arith.muli %c1_i32, %c256_i32_65 : i32
    %150 = tpu.assume_multiple %149, 256 : i32
    %c0_66 = arith.constant 0 : index
    %c0_67 = arith.constant 0 : index
    %151 = arith.index_cast %150 : i32 to index
    %152 = vector.load %arg10[%c0_66, %c0_67, %151] : memref<2x32x2048xbf16, #tpu.memory_space<vmem>>, vector<1x32x256xbf16>
    %153 = vector.shape_cast %152 : vector<1x32x256xbf16> to vector<32x256xbf16>
    %cst_68 = arith.constant dense<0.000000e+00> : vector<16x256xf32>
    %154 = tpu.matmul %128, %153, %cst_68 {dimension_numbers = #tpu.dot_dimension_numbers<[1], [0], [0], [1], [0, 0, 1, 1], [], []>} : vector<16x32xbf16>, vector<32x256xbf16>, vector<16x256xf32> -> vector<16x256xf32>
    %c0_69 = arith.constant 0 : index
    %c0_70 = arith.constant 0 : index
    %155 = arith.index_cast %150 : i32 to index
    %156 = vector.load %arg11[%c0_69, %c0_70, %155] : memref<2x1x2048xf32, #tpu.memory_space<vmem>>, vector<1x1x256xf32>
    %157 = vector.shape_cast %156 : vector<1x1x256xf32> to vector<1x256xf32>
    %158 = vector.broadcast %157 : vector<1x256xf32> to vector<16x256xf32>
    %159 = arith.addf %154, %158 : vector<16x256xf32>
    %cst_71 = arith.constant 0.000000e+00 : f32
    %160 = vector.broadcast %cst_71 : f32 to vector<16x256xf32>
    %161 = arith.maximumf %159, %160 : vector<16x256xf32>
    %162 = arith.truncf %161 : vector<16x256xf32> to vector<16x256xbf16>
    %c0_72 = arith.constant 0 : index
    %c0_73 = arith.constant 0 : index
    %163 = arith.index_cast %150 : i32 to index
    %164 = vector.load %arg12[%c0_72, %c0_73, %163] : memref<2x32x2048xbf16, #tpu.memory_space<vmem>>, vector<1x32x256xbf16>
    %165 = vector.shape_cast %164 : vector<1x32x256xbf16> to vector<32x256xbf16>
    %cst_74 = arith.constant dense<0.000000e+00> : vector<16x32xf32>
    %166 = tpu.matmul %162, %165, %cst_74 {dimension_numbers = #tpu.dot_dimension_numbers<[1], [1], [0], [0], [0, 0, 1, 0], [], []>} : vector<16x256xbf16>, vector<32x256xbf16>, vector<16x32xf32> -> vector<16x32xf32>
    %167 = arith.addf %148, %166 : vector<16x32xf32>
    %c2_i32 = arith.constant 2 : i32
    %c256_i32_75 = arith.constant 256 : i32
    %168 = arith.muli %c2_i32, %c256_i32_75 : i32
    %169 = tpu.assume_multiple %168, 256 : i32
    %c0_76 = arith.constant 0 : index
    %c0_77 = arith.constant 0 : index
    %170 = arith.index_cast %169 : i32 to index
    %171 = vector.load %arg10[%c0_76, %c0_77, %170] : memref<2x32x2048xbf16, #tpu.memory_space<vmem>>, vector<1x32x256xbf16>
    %172 = vector.shape_cast %171 : vector<1x32x256xbf16> to vector<32x256xbf16>
    %cst_78 = arith.constant dense<0.000000e+00> : vector<16x256xf32>
    %173 = tpu.matmul %128, %172, %cst_78 {dimension_numbers = #tpu.dot_dimension_numbers<[1], [0], [0], [1], [0, 0, 1, 1], [], []>} : vector<16x32xbf16>, vector<32x256xbf16>, vector<16x256xf32> -> vector<16x256xf32>
    %c0_79 = arith.constant 0 : index
    %c0_80 = arith.constant 0 : index
    %174 = arith.index_cast %169 : i32 to index
    %175 = vector.load %arg11[%c0_79, %c0_80, %174] : memref<2x1x2048xf32, #tpu.memory_space<vmem>>, vector<1x1x256xf32>
    %176 = vector.shape_cast %175 : vector<1x1x256xf32> to vector<1x256xf32>
    %177 = vector.broadcast %176 : vector<1x256xf32> to vector<16x256xf32>
    %178 = arith.addf %173, %177 : vector<16x256xf32>
    %cst_81 = arith.constant 0.000000e+00 : f32
    %179 = vector.broadcast %cst_81 : f32 to vector<16x256xf32>
    %180 = arith.maximumf %178, %179 : vector<16x256xf32>
    %181 = arith.truncf %180 : vector<16x256xf32> to vector<16x256xbf16>
    %c0_82 = arith.constant 0 : index
    %c0_83 = arith.constant 0 : index
    %182 = arith.index_cast %169 : i32 to index
    %183 = vector.load %arg12[%c0_82, %c0_83, %182] : memref<2x32x2048xbf16, #tpu.memory_space<vmem>>, vector<1x32x256xbf16>
    %184 = vector.shape_cast %183 : vector<1x32x256xbf16> to vector<32x256xbf16>
    %cst_84 = arith.constant dense<0.000000e+00> : vector<16x32xf32>
    %185 = tpu.matmul %181, %184, %cst_84 {dimension_numbers = #tpu.dot_dimension_numbers<[1], [1], [0], [0], [0, 0, 1, 0], [], []>} : vector<16x256xbf16>, vector<32x256xbf16>, vector<16x32xf32> -> vector<16x32xf32>
    %186 = arith.addf %167, %185 : vector<16x32xf32>
    %c3_i32 = arith.constant 3 : i32
    %c256_i32_85 = arith.constant 256 : i32
    %187 = arith.muli %c3_i32, %c256_i32_85 : i32
    %188 = tpu.assume_multiple %187, 256 : i32
    %c0_86 = arith.constant 0 : index
    %c0_87 = arith.constant 0 : index
    %189 = arith.index_cast %188 : i32 to index
    %190 = vector.load %arg10[%c0_86, %c0_87, %189] : memref<2x32x2048xbf16, #tpu.memory_space<vmem>>, vector<1x32x256xbf16>
    %191 = vector.shape_cast %190 : vector<1x32x256xbf16> to vector<32x256xbf16>
    %cst_88 = arith.constant dense<0.000000e+00> : vector<16x256xf32>
    %192 = tpu.matmul %128, %191, %cst_88 {dimension_numbers = #tpu.dot_dimension_numbers<[1], [0], [0], [1], [0, 0, 1, 1], [], []>} : vector<16x32xbf16>, vector<32x256xbf16>, vector<16x256xf32> -> vector<16x256xf32>
    %c0_89 = arith.constant 0 : index
    %c0_90 = arith.constant 0 : index
    %193 = arith.index_cast %188 : i32 to index
    %194 = vector.load %arg11[%c0_89, %c0_90, %193] : memref<2x1x2048xf32, #tpu.memory_space<vmem>>, vector<1x1x256xf32>
    %195 = vector.shape_cast %194 : vector<1x1x256xf32> to vector<1x256xf32>
    %196 = vector.broadcast %195 : vector<1x256xf32> to vector<16x256xf32>
    %197 = arith.addf %192, %196 : vector<16x256xf32>
    %cst_91 = arith.constant 0.000000e+00 : f32
    %198 = vector.broadcast %cst_91 : f32 to vector<16x256xf32>
    %199 = arith.maximumf %197, %198 : vector<16x256xf32>
    %200 = arith.truncf %199 : vector<16x256xf32> to vector<16x256xbf16>
    %c0_92 = arith.constant 0 : index
    %c0_93 = arith.constant 0 : index
    %201 = arith.index_cast %188 : i32 to index
    %202 = vector.load %arg12[%c0_92, %c0_93, %201] : memref<2x32x2048xbf16, #tpu.memory_space<vmem>>, vector<1x32x256xbf16>
    %203 = vector.shape_cast %202 : vector<1x32x256xbf16> to vector<32x256xbf16>
    %cst_94 = arith.constant dense<0.000000e+00> : vector<16x32xf32>
    %204 = tpu.matmul %200, %203, %cst_94 {dimension_numbers = #tpu.dot_dimension_numbers<[1], [1], [0], [0], [0, 0, 1, 0], [], []>} : vector<16x256xbf16>, vector<32x256xbf16>, vector<16x32xf32> -> vector<16x32xf32>
    %205 = arith.addf %186, %204 : vector<16x32xf32>
    %c4_i32 = arith.constant 4 : i32
    %c256_i32_95 = arith.constant 256 : i32
    %206 = arith.muli %c4_i32, %c256_i32_95 : i32
    %207 = tpu.assume_multiple %206, 256 : i32
    %c0_96 = arith.constant 0 : index
    %c0_97 = arith.constant 0 : index
    %208 = arith.index_cast %207 : i32 to index
    %209 = vector.load %arg10[%c0_96, %c0_97, %208] : memref<2x32x2048xbf16, #tpu.memory_space<vmem>>, vector<1x32x256xbf16>
    %210 = vector.shape_cast %209 : vector<1x32x256xbf16> to vector<32x256xbf16>
    %cst_98 = arith.constant dense<0.000000e+00> : vector<16x256xf32>
    %211 = tpu.matmul %128, %210, %cst_98 {dimension_numbers = #tpu.dot_dimension_numbers<[1], [0], [0], [1], [0, 0, 1, 1], [], []>} : vector<16x32xbf16>, vector<32x256xbf16>, vector<16x256xf32> -> vector<16x256xf32>
    %c0_99 = arith.constant 0 : index
    %c0_100 = arith.constant 0 : index
    %212 = arith.index_cast %207 : i32 to index
    %213 = vector.load %arg11[%c0_99, %c0_100, %212] : memref<2x1x2048xf32, #tpu.memory_space<vmem>>, vector<1x1x256xf32>
    %214 = vector.shape_cast %213 : vector<1x1x256xf32> to vector<1x256xf32>
    %215 = vector.broadcast %214 : vector<1x256xf32> to vector<16x256xf32>
    %216 = arith.addf %211, %215 : vector<16x256xf32>
    %cst_101 = arith.constant 0.000000e+00 : f32
    %217 = vector.broadcast %cst_101 : f32 to vector<16x256xf32>
    %218 = arith.maximumf %216, %217 : vector<16x256xf32>
    %219 = arith.truncf %218 : vector<16x256xf32> to vector<16x256xbf16>
    %c0_102 = arith.constant 0 : index
    %c0_103 = arith.constant 0 : index
    %220 = arith.index_cast %207 : i32 to index
    %221 = vector.load %arg12[%c0_102, %c0_103, %220] : memref<2x32x2048xbf16, #tpu.memory_space<vmem>>, vector<1x32x256xbf16>
    %222 = vector.shape_cast %221 : vector<1x32x256xbf16> to vector<32x256xbf16>
    %cst_104 = arith.constant dense<0.000000e+00> : vector<16x32xf32>
    %223 = tpu.matmul %219, %222, %cst_104 {dimension_numbers = #tpu.dot_dimension_numbers<[1], [1], [0], [0], [0, 0, 1, 0], [], []>} : vector<16x256xbf16>, vector<32x256xbf16>, vector<16x32xf32> -> vector<16x32xf32>
    %224 = arith.addf %205, %223 : vector<16x32xf32>
    %c5_i32 = arith.constant 5 : i32
    %c256_i32_105 = arith.constant 256 : i32
    %225 = arith.muli %c5_i32, %c256_i32_105 : i32
    %226 = tpu.assume_multiple %225, 256 : i32
    %c0_106 = arith.constant 0 : index
    %c0_107 = arith.constant 0 : index
    %227 = arith.index_cast %226 : i32 to index
    %228 = vector.load %arg10[%c0_106, %c0_107, %227] : memref<2x32x2048xbf16, #tpu.memory_space<vmem>>, vector<1x32x256xbf16>
    %229 = vector.shape_cast %228 : vector<1x32x256xbf16> to vector<32x256xbf16>
    %cst_108 = arith.constant dense<0.000000e+00> : vector<16x256xf32>
    %230 = tpu.matmul %128, %229, %cst_108 {dimension_numbers = #tpu.dot_dimension_numbers<[1], [0], [0], [1], [0, 0, 1, 1], [], []>} : vector<16x32xbf16>, vector<32x256xbf16>, vector<16x256xf32> -> vector<16x256xf32>
    %c0_109 = arith.constant 0 : index
    %c0_110 = arith.constant 0 : index
    %231 = arith.index_cast %226 : i32 to index
    %232 = vector.load %arg11[%c0_109, %c0_110, %231] : memref<2x1x2048xf32, #tpu.memory_space<vmem>>, vector<1x1x256xf32>
    %233 = vector.shape_cast %232 : vector<1x1x256xf32> to vector<1x256xf32>
    %234 = vector.broadcast %233 : vector<1x256xf32> to vector<16x256xf32>
    %235 = arith.addf %230, %234 : vector<16x256xf32>
    %cst_111 = arith.constant 0.000000e+00 : f32
    %236 = vector.broadcast %cst_111 : f32 to vector<16x256xf32>
    %237 = arith.maximumf %235, %236 : vector<16x256xf32>
    %238 = arith.truncf %237 : vector<16x256xf32> to vector<16x256xbf16>
    %c0_112 = arith.constant 0 : index
    %c0_113 = arith.constant 0 : index
    %239 = arith.index_cast %226 : i32 to index
    %240 = vector.load %arg12[%c0_112, %c0_113, %239] : memref<2x32x2048xbf16, #tpu.memory_space<vmem>>, vector<1x32x256xbf16>
    %241 = vector.shape_cast %240 : vector<1x32x256xbf16> to vector<32x256xbf16>
    %cst_114 = arith.constant dense<0.000000e+00> : vector<16x32xf32>
    %242 = tpu.matmul %238, %241, %cst_114 {dimension_numbers = #tpu.dot_dimension_numbers<[1], [1], [0], [0], [0, 0, 1, 0], [], []>} : vector<16x256xbf16>, vector<32x256xbf16>, vector<16x32xf32> -> vector<16x32xf32>
    %243 = arith.addf %224, %242 : vector<16x32xf32>
    %c6_i32 = arith.constant 6 : i32
    %c256_i32_115 = arith.constant 256 : i32
    %244 = arith.muli %c6_i32, %c256_i32_115 : i32
    %245 = tpu.assume_multiple %244, 256 : i32
    %c0_116 = arith.constant 0 : index
    %c0_117 = arith.constant 0 : index
    %246 = arith.index_cast %245 : i32 to index
    %247 = vector.load %arg10[%c0_116, %c0_117, %246] : memref<2x32x2048xbf16, #tpu.memory_space<vmem>>, vector<1x32x256xbf16>
    %248 = vector.shape_cast %247 : vector<1x32x256xbf16> to vector<32x256xbf16>
    %cst_118 = arith.constant dense<0.000000e+00> : vector<16x256xf32>
    %249 = tpu.matmul %128, %248, %cst_118 {dimension_numbers = #tpu.dot_dimension_numbers<[1], [0], [0], [1], [0, 0, 1, 1], [], []>} : vector<16x32xbf16>, vector<32x256xbf16>, vector<16x256xf32> -> vector<16x256xf32>
    %c0_119 = arith.constant 0 : index
    %c0_120 = arith.constant 0 : index
    %250 = arith.index_cast %245 : i32 to index
    %251 = vector.load %arg11[%c0_119, %c0_120, %250] : memref<2x1x2048xf32, #tpu.memory_space<vmem>>, vector<1x1x256xf32>
    %252 = vector.shape_cast %251 : vector<1x1x256xf32> to vector<1x256xf32>
    %253 = vector.broadcast %252 : vector<1x256xf32> to vector<16x256xf32>
    %254 = arith.addf %249, %253 : vector<16x256xf32>
    %cst_121 = arith.constant 0.000000e+00 : f32
    %255 = vector.broadcast %cst_121 : f32 to vector<16x256xf32>
    %256 = arith.maximumf %254, %255 : vector<16x256xf32>
    %257 = arith.truncf %256 : vector<16x256xf32> to vector<16x256xbf16>
    %c0_122 = arith.constant 0 : index
    %c0_123 = arith.constant 0 : index
    %258 = arith.index_cast %245 : i32 to index
    %259 = vector.load %arg12[%c0_122, %c0_123, %258] : memref<2x32x2048xbf16, #tpu.memory_space<vmem>>, vector<1x32x256xbf16>
    %260 = vector.shape_cast %259 : vector<1x32x256xbf16> to vector<32x256xbf16>
    %cst_124 = arith.constant dense<0.000000e+00> : vector<16x32xf32>
    %261 = tpu.matmul %257, %260, %cst_124 {dimension_numbers = #tpu.dot_dimension_numbers<[1], [1], [0], [0], [0, 0, 1, 0], [], []>} : vector<16x256xbf16>, vector<32x256xbf16>, vector<16x32xf32> -> vector<16x32xf32>
    %262 = arith.addf %243, %261 : vector<16x32xf32>
    %c7_i32 = arith.constant 7 : i32
    %c256_i32_125 = arith.constant 256 : i32
    %263 = arith.muli %c7_i32, %c256_i32_125 : i32
    %264 = tpu.assume_multiple %263, 256 : i32
    %c0_126 = arith.constant 0 : index
    %c0_127 = arith.constant 0 : index
    %265 = arith.index_cast %264 : i32 to index
    %266 = vector.load %arg10[%c0_126, %c0_127, %265] : memref<2x32x2048xbf16, #tpu.memory_space<vmem>>, vector<1x32x256xbf16>
    %267 = vector.shape_cast %266 : vector<1x32x256xbf16> to vector<32x256xbf16>
    %cst_128 = arith.constant dense<0.000000e+00> : vector<16x256xf32>
    %268 = tpu.matmul %128, %267, %cst_128 {dimension_numbers = #tpu.dot_dimension_numbers<[1], [0], [0], [1], [0, 0, 1, 1], [], []>} : vector<16x32xbf16>, vector<32x256xbf16>, vector<16x256xf32> -> vector<16x256xf32>
    %c0_129 = arith.constant 0 : index
    %c0_130 = arith.constant 0 : index
    %269 = arith.index_cast %264 : i32 to index
    %270 = vector.load %arg11[%c0_129, %c0_130, %269] : memref<2x1x2048xf32, #tpu.memory_space<vmem>>, vector<1x1x256xf32>
    %271 = vector.shape_cast %270 : vector<1x1x256xf32> to vector<1x256xf32>
    %272 = vector.broadcast %271 : vector<1x256xf32> to vector<16x256xf32>
    %273 = arith.addf %268, %272 : vector<16x256xf32>
    %cst_131 = arith.constant 0.000000e+00 : f32
    %274 = vector.broadcast %cst_131 : f32 to vector<16x256xf32>
    %275 = arith.maximumf %273, %274 : vector<16x256xf32>
    %276 = arith.truncf %275 : vector<16x256xf32> to vector<16x256xbf16>
    %c0_132 = arith.constant 0 : index
    %c0_133 = arith.constant 0 : index
    %277 = arith.index_cast %264 : i32 to index
    %278 = vector.load %arg12[%c0_132, %c0_133, %277] : memref<2x32x2048xbf16, #tpu.memory_space<vmem>>, vector<1x32x256xbf16>
    %279 = vector.shape_cast %278 : vector<1x32x256xbf16> to vector<32x256xbf16>
    %cst_134 = arith.constant dense<0.000000e+00> : vector<16x32xf32>
    %280 = tpu.matmul %276, %279, %cst_134 {dimension_numbers = #tpu.dot_dimension_numbers<[1], [1], [0], [0], [0, 0, 1, 0], [], []>} : vector<16x256xbf16>, vector<32x256xbf16>, vector<16x32xf32> -> vector<16x32xf32>
    %281 = arith.addf %262, %280 : vector<16x32xf32>
    %c8_i32 = arith.constant 8 : i32
    %c0_135 = arith.constant 0 : index
    %c0_136 = arith.constant 0 : index
    %c0_137 = arith.constant 0 : index
    %282 = vector.load %arg13[%c0_135, %c0_136, %c0_137] : memref<2x1x32xf32, #tpu.memory_space<vmem>>, vector<1x1x32xf32>
    %283 = vector.shape_cast %282 : vector<1x1x32xf32> to vector<1x32xf32>
    %284 = vector.broadcast %283 : vector<1x32xf32> to vector<16x32xf32>
    %285 = arith.addf %281, %284 : vector<16x32xf32>
    %286 = arith.addf %127, %285 : vector<16x32xf32>
    %c0_138 = arith.constant 0 : index
    %c0_139 = arith.constant 0 : index
    %c0_140 = arith.constant 0 : index
    %287 = vector.load %arg14[%c0_138, %c0_139, %c0_140] : memref<2x2x32xf32, #tpu.memory_space<vmem>>, vector<1x1x32xf32>
    %288 = vector.shape_cast %287 : vector<1x1x32xf32> to vector<1x32xf32>
    %c0_141 = arith.constant 0 : index
    %c1_142 = arith.constant 1 : index
    %c0_143 = arith.constant 0 : index
    %289 = vector.load %arg14[%c0_141, %c1_142, %c0_143] : memref<2x2x32xf32, #tpu.memory_space<vmem>>, vector<1x1x32xf32>
    %290 = vector.shape_cast %289 : vector<1x1x32xf32> to vector<1x32xf32>
    %cst_144 = arith.constant dense<0.000000e+00> : vector<16xf32>
    %291 = vector.multi_reduction <add>, %286, %cst_144 [1] : vector<16x32xf32> to vector<16xf32>
    %292 = vector.shape_cast %291 : vector<16xf32> to vector<16x1xf32>
    %cst_145 = arith.constant 3.200000e+01 : f32
    %293 = vector.broadcast %cst_145 : f32 to vector<16x1xf32>
    %294 = arith.divf %292, %293 : vector<16x1xf32>
    %295 = vector.broadcast %294 : vector<16x1xf32> to vector<16x32xf32>
    %296 = arith.subf %286, %295 : vector<16x32xf32>
    %297 = arith.mulf %296, %296 : vector<16x32xf32>
    %cst_146 = arith.constant dense<0.000000e+00> : vector<16xf32>
    %298 = vector.multi_reduction <add>, %297, %cst_146 [1] : vector<16x32xf32> to vector<16xf32>
    %299 = vector.shape_cast %298 : vector<16xf32> to vector<16x1xf32>
    %cst_147 = arith.constant 3.200000e+01 : f32
    %300 = vector.broadcast %cst_147 : f32 to vector<16x1xf32>
    %301 = arith.divf %299, %300 : vector<16x1xf32>
    %302 = vector.broadcast %294 : vector<16x1xf32> to vector<16x32xf32>
    %303 = arith.subf %286, %302 : vector<16x32xf32>
    %cst_148 = arith.constant 9.99999974E-6 : f32
    %304 = vector.broadcast %cst_148 : f32 to vector<16x1xf32>
    %305 = arith.addf %301, %304 : vector<16x1xf32>
    %306 = math.rsqrt %305 : vector<16x1xf32>
    %307 = vector.broadcast %306 : vector<16x1xf32> to vector<16x32xf32>
    %308 = arith.mulf %303, %307 : vector<16x32xf32>
    %309 = vector.broadcast %288 : vector<1x32xf32> to vector<16x32xf32>
    %310 = arith.mulf %308, %309 : vector<16x32xf32>
    %311 = vector.broadcast %290 : vector<1x32xf32> to vector<16x32xf32>
    %312 = arith.addf %310, %311 : vector<16x32xf32>
    %313 = arith.truncf %312 : vector<16x32xf32> to vector<16x32xbf16>
    %c1_149 = arith.constant 1 : index
    %c0_150 = arith.constant 0 : index
    %c0_151 = arith.constant 0 : index
    %c0_152 = arith.constant 0 : index
    %314 = vector.load %arg5[%c1_149, %c0_150, %c0_151, %c0_152] : memref<2x3x32x32xbf16, #tpu.memory_space<vmem>>, vector<1x1x32x32xbf16>
    %315 = vector.shape_cast %314 : vector<1x1x32x32xbf16> to vector<32x32xbf16>
    %cst_153 = arith.constant dense<0.000000e+00> : vector<16x32xf32>
    %316 = tpu.matmul %313, %315, %cst_153 {dimension_numbers = #tpu.dot_dimension_numbers<[1], [0], [0], [1], [0, 0, 1, 1], [], []>} : vector<16x32xbf16>, vector<32x32xbf16>, vector<16x32xf32> -> vector<16x32xf32>
    %c1_154 = arith.constant 1 : index
    %c0_155 = arith.constant 0 : index
    %c0_156 = arith.constant 0 : index
    %c0_157 = arith.constant 0 : index
    %317 = vector.load %arg6[%c1_154, %c0_155, %c0_156, %c0_157] : memref<2x3x1x32xf32, #tpu.memory_space<vmem>>, vector<1x1x1x32xf32>
    %318 = vector.shape_cast %317 : vector<1x1x1x32xf32> to vector<1x32xf32>
    %319 = vector.broadcast %318 : vector<1x32xf32> to vector<16x32xf32>
    %320 = arith.addf %316, %319 : vector<16x32xf32>
    %c1_158 = arith.constant 1 : index
    %c1_159 = arith.constant 1 : index
    %c0_160 = arith.constant 0 : index
    %c0_161 = arith.constant 0 : index
    %321 = vector.load %arg5[%c1_158, %c1_159, %c0_160, %c0_161] : memref<2x3x32x32xbf16, #tpu.memory_space<vmem>>, vector<1x1x32x32xbf16>
    %322 = vector.shape_cast %321 : vector<1x1x32x32xbf16> to vector<32x32xbf16>
    %cst_162 = arith.constant dense<0.000000e+00> : vector<16x32xf32>
    %323 = tpu.matmul %313, %322, %cst_162 {dimension_numbers = #tpu.dot_dimension_numbers<[1], [0], [0], [1], [0, 0, 1, 1], [], []>} : vector<16x32xbf16>, vector<32x32xbf16>, vector<16x32xf32> -> vector<16x32xf32>
    %c1_163 = arith.constant 1 : index
    %c1_164 = arith.constant 1 : index
    %c0_165 = arith.constant 0 : index
    %c0_166 = arith.constant 0 : index
    %324 = vector.load %arg6[%c1_163, %c1_164, %c0_165, %c0_166] : memref<2x3x1x32xf32, #tpu.memory_space<vmem>>, vector<1x1x1x32xf32>
    %325 = vector.shape_cast %324 : vector<1x1x1x32xf32> to vector<1x32xf32>
    %326 = vector.broadcast %325 : vector<1x32xf32> to vector<16x32xf32>
    %327 = arith.addf %323, %326 : vector<16x32xf32>
    %c1_167 = arith.constant 1 : index
    %c2_168 = arith.constant 2 : index
    %c0_169 = arith.constant 0 : index
    %c0_170 = arith.constant 0 : index
    %328 = vector.load %arg5[%c1_167, %c2_168, %c0_169, %c0_170] : memref<2x3x32x32xbf16, #tpu.memory_space<vmem>>, vector<1x1x32x32xbf16>
    %329 = vector.shape_cast %328 : vector<1x1x32x32xbf16> to vector<32x32xbf16>
    %cst_171 = arith.constant dense<0.000000e+00> : vector<16x32xf32>
    %330 = tpu.matmul %313, %329, %cst_171 {dimension_numbers = #tpu.dot_dimension_numbers<[1], [0], [0], [1], [0, 0, 1, 1], [], []>} : vector<16x32xbf16>, vector<32x32xbf16>, vector<16x32xf32> -> vector<16x32xf32>
    %c1_172 = arith.constant 1 : index
    %c2_173 = arith.constant 2 : index
    %c0_174 = arith.constant 0 : index
    %c0_175 = arith.constant 0 : index
    %331 = vector.load %arg6[%c1_172, %c2_173, %c0_174, %c0_175] : memref<2x3x1x32xf32, #tpu.memory_space<vmem>>, vector<1x1x1x32xf32>
    %332 = vector.shape_cast %331 : vector<1x1x1x32xf32> to vector<1x32xf32>
    %333 = vector.broadcast %332 : vector<1x32xf32> to vector<16x32xf32>
    %334 = arith.addf %330, %333 : vector<16x32xf32>
    %335 = vector.shape_cast %320 : vector<16x32xf32> to vector<1x16x32xf32>
    %336 = vector.extract_strided_slice %335 {offsets = [0, 0, 0], sizes = [1, 16, 8], strides = [1, 1, 1]} : vector<1x16x32xf32> to vector<1x16x8xf32>
    %337 = vector.extract_strided_slice %335 {offsets = [0, 0, 8], sizes = [1, 16, 8], strides = [1, 1, 1]} : vector<1x16x32xf32> to vector<1x16x8xf32>
    %338 = vector.extract_strided_slice %335 {offsets = [0, 0, 16], sizes = [1, 16, 8], strides = [1, 1, 1]} : vector<1x16x32xf32> to vector<1x16x8xf32>
    %339 = vector.extract_strided_slice %335 {offsets = [0, 0, 24], sizes = [1, 16, 8], strides = [1, 1, 1]} : vector<1x16x32xf32> to vector<1x16x8xf32>
    %340 = vector.shape_cast %336 : vector<1x16x8xf32> to vector<1x1x16x8xf32>
    %341 = vector.shape_cast %337 : vector<1x16x8xf32> to vector<1x1x16x8xf32>
    %342 = vector.shape_cast %338 : vector<1x16x8xf32> to vector<1x1x16x8xf32>
    %343 = vector.shape_cast %339 : vector<1x16x8xf32> to vector<1x1x16x8xf32>
    %344 = tpu.concatenate %340, %341, %342, %343 in 0 : vector<1x1x16x8xf32>, vector<1x1x16x8xf32>, vector<1x1x16x8xf32>, vector<1x1x16x8xf32> -> vector<4x1x16x8xf32>
    %345 = vector.shape_cast %344 : vector<4x1x16x8xf32> to vector<4x16x8xf32>
    %346 = arith.truncf %345 : vector<4x16x8xf32> to vector<4x16x8xbf16>
    %347 = vector.shape_cast %327 : vector<16x32xf32> to vector<1x16x32xf32>
    %348 = vector.extract_strided_slice %347 {offsets = [0, 0, 0], sizes = [1, 16, 8], strides = [1, 1, 1]} : vector<1x16x32xf32> to vector<1x16x8xf32>
    %349 = vector.extract_strided_slice %347 {offsets = [0, 0, 8], sizes = [1, 16, 8], strides = [1, 1, 1]} : vector<1x16x32xf32> to vector<1x16x8xf32>
    %350 = vector.extract_strided_slice %347 {offsets = [0, 0, 16], sizes = [1, 16, 8], strides = [1, 1, 1]} : vector<1x16x32xf32> to vector<1x16x8xf32>
    %351 = vector.extract_strided_slice %347 {offsets = [0, 0, 24], sizes = [1, 16, 8], strides = [1, 1, 1]} : vector<1x16x32xf32> to vector<1x16x8xf32>
    %352 = vector.shape_cast %348 : vector<1x16x8xf32> to vector<1x1x16x8xf32>
    %353 = vector.shape_cast %349 : vector<1x16x8xf32> to vector<1x1x16x8xf32>
    %354 = vector.shape_cast %350 : vector<1x16x8xf32> to vector<1x1x16x8xf32>
    %355 = vector.shape_cast %351 : vector<1x16x8xf32> to vector<1x1x16x8xf32>
    %356 = tpu.concatenate %352, %353, %354, %355 in 0 : vector<1x1x16x8xf32>, vector<1x1x16x8xf32>, vector<1x1x16x8xf32>, vector<1x1x16x8xf32> -> vector<4x1x16x8xf32>
    %357 = vector.shape_cast %356 : vector<4x1x16x8xf32> to vector<4x16x8xf32>
    %358 = arith.truncf %357 : vector<4x16x8xf32> to vector<4x16x8xbf16>
    %359 = vector.shape_cast %334 : vector<16x32xf32> to vector<1x16x32xf32>
    %360 = vector.extract_strided_slice %359 {offsets = [0, 0, 0], sizes = [1, 16, 8], strides = [1, 1, 1]} : vector<1x16x32xf32> to vector<1x16x8xf32>
    %361 = vector.extract_strided_slice %359 {offsets = [0, 0, 8], sizes = [1, 16, 8], strides = [1, 1, 1]} : vector<1x16x32xf32> to vector<1x16x8xf32>
    %362 = vector.extract_strided_slice %359 {offsets = [0, 0, 16], sizes = [1, 16, 8], strides = [1, 1, 1]} : vector<1x16x32xf32> to vector<1x16x8xf32>
    %363 = vector.extract_strided_slice %359 {offsets = [0, 0, 24], sizes = [1, 16, 8], strides = [1, 1, 1]} : vector<1x16x32xf32> to vector<1x16x8xf32>
    %364 = vector.shape_cast %360 : vector<1x16x8xf32> to vector<1x1x16x8xf32>
    %365 = vector.shape_cast %361 : vector<1x16x8xf32> to vector<1x1x16x8xf32>
    %366 = vector.shape_cast %362 : vector<1x16x8xf32> to vector<1x1x16x8xf32>
    %367 = vector.shape_cast %363 : vector<1x16x8xf32> to vector<1x1x16x8xf32>
    %368 = tpu.concatenate %364, %365, %366, %367 in 0 : vector<1x1x16x8xf32>, vector<1x1x16x8xf32>, vector<1x1x16x8xf32>, vector<1x1x16x8xf32> -> vector<4x1x16x8xf32>
    %369 = vector.shape_cast %368 : vector<4x1x16x8xf32> to vector<4x16x8xf32>
    %370 = arith.truncf %369 : vector<4x16x8xf32> to vector<4x16x8xbf16>
    %cst_176 = arith.constant dense<0.000000e+00> : vector<4x16x16xf32>
    %371 = tpu.matmul %346, %358, %cst_176 {dimension_numbers = #tpu.dot_dimension_numbers<[2], [2], [1], [1], [0, 0, 0, 1, 1, 1], [0], [0]>} : vector<4x16x8xbf16>, vector<4x16x8xbf16>, vector<4x16x16xf32> -> vector<4x16x16xf32>
    %cst_177 = arith.constant 0.353553385 : f32
    %372 = vector.broadcast %cst_177 : f32 to vector<4x16x16xf32>
    %373 = arith.mulf %371, %372 : vector<4x16x16xf32>
    %cst_178 = arith.constant dense<0xFF800000> : vector<4x16xf32>
    %374 = vector.multi_reduction <maximumf>, %373, %cst_178 [2] : vector<4x16x16xf32> to vector<4x16xf32>
    %375 = vector.shape_cast %374 : vector<4x16xf32> to vector<4x16x1xf32>
    %376 = vector.broadcast %375 : vector<4x16x1xf32> to vector<4x16x16xf32>
    %377 = arith.subf %373, %376 : vector<4x16x16xf32>
    %378 = math.exp %377 : vector<4x16x16xf32>
    %cst_179 = arith.constant dense<0.000000e+00> : vector<4x16xf32>
    %379 = vector.multi_reduction <add>, %378, %cst_179 [2] : vector<4x16x16xf32> to vector<4x16xf32>
    %380 = vector.shape_cast %379 : vector<4x16xf32> to vector<4x16x1xf32>
    %381 = tpu.reciprocal %380 {approx = true} : vector<4x16x1xf32> -> vector<4x16x1xf32>
    %382 = vector.broadcast %381 : vector<4x16x1xf32> to vector<4x16x16xf32>
    %383 = arith.mulf %378, %382 : vector<4x16x16xf32>
    %384 = arith.truncf %383 : vector<4x16x16xf32> to vector<4x16x16xbf16>
    %cst_180 = arith.constant dense<0.000000e+00> : vector<4x16x8xf32>
    %385 = tpu.matmul %384, %370, %cst_180 {dimension_numbers = #tpu.dot_dimension_numbers<[2], [1], [1], [2], [0, 0, 0, 1, 1, 2], [0], [0]>} : vector<4x16x16xbf16>, vector<4x16x8xbf16>, vector<4x16x8xf32> -> vector<4x16x8xf32>
    %386 = vector.shape_cast %385 : vector<4x16x8xf32> to vector<4x1x16x8xf32>
    %387 = vector.extract_strided_slice %386 {offsets = [0, 0, 0, 0], sizes = [1, 1, 16, 8], strides = [1, 1, 1, 1]} : vector<4x1x16x8xf32> to vector<1x1x16x8xf32>
    %388 = vector.shape_cast %387 : vector<1x1x16x8xf32> to vector<1x16x8xf32>
    %389 = vector.extract_strided_slice %386 {offsets = [1, 0, 0, 0], sizes = [1, 1, 16, 8], strides = [1, 1, 1, 1]} : vector<4x1x16x8xf32> to vector<1x1x16x8xf32>
    %390 = vector.shape_cast %389 : vector<1x1x16x8xf32> to vector<1x16x8xf32>
    %391 = vector.extract_strided_slice %386 {offsets = [2, 0, 0, 0], sizes = [1, 1, 16, 8], strides = [1, 1, 1, 1]} : vector<4x1x16x8xf32> to vector<1x1x16x8xf32>
    %392 = vector.shape_cast %391 : vector<1x1x16x8xf32> to vector<1x16x8xf32>
    %393 = vector.extract_strided_slice %386 {offsets = [3, 0, 0, 0], sizes = [1, 1, 16, 8], strides = [1, 1, 1, 1]} : vector<4x1x16x8xf32> to vector<1x1x16x8xf32>
    %394 = vector.shape_cast %393 : vector<1x1x16x8xf32> to vector<1x16x8xf32>
    %395 = tpu.concatenate %388, %390, %392, %394 in 2 : vector<1x16x8xf32>, vector<1x16x8xf32>, vector<1x16x8xf32>, vector<1x16x8xf32> -> vector<1x16x32xf32>
    %396 = vector.shape_cast %395 : vector<1x16x32xf32> to vector<16x32xf32>
    %397 = arith.truncf %396 : vector<16x32xf32> to vector<16x32xbf16>
    %c1_181 = arith.constant 1 : index
    %c0_182 = arith.constant 0 : index
    %c0_183 = arith.constant 0 : index
    %398 = vector.load %arg7[%c1_181, %c0_182, %c0_183] : memref<2x32x32xbf16, #tpu.memory_space<vmem>>, vector<1x32x32xbf16>
    %399 = vector.shape_cast %398 : vector<1x32x32xbf16> to vector<32x32xbf16>
    %cst_184 = arith.constant dense<0.000000e+00> : vector<16x32xf32>
    %400 = tpu.matmul %397, %399, %cst_184 {dimension_numbers = #tpu.dot_dimension_numbers<[1], [0], [0], [1], [0, 0, 1, 1], [], []>} : vector<16x32xbf16>, vector<32x32xbf16>, vector<16x32xf32> -> vector<16x32xf32>
    %c1_185 = arith.constant 1 : index
    %c0_186 = arith.constant 0 : index
    %c0_187 = arith.constant 0 : index
    %401 = vector.load %arg8[%c1_185, %c0_186, %c0_187] : memref<2x1x32xf32, #tpu.memory_space<vmem>>, vector<1x1x32xf32>
    %402 = vector.shape_cast %401 : vector<1x1x32xf32> to vector<1x32xf32>
    %403 = vector.broadcast %402 : vector<1x32xf32> to vector<16x32xf32>
    %404 = arith.addf %400, %403 : vector<16x32xf32>
    %405 = arith.addf %312, %404 : vector<16x32xf32>
    %c1_188 = arith.constant 1 : index
    %c0_189 = arith.constant 0 : index
    %c0_190 = arith.constant 0 : index
    %406 = vector.load %arg9[%c1_188, %c0_189, %c0_190] : memref<2x2x32xf32, #tpu.memory_space<vmem>>, vector<1x1x32xf32>
    %407 = vector.shape_cast %406 : vector<1x1x32xf32> to vector<1x32xf32>
    %c1_191 = arith.constant 1 : index
    %c1_192 = arith.constant 1 : index
    %c0_193 = arith.constant 0 : index
    %408 = vector.load %arg9[%c1_191, %c1_192, %c0_193] : memref<2x2x32xf32, #tpu.memory_space<vmem>>, vector<1x1x32xf32>
    %409 = vector.shape_cast %408 : vector<1x1x32xf32> to vector<1x32xf32>
    %cst_194 = arith.constant dense<0.000000e+00> : vector<16xf32>
    %410 = vector.multi_reduction <add>, %405, %cst_194 [1] : vector<16x32xf32> to vector<16xf32>
    %411 = vector.shape_cast %410 : vector<16xf32> to vector<16x1xf32>
    %cst_195 = arith.constant 3.200000e+01 : f32
    %412 = vector.broadcast %cst_195 : f32 to vector<16x1xf32>
    %413 = arith.divf %411, %412 : vector<16x1xf32>
    %414 = vector.broadcast %413 : vector<16x1xf32> to vector<16x32xf32>
    %415 = arith.subf %405, %414 : vector<16x32xf32>
    %416 = arith.mulf %415, %415 : vector<16x32xf32>
    %cst_196 = arith.constant dense<0.000000e+00> : vector<16xf32>
    %417 = vector.multi_reduction <add>, %416, %cst_196 [1] : vector<16x32xf32> to vector<16xf32>
    %418 = vector.shape_cast %417 : vector<16xf32> to vector<16x1xf32>
    %cst_197 = arith.constant 3.200000e+01 : f32
    %419 = vector.broadcast %cst_197 : f32 to vector<16x1xf32>
    %420 = arith.divf %418, %419 : vector<16x1xf32>
    %421 = vector.broadcast %413 : vector<16x1xf32> to vector<16x32xf32>
    %422 = arith.subf %405, %421 : vector<16x32xf32>
    %cst_198 = arith.constant 9.99999974E-6 : f32
    %423 = vector.broadcast %cst_198 : f32 to vector<16x1xf32>
    %424 = arith.addf %420, %423 : vector<16x1xf32>
    %425 = math.rsqrt %424 : vector<16x1xf32>
    %426 = vector.broadcast %425 : vector<16x1xf32> to vector<16x32xf32>
    %427 = arith.mulf %422, %426 : vector<16x32xf32>
    %428 = vector.broadcast %407 : vector<1x32xf32> to vector<16x32xf32>
    %429 = arith.mulf %427, %428 : vector<16x32xf32>
    %430 = vector.broadcast %409 : vector<1x32xf32> to vector<16x32xf32>
    %431 = arith.addf %429, %430 : vector<16x32xf32>
    %432 = arith.truncf %431 : vector<16x32xf32> to vector<16x32xbf16>
    %cst_199 = arith.constant 0.000000e+00 : f32
    %433 = vector.broadcast %cst_199 : f32 to vector<16x32xf32>
    %c0_i32_200 = arith.constant 0 : i32
    %c256_i32_201 = arith.constant 256 : i32
    %434 = arith.muli %c0_i32_200, %c256_i32_201 : i32
    %435 = tpu.assume_multiple %434, 256 : i32
    %c1_202 = arith.constant 1 : index
    %c0_203 = arith.constant 0 : index
    %436 = arith.index_cast %435 : i32 to index
    %437 = vector.load %arg10[%c1_202, %c0_203, %436] : memref<2x32x2048xbf16, #tpu.memory_space<vmem>>, vector<1x32x256xbf16>
    %438 = vector.shape_cast %437 : vector<1x32x256xbf16> to vector<32x256xbf16>
    %cst_204 = arith.constant dense<0.000000e+00> : vector<16x256xf32>
    %439 = tpu.matmul %432, %438, %cst_204 {dimension_numbers = #tpu.dot_dimension_numbers<[1], [0], [0], [1], [0, 0, 1, 1], [], []>} : vector<16x32xbf16>, vector<32x256xbf16>, vector<16x256xf32> -> vector<16x256xf32>
    %c1_205 = arith.constant 1 : index
    %c0_206 = arith.constant 0 : index
    %440 = arith.index_cast %435 : i32 to index
    %441 = vector.load %arg11[%c1_205, %c0_206, %440] : memref<2x1x2048xf32, #tpu.memory_space<vmem>>, vector<1x1x256xf32>
    %442 = vector.shape_cast %441 : vector<1x1x256xf32> to vector<1x256xf32>
    %443 = vector.broadcast %442 : vector<1x256xf32> to vector<16x256xf32>
    %444 = arith.addf %439, %443 : vector<16x256xf32>
    %cst_207 = arith.constant 0.000000e+00 : f32
    %445 = vector.broadcast %cst_207 : f32 to vector<16x256xf32>
    %446 = arith.maximumf %444, %445 : vector<16x256xf32>
    %447 = arith.truncf %446 : vector<16x256xf32> to vector<16x256xbf16>
    %c1_208 = arith.constant 1 : index
    %c0_209 = arith.constant 0 : index
    %448 = arith.index_cast %435 : i32 to index
    %449 = vector.load %arg12[%c1_208, %c0_209, %448] : memref<2x32x2048xbf16, #tpu.memory_space<vmem>>, vector<1x32x256xbf16>
    %450 = vector.shape_cast %449 : vector<1x32x256xbf16> to vector<32x256xbf16>
    %cst_210 = arith.constant dense<0.000000e+00> : vector<16x32xf32>
    %451 = tpu.matmul %447, %450, %cst_210 {dimension_numbers = #tpu.dot_dimension_numbers<[1], [1], [0], [0], [0, 0, 1, 0], [], []>} : vector<16x256xbf16>, vector<32x256xbf16>, vector<16x32xf32> -> vector<16x32xf32>
    %452 = arith.addf %433, %451 : vector<16x32xf32>
    %c1_i32_211 = arith.constant 1 : i32
    %c256_i32_212 = arith.constant 256 : i32
    %453 = arith.muli %c1_i32_211, %c256_i32_212 : i32
    %454 = tpu.assume_multiple %453, 256 : i32
    %c1_213 = arith.constant 1 : index
    %c0_214 = arith.constant 0 : index
    %455 = arith.index_cast %454 : i32 to index
    %456 = vector.load %arg10[%c1_213, %c0_214, %455] : memref<2x32x2048xbf16, #tpu.memory_space<vmem>>, vector<1x32x256xbf16>
    %457 = vector.shape_cast %456 : vector<1x32x256xbf16> to vector<32x256xbf16>
    %cst_215 = arith.constant dense<0.000000e+00> : vector<16x256xf32>
    %458 = tpu.matmul %432, %457, %cst_215 {dimension_numbers = #tpu.dot_dimension_numbers<[1], [0], [0], [1], [0, 0, 1, 1], [], []>} : vector<16x32xbf16>, vector<32x256xbf16>, vector<16x256xf32> -> vector<16x256xf32>
    %c1_216 = arith.constant 1 : index
    %c0_217 = arith.constant 0 : index
    %459 = arith.index_cast %454 : i32 to index
    %460 = vector.load %arg11[%c1_216, %c0_217, %459] : memref<2x1x2048xf32, #tpu.memory_space<vmem>>, vector<1x1x256xf32>
    %461 = vector.shape_cast %460 : vector<1x1x256xf32> to vector<1x256xf32>
    %462 = vector.broadcast %461 : vector<1x256xf32> to vector<16x256xf32>
    %463 = arith.addf %458, %462 : vector<16x256xf32>
    %cst_218 = arith.constant 0.000000e+00 : f32
    %464 = vector.broadcast %cst_218 : f32 to vector<16x256xf32>
    %465 = arith.maximumf %463, %464 : vector<16x256xf32>
    %466 = arith.truncf %465 : vector<16x256xf32> to vector<16x256xbf16>
    %c1_219 = arith.constant 1 : index
    %c0_220 = arith.constant 0 : index
    %467 = arith.index_cast %454 : i32 to index
    %468 = vector.load %arg12[%c1_219, %c0_220, %467] : memref<2x32x2048xbf16, #tpu.memory_space<vmem>>, vector<1x32x256xbf16>
    %469 = vector.shape_cast %468 : vector<1x32x256xbf16> to vector<32x256xbf16>
    %cst_221 = arith.constant dense<0.000000e+00> : vector<16x32xf32>
    %470 = tpu.matmul %466, %469, %cst_221 {dimension_numbers = #tpu.dot_dimension_numbers<[1], [1], [0], [0], [0, 0, 1, 0], [], []>} : vector<16x256xbf16>, vector<32x256xbf16>, vector<16x32xf32> -> vector<16x32xf32>
    %471 = arith.addf %452, %470 : vector<16x32xf32>
    %c2_i32_222 = arith.constant 2 : i32
    %c256_i32_223 = arith.constant 256 : i32
    %472 = arith.muli %c2_i32_222, %c256_i32_223 : i32
    %473 = tpu.assume_multiple %472, 256 : i32
    %c1_224 = arith.constant 1 : index
    %c0_225 = arith.constant 0 : index
    %474 = arith.index_cast %473 : i32 to index
    %475 = vector.load %arg10[%c1_224, %c0_225, %474] : memref<2x32x2048xbf16, #tpu.memory_space<vmem>>, vector<1x32x256xbf16>
    %476 = vector.shape_cast %475 : vector<1x32x256xbf16> to vector<32x256xbf16>
    %cst_226 = arith.constant dense<0.000000e+00> : vector<16x256xf32>
    %477 = tpu.matmul %432, %476, %cst_226 {dimension_numbers = #tpu.dot_dimension_numbers<[1], [0], [0], [1], [0, 0, 1, 1], [], []>} : vector<16x32xbf16>, vector<32x256xbf16>, vector<16x256xf32> -> vector<16x256xf32>
    %c1_227 = arith.constant 1 : index
    %c0_228 = arith.constant 0 : index
    %478 = arith.index_cast %473 : i32 to index
    %479 = vector.load %arg11[%c1_227, %c0_228, %478] : memref<2x1x2048xf32, #tpu.memory_space<vmem>>, vector<1x1x256xf32>
    %480 = vector.shape_cast %479 : vector<1x1x256xf32> to vector<1x256xf32>
    %481 = vector.broadcast %480 : vector<1x256xf32> to vector<16x256xf32>
    %482 = arith.addf %477, %481 : vector<16x256xf32>
    %cst_229 = arith.constant 0.000000e+00 : f32
    %483 = vector.broadcast %cst_229 : f32 to vector<16x256xf32>
    %484 = arith.maximumf %482, %483 : vector<16x256xf32>
    %485 = arith.truncf %484 : vector<16x256xf32> to vector<16x256xbf16>
    %c1_230 = arith.constant 1 : index
    %c0_231 = arith.constant 0 : index
    %486 = arith.index_cast %473 : i32 to index
    %487 = vector.load %arg12[%c1_230, %c0_231, %486] : memref<2x32x2048xbf16, #tpu.memory_space<vmem>>, vector<1x32x256xbf16>
    %488 = vector.shape_cast %487 : vector<1x32x256xbf16> to vector<32x256xbf16>
    %cst_232 = arith.constant dense<0.000000e+00> : vector<16x32xf32>
    %489 = tpu.matmul %485, %488, %cst_232 {dimension_numbers = #tpu.dot_dimension_numbers<[1], [1], [0], [0], [0, 0, 1, 0], [], []>} : vector<16x256xbf16>, vector<32x256xbf16>, vector<16x32xf32> -> vector<16x32xf32>
    %490 = arith.addf %471, %489 : vector<16x32xf32>
    %c3_i32_233 = arith.constant 3 : i32
    %c256_i32_234 = arith.constant 256 : i32
    %491 = arith.muli %c3_i32_233, %c256_i32_234 : i32
    %492 = tpu.assume_multiple %491, 256 : i32
    %c1_235 = arith.constant 1 : index
    %c0_236 = arith.constant 0 : index
    %493 = arith.index_cast %492 : i32 to index
    %494 = vector.load %arg10[%c1_235, %c0_236, %493] : memref<2x32x2048xbf16, #tpu.memory_space<vmem>>, vector<1x32x256xbf16>
    %495 = vector.shape_cast %494 : vector<1x32x256xbf16> to vector<32x256xbf16>
    %cst_237 = arith.constant dense<0.000000e+00> : vector<16x256xf32>
    %496 = tpu.matmul %432, %495, %cst_237 {dimension_numbers = #tpu.dot_dimension_numbers<[1], [0], [0], [1], [0, 0, 1, 1], [], []>} : vector<16x32xbf16>, vector<32x256xbf16>, vector<16x256xf32> -> vector<16x256xf32>
    %c1_238 = arith.constant 1 : index
    %c0_239 = arith.constant 0 : index
    %497 = arith.index_cast %492 : i32 to index
    %498 = vector.load %arg11[%c1_238, %c0_239, %497] : memref<2x1x2048xf32, #tpu.memory_space<vmem>>, vector<1x1x256xf32>
    %499 = vector.shape_cast %498 : vector<1x1x256xf32> to vector<1x256xf32>
    %500 = vector.broadcast %499 : vector<1x256xf32> to vector<16x256xf32>
    %501 = arith.addf %496, %500 : vector<16x256xf32>
    %cst_240 = arith.constant 0.000000e+00 : f32
    %502 = vector.broadcast %cst_240 : f32 to vector<16x256xf32>
    %503 = arith.maximumf %501, %502 : vector<16x256xf32>
    %504 = arith.truncf %503 : vector<16x256xf32> to vector<16x256xbf16>
    %c1_241 = arith.constant 1 : index
    %c0_242 = arith.constant 0 : index
    %505 = arith.index_cast %492 : i32 to index
    %506 = vector.load %arg12[%c1_241, %c0_242, %505] : memref<2x32x2048xbf16, #tpu.memory_space<vmem>>, vector<1x32x256xbf16>
    %507 = vector.shape_cast %506 : vector<1x32x256xbf16> to vector<32x256xbf16>
    %cst_243 = arith.constant dense<0.000000e+00> : vector<16x32xf32>
    %508 = tpu.matmul %504, %507, %cst_243 {dimension_numbers = #tpu.dot_dimension_numbers<[1], [1], [0], [0], [0, 0, 1, 0], [], []>} : vector<16x256xbf16>, vector<32x256xbf16>, vector<16x32xf32> -> vector<16x32xf32>
    %509 = arith.addf %490, %508 : vector<16x32xf32>
    %c4_i32_244 = arith.constant 4 : i32
    %c256_i32_245 = arith.constant 256 : i32
    %510 = arith.muli %c4_i32_244, %c256_i32_245 : i32
    %511 = tpu.assume_multiple %510, 256 : i32
    %c1_246 = arith.constant 1 : index
    %c0_247 = arith.constant 0 : index
    %512 = arith.index_cast %511 : i32 to index
    %513 = vector.load %arg10[%c1_246, %c0_247, %512] : memref<2x32x2048xbf16, #tpu.memory_space<vmem>>, vector<1x32x256xbf16>
    %514 = vector.shape_cast %513 : vector<1x32x256xbf16> to vector<32x256xbf16>
    %cst_248 = arith.constant dense<0.000000e+00> : vector<16x256xf32>
    %515 = tpu.matmul %432, %514, %cst_248 {dimension_numbers = #tpu.dot_dimension_numbers<[1], [0], [0], [1], [0, 0, 1, 1], [], []>} : vector<16x32xbf16>, vector<32x256xbf16>, vector<16x256xf32> -> vector<16x256xf32>
    %c1_249 = arith.constant 1 : index
    %c0_250 = arith.constant 0 : index
    %516 = arith.index_cast %511 : i32 to index
    %517 = vector.load %arg11[%c1_249, %c0_250, %516] : memref<2x1x2048xf32, #tpu.memory_space<vmem>>, vector<1x1x256xf32>
    %518 = vector.shape_cast %517 : vector<1x1x256xf32> to vector<1x256xf32>
    %519 = vector.broadcast %518 : vector<1x256xf32> to vector<16x256xf32>
    %520 = arith.addf %515, %519 : vector<16x256xf32>
    %cst_251 = arith.constant 0.000000e+00 : f32
    %521 = vector.broadcast %cst_251 : f32 to vector<16x256xf32>
    %522 = arith.maximumf %520, %521 : vector<16x256xf32>
    %523 = arith.truncf %522 : vector<16x256xf32> to vector<16x256xbf16>
    %c1_252 = arith.constant 1 : index
    %c0_253 = arith.constant 0 : index
    %524 = arith.index_cast %511 : i32 to index
    %525 = vector.load %arg12[%c1_252, %c0_253, %524] : memref<2x32x2048xbf16, #tpu.memory_space<vmem>>, vector<1x32x256xbf16>
    %526 = vector.shape_cast %525 : vector<1x32x256xbf16> to vector<32x256xbf16>
    %cst_254 = arith.constant dense<0.000000e+00> : vector<16x32xf32>
    %527 = tpu.matmul %523, %526, %cst_254 {dimension_numbers = #tpu.dot_dimension_numbers<[1], [1], [0], [0], [0, 0, 1, 0], [], []>} : vector<16x256xbf16>, vector<32x256xbf16>, vector<16x32xf32> -> vector<16x32xf32>
    %528 = arith.addf %509, %527 : vector<16x32xf32>
    %c5_i32_255 = arith.constant 5 : i32
    %c256_i32_256 = arith.constant 256 : i32
    %529 = arith.muli %c5_i32_255, %c256_i32_256 : i32
    %530 = tpu.assume_multiple %529, 256 : i32
    %c1_257 = arith.constant 1 : index
    %c0_258 = arith.constant 0 : index
    %531 = arith.index_cast %530 : i32 to index
    %532 = vector.load %arg10[%c1_257, %c0_258, %531] : memref<2x32x2048xbf16, #tpu.memory_space<vmem>>, vector<1x32x256xbf16>
    %533 = vector.shape_cast %532 : vector<1x32x256xbf16> to vector<32x256xbf16>
    %cst_259 = arith.constant dense<0.000000e+00> : vector<16x256xf32>
    %534 = tpu.matmul %432, %533, %cst_259 {dimension_numbers = #tpu.dot_dimension_numbers<[1], [0], [0], [1], [0, 0, 1, 1], [], []>} : vector<16x32xbf16>, vector<32x256xbf16>, vector<16x256xf32> -> vector<16x256xf32>
    %c1_260 = arith.constant 1 : index
    %c0_261 = arith.constant 0 : index
    %535 = arith.index_cast %530 : i32 to index
    %536 = vector.load %arg11[%c1_260, %c0_261, %535] : memref<2x1x2048xf32, #tpu.memory_space<vmem>>, vector<1x1x256xf32>
    %537 = vector.shape_cast %536 : vector<1x1x256xf32> to vector<1x256xf32>
    %538 = vector.broadcast %537 : vector<1x256xf32> to vector<16x256xf32>
    %539 = arith.addf %534, %538 : vector<16x256xf32>
    %cst_262 = arith.constant 0.000000e+00 : f32
    %540 = vector.broadcast %cst_262 : f32 to vector<16x256xf32>
    %541 = arith.maximumf %539, %540 : vector<16x256xf32>
    %542 = arith.truncf %541 : vector<16x256xf32> to vector<16x256xbf16>
    %c1_263 = arith.constant 1 : index
    %c0_264 = arith.constant 0 : index
    %543 = arith.index_cast %530 : i32 to index
    %544 = vector.load %arg12[%c1_263, %c0_264, %543] : memref<2x32x2048xbf16, #tpu.memory_space<vmem>>, vector<1x32x256xbf16>
    %545 = vector.shape_cast %544 : vector<1x32x256xbf16> to vector<32x256xbf16>
    %cst_265 = arith.constant dense<0.000000e+00> : vector<16x32xf32>
    %546 = tpu.matmul %542, %545, %cst_265 {dimension_numbers = #tpu.dot_dimension_numbers<[1], [1], [0], [0], [0, 0, 1, 0], [], []>} : vector<16x256xbf16>, vector<32x256xbf16>, vector<16x32xf32> -> vector<16x32xf32>
    %547 = arith.addf %528, %546 : vector<16x32xf32>
    %c6_i32_266 = arith.constant 6 : i32
    %c256_i32_267 = arith.constant 256 : i32
    %548 = arith.muli %c6_i32_266, %c256_i32_267 : i32
    %549 = tpu.assume_multiple %548, 256 : i32
    %c1_268 = arith.constant 1 : index
    %c0_269 = arith.constant 0 : index
    %550 = arith.index_cast %549 : i32 to index
    %551 = vector.load %arg10[%c1_268, %c0_269, %550] : memref<2x32x2048xbf16, #tpu.memory_space<vmem>>, vector<1x32x256xbf16>
    %552 = vector.shape_cast %551 : vector<1x32x256xbf16> to vector<32x256xbf16>
    %cst_270 = arith.constant dense<0.000000e+00> : vector<16x256xf32>
    %553 = tpu.matmul %432, %552, %cst_270 {dimension_numbers = #tpu.dot_dimension_numbers<[1], [0], [0], [1], [0, 0, 1, 1], [], []>} : vector<16x32xbf16>, vector<32x256xbf16>, vector<16x256xf32> -> vector<16x256xf32>
    %c1_271 = arith.constant 1 : index
    %c0_272 = arith.constant 0 : index
    %554 = arith.index_cast %549 : i32 to index
    %555 = vector.load %arg11[%c1_271, %c0_272, %554] : memref<2x1x2048xf32, #tpu.memory_space<vmem>>, vector<1x1x256xf32>
    %556 = vector.shape_cast %555 : vector<1x1x256xf32> to vector<1x256xf32>
    %557 = vector.broadcast %556 : vector<1x256xf32> to vector<16x256xf32>
    %558 = arith.addf %553, %557 : vector<16x256xf32>
    %cst_273 = arith.constant 0.000000e+00 : f32
    %559 = vector.broadcast %cst_273 : f32 to vector<16x256xf32>
    %560 = arith.maximumf %558, %559 : vector<16x256xf32>
    %561 = arith.truncf %560 : vector<16x256xf32> to vector<16x256xbf16>
    %c1_274 = arith.constant 1 : index
    %c0_275 = arith.constant 0 : index
    %562 = arith.index_cast %549 : i32 to index
    %563 = vector.load %arg12[%c1_274, %c0_275, %562] : memref<2x32x2048xbf16, #tpu.memory_space<vmem>>, vector<1x32x256xbf16>
    %564 = vector.shape_cast %563 : vector<1x32x256xbf16> to vector<32x256xbf16>
    %cst_276 = arith.constant dense<0.000000e+00> : vector<16x32xf32>
    %565 = tpu.matmul %561, %564, %cst_276 {dimension_numbers = #tpu.dot_dimension_numbers<[1], [1], [0], [0], [0, 0, 1, 0], [], []>} : vector<16x256xbf16>, vector<32x256xbf16>, vector<16x32xf32> -> vector<16x32xf32>
    %566 = arith.addf %547, %565 : vector<16x32xf32>
    %c7_i32_277 = arith.constant 7 : i32
    %c256_i32_278 = arith.constant 256 : i32
    %567 = arith.muli %c7_i32_277, %c256_i32_278 : i32
    %568 = tpu.assume_multiple %567, 256 : i32
    %c1_279 = arith.constant 1 : index
    %c0_280 = arith.constant 0 : index
    %569 = arith.index_cast %568 : i32 to index
    %570 = vector.load %arg10[%c1_279, %c0_280, %569] : memref<2x32x2048xbf16, #tpu.memory_space<vmem>>, vector<1x32x256xbf16>
    %571 = vector.shape_cast %570 : vector<1x32x256xbf16> to vector<32x256xbf16>
    %cst_281 = arith.constant dense<0.000000e+00> : vector<16x256xf32>
    %572 = tpu.matmul %432, %571, %cst_281 {dimension_numbers = #tpu.dot_dimension_numbers<[1], [0], [0], [1], [0, 0, 1, 1], [], []>} : vector<16x32xbf16>, vector<32x256xbf16>, vector<16x256xf32> -> vector<16x256xf32>
    %c1_282 = arith.constant 1 : index
    %c0_283 = arith.constant 0 : index
    %573 = arith.index_cast %568 : i32 to index
    %574 = vector.load %arg11[%c1_282, %c0_283, %573] : memref<2x1x2048xf32, #tpu.memory_space<vmem>>, vector<1x1x256xf32>
    %575 = vector.shape_cast %574 : vector<1x1x256xf32> to vector<1x256xf32>
    %576 = vector.broadcast %575 : vector<1x256xf32> to vector<16x256xf32>
    %577 = arith.addf %572, %576 : vector<16x256xf32>
    %cst_284 = arith.constant 0.000000e+00 : f32
    %578 = vector.broadcast %cst_284 : f32 to vector<16x256xf32>
    %579 = arith.maximumf %577, %578 : vector<16x256xf32>
    %580 = arith.truncf %579 : vector<16x256xf32> to vector<16x256xbf16>
    %c1_285 = arith.constant 1 : index
    %c0_286 = arith.constant 0 : index
    %581 = arith.index_cast %568 : i32 to index
    %582 = vector.load %arg12[%c1_285, %c0_286, %581] : memref<2x32x2048xbf16, #tpu.memory_space<vmem>>, vector<1x32x256xbf16>
    %583 = vector.shape_cast %582 : vector<1x32x256xbf16> to vector<32x256xbf16>
    %cst_287 = arith.constant dense<0.000000e+00> : vector<16x32xf32>
    %584 = tpu.matmul %580, %583, %cst_287 {dimension_numbers = #tpu.dot_dimension_numbers<[1], [1], [0], [0], [0, 0, 1, 0], [], []>} : vector<16x256xbf16>, vector<32x256xbf16>, vector<16x32xf32> -> vector<16x32xf32>
    %585 = arith.addf %566, %584 : vector<16x32xf32>
    %c8_i32_288 = arith.constant 8 : i32
    %c1_289 = arith.constant 1 : index
    %c0_290 = arith.constant 0 : index
    %c0_291 = arith.constant 0 : index
    %586 = vector.load %arg13[%c1_289, %c0_290, %c0_291] : memref<2x1x32xf32, #tpu.memory_space<vmem>>, vector<1x1x32xf32>
    %587 = vector.shape_cast %586 : vector<1x1x32xf32> to vector<1x32xf32>
    %588 = vector.broadcast %587 : vector<1x32xf32> to vector<16x32xf32>
    %589 = arith.addf %585, %588 : vector<16x32xf32>
    %590 = arith.addf %431, %589 : vector<16x32xf32>
    %c1_292 = arith.constant 1 : index
    %c0_293 = arith.constant 0 : index
    %c0_294 = arith.constant 0 : index
    %591 = vector.load %arg14[%c1_292, %c0_293, %c0_294] : memref<2x2x32xf32, #tpu.memory_space<vmem>>, vector<1x1x32xf32>
    %592 = vector.shape_cast %591 : vector<1x1x32xf32> to vector<1x32xf32>
    %c1_295 = arith.constant 1 : index
    %c1_296 = arith.constant 1 : index
    %c0_297 = arith.constant 0 : index
    %593 = vector.load %arg14[%c1_295, %c1_296, %c0_297] : memref<2x2x32xf32, #tpu.memory_space<vmem>>, vector<1x1x32xf32>
    %594 = vector.shape_cast %593 : vector<1x1x32xf32> to vector<1x32xf32>
    %cst_298 = arith.constant dense<0.000000e+00> : vector<16xf32>
    %595 = vector.multi_reduction <add>, %590, %cst_298 [1] : vector<16x32xf32> to vector<16xf32>
    %596 = vector.shape_cast %595 : vector<16xf32> to vector<16x1xf32>
    %cst_299 = arith.constant 3.200000e+01 : f32
    %597 = vector.broadcast %cst_299 : f32 to vector<16x1xf32>
    %598 = arith.divf %596, %597 : vector<16x1xf32>
    %599 = vector.broadcast %598 : vector<16x1xf32> to vector<16x32xf32>
    %600 = arith.subf %590, %599 : vector<16x32xf32>
    %601 = arith.mulf %600, %600 : vector<16x32xf32>
    %cst_300 = arith.constant dense<0.000000e+00> : vector<16xf32>
    %602 = vector.multi_reduction <add>, %601, %cst_300 [1] : vector<16x32xf32> to vector<16xf32>
    %603 = vector.shape_cast %602 : vector<16xf32> to vector<16x1xf32>
    %cst_301 = arith.constant 3.200000e+01 : f32
    %604 = vector.broadcast %cst_301 : f32 to vector<16x1xf32>
    %605 = arith.divf %603, %604 : vector<16x1xf32>
    %606 = vector.broadcast %598 : vector<16x1xf32> to vector<16x32xf32>
    %607 = arith.subf %590, %606 : vector<16x32xf32>
    %cst_302 = arith.constant 9.99999974E-6 : f32
    %608 = vector.broadcast %cst_302 : f32 to vector<16x1xf32>
    %609 = arith.addf %605, %608 : vector<16x1xf32>
    %610 = math.rsqrt %609 : vector<16x1xf32>
    %611 = vector.broadcast %610 : vector<16x1xf32> to vector<16x32xf32>
    %612 = arith.mulf %607, %611 : vector<16x32xf32>
    %613 = vector.broadcast %592 : vector<1x32xf32> to vector<16x32xf32>
    %614 = arith.mulf %612, %613 : vector<16x32xf32>
    %615 = vector.broadcast %594 : vector<1x32xf32> to vector<16x32xf32>
    %616 = arith.addf %614, %615 : vector<16x32xf32>
    %c0_303 = arith.constant 0 : index
    %c0_304 = arith.constant 0 : index
    %617 = vector.load %arg15[%c0_303, %c0_304] : memref<2x32xf32, #tpu.memory_space<vmem>>, vector<1x32xf32>
    %c1_305 = arith.constant 1 : index
    %c0_306 = arith.constant 0 : index
    %618 = vector.load %arg15[%c1_305, %c0_306] : memref<2x32xf32, #tpu.memory_space<vmem>>, vector<1x32xf32>
    %cst_307 = arith.constant dense<0.000000e+00> : vector<16xf32>
    %619 = vector.multi_reduction <add>, %616, %cst_307 [1] : vector<16x32xf32> to vector<16xf32>
    %620 = vector.shape_cast %619 : vector<16xf32> to vector<16x1xf32>
    %cst_308 = arith.constant 3.200000e+01 : f32
    %621 = vector.broadcast %cst_308 : f32 to vector<16x1xf32>
    %622 = arith.divf %620, %621 : vector<16x1xf32>
    %623 = vector.broadcast %622 : vector<16x1xf32> to vector<16x32xf32>
    %624 = arith.subf %616, %623 : vector<16x32xf32>
    %625 = arith.mulf %624, %624 : vector<16x32xf32>
    %cst_309 = arith.constant dense<0.000000e+00> : vector<16xf32>
    %626 = vector.multi_reduction <add>, %625, %cst_309 [1] : vector<16x32xf32> to vector<16xf32>
    %627 = vector.shape_cast %626 : vector<16xf32> to vector<16x1xf32>
    %cst_310 = arith.constant 3.200000e+01 : f32
    %628 = vector.broadcast %cst_310 : f32 to vector<16x1xf32>
    %629 = arith.divf %627, %628 : vector<16x1xf32>
    %630 = vector.broadcast %622 : vector<16x1xf32> to vector<16x32xf32>
    %631 = arith.subf %616, %630 : vector<16x32xf32>
    %cst_311 = arith.constant 9.99999974E-6 : f32
    %632 = vector.broadcast %cst_311 : f32 to vector<16x1xf32>
    %633 = arith.addf %629, %632 : vector<16x1xf32>
    %634 = math.rsqrt %633 : vector<16x1xf32>
    %635 = vector.broadcast %634 : vector<16x1xf32> to vector<16x32xf32>
    %636 = arith.mulf %631, %635 : vector<16x32xf32>
    %637 = vector.broadcast %617 : vector<1x32xf32> to vector<16x32xf32>
    %638 = arith.mulf %636, %637 : vector<16x32xf32>
    %639 = vector.broadcast %618 : vector<1x32xf32> to vector<16x32xf32>
    %640 = arith.addf %638, %639 : vector<16x32xf32>
    %641 = arith.truncf %640 : vector<16x32xf32> to vector<16x32xbf16>
    %c0_312 = arith.constant 0 : index
    %c0_313 = arith.constant 0 : index
    %642 = vector.load %arg16[%c0_312, %c0_313] : memref<32x128xbf16, #tpu.memory_space<vmem>>, vector<32x128xbf16>
    %cst_314 = arith.constant dense<0.000000e+00> : vector<16x128xf32>
    %643 = tpu.matmul %641, %642, %cst_314 {dimension_numbers = #tpu.dot_dimension_numbers<[1], [0], [0], [1], [0, 0, 1, 1], [], []>} : vector<16x32xbf16>, vector<32x128xbf16>, vector<16x128xf32> -> vector<16x128xf32>
    %c0_315 = arith.constant 0 : index
    %c0_316 = arith.constant 0 : index
    %644 = vector.load %arg17[%c0_315, %c0_316] : memref<1x128xf32, #tpu.memory_space<vmem>>, vector<1x128xf32>
    %645 = vector.broadcast %644 : vector<1x128xf32> to vector<16x128xf32>
    %646 = arith.addf %643, %645 : vector<16x128xf32>
    %c0_317 = arith.constant 0 : index
    %c0_318 = arith.constant 0 : index
    %647 = vector.load %arg18[%c0_317, %c0_318] : memref<16x128xf32, #tpu.memory_space<vmem>>, vector<16x128xf32>
    tpu.vector_store %arg18[%c0_317, %c0_318], %646 {strides = array<i32>} : memref<16x128xf32, #tpu.memory_space<vmem>>, vector<16x128xf32>,
    return
  }
  func.func @transform_0(%arg0: i32) -> (i32, i32) {
    %c0_i32 = arith.constant 0 : i32
    %c0_i32_0 = arith.constant 0 : i32
    return %arg0, %c0_i32 : i32, i32
  }
  func.func @transform_1(%arg0: i32) -> (i32, i32) {
    %c0_i32 = arith.constant 0 : i32
    %c0_i32_0 = arith.constant 0 : i32
    %c0_i32_1 = arith.constant 0 : i32
    return %c0_i32, %c0_i32_0 : i32, i32
  }
  func.func @transform_2(%arg0: i32) -> (i32, i32) {
    %c0_i32 = arith.constant 0 : i32
    %c0_i32_0 = arith.constant 0 : i32
    %c0_i32_1 = arith.constant 0 : i32
    return %c0_i32, %c0_i32_0 : i32, i32
  }
  func.func @transform_3(%arg0: i32) -> (i32, i32) {
    %c0_i32 = arith.constant 0 : i32
    %c0_i32_0 = arith.constant 0 : i32
    %c0_i32_1 = arith.constant 0 : i32
    return %c0_i32, %c0_i32_0 : i32, i32
  }
  func.func @transform_4(%arg0: i32) -> (i32, i32, i32, i32) {
    %c0_i32 = arith.constant 0 : i32
    %c0_i32_0 = arith.constant 0 : i32
    %c0_i32_1 = arith.constant 0 : i32
    %c0_i32_2 = arith.constant 0 : i32
    %c0_i32_3 = arith.constant 0 : i32
    return %c0_i32, %c0_i32_0, %c0_i32_1, %c0_i32_2 : i32, i32, i32, i32
  }
  func.func @transform_5(%arg0: i32) -> (i32, i32, i32, i32) {
    %c0_i32 = arith.constant 0 : i32
    %c0_i32_0 = arith.constant 0 : i32
    %c0_i32_1 = arith.constant 0 : i32
    %c0_i32_2 = arith.constant 0 : i32
    %c0_i32_3 = arith.constant 0 : i32
    return %c0_i32, %c0_i32_0, %c0_i32_1, %c0_i32_2 : i32, i32, i32, i32
  }
  func.func @transform_6(%arg0: i32) -> (i32, i32, i32) {
    %c0_i32 = arith.constant 0 : i32
    %c0_i32_0 = arith.constant 0 : i32
    %c0_i32_1 = arith.constant 0 : i32
    %c0_i32_2 = arith.constant 0 : i32
    return %c0_i32, %c0_i32_0, %c0_i32_1 : i32, i32, i32
  }
  func.func @transform_7(%arg0: i32) -> (i32, i32, i32) {
    %c0_i32 = arith.constant 0 : i32
    %c0_i32_0 = arith.constant 0 : i32
    %c0_i32_1 = arith.constant 0 : i32
    %c0_i32_2 = arith.constant 0 : i32
    return %c0_i32, %c0_i32_0, %c0_i32_1 : i32, i32, i32
  }
  func.func @transform_8(%arg0: i32) -> (i32, i32, i32) {
    %c0_i32 = arith.constant 0 : i32
    %c0_i32_0 = arith.constant 0 : i32
    %c0_i32_1 = arith.constant 0 : i32
    %c0_i32_2 = arith.constant 0 : i32
    return %c0_i32, %c0_i32_0, %c0_i32_1 : i32, i32, i32
  }
  func.func @transform_9(%arg0: i32) -> (i32, i32, i32) {
    %c0_i32 = arith.constant 0 : i32
    %c0_i32_0 = arith.constant 0 : i32
    %c0_i32_1 = arith.constant 0 : i32
    %c0_i32_2 = arith.constant 0 : i32
    return %c0_i32, %c0_i32_0, %c0_i32_1 : i32, i32, i32
  }
  func.func @transform_10(%arg0: i32) -> (i32, i32, i32) {
    %c0_i32 = arith.constant 0 : i32
    %c0_i32_0 = arith.constant 0 : i32
    %c0_i32_1 = arith.constant 0 : i32
    %c0_i32_2 = arith.constant 0 : i32
    return %c0_i32, %c0_i32_0, %c0_i32_1 : i32, i32, i32
  }
  func.func @transform_11(%arg0: i32) -> (i32, i32, i32) {
    %c0_i32 = arith.constant 0 : i32
    %c0_i32_0 = arith.constant 0 : i32
    %c0_i32_1 = arith.constant 0 : i32
    %c0_i32_2 = arith.constant 0 : i32
    return %c0_i32, %c0_i32_0, %c0_i32_1 : i32, i32, i32
  }
  func.func @transform_12(%arg0: i32) -> (i32, i32, i32) {
    %c0_i32 = arith.constant 0 : i32
    %c0_i32_0 = arith.constant 0 : i32
    %c0_i32_1 = arith.constant 0 : i32
    %c0_i32_2 = arith.constant 0 : i32
    return %c0_i32, %c0_i32_0, %c0_i32_1 : i32, i32, i32
  }
  func.func @transform_13(%arg0: i32) -> (i32, i32, i32) {
    %c0_i32 = arith.constant 0 : i32
    %c0_i32_0 = arith.constant 0 : i32
    %c0_i32_1 = arith.constant 0 : i32
    %c0_i32_2 = arith.constant 0 : i32
    return %c0_i32, %c0_i32_0, %c0_i32_1 : i32, i32, i32
  }
  func.func @transform_14(%arg0: i32) -> (i32, i32) {
    %c0_i32 = arith.constant 0 : i32
    %c0_i32_0 = arith.constant 0 : i32
    %c0_i32_1 = arith.constant 0 : i32
    return %c0_i32, %c0_i32_0 : i32, i32
  }
  func.func @transform_15(%arg0: i32) -> (i32, i32) {
    %c0_i32 = arith.constant 0 : i32
    %c0_i32_0 = arith.constant 0 : i32
    %c0_i32_1 = arith.constant 0 : i32
    return %c0_i32, %c0_i32_0 : i32, i32
  }
  func.func @transform_16(%arg0: i32) -> (i32, i32) {
    %c0_i32 = arith.constant 0 : i32
    %c0_i32_0 = arith.constant 0 : i32
    %c0_i32_1 = arith.constant 0 : i32
    return %c0_i32, %c0_i32_0 : i32, i32
  }
  func.func @transform_17(%arg0: i32) -> (i32, i32) {
    %c0_i32 = arith.constant 0 : i32
    %c0_i32_0 = arith.constant 0 : i32
    return %arg0, %c0_i32 : i32, i32
  }
}

</mosaic_0001>

<llo_original>
// kernel: vit_diffusion_forward.1
$region0: #{vit_diffusion_forward.1}
  #allocation0 [shape = 'u32[]', space=smem, size = 0x4, offset = 0x4, fixed_abs, tag = 'smem constant byte address 0x4 - core index']
  #allocation1 [shape = 'u32[144,128]{1,0:T(1,128)}', space=vmem, size = 0x12000, scoped, tag = 'internal scratch']
  %s0 = inlined_call_operand.vmem [shape: f32[32,48], index: 0, kind: input, shape index: {}]
  %s1 = inlined_call_operand.vmem [shape: bf16[48,32], index: 1, kind: input, shape index: {}]
  %s2 = inlined_call_operand.vmem [shape: f32[1,32], index: 2, kind: input, shape index: {}]
  %s3 = inlined_call_operand.vmem [shape: f32[16,32], index: 3, kind: input, shape index: {}]
  %s4 = inlined_call_operand.vmem [shape: bf16[2,3,32,32], index: 4, kind: input, shape index: {}]
  %s5 = inlined_call_operand.vmem [shape: f32[2,3,1,32], index: 5, kind: input, shape index: {}]
  %s6 = inlined_call_operand.vmem [shape: bf16[2,32,32], index: 6, kind: input, shape index: {}]
  %s7 = inlined_call_operand.vmem [shape: f32[2,1,32], index: 7, kind: input, shape index: {}]
  %s8 = inlined_call_operand.vmem [shape: f32[2,2,32], index: 8, kind: input, shape index: {}, may-alias: {8,13}]
  %s9 = inlined_call_operand.vmem [shape: bf16[2,32,2048], index: 9, kind: input, shape index: {}]
  %s10 = inlined_call_operand.vmem [shape: f32[2,1,2048], index: 10, kind: input, shape index: {}]
  %s11 = inlined_call_operand.vmem [shape: bf16[2,32,2048], index: 11, kind: input, shape index: {}]
  %s12 = inlined_call_operand.vmem [shape: f32[2,1,32], index: 12, kind: input, shape index: {}]
  %s13 = inlined_call_operand.vmem [shape: f32[2,2,32], index: 13, kind: input, shape index: {}, may-alias: {8,13}]
  %s14 = inlined_call_operand.vmem [shape: f32[2,32], index: 14, kind: input, shape index: {}]
  %s15 = inlined_call_operand.vmem [shape: bf16[32,128], index: 15, kind: input, shape index: {}]
  %s16 = inlined_call_operand.vmem [shape: f32[1,128], index: 16, kind: input, shape index: {}]
  %s17 = inlined_call_operand.vmem [shape: f32[32,128], index: 17, kind: output, shape index: {}]
  %s18 = sld [smem:[#allocation0]]
  $region101: #{vit_diffusion_forward.1} parent=0
    _
  %s20 = ssub.s32 1, %s18
  %s21 = scalar_select 0, %s20, %s18
  loop: start=0, step=1, limit=4
  $region2: #{vit_diffusion_forward.1} parent=0 // loop_pre_header
    _
  $region3: #{vit_diffusion_forward.1} parent=0 // loop_header
    %s23 = sphi 0, %s27
    %p24 = scmp.ge.s32.totalorder %s23, 4
    %s33 = sphi 0, %s35
    %s36 = sphi 0, %s33
    %s37 = sphi 0, %s36
    %s53 = sphi 0, %s37
    %s57 = sphi 0, %s57
    %s59 = sphi 0, %s57
    %s60 = sphi 0, %s59
    %s74 = sphi 0, %s60
    %s78 = sphi 0, %s78
    %s80 = sphi 0, %s78
    %s81 = sphi 0, %s80
    %s95 = sphi 0, %s81
    %s99 = sphi 0, %s99
    %s101 = sphi 0, %s99
    %s102 = sphi 0, %s101
    %s116 = sphi 0, %s102
    %s120 = sphi 0, %s120
    %s122 = sphi 0, %s120
    %s123 = sphi 0, %s122
    %s137 = sphi 0, %s123
    %s141 = sphi 0, %s141
    %s143 = sphi 0, %s141
    %s144 = sphi 0, %s143
    %s158 = sphi 0, %s144
    %s162 = sphi 0, %s162
    %s164 = sphi 0, %s162
    %s165 = sphi 0, %s164
    %s179 = sphi 0, %s165
    %s183 = sphi 0, %s183
    %s185 = sphi 0, %s183
    %s186 = sphi 0, %s185
    %s200 = sphi 0, %s186
    %s204 = sphi 0, %s204
    %s206 = sphi 0, %s204
    %s207 = sphi 0, %s206
    %s221 = sphi 0, %s207
    %s225 = sphi 0, %s225
    %s227 = sphi 0, %s225
    %s228 = sphi 0, %s227
    %s242 = sphi 0, %s228
    %s246 = sphi 0, %s246
    %s248 = sphi 0, %s246
    %s249 = sphi 0, %s248
    %s263 = sphi 0, %s249
    %s267 = sphi 0, %s267
    %s269 = sphi 0, %s267
    %s270 = sphi 0, %s269
    %s284 = sphi 0, %s270
    %s288 = sphi 0, %s288
    %s290 = sphi 0, %s288
    %s291 = sphi 0, %s290
    %s305 = sphi 0, %s291
    %s309 = sphi 0, %s309
    %s311 = sphi 0, %s309
    %s312 = sphi 0, %s311
    %s326 = sphi 0, %s312
    %s330 = sphi 0, %s330
    %s332 = sphi 0, %s330
    %s333 = sphi 0, %s332
    %s347 = sphi 0, %s333
    %s351 = sphi 0, %s351
    %s353 = sphi 0, %s351
    %s354 = sphi 0, %s353
    %s368 = sphi 0, %s354
    %s372 = sphi 0, %s372
    %s374 = sphi 0, %s372
    %s375 = sphi 0, %s374
    %s389 = sphi 0, %s375
    %s395 = sphi 0, %s397
    %s398 = sphi 0, %s395
    %s399 = sphi 0, %s398
    %s415 = sphi 0, %s399
  $region4: #{vit_diffusion_forward.1} parent=0 // loop_header_branch
    %26 = sbr.rel (%p24) target = $region8
  $region5: #{vit_diffusion_forward.1} parent=0 // loop_body
    %s28 = ssub.s32 %s23, 1
    %s29 = ssub.s32 %s23, 2
    %s30 = sadd.s32 %s23, 1
    %s31 = ssub.s32 %s23, %s30
    %p32 = scmp.eq.s32.totalorder %s31, 0
    %s34 = sadd.s32 %s33, 1
    %s35 = scalar_select %p32, %s33, %s34
    %p38 = pneg %p32
    %p39 = scmp.eq.s32.totalorder %s23, 1
    %p40 = por %p38, %p39
    %p41 = scmp.ne.s32.totalorder %s33, %s36
    %p42 = scmp.eq.s32.totalorder %s23, 0
    %p43 = por %p41, %p42
    %p44 = scmp.ne.s32.totalorder %s33, %s36
    %p45 = scmp.eq.s32.totalorder %s28, 1
    %p46 = por %p44, %p45
    %p47 = scmp.ne.s32.totalorder %s36, %s37
    %p48 = scmp.eq.s32.totalorder %s28, 0
    %p49 = por %p47, %p48
    %p50 = scmp.ne.s32.totalorder %s36, %s37
    %p51 = scmp.eq.s32.totalorder %s29, 1
    %p52 = por %p50, %p51
    %p54 = scmp.ne.s32.totalorder %s37, %s53
    %p55 = scmp.eq.s32.totalorder %s29, 0
    %p56 = por %p54, %p55
    %s58 = sadd.s32 %s57, 1
    %p61 = scmp.eq.s32.totalorder %s23, 1
    %p62 = scmp.ne.s32.totalorder %s57, %s59
    %p63 = scmp.eq.s32.totalorder %s23, 0
    %p64 = por %p62, %p63
    %p65 = scmp.ne.s32.totalorder %s57, %s59
    %p66 = scmp.eq.s32.totalorder %s28, 1
    %p67 = por %p65, %p66
    %p68 = scmp.ne.s32.totalorder %s59, %s60
    %p69 = scmp.eq.s32.totalorder %s28, 0
    %p70 = por %p68, %p69
    %p71 = scmp.ne.s32.totalorder %s59, %s60
    %p72 = scmp.eq.s32.totalorder %s29, 1
    %p73 = por %p71, %p72
    %p75 = scmp.ne.s32.totalorder %s60, %s74
    %p76 = scmp.eq.s32.totalorder %s29, 0
    %p77 = por %p75, %p76
    %s79 = sadd.s32 %s78, 1
    %p82 = scmp.eq.s32.totalorder %s23, 1
    %p83 = scmp.ne.s32.totalorder %s78, %s80
    %p84 = scmp.eq.s32.totalorder %s23, 0
    %p85 = por %p83, %p84
    %p86 = scmp.ne.s32.totalorder %s78, %s80
    %p87 = scmp.eq.s32.totalorder %s28, 1
    %p88 = por %p86, %p87
    %p89 = scmp.ne.s32.totalorder %s80, %s81
    %p90 = scmp.eq.s32.totalorder %s28, 0
    %p91 = por %p89, %p90
    %p92 = scmp.ne.s32.totalorder %s80, %s81
    %p93 = scmp.eq.s32.totalorder %s29, 1
    %p94 = por %p92, %p93
    %p96 = scmp.ne.s32.totalorder %s81, %s95
    %p97 = scmp.eq.s32.totalorder %s29, 0
    %p98 = por %p96, %p97
    %s100 = sadd.s32 %s99, 1
    %p103 = scmp.eq.s32.totalorder %s23, 1
    %p104 = scmp.ne.s32.totalorder %s99, %s101
    %p105 = scmp.eq.s32.totalorder %s23, 0
    %p106 = por %p104, %p105
    %p107 = scmp.ne.s32.totalorder %s99, %s101
    %p108 = scmp.eq.s32.totalorder %s28, 1
    %p109 = por %p107, %p108
    %p110 = scmp.ne.s32.totalorder %s101, %s102
    %p111 = scmp.eq.s32.totalorder %s28, 0
    %p112 = por %p110, %p111
    %p113 = scmp.ne.s32.totalorder %s101, %s102
    %p114 = scmp.eq.s32.totalorder %s29, 1
    %p115 = por %p113, %p114
    %p117 = scmp.ne.s32.totalorder %s102, %s116
    %p118 = scmp.eq.s32.totalorder %s29, 0
    %p119 = por %p117, %p118
    %s121 = sadd.s32 %s120, 1
    %p124 = scmp.eq.s32.totalorder %s23, 1
    %p125 = scmp.ne.s32.totalorder %s120, %s122
    %p126 = scmp.eq.s32.totalorder %s23, 0
    %p127 = por %p125, %p126
    %p128 = scmp.ne.s32.totalorder %s120, %s122
    %p129 = scmp.eq.s32.totalorder %s28, 1
    %p130 = por %p128, %p129
    %p131 = scmp.ne.s32.totalorder %s122, %s123
    %p132 = scmp.eq.s32.totalorder %s28, 0
    %p133 = por %p131, %p132
    %p134 = scmp.ne.s32.totalorder %s122, %s123
    %p135 = scmp.eq.s32.totalorder %s29, 1
    %p136 = por %p134, %p135
    %p138 = scmp.ne.s32.totalorder %s123, %s137
    %p139 = scmp.eq.s32.totalorder %s29, 0
    %p140 = por %p138, %p139
    %s142 = sadd.s32 %s141, 1
    %p145 = scmp.eq.s32.totalorder %s23, 1
    %p146 = scmp.ne.s32.totalorder %s141, %s143
    %p147 = scmp.eq.s32.totalorder %s23, 0
    %p148 = por %p146, %p147
    %p149 = scmp.ne.s32.totalorder %s141, %s143
    %p150 = scmp.eq.s32.totalorder %s28, 1
    %p151 = por %p149, %p150
    %p152 = scmp.ne.s32.totalorder %s143, %s144
    %p153 = scmp.eq.s32.totalorder %s28, 0
    %p154 = por %p152, %p153
    %p155 = scmp.ne.s32.totalorder %s143, %s144
    %p156 = scmp.eq.s32.totalorder %s29, 1
    %p157 = por %p155, %p156
    %p159 = scmp.ne.s32.totalorder %s144, %s158
    %p160 = scmp.eq.s32.totalorder %s29, 0
    %p161 = por %p159, %p160
    %s163 = sadd.s32 %s162, 1
    %p166 = scmp.eq.s32.totalorder %s23, 1
    %p167 = scmp.ne.s32.totalorder %s162, %s164
    %p168 = scmp.eq.s32.totalorder %s23, 0
    %p169 = por %p167, %p168
    %p170 = scmp.ne.s32.totalorder %s162, %s164
    %p171 = scmp.eq.s32.totalorder %s28, 1
    %p172 = por %p170, %p171
    %p173 = scmp.ne.s32.totalorder %s164, %s165
    %p174 = scmp.eq.s32.totalorder %s28, 0
    %p175 = por %p173, %p174
    %p176 = scmp.ne.s32.totalorder %s164, %s165
    %p177 = scmp.eq.s32.totalorder %s29, 1
    %p178 = por %p176, %p177
    %p180 = scmp.ne.s32.totalorder %s165, %s179
    %p181 = scmp.eq.s32.totalorder %s29, 0
    %p182 = por %p180, %p181
    %s184 = sadd.s32 %s183, 1
    %p187 = scmp.eq.s32.totalorder %s23, 1
    %p188 = scmp.ne.s32.totalorder %s183, %s185
    %p189 = scmp.eq.s32.totalorder %s23, 0
    %p190 = por %p188, %p189
    %p191 = scmp.ne.s32.totalorder %s183, %s185
    %p192 = scmp.eq.s32.totalorder %s28, 1
    %p193 = por %p191, %p192
    %p194 = scmp.ne.s32.totalorder %s185, %s186
    %p195 = scmp.eq.s32.totalorder %s28, 0
    %p196 = por %p194, %p195
    %p197 = scmp.ne.s32.totalorder %s185, %s186
    %p198 = scmp.eq.s32.totalorder %s29, 1
    %p199 = por %p197, %p198
    %p201 = scmp.ne.s32.totalorder %s186, %s200
    %p202 = scmp.eq.s32.totalorder %s29, 0
    %p203 = por %p201, %p202
    %s205 = sadd.s32 %s204, 1
    %p208 = scmp.eq.s32.totalorder %s23, 1
    %p209 = scmp.ne.s32.totalorder %s204, %s206
    %p210 = scmp.eq.s32.totalorder %s23, 0
    %p211 = por %p209, %p210
    %p212 = scmp.ne.s32.totalorder %s204, %s206
    %p213 = scmp.eq.s32.totalorder %s28, 1
    %p214 = por %p212, %p213
    %p215 = scmp.ne.s32.totalorder %s206, %s207
    %p216 = scmp.eq.s32.totalorder %s28, 0
    %p217 = por %p215, %p216
    %p218 = scmp.ne.s32.totalorder %s206, %s207
    %p219 = scmp.eq.s32.totalorder %s29, 1
    %p220 = por %p218, %p219
    %p222 = scmp.ne.s32.totalorder %s207, %s221
    %p223 = scmp.eq.s32.totalorder %s29, 0
    %p224 = por %p222, %p223
    %s226 = sadd.s32 %s225, 1
    %p229 = scmp.eq.s32.totalorder %s23, 1
    %p230 = scmp.ne.s32.totalorder %s225, %s227
    %p231 = scmp.eq.s32.totalorder %s23, 0
    %p232 = por %p230, %p231
    %p233 = scmp.ne.s32.totalorder %s225, %s227
    %p234 = scmp.eq.s32.totalorder %s28, 1
    %p235 = por %p233, %p234
    %p236 = scmp.ne.s32.totalorder %s227, %s228
    %p237 = scmp.eq.s32.totalorder %s28, 0
    %p238 = por %p236, %p237
    %p239 = scmp.ne.s32.totalorder %s227, %s228
    %p240 = scmp.eq.s32.totalorder %s29, 1
    %p241 = por %p239, %p240
    %p243 = scmp.ne.s32.totalorder %s228, %s242
    %p244 = scmp.eq.s32.totalorder %s29, 0
    %p245 = por %p243, %p244
    %s247 = sadd.s32 %s246, 1
    %p250 = scmp.eq.s32.totalorder %s23, 1
    %p251 = scmp.ne.s32.totalorder %s246, %s248
    %p252 = scmp.eq.s32.totalorder %s23, 0
    %p253 = por %p251, %p252
    %p254 = scmp.ne.s32.totalorder %s246, %s248
    %p255 = scmp.eq.s32.totalorder %s28, 1
    %p256 = por %p254, %p255
    %p257 = scmp.ne.s32.totalorder %s248, %s249
    %p258 = scmp.eq.s32.totalorder %s28, 0
    %p259 = por %p257, %p258
    %p260 = scmp.ne.s32.totalorder %s248, %s249
    %p261 = scmp.eq.s32.totalorder %s29, 1
    %p262 = por %p260, %p261
    %p264 = scmp.ne.s32.totalorder %s249, %s263
    %p265 = scmp.eq.s32.totalorder %s29, 0
    %p266 = por %p264, %p265
    %s268 = sadd.s32 %s267, 1
    %p271 = scmp.eq.s32.totalorder %s23, 1
    %p272 = scmp.ne.s32.totalorder %s267, %s269
    %p273 = scmp.eq.s32.totalorder %s23, 0
    %p274 = por %p272, %p273
    %p275 = scmp.ne.s32.totalorder %s267, %s269
    %p276 = scmp.eq.s32.totalorder %s28, 1
    %p277 = por %p275, %p276
    %p278 = scmp.ne.s32.totalorder %s269, %s270
    %p279 = scmp.eq.s32.totalorder %s28, 0
    %p280 = por %p278, %p279
    %p281 = scmp.ne.s32.totalorder %s269, %s270
    %p282 = scmp.eq.s32.totalorder %s29, 1
    %p283 = por %p281, %p282
    %p285 = scmp.ne.s32.totalorder %s270, %s284
    %p286 = scmp.eq.s32.totalorder %s29, 0
    %p287 = por %p285, %p286
    %s289 = sadd.s32 %s288, 1
    %p292 = scmp.eq.s32.totalorder %s23, 1
    %p293 = scmp.ne.s32.totalorder %s288, %s290
    %p294 = scmp.eq.s32.totalorder %s23, 0
    %p295 = por %p293, %p294
    %p296 = scmp.ne.s32.totalorder %s288, %s290
    %p297 = scmp.eq.s32.totalorder %s28, 1
    %p298 = por %p296, %p297
    %p299 = scmp.ne.s32.totalorder %s290, %s291
    %p300 = scmp.eq.s32.totalorder %s28, 0
    %p301 = por %p299, %p300
    %p302 = scmp.ne.s32.totalorder %s290, %s291
    %p303 = scmp.eq.s32.totalorder %s29, 1
    %p304 = por %p302, %p303
    %p306 = scmp.ne.s32.totalorder %s291, %s305
    %p307 = scmp.eq.s32.totalorder %s29, 0
    %p308 = por %p306, %p307
    %s310 = sadd.s32 %s309, 1
    %p313 = scmp.eq.s32.totalorder %s23, 1
    %p314 = scmp.ne.s32.totalorder %s309, %s311
    %p315 = scmp.eq.s32.totalorder %s23, 0
    %p316 = por %p314, %p315
    %p317 = scmp.ne.s32.totalorder %s309, %s311
    %p318 = scmp.eq.s32.totalorder %s28, 1
    %p319 = por %p317, %p318
    %p320 = scmp.ne.s32.totalorder %s311, %s312
    %p321 = scmp.eq.s32.totalorder %s28, 0
    %p322 = por %p320, %p321
    %p323 = scmp.ne.s32.totalorder %s311, %s312
    %p324 = scmp.eq.s32.totalorder %s29, 1
    %p325 = por %p323, %p324
    %p327 = scmp.ne.s32.totalorder %s312, %s326
    %p328 = scmp.eq.s32.totalorder %s29, 0
    %p329 = por %p327, %p328
    %s331 = sadd.s32 %s330, 1
    %p334 = scmp.eq.s32.totalorder %s23, 1
    %p335 = scmp.ne.s32.totalorder %s330, %s332
    %p336 = scmp.eq.s32.totalorder %s23, 0
    %p337 = por %p335, %p336
    %p338 = scmp.ne.s32.totalorder %s330, %s332
    %p339 = scmp.eq.s32.totalorder %s28, 1
    %p340 = por %p338, %p339
    %p341 = scmp.ne.s32.totalorder %s332, %s333
    %p342 = scmp.eq.s32.totalorder %s28, 0
    %p343 = por %p341, %p342
    %p344 = scmp.ne.s32.totalorder %s332, %s333
    %p345 = scmp.eq.s32.totalorder %s29, 1
    %p346 = por %p344, %p345
    %p348 = scmp.ne.s32.totalorder %s333, %s347
    %p349 = scmp.eq.s32.totalorder %s29, 0
    %p350 = por %p348, %p349
    %s352 = sadd.s32 %s351, 1
    %p355 = scmp.eq.s32.totalorder %s23, 1
    %p356 = scmp.ne.s32.totalorder %s351, %s353
    %p357 = scmp.eq.s32.totalorder %s23, 0
    %p358 = por %p356, %p357
    %p359 = scmp.ne.s32.totalorder %s351, %s353
    %p360 = scmp.eq.s32.totalorder %s28, 1
    %p361 = por %p359, %p360
    %p362 = scmp.ne.s32.totalorder %s353, %s354
    %p363 = scmp.eq.s32.totalorder %s28, 0
    %p364 = por %p362, %p363
    %p365 = scmp.ne.s32.totalorder %s353, %s354
    %p366 = scmp.eq.s32.totalorder %s29, 1
    %p367 = por %p365, %p366
    %p369 = scmp.ne.s32.totalorder %s354, %s368
    %p370 = scmp.eq.s32.totalorder %s29, 0
    %p371 = por %p369, %p370
    %s373 = sadd.s32 %s372, 1
    %p376 = scmp.eq.s32.totalorder %s23, 1
    %p377 = scmp.ne.s32.totalorder %s372, %s374
    %p378 = scmp.eq.s32.totalorder %s23, 0
    %p379 = por %p377, %p378
    %p380 = scmp.ne.s32.totalorder %s372, %s374
    %p381 = scmp.eq.s32.totalorder %s28, 1
    %p382 = por %p380, %p381
    %p383 = scmp.ne.s32.totalorder %s374, %s375
    %p384 = scmp.eq.s32.totalorder %s28, 0
    %p385 = por %p383, %p384
    %p386 = scmp.ne.s32.totalorder %s374, %s375
    %p387 = scmp.eq.s32.totalorder %s29, 1
    %p388 = por %p386, %p387
    %p390 = scmp.ne.s32.totalorder %s375, %s389
    %p391 = scmp.eq.s32.totalorder %s29, 0
    %p392 = por %p390, %p391
    %s393 = ssub.s32 %s23, %s30
    %p394 = scmp.eq.s32.totalorder %s393, 0
    %s396 = sadd.s32 %s395, 1
    %s397 = scalar_select %p394, %s395, %s396
    %p400 = pneg %p394
    %p401 = scmp.eq.s32.totalorder %s23, 1
    %p402 = por %p400, %p401
    %p403 = scmp.ne.s32.totalorder %s395, %s398
    %p404 = scmp.eq.s32.totalorder %s23, 0
    %p405 = por %p403, %p404
    %p406 = scmp.ne.s32.totalorder %s395, %s398
    %p407 = scmp.eq.s32.totalorder %s28, 1
    %p408 = por %p406, %p407
    %p409 = scmp.ne.s32.totalorder %s398, %s399
    %p410 = scmp.eq.s32.totalorder %s28, 0
    %p411 = por %p409, %p410
    %p412 = scmp.ne.s32.totalorder %s398, %s399
    %p413 = scmp.eq.s32.totalorder %s29, 1
    %p414 = por %p412, %p413
    %p416 = scmp.ne.s32.totalorder %s399, %s415
    %p417 = scmp.eq.s32.totalorder %s29, 0
    %p418 = por %p416, %p417
    %p419 = scmp.le.s32.totalorder 1, %s23
    %p420 = scmp.lt.s32.totalorder %s23, 3
    %p421 = pnand %p419, %p420
    %p422 = pneg %p421
    // Predicated region
    $region9: #{vit_diffusion_forward.1} parent=5 // pred_check
      _
    $region10: #{vit_diffusion_forward.1} parent=5 // pred_check_branch
      %424 = sbr.rel (%p421) target = $region12
    $region11: #{vit_diffusion_forward.1} parent=5 // pred_region
      %s425 = ssub.s32 %s23, 1
      // Predicated region
      $region13: #{vit_diffusion_forward.1} parent=11 // pred_check
        %p426 = pneg %p70
      $region14: #{vit_diffusion_forward.1} parent=11 // pred_check_branch
        %428 = sbr.rel (%p426) target = $region16
      $region15: #{vit_diffusion_forward.1} parent=11 // pred_region
        _
      $region16: #{vit_diffusion_forward.1} parent=11 // pred_fallthru
        _
      // Predicated region
      $region17: #{vit_diffusion_forward.1} parent=11 // pred_check
        %p429 = pneg %p91
      $region18: #{vit_diffusion_forward.1} parent=11 // pred_check_branch
        %431 = sbr.rel (%p429) target = $region20
      $region19: #{vit_diffusion_forward.1} parent=11 // pred_region
        _
      $region20: #{vit_diffusion_forward.1} parent=11 // pred_fallthru
        _
      // Predicated region
      $region21: #{vit_diffusion_forward.1} parent=11 // pred_check
        %p432 = pneg %p112
      $region22: #{vit_diffusion_forward.1} parent=11 // pred_check_branch
        %434 = sbr.rel (%p432) target = $region24
      $region23: #{vit_diffusion_forward.1} parent=11 // pred_region
        _
      $region24: #{vit_diffusion_forward.1} parent=11 // pred_fallthru
        _
      // Predicated region
      $region25: #{vit_diffusion_forward.1} parent=11 // pred_check
        %p435 = pneg %p133
      $region26: #{vit_diffusion_forward.1} parent=11 // pred_check_branch
        %437 = sbr.rel (%p435) target = $region28
      $region27: #{vit_diffusion_forward.1} parent=11 // pred_region
        _
      $region28: #{vit_diffusion_forward.1} parent=11 // pred_fallthru
        _
      // Predicated region
      $region29: #{vit_diffusion_forward.1} parent=11 // pred_check
        %p438 = pneg %p154
      $region30: #{vit_diffusion_forward.1} parent=11 // pred_check_branch
        %440 = sbr.rel (%p438) target = $region32
      $region31: #{vit_diffusion_forward.1} parent=11 // pred_region
        _
      $region32: #{vit_diffusion_forward.1} parent=11 // pred_fallthru
        _
      // Predicated region
      $region33: #{vit_diffusion_forward.1} parent=11 // pred_check
        %p441 = pneg %p175
      $region34: #{vit_diffusion_forward.1} parent=11 // pred_check_branch
        %443 = sbr.rel (%p441) target = $region36
      $region35: #{vit_diffusion_forward.1} parent=11 // pred_region
        _
      $region36: #{vit_diffusion_forward.1} parent=11 // pred_fallthru
        _
      // Predicated region
      $region37: #{vit_diffusion_forward.1} parent=11 // pred_check
        %p444 = pneg %p196
      $region38: #{vit_diffusion_forward.1} parent=11 // pred_check_branch
        %446 = sbr.rel (%p444) target = $region40
      $region39: #{vit_diffusion_forward.1} parent=11 // pred_region
        _
      $region40: #{vit_diffusion_forward.1} parent=11 // pred_fallthru
        _
      // Predicated region
      $region41: #{vit_diffusion_forward.1} parent=11 // pred_check
        %p447 = pneg %p217
      $region42: #{vit_diffusion_forward.1} parent=11 // pred_check_branch
        %449 = sbr.rel (%p447) target = $region44
      $region43: #{vit_diffusion_forward.1} parent=11 // pred_region
        _
      $region44: #{vit_diffusion_forward.1} parent=11 // pred_fallthru
        _
      // Predicated region
      $region45: #{vit_diffusion_forward.1} parent=11 // pred_check
        %p450 = pneg %p238
      $region46: #{vit_diffusion_forward.1} parent=11 // pred_check_branch
        %452 = sbr.rel (%p450) target = $region48
      $region47: #{vit_diffusion_forward.1} parent=11 // pred_region
        _
      $region48: #{vit_diffusion_forward.1} parent=11 // pred_fallthru
        _
      // Predicated region
      $region49: #{vit_diffusion_forward.1} parent=11 // pred_check
        %p453 = pneg %p259
      $region50: #{vit_diffusion_forward.1} parent=11 // pred_check_branch
        %455 = sbr.rel (%p453) target = $region52
      $region51: #{vit_diffusion_forward.1} parent=11 // pred_region
        _
      $region52: #{vit_diffusion_forward.1} parent=11 // pred_fallthru
        _
      // Predicated region
      $region53: #{vit_diffusion_forward.1} parent=11 // pred_check
        %p456 = pneg %p280
      $region54: #{vit_diffusion_forward.1} parent=11 // pred_check_branch
        %458 = sbr.rel (%p456) target = $region56
      $region55: #{vit_diffusion_forward.1} parent=11 // pred_region
        _
      $region56: #{vit_diffusion_forward.1} parent=11 // pred_fallthru
        _
      // Predicated region
      $region57: #{vit_diffusion_forward.1} parent=11 // pred_check
        %p459 = pneg %p301
      $region58: #{vit_diffusion_forward.1} parent=11 // pred_check_branch
        %461 = sbr.rel (%p459) target = $region60
      $region59: #{vit_diffusion_forward.1} parent=11 // pred_region
        _
      $region60: #{vit_diffusion_forward.1} parent=11 // pred_fallthru
        _
      // Predicated region
      $region61: #{vit_diffusion_forward.1} parent=11 // pred_check
        %p462 = pneg %p322
      $region62: #{vit_diffusion_forward.1} parent=11 // pred_check_branch
        %464 = sbr.rel (%p462) target = $region64
      $region63: #{vit_diffusion_forward.1} parent=11 // pred_region
        _
      $region64: #{vit_diffusion_forward.1} parent=11 // pred_fallthru
        _
      // Predicated region
      $region65: #{vit_diffusion_forward.1} parent=11 // pred_check
        %p465 = pneg %p343
      $region66: #{vit_diffusion_forward.1} parent=11 // pred_check_branch
        %467 = sbr.rel (%p465) target = $region68
      $region67: #{vit_diffusion_forward.1} parent=11 // pred_region
        _
      $region68: #{vit_diffusion_forward.1} parent=11 // pred_fallthru
        _
      // Predicated region
      $region69: #{vit_diffusion_forward.1} parent=11 // pred_check
        %p468 = pneg %p364
      $region70: #{vit_diffusion_forward.1} parent=11 // pred_check_branch
        %470 = sbr.rel (%p468) target = $region72
      $region71: #{vit_diffusion_forward.1} parent=11 // pred_region
        _
      $region72: #{vit_diffusion_forward.1} parent=11 // pred_fallthru
        _
      // Predicated region
      $region73: #{vit_diffusion_forward.1} parent=11 // pred_check
        %p471 = pneg %p385
      $region74: #{vit_diffusion_forward.1} parent=11 // pred_check_branch
        %473 = sbr.rel (%p471) target = $region76
      $region75: #{vit_diffusion_forward.1} parent=11 // pred_region
        _
      $region76: #{vit_diffusion_forward.1} parent=11 // pred_fallthru
        _
    $region12: #{vit_diffusion_forward.1} parent=5 // pred_fallthru
      _
    %p474 = scmp.lt.s32.totalorder %s23, 2
    // Predicated region
    $region77: #{vit_diffusion_forward.1} parent=5 // pred_check
      %p475 = pneg %p474
    $region78: #{vit_diffusion_forward.1} parent=5 // pred_check_branch
      %477 = sbr.rel (%p475) target = $region80
    $region79: #{vit_diffusion_forward.1} parent=5 // pred_region
      // Predicated region
      $region81: #{vit_diffusion_forward.1} parent=79 // pred_check
        %p478 = pneg %p43
      $region82: #{vit_diffusion_forward.1} parent=79 // pred_check_branch
        %480 = sbr.rel (%p478) target = $region84
      $region83: #{vit_diffusion_forward.1} parent=79 // pred_region
        %s481 = smul.u32 2, %s23
        %p482 = scmp.lt.s32.totalorder %s481, 3
        %s483 = scalar_select %p482, %s481, 3
        %s484 = smul.addr %s483, 8
        %s485 = scalar_lea.vmem %s0, %s484
        %s486 = smul.u32 2, %s23
      $region84: #{vit_diffusion_forward.1} parent=79 // pred_fallthru
        _
    $region80: #{vit_diffusion_forward.1} parent=5 // pred_fallthru
      _
    %p487 = scmp.le.s32.totalorder 1, %s23
    %p488 = scmp.lt.s32.totalorder %s23, 3
    %p489 = pnand %p487, %p488
    %p490 = pneg %p489
    // Predicated region
    $region85: #{vit_diffusion_forward.1} parent=5 // pred_check
      _
    $region86: #{vit_diffusion_forward.1} parent=5 // pred_check_branch
      %492 = sbr.rel (%p489) target = $region88
    $region87: #{vit_diffusion_forward.1} parent=5 // pred_region
      %s493 = ssub.s32 %s23, 1
      %s494 = smul.u32 2, %s28
      %p495 = scmp.lt.s32.totalorder %s494, 3
      %s496 = scalar_select %p495, %s494, 3
      %s497 = smul.addr %s496, 8
      %s498 = scalar_lea.vmem %s0, %s497
      %p499 = pneg %p49
      %p500 = pneg %p46
      %p501 = pneg %p70
      %p502 = pneg %p67
      %p503 = pneg %p91
      %p504 = pneg %p88
      %p505 = pneg %p112
      %p506 = pneg %p109
      %p507 = pneg %p133
      %p508 = pneg %p130
      %p509 = pneg %p154
      %p510 = pneg %p151
      %p511 = pneg %p175
      %p512 = pneg %p172
      %p513 = pneg %p196
      %p514 = pneg %p193
      %p515 = pneg %p217
      %p516 = pneg %p214
      %p517 = pneg %p238
      %p518 = pneg %p235
      %p519 = pneg %p259
      %p520 = pneg %p256
      %p521 = pneg %p280
      %p522 = pneg %p277
      %p523 = pneg %p301
      %p524 = pneg %p298
      %p525 = pneg %p322
      %p526 = pneg %p319
      %p527 = pneg %p343
      %p528 = pneg %p340
      %p529 = pneg %p364
      %p530 = pneg %p361
      %p531 = pneg %p385
      %p532 = pneg %p382
      %p533 = pneg %p411
      %p534 = pneg %p408
      %s535 = smul.u32 2, %s28
      %p536 = scmp.lt.s32.totalorder %s535, 3
      %s537 = scalar_select %p536, %s535, 3
      %s538 = smul.addr %s537, 8
      %s539 = scalar_lea.vmem %s17, %s538
      %s540 = smul.u32 2, %s28
      %p541 = scmp.lt.s32.totalorder %s540, 3
      %s542 = scalar_select %p541, %s540, 3
      %s543 = smul.addr %s542, 8
      %s544 = scalar_lea.vmem %s0, %s543
      %s545 = smul.u32 2, %s28
      %s546 = smul.u32 2, %s28
      %p547 = scmp.lt.s32.totalorder %s546, 3
      %s548 = scalar_select %p547, %s546, 3
      %s549 = smul.addr %s548, 8
      %s550 = scalar_lea.vmem %s17, %s549
      %s551 = smul.u32 2, %s28
      %v553 = vld [vmem:[%s544] sm:$0xff]
      %v554 = vld [vmem:[%s544 + $0x8] sm:$0xff]
      %v555 = vpack.c.bf16 %v554, %v553
      %v556 = vld [vmem:[%s1] sm:$0xf]
      %v557 = vld [vmem:[%s1 + $0x4] sm:$0xf]
      %v558 = vld [vmem:[%s1 + $0x8] sm:$0xf]
      %v559 = vld [vmem:[%s1 + $0xc] sm:$0xf]
      %v560 = vld [vmem:[%s1 + $0x10] sm:$0xf]
      %v561 = vld [vmem:[%s1 + $0x14] sm:$0xf]
      %v562 = vld [vmem:[%s2] sm:$0x1]
      %v564 = vlaneseq
      %v565 = vshrl.u32 %v564, 7
      %v566 = vsub.s32 0, %v565
      %v567 = vrot.slane %v562, %v566
      %v575 = vunpack.c.l.b16 %v556
      %v576 = vunpack.c.l.b16 %v557
      %v577 = vunpack.c.l.b16 %v558
      %v578 = vunpack.c.l.b16 %v559
      %v579 = vunpack.c.l.b16 %v560
      %v580 = vunpack.c.l.b16 %v561
      %v581 = vpack.c.b16 %v576, %v575
      %v582 = vpack.c.b16 %v578, %v577
      %v583 = vpack.c.b16 %v580, %v579
      %vm587 = vcmask 392192
      %v589 = vsel %vm587, %v555, 0
      %591 = vmatprep.subr.bf16.mxu0 0
      %592 = vmatpush1.bf16.msra.mxu0 %v581
      %593 = vmatprep.subr.bf16.mxu0 0
      %594 = vmatpush1.bf16.msra.mxu0 %v582
      %595 = vmatprep.subr.bf16.mxu0 0
      %596 = vmatpush1.bf16.msra.mxu0 %v583
      %597 = vmatprep.subr.bf16.mxu0 0
      %598 = vmatpush1.bf16.msra.mxu0 0
      %599 = vmatprep.subr.bf16.mxu0 0
      %600 = vmatpush1.bf16.msra.mxu0 0
      %601 = vmatprep.subr.bf16.mxu0 0
      %602 = vmatpush1.bf16.msra.mxu0 0
      %603 = vmatprep.subr.bf16.mxu0 0
      %604 = vmatpush1.bf16.msra.mxu0 0
      %605 = vmatprep.subr.bf16.mxu0 0
      %606 = vmatpush1.bf16.msra.mxu0 0
      %607 = vmatprep.subr.bf16.mxu0 0
      %608 = vmatpush1.bf16.msra.mxu0 0
      %609 = vmatprep.subr.bf16.mxu0 0
      %610 = vmatpush1.bf16.msra.mxu0 0
      %611 = vmatprep.subr.bf16.mxu0 0
      %612 = vmatpush1.bf16.msra.mxu0 0
      %613 = vmatprep.subr.bf16.mxu0 0
      %614 = vmatpush1.bf16.msra.mxu0 0
      %615 = vmatprep.subr.bf16.mxu0 0
      %616 = vmatpush1.bf16.msra.mxu0 0
      %617 = vmatprep.subr.bf16.mxu0 0
      %618 = vmatpush1.bf16.msra.mxu0 0
      %619 = vmatprep.subr.bf16.mxu0 0
      %620 = vmatpush1.bf16.msra.mxu0 0
      %621 = vmatprep.subr.bf16.mxu0 0
      %622 = vmatpush1.bf16.msra.mxu0 0
      %623 = vmatprep.mubr.bf16.mxu0 0
      %624 = vmatmul.mubr.bf16.gmra.mrb[0].mxu0 %v589
      %v625 = vpop.f32.mrb[0].mxu0
      %v626 = vadd.f32 %v567, %v625
      %v627 = vpop.f32.mrb[0].mxu0
      %v628 = vpop.f32.mrb[0].mxu0
      %v629 = vadd.f32 %v567, %v628
      %v630 = vpop.f32.mrb[0].mxu0
      %631 = vdwg.mxu0
      %v632 = vld [vmem:[%s3] sm:$0xff]
      %v633 = vld [vmem:[%s3 + $0x8] sm:$0xff]
      %v634 = vadd.f32 %v626, %v632
      %v635 = vadd.f32 %v629, %v633
      %v636 = vpack.c.bf16 %v635, %v634
      %v637 = vld [vmem:[%s4] sm:$0xf]
      %v638 = vld [vmem:[%s4 + $0x4] sm:$0xf]
      %v639 = vld [vmem:[%s4 + $0x8] sm:$0xf]
      %v640 = vld [vmem:[%s4 + $0xc] sm:$0xf]
      %v641 = vld [vmem:[%s5] sm:$0x1]
      %v643 = vlaneseq
      %v644 = vshrl.u32 %v643, 7
      %v645 = vsub.s32 0, %v644
      %v646 = vrot.slane %v641, %v645
      %v652 = vunpack.c.l.b16 %v637
      %v653 = vunpack.c.l.b16 %v638
      %v654 = vunpack.c.l.b16 %v639
      %v655 = vunpack.c.l.b16 %v640
      %v656 = vpack.c.b16 %v653, %v652
      %v657 = vpack.c.b16 %v655, %v654
      %vm660 = vcmask 261120
      %v662 = vsel %vm660, %v636, 0
      %664 = vmatprep.subr.bf16.mxu0 0
      %665 = vmatpush1.bf16.msra.mxu0 %v656
      %666 = vmatprep.subr.bf16.mxu0 0
      %667 = vmatpush1.bf16.msra.mxu0 %v657
      %668 = vmatprep.subr.bf16.mxu0 0
      %669 = vmatpush1.bf16.msra.mxu0 0
      %670 = vmatprep.subr.bf16.mxu0 0
      %671 = vmatpush1.bf16.msra.mxu0 0
      %672 = vmatprep.subr.bf16.mxu0 0
      %673 = vmatpush1.bf16.msra.mxu0 0
      %674 = vmatprep.subr.bf16.mxu0 0
      %675 = vmatpush1.bf16.msra.mxu0 0
      %676 = vmatprep.subr.bf16.mxu0 0
      %677 = vmatpush1.bf16.msra.mxu0 0
      %678 = vmatprep.subr.bf16.mxu0 0
      %679 = vmatpush1.bf16.msra.mxu0 0
      %680 = vmatprep.subr.bf16.mxu0 0
      %681 = vmatpush1.bf16.msra.mxu0 0
      %682 = vmatprep.subr.bf16.mxu0 0
      %683 = vmatpush1.bf16.msra.mxu0 0
      %684 = vmatprep.subr.bf16.mxu0 0
      %685 = vmatpush1.bf16.msra.mxu0 0
      %686 = vmatprep.subr.bf16.mxu0 0
      %687 = vmatpush1.bf16.msra.mxu0 0
      %688 = vmatprep.subr.bf16.mxu0 0
      %689 = vmatpush1.bf16.msra.mxu0 0
      %690 = vmatprep.subr.bf16.mxu0 0
      %691 = vmatpush1.bf16.msra.mxu0 0
      %692 = vmatprep.subr.bf16.mxu0 0
      %693 = vmatpush1.bf16.msra.mxu0 0
      %694 = vmatprep.subr.bf16.mxu0 0
      %695 = vmatpush1.bf16.msra.mxu0 0
      %696 = vmatprep.mubr.bf16.mxu0 0
      %697 = vmatmul.mubr.bf16.gmra.mrb[0].mxu0 %v662
      %v698 = vpop.f32.mrb[0].mxu0
      %v699 = vadd.f32 %v646, %v698
      %v700 = vpop.f32.mrb[0].mxu0
      %v701 = vpop.f32.mrb[0].mxu0
      %v702 = vadd.f32 %v646, %v701
      %v703 = vpop.f32.mrb[0].mxu0
      %704 = vdwg.mxu0
      %s705 = scalar_lea.vmem %s4, 16
      %v706 = vld [vmem:[%s705] sm:$0xf]
      %v707 = vld [vmem:[%s705 + $0x4] sm:$0xf]
      %v708 = vld [vmem:[%s705 + $0x8] sm:$0xf]
      %v709 = vld [vmem:[%s705 + $0xc] sm:$0xf]
      %s710 = scalar_lea.vmem %s5, 1
      %v711 = vld [vmem:[%s710] sm:$0x1]
      %v713 = vlaneseq
      %v714 = vshrl.u32 %v713, 7
      %v715 = vsub.s32 0, %v714
      %v716 = vrot.slane %v711, %v715
      %v722 = vunpack.c.l.b16 %v706
      %v723 = vunpack.c.l.b16 %v707
      %v724 = vunpack.c.l.b16 %v708
      %v725 = vunpack.c.l.b16 %v709
      %v726 = vpack.c.b16 %v723, %v722
      %v727 = vpack.c.b16 %v725, %v724
      %730 = vmatprep.subr.bf16.mxu0 0
      %731 = vmatpush1.bf16.msra.mxu0 %v726
      %732 = vmatprep.subr.bf16.mxu0 0
      %733 = vmatpush1.bf16.msra.mxu0 %v727
      %734 = vmatprep.subr.bf16.mxu0 0
      %735 = vmatpush1.bf16.msra.mxu0 0
      %736 = vmatprep.subr.bf16.mxu0 0
      %737 = vmatpush1.bf16.msra.mxu0 0
      %738 = vmatprep.subr.bf16.mxu0 0
      %739 = vmatpush1.bf16.msra.mxu0 0
      %740 = vmatprep.subr.bf16.mxu0 0
      %741 = vmatpush1.bf16.msra.mxu0 0
      %742 = vmatprep.subr.bf16.mxu0 0
      %743 = vmatpush1.bf16.msra.mxu0 0
      %744 = vmatprep.subr.bf16.mxu0 0
      %745 = vmatpush1.bf16.msra.mxu0 0
      %746 = vmatprep.subr.bf16.mxu0 0
      %747 = vmatpush1.bf16.msra.mxu0 0
      %748 = vmatprep.subr.bf16.mxu0 0
      %749 = vmatpush1.bf16.msra.mxu0 0
      %750 = vmatprep.subr.bf16.mxu0 0
      %751 = vmatpush1.bf16.msra.mxu0 0
      %752 = vmatprep.subr.bf16.mxu0 0
      %753 = vmatpush1.bf16.msra.mxu0 0
      %754 = vmatprep.subr.bf16.mxu0 0
      %755 = vmatpush1.bf16.msra.mxu0 0
      %756 = vmatprep.subr.bf16.mxu0 0
      %757 = vmatpush1.bf16.msra.mxu0 0
      %758 = vmatprep.subr.bf16.mxu0 0
      %759 = vmatpush1.bf16.msra.mxu0 0
      %760 = vmatprep.subr.bf16.mxu0 0
      %761 = vmatpush1.bf16.msra.mxu0 0
      %762 = vmatprep.mubr.bf16.mxu0 0
      %763 = vmatmul.mubr.bf16.gmra.mrb[0].mxu0 %v662
      %v764 = vpop.f32.mrb[0].mxu0
      %v765 = vadd.f32 %v716, %v764
      %v766 = vpop.f32.mrb[0].mxu0
      %v767 = vpop.f32.mrb[0].mxu0
      %v768 = vadd.f32 %v716, %v767
      %v769 = vpop.f32.mrb[0].mxu0
      %770 = vdwg.mxu0
      %s771 = scalar_lea.vmem %s4, 32
      %v772 = vld [vmem:[%s771] sm:$0xf]
      %v773 = vld [vmem:[%s771 + $0x4] sm:$0xf]
      %v774 = vld [vmem:[%s771 + $0x8] sm:$0xf]
      %v775 = vld [vmem:[%s771 + $0xc] sm:$0xf]
      %s776 = scalar_lea.vmem %s5, 2
      %v777 = vld [vmem:[%s776] sm:$0x1]
      %v779 = vlaneseq
      %v780 = vshrl.u32 %v779, 7
      %v781 = vsub.s32 0, %v780
      %v782 = vrot.slane %v777, %v781
      %v788 = vunpack.c.l.b16 %v772
      %v789 = vunpack.c.l.b16 %v773
      %v790 = vunpack.c.l.b16 %v774
      %v791 = vunpack.c.l.b16 %v775
      %v792 = vpack.c.b16 %v789, %v788
      %v793 = vpack.c.b16 %v791, %v790
      %796 = vmatprep.subr.bf16.mxu0 0
      %797 = vmatpush1.bf16.msra.mxu0 %v792
      %798 = vmatprep.subr.bf16.mxu0 0
      %799 = vmatpush1.bf16.msra.mxu0 %v793
      %800 = vmatprep.subr.bf16.mxu0 0
      %801 = vmatpush1.bf16.msra.mxu0 0
      %802 = vmatprep.subr.bf16.mxu0 0
      %803 = vmatpush1.bf16.msra.mxu0 0
      %804 = vmatprep.subr.bf16.mxu0 0
      %805 = vmatpush1.bf16.msra.mxu0 0
      %806 = vmatprep.subr.bf16.mxu0 0
      %807 = vmatpush1.bf16.msra.mxu0 0
      %808 = vmatprep.subr.bf16.mxu0 0
      %809 = vmatpush1.bf16.msra.mxu0 0
      %810 = vmatprep.subr.bf16.mxu0 0
      %811 = vmatpush1.bf16.msra.mxu0 0
      %812 = vmatprep.subr.bf16.mxu0 0
      %813 = vmatpush1.bf16.msra.mxu0 0
      %814 = vmatprep.subr.bf16.mxu0 0
      %815 = vmatpush1.bf16.msra.mxu0 0
      %816 = vmatprep.subr.bf16.mxu0 0
      %817 = vmatpush1.bf16.msra.mxu0 0
      %818 = vmatprep.subr.bf16.mxu0 0
      %819 = vmatpush1.bf16.msra.mxu0 0
      %820 = vmatprep.subr.bf16.mxu0 0
      %821 = vmatpush1.bf16.msra.mxu0 0
      %822 = vmatprep.subr.bf16.mxu0 0
      %823 = vmatpush1.bf16.msra.mxu0 0
      %824 = vmatprep.subr.bf16.mxu0 0
      %825 = vmatpush1.bf16.msra.mxu0 0
      %826 = vmatprep.subr.bf16.mxu0 0
      %827 = vmatpush1.bf16.msra.mxu0 0
      %828 = vmatprep.mubr.bf16.mxu0 0
      %829 = vmatmul.mubr.bf16.gmra.mrb[0].mxu0 %v662
      %v830 = vpop.f32.mrb[0].mxu0
      %v831 = vadd.f32 %v782, %v830
      %v832 = vpop.f32.mrb[0].mxu0
      %v833 = vpop.f32.mrb[0].mxu0
      %v834 = vadd.f32 %v782, %v833
      %v835 = vpop.f32.mrb[0].mxu0
      %836 = vdwg.mxu0
      %839 = vrot.lane.b32.xlu0 %v699, 120
      %v840 = vpop.permute.xlu0 %839
      %841 = vrot.lane.b32.xlu0 %v702, 120
      %v842 = vpop.permute.xlu0 %841
      %845 = vrot.lane.b32.xlu0 %v699, 112
      %v846 = vpop.permute.xlu0 %845
      %847 = vrot.lane.b32.xlu0 %v702, 112
      %v848 = vpop.permute.xlu0 %847
      %851 = vrot.lane.b32.xlu0 %v699, 104
      %v852 = vpop.permute.xlu0 %851
      %853 = vrot.lane.b32.xlu0 %v702, 104
      %v854 = vpop.permute.xlu0 %853
      %v857 = vpack.c.bf16 %v702, %v699
      %v858 = vpack.c.bf16 %v842, %v840
      %v859 = vpack.c.bf16 %v848, %v846
      %v860 = vpack.c.bf16 %v854, %v852
      %863 = vrot.lane.b32.xlu0 %v765, 120
      %v864 = vpop.permute.xlu0 %863
      %865 = vrot.lane.b32.xlu0 %v768, 120
      %v866 = vpop.permute.xlu0 %865
      %869 = vrot.lane.b32.xlu0 %v765, 112
      %v870 = vpop.permute.xlu0 %869
      %871 = vrot.lane.b32.xlu0 %v768, 112
      %v872 = vpop.permute.xlu0 %871
      %875 = vrot.lane.b32.xlu0 %v765, 104
      %v876 = vpop.permute.xlu0 %875
      %877 = vrot.lane.b32.xlu0 %v768, 104
      %v878 = vpop.permute.xlu0 %877
      %v881 = vpack.c.bf16 %v768, %v765
      %v882 = vpack.c.bf16 %v866, %v864
      %v883 = vpack.c.bf16 %v872, %v870
      %v884 = vpack.c.bf16 %v878, %v876
      %887 = vrot.lane.b32.xlu0 %v831, 120
      %v888 = vpop.permute.xlu0 %887
      %889 = vrot.lane.b32.xlu0 %v834, 120
      %v890 = vpop.permute.xlu0 %889
      %893 = vrot.lane.b32.xlu0 %v831, 112
      %v894 = vpop.permute.xlu0 %893
      %895 = vrot.lane.b32.xlu0 %v834, 112
      %v896 = vpop.permute.xlu0 %895
      %899 = vrot.lane.b32.xlu0 %v831, 104
      %v900 = vpop.permute.xlu0 %899
      %901 = vrot.lane.b32.xlu0 %v834, 104
      %v902 = vpop.permute.xlu0 %901
      %v905 = vpack.c.bf16 %v834, %v831
      %v906 = vpack.c.bf16 %v890, %v888
      %v907 = vpack.c.bf16 %v896, %v894
      %v908 = vpack.c.bf16 %v902, %v900
      %vm909 = vcmask 64512
      %v911 = vsel %vm909, %v857, 0
      %v914 = vsel %vm909, %v881, 0
      %916 = vmatprep.subr.bf16.mxu0 0
      %917 = vmatpush1.bf16.xpose.msra.mxu0 %v914
      %918 = vmatprep.subr.bf16.mxu0 0
      %919 = vmatpush1.bf16.xpose.msra.mxu0 0
      %920 = vmatprep.subr.bf16.mxu0 0
      %921 = vmatpush1.bf16.xpose.msra.mxu0 0
      %922 = vmatprep.subr.bf16.mxu0 0
      %923 = vmatpush1.bf16.xpose.msra.mxu0 0
      %924 = vmatprep.subr.bf16.mxu0 0
      %925 = vmatpush1.bf16.xpose.msra.mxu0 0
      %926 = vmatprep.subr.bf16.mxu0 0
      %927 = vmatpush1.bf16.xpose.msra.mxu0 0
      %928 = vmatprep.subr.bf16.mxu0 0
      %929 = vmatpush1.bf16.xpose.msra.mxu0 0
      %930 = vmatprep.subr.bf16.mxu0 0
      %931 = vmatpush1.bf16.xpose.msra.mxu0 0
      %932 = vmatprep.subr.bf16.mxu0 0
      %933 = vmatpush1.bf16.xpose.msra.mxu0 0
      %934 = vmatprep.subr.bf16.mxu0 0
      %935 = vmatpush1.bf16.xpose.msra.mxu0 0
      %936 = vmatprep.subr.bf16.mxu0 0
      %937 = vmatpush1.bf16.xpose.msra.mxu0 0
      %938 = vmatprep.subr.bf16.mxu0 0
      %939 = vmatpush1.bf16.xpose.msra.mxu0 0
      %940 = vmatprep.subr.bf16.mxu0 0
      %941 = vmatpush1.bf16.xpose.msra.mxu0 0
      %942 = vmatprep.subr.bf16.mxu0 0
      %943 = vmatpush1.bf16.xpose.msra.mxu0 0
      %944 = vmatprep.subr.bf16.mxu0 0
      %945 = vmatpush1.bf16.xpose.msra.mxu0 0
      %946 = vmatprep.subr.bf16.mxu0 0
      %947 = vmatpush1.bf16.xpose.msra.mxu0 0
      %948 = vmatprep.mubr.bf16.mxu0 0
      %949 = vmatmul.mubr.bf16.gmra.mrb[0].mxu0 %v911
      %v950 = vpop.f32.mrb[0].mxu0
      %v951 = vadd.f32 0.0, %v950
      %v952 = vpop.f32.mrb[0].mxu0
      %v953 = vpop.f32.mrb[0].mxu0
      %v954 = vadd.f32 0.0, %v953
      %v955 = vpop.f32.mrb[0].mxu0
      %956 = vdwg.mxu0
      %v958 = vsel %vm909, %v858, 0
      %v961 = vsel %vm909, %v882, 0
      %963 = vmatprep.subr.bf16.mxu0 0
      %964 = vmatpush1.bf16.xpose.msra.mxu0 %v961
      %965 = vmatprep.subr.bf16.mxu0 0
      %966 = vmatpush1.bf16.xpose.msra.mxu0 0
      %967 = vmatprep.subr.bf16.mxu0 0
      %968 = vmatpush1.bf16.xpose.msra.mxu0 0
      %969 = vmatprep.subr.bf16.mxu0 0
      %970 = vmatpush1.bf16.xpose.msra.mxu0 0
      %971 = vmatprep.subr.bf16.mxu0 0
      %972 = vmatpush1.bf16.xpose.msra.mxu0 0
      %973 = vmatprep.subr.bf16.mxu0 0
      %974 = vmatpush1.bf16.xpose.msra.mxu0 0
      %975 = vmatprep.subr.bf16.mxu0 0
      %976 = vmatpush1.bf16.xpose.msra.mxu0 0
      %977 = vmatprep.subr.bf16.mxu0 0
      %978 = vmatpush1.bf16.xpose.msra.mxu0 0
      %979 = vmatprep.subr.bf16.mxu0 0
      %980 = vmatpush1.bf16.xpose.msra.mxu0 0
      %981 = vmatprep.subr.bf16.mxu0 0
      %982 = vmatpush1.bf16.xpose.msra.mxu0 0
      %983 = vmatprep.subr.bf16.mxu0 0
      %984 = vmatpush1.bf16.xpose.msra.mxu0 0
      %985 = vmatprep.subr.bf16.mxu0 0
      %986 = vmatpush1.bf16.xpose.msra.mxu0 0
      %987 = vmatprep.subr.bf16.mxu0 0
      %988 = vmatpush1.bf16.xpose.msra.mxu0 0
      %989 = vmatprep.subr.bf16.mxu0 0
      %990 = vmatpush1.bf16.xpose.msra.mxu0 0
      %991 = vmatprep.subr.bf16.mxu0 0
      %992 = vmatpush1.bf16.xpose.msra.mxu0 0
      %993 = vmatprep.subr.bf16.mxu0 0
      %994 = vmatpush1.bf16.xpose.msra.mxu0 0
      %995 = vmatprep.mubr.bf16.mxu0 0
      %996 = vmatmul.mubr.bf16.gmra.mrb[0].mxu0 %v958
      %v997 = vpop.f32.mrb[0].mxu0
      %v998 = vadd.f32 0.0, %v997
      %v999 = vpop.f32.mrb[0].mxu0
      %v1000 = vpop.f32.mrb[0].mxu0
      %v1001 = vadd.f32 0.0, %v1000
      %v1002 = vpop.f32.mrb[0].mxu0
      %1003 = vdwg.mxu0
      %v1005 = vsel %vm909, %v859, 0
      %v1008 = vsel %vm909, %v883, 0
      %1010 = vmatprep.subr.bf16.mxu0 0
      %1011 = vmatpush1.bf16.xpose.msra.mxu0 %v1008
      %1012 = vmatprep.subr.bf16.mxu0 0
      %1013 = vmatpush1.bf16.xpose.msra.mxu0 0
      %1014 = vmatprep.subr.bf16.mxu0 0
      %1015 = vmatpush1.bf16.xpose.msra.mxu0 0
      %1016 = vmatprep.subr.bf16.mxu0 0
      %1017 = vmatpush1.bf16.xpose.msra.mxu0 0
      %1018 = vmatprep.subr.bf16.mxu0 0
      %1019 = vmatpush1.bf16.xpose.msra.mxu0 0
      %1020 = vmatprep.subr.bf16.mxu0 0
      %1021 = vmatpush1.bf16.xpose.msra.mxu0 0
      %1022 = vmatprep.subr.bf16.mxu0 0
      %1023 = vmatpush1.bf16.xpose.msra.mxu0 0
      %1024 = vmatprep.subr.bf16.mxu0 0
      %1025 = vmatpush1.bf16.xpose.msra.mxu0 0
      %1026 = vmatprep.subr.bf16.mxu0 0
      %1027 = vmatpush1.bf16.xpose.msra.mxu0 0
      %1028 = vmatprep.subr.bf16.mxu0 0
      %1029 = vmatpush1.bf16.xpose.msra.mxu0 0
      %1030 = vmatprep.subr.bf16.mxu0 0
      %1031 = vmatpush1.bf16.xpose.msra.mxu0 0
      %1032 = vmatprep.subr.bf16.mxu0 0
      %1033 = vmatpush1.bf16.xpose.msra.mxu0 0
      %1034 = vmatprep.subr.bf16.mxu0 0
      %1035 = vmatpush1.bf16.xpose.msra.mxu0 0
      %1036 = vmatprep.subr.bf16.mxu0 0
      %1037 = vmatpush1.bf16.xpose.msra.mxu0 0
      %1038 = vmatprep.subr.bf16.mxu0 0
      %1039 = vmatpush1.bf16.xpose.msra.mxu0 0
      %1040 = vmatprep.subr.bf16.mxu0 0
      %1041 = vmatpush1.bf16.xpose.msra.mxu0 0
      %1042 = vmatprep.mubr.bf16.mxu0 0
      %1043 = vmatmul.mubr.bf16.gmra.mrb[0].mxu0 %v1005
      %v1044 = vpop.f32.mrb[0].mxu0
      %v1045 = vadd.f32 0.0, %v1044
      %v1046 = vpop.f32.mrb[0].mxu0
      %v1047 = vpop.f32.mrb[0].mxu0
      %v1048 = vadd.f32 0.0, %v1047
      %v1049 = vpop.f32.mrb[0].mxu0
      %1050 = vdwg.mxu0
      %v1052 = vsel %vm909, %v860, 0
      %v1055 = vsel %vm909, %v884, 0
      %1057 = vmatprep.subr.bf16.mxu0 0
      %1058 = vmatpush1.bf16.xpose.msra.mxu0 %v1055
      %1059 = vmatprep.subr.bf16.mxu0 0
      %1060 = vmatpush1.bf16.xpose.msra.mxu0 0
      %1061 = vmatprep.subr.bf16.mxu0 0
      %1062 = vmatpush1.bf16.xpose.msra.mxu0 0
      %1063 = vmatprep.subr.bf16.mxu0 0
      %1064 = vmatpush1.bf16.xpose.msra.mxu0 0
      %1065 = vmatprep.subr.bf16.mxu0 0
      %1066 = vmatpush1.bf16.xpose.msra.mxu0 0
      %1067 = vmatprep.subr.bf16.mxu0 0
      %1068 = vmatpush1.bf16.xpose.msra.mxu0 0
      %1069 = vmatprep.subr.bf16.mxu0 0
      %1070 = vmatpush1.bf16.xpose.msra.mxu0 0
      %1071 = vmatprep.subr.bf16.mxu0 0
      %1072 = vmatpush1.bf16.xpose.msra.mxu0 0
      %1073 = vmatprep.subr.bf16.mxu0 0
      %1074 = vmatpush1.bf16.xpose.msra.mxu0 0
      %1075 = vmatprep.subr.bf16.mxu0 0
      %1076 = vmatpush1.bf16.xpose.msra.mxu0 0
      %1077 = vmatprep.subr.bf16.mxu0 0
      %1078 = vmatpush1.bf16.xpose.msra.mxu0 0
      %1079 = vmatprep.subr.bf16.mxu0 0
      %1080 = vmatpush1.bf16.xpose.msra.mxu0 0
      %1081 = vmatprep.subr.bf16.mxu0 0
      %1082 = vmatpush1.bf16.xpose.msra.mxu0 0
      %1083 = vmatprep.subr.bf16.mxu0 0
      %1084 = vmatpush1.bf16.xpose.msra.mxu0 0
      %1085 = vmatprep.subr.bf16.mxu0 0
      %1086 = vmatpush1.bf16.xpose.msra.mxu0 0
      %1087 = vmatprep.subr.bf16.mxu0 0
      %1088 = vmatpush1.bf16.xpose.msra.mxu0 0
      %1089 = vmatprep.mubr.bf16.mxu0 0
      %1090 = vmatmul.mubr.bf16.gmra.mrb[0].mxu0 %v1052
      %v1091 = vpop.f32.mrb[0].mxu0
      %v1092 = vadd.f32 0.0, %v1091
      %v1093 = vpop.f32.mrb[0].mxu0
      %v1094 = vpop.f32.mrb[0].mxu0
      %v1095 = vadd.f32 0.0, %v1094
      %v1096 = vpop.f32.mrb[0].mxu0
      %1097 = vdwg.mxu0
      %v1098 = vmul.f32 %v951, 0.35355338
      %v1099 = vmul.f32 %v954, 0.35355338
      %v1100 = vmul.f32 %v998, 0.35355338
      %v1101 = vmul.f32 %v1001, 0.35355338
      %v1102 = vmul.f32 %v1045, 0.35355338
      %v1103 = vmul.f32 %v1048, 0.35355338
      %v1104 = vmul.f32 %v1092, 0.35355338
      %v1105 = vmul.f32 %v1095, 0.35355338
      %vm1106 = vcmask 130048
      %v1107 = vsel %vm1106, %v1098, -inf
      %1108 = vmax.xlane.f32.xlu0 %v1107
      %v1109 = vpop.xlane.xlu0 %1108
      %v1110 = vsel %vm1106, %v1099, -inf
      %1111 = vmax.xlane.f32.xlu0 %v1110
      %v1112 = vpop.xlane.xlu0 %1111
      %v1113 = vsel %vm1106, %v1100, -inf
      %1114 = vmax.xlane.f32.xlu0 %v1113
      %v1115 = vpop.xlane.xlu0 %1114
      %v1116 = vsel %vm1106, %v1101, -inf
      %1117 = vmax.xlane.f32.xlu0 %v1116
      %v1118 = vpop.xlane.xlu0 %1117
      %v1119 = vsel %vm1106, %v1102, -inf
      %1120 = vmax.xlane.f32.xlu0 %v1119
      %v1121 = vpop.xlane.xlu0 %1120
      %v1122 = vsel %vm1106, %v1103, -inf
      %1123 = vmax.xlane.f32.xlu0 %v1122
      %v1124 = vpop.xlane.xlu0 %1123
      %v1125 = vsel %vm1106, %v1104, -inf
      %1126 = vmax.xlane.f32.xlu0 %v1125
      %v1127 = vpop.xlane.xlu0 %1126
      %v1128 = vsel %vm1106, %v1105, -inf
      %1129 = vmax.xlane.f32.xlu0 %v1128
      %v1130 = vpop.xlane.xlu0 %1129
      %v1131 = vsub.f32 %v1098, %v1109
      %v1132 = vsub.f32 %v1099, %v1112
      %v1133 = vsub.f32 %v1100, %v1115
      %v1134 = vsub.f32 %v1101, %v1118
      %v1135 = vsub.f32 %v1102, %v1121
      %v1136 = vsub.f32 %v1103, %v1124
      %v1137 = vsub.f32 %v1104, %v1127
      %v1138 = vsub.f32 %v1105, %v1130
      %v1139 = vmul.f32 %v1131, 1.442695
      %v1140 = vpow.pop %v1139
      %v1141 = vmul.f32 %v1132, 1.442695
      %v1142 = vpow.pop %v1141
      %v1143 = vmul.f32 %v1133, 1.442695
      %v1144 = vpow.pop %v1143
      %v1145 = vmul.f32 %v1134, 1.442695
      %v1146 = vpow.pop %v1145
      %v1147 = vmul.f32 %v1135, 1.442695
      %v1148 = vpow.pop %v1147
      %v1149 = vmul.f32 %v1136, 1.442695
      %v1150 = vpow.pop %v1149
      %v1151 = vmul.f32 %v1137, 1.442695
      %v1152 = vpow.pop %v1151
      %v1153 = vmul.f32 %v1138, 1.442695
      %v1154 = vpow.pop %v1153
      %v1155 = vsel %vm1106, %v1140, 0.0
      %1156 = vadd.xlane.f32.xlu0 %v1155
      %v1157 = vpop.xlane.xlu0 %1156
      %v1158 = vsel %vm1106, %v1142, 0.0
      %1159 = vadd.xlane.f32.xlu0 %v1158
      %v1160 = vpop.xlane.xlu0 %1159
      %v1161 = vsel %vm1106, %v1144, 0.0
      %1162 = vadd.xlane.f32.xlu0 %v1161
      %v1163 = vpop.xlane.xlu0 %1162
      %v1164 = vsel %vm1106, %v1146, 0.0
      %1165 = vadd.xlane.f32.xlu0 %v1164
      %v1166 = vpop.xlane.xlu0 %1165
      %v1167 = vsel %vm1106, %v1148, 0.0
      %1168 = vadd.xlane.f32.xlu0 %v1167
      %v1169 = vpop.xlane.xlu0 %1168
      %v1170 = vsel %vm1106, %v1150, 0.0
      %1171 = vadd.xlane.f32.xlu0 %v1170
      %v1172 = vpop.xlane.xlu0 %1171
      %v1173 = vsel %vm1106, %v1152, 0.0
      %1174 = vadd.xlane.f32.xlu0 %v1173
      %v1175 = vpop.xlane.xlu0 %1174
      %v1176 = vsel %vm1106, %v1154, 0.0
      %1177 = vadd.xlane.f32.xlu0 %v1176
      %v1178 = vpop.xlane.xlu0 %1177
      %v1179 = vrcp.pop %v1157
      %v1180 = vrcp.pop %v1160
      %v1181 = vrcp.pop %v1163
      %v1182 = vrcp.pop %v1166
      %v1183 = vrcp.pop %v1169
      %v1184 = vrcp.pop %v1172
      %v1185 = vrcp.pop %v1175
      %v1186 = vrcp.pop %v1178
      %v1187 = vmul.f32 %v1140, %v1179
      %v1188 = vmul.f32 %v1142, %v1180
      %v1189 = vmul.f32 %v1144, %v1181
      %v1190 = vmul.f32 %v1146, %v1182
      %v1191 = vmul.f32 %v1148, %v1183
      %v1192 = vmul.f32 %v1150, %v1184
      %v1193 = vmul.f32 %v1152, %v1185
      %v1194 = vmul.f32 %v1154, %v1186
      %v1195 = vpack.c.bf16 %v1188, %v1187
      %v1196 = vpack.c.bf16 %v1190, %v1189
      %v1197 = vpack.c.bf16 %v1192, %v1191
      %v1198 = vpack.c.bf16 %v1194, %v1193
      %v1200 = vsel %vm1106, %v1195, 0
      %1202 = vmatprep.subr.bf16.mxu0 0
      %1203 = vmatpush1.bf16.msra.mxu0 %v905
      %1204 = vmatprep.subr.bf16.mxu0 0
      %1205 = vmatpush1.bf16.msra.mxu0 0
      %1206 = vmatprep.subr.bf16.mxu0 0
      %1207 = vmatpush1.bf16.msra.mxu0 0
      %1208 = vmatprep.subr.bf16.mxu0 0
      %1209 = vmatpush1.bf16.msra.mxu0 0
      %1210 = vmatprep.subr.bf16.mxu0 0
      %1211 = vmatpush1.bf16.msra.mxu0 0
      %1212 = vmatprep.subr.bf16.mxu0 0
      %1213 = vmatpush1.bf16.msra.mxu0 0
      %1214 = vmatprep.subr.bf16.mxu0 0
      %1215 = vmatpush1.bf16.msra.mxu0 0
      %1216 = vmatprep.subr.bf16.mxu0 0
      %1217 = vmatpush1.bf16.msra.mxu0 0
      %1218 = vmatprep.subr.bf16.mxu0 0
      %1219 = vmatpush1.bf16.msra.mxu0 0
      %1220 = vmatprep.subr.bf16.mxu0 0
      %1221 = vmatpush1.bf16.msra.mxu0 0
      %1222 = vmatprep.subr.bf16.mxu0 0
      %1223 = vmatpush1.bf16.msra.mxu0 0
      %1224 = vmatprep.subr.bf16.mxu0 0
      %1225 = vmatpush1.bf16.msra.mxu0 0
      %1226 = vmatprep.subr.bf16.mxu0 0
      %1227 = vmatpush1.bf16.msra.mxu0 0
      %1228 = vmatprep.subr.bf16.mxu0 0
      %1229 = vmatpush1.bf16.msra.mxu0 0
      %1230 = vmatprep.subr.bf16.mxu0 0
      %1231 = vmatpush1.bf16.msra.mxu0 0
      %1232 = vmatprep.subr.bf16.mxu0 0
      %1233 = vmatpush1.bf16.msra.mxu0 0
      %1234 = vmatprep.mubr.bf16.mxu0 0
      %1235 = vmatmul.mubr.bf16.gmra.mrb[0].mxu0 %v1200
      %v1236 = vpop.f32.mrb[0].mxu0
      %v1237 = vadd.f32 0.0, %v1236
      %v1238 = vpop.f32.mrb[0].mxu0
      %v1239 = vpop.f32.mrb[0].mxu0
      %v1240 = vadd.f32 0.0, %v1239
      %v1241 = vpop.f32.mrb[0].mxu0
      %1242 = vdwg.mxu0
      %v1244 = vsel %vm1106, %v1196, 0
      %1246 = vmatprep.subr.bf16.mxu0 0
      %1247 = vmatpush1.bf16.msra.mxu0 %v906
      %1248 = vmatprep.subr.bf16.mxu0 0
      %1249 = vmatpush1.bf16.msra.mxu0 0
      %1250 = vmatprep.subr.bf16.mxu0 0
      %1251 = vmatpush1.bf16.msra.mxu0 0
      %1252 = vmatprep.subr.bf16.mxu0 0
      %1253 = vmatpush1.bf16.msra.mxu0 0
      %1254 = vmatprep.subr.bf16.mxu0 0
      %1255 = vmatpush1.bf16.msra.mxu0 0
      %1256 = vmatprep.subr.bf16.mxu0 0
      %1257 = vmatpush1.bf16.msra.mxu0 0
      %1258 = vmatprep.subr.bf16.mxu0 0
      %1259 = vmatpush1.bf16.msra.mxu0 0
      %1260 = vmatprep.subr.bf16.mxu0 0
      %1261 = vmatpush1.bf16.msra.mxu0 0
      %1262 = vmatprep.subr.bf16.mxu0 0
      %1263 = vmatpush1.bf16.msra.mxu0 0
      %1264 = vmatprep.subr.bf16.mxu0 0
      %1265 = vmatpush1.bf16.msra.mxu0 0
      %1266 = vmatprep.subr.bf16.mxu0 0
      %1267 = vmatpush1.bf16.msra.mxu0 0
      %1268 = vmatprep.subr.bf16.mxu0 0
      %1269 = vmatpush1.bf16.msra.mxu0 0
      %1270 = vmatprep.subr.bf16.mxu0 0
      %1271 = vmatpush1.bf16.msra.mxu0 0
      %1272 = vmatprep.subr.bf16.mxu0 0
      %1273 = vmatpush1.bf16.msra.mxu0 0
      %1274 = vmatprep.subr.bf16.mxu0 0
      %1275 = vmatpush1.bf16.msra.mxu0 0
      %1276 = vmatprep.subr.bf16.mxu0 0
      %1277 = vmatpush1.bf16.msra.mxu0 0
      %1278 = vmatprep.mubr.bf16.mxu0 0
      %1279 = vmatmul.mubr.bf16.gmra.mrb[0].mxu0 %v1244
      %v1280 = vpop.f32.mrb[0].mxu0
      %v1281 = vadd.f32 0.0, %v1280
      %v1282 = vpop.f32.mrb[0].mxu0
      %v1283 = vpop.f32.mrb[0].mxu0
      %v1284 = vadd.f32 0.0, %v1283
      %v1285 = vpop.f32.mrb[0].mxu0
      %1286 = vdwg.mxu0
      %v1288 = vsel %vm1106, %v1197, 0
      %1290 = vmatprep.subr.bf16.mxu0 0
      %1291 = vmatpush1.bf16.msra.mxu0 %v907
      %1292 = vmatprep.subr.bf16.mxu0 0
      %1293 = vmatpush1.bf16.msra.mxu0 0
      %1294 = vmatprep.subr.bf16.mxu0 0
      %1295 = vmatpush1.bf16.msra.mxu0 0
      %1296 = vmatprep.subr.bf16.mxu0 0
      %1297 = vmatpush1.bf16.msra.mxu0 0
      %1298 = vmatprep.subr.bf16.mxu0 0
      %1299 = vmatpush1.bf16.msra.mxu0 0
      %1300 = vmatprep.subr.bf16.mxu0 0
      %1301 = vmatpush1.bf16.msra.mxu0 0
      %1302 = vmatprep.subr.bf16.mxu0 0
      %1303 = vmatpush1.bf16.msra.mxu0 0
      %1304 = vmatprep.subr.bf16.mxu0 0
      %1305 = vmatpush1.bf16.msra.mxu0 0
      %1306 = vmatprep.subr.bf16.mxu0 0
      %1307 = vmatpush1.bf16.msra.mxu0 0
      %1308 = vmatprep.subr.bf16.mxu0 0
      %1309 = vmatpush1.bf16.msra.mxu0 0
      %1310 = vmatprep.subr.bf16.mxu0 0
      %1311 = vmatpush1.bf16.msra.mxu0 0
      %1312 = vmatprep.subr.bf16.mxu0 0
      %1313 = vmatpush1.bf16.msra.mxu0 0
      %1314 = vmatprep.subr.bf16.mxu0 0
      %1315 = vmatpush1.bf16.msra.mxu0 0
      %1316 = vmatprep.subr.bf16.mxu0 0
      %1317 = vmatpush1.bf16.msra.mxu0 0
      %1318 = vmatprep.subr.bf16.mxu0 0
      %1319 = vmatpush1.bf16.msra.mxu0 0
      %1320 = vmatprep.subr.bf16.mxu0 0
      %1321 = vmatpush1.bf16.msra.mxu0 0
      %1322 = vmatprep.mubr.bf16.mxu0 0
      %1323 = vmatmul.mubr.bf16.gmra.mrb[0].mxu0 %v1288
      %v1324 = vpop.f32.mrb[0].mxu0
      %v1325 = vadd.f32 0.0, %v1324
      %v1326 = vpop.f32.mrb[0].mxu0
      %v1327 = vpop.f32.mrb[0].mxu0
      %v1328 = vadd.f32 0.0, %v1327
      %v1329 = vpop.f32.mrb[0].mxu0
      %1330 = vdwg.mxu0
      %v1332 = vsel %vm1106, %v1198, 0
      %1334 = vmatprep.subr.bf16.mxu0 0
      %1335 = vmatpush1.bf16.msra.mxu0 %v908
      %1336 = vmatprep.subr.bf16.mxu0 0
      %1337 = vmatpush1.bf16.msra.mxu0 0
      %1338 = vmatprep.subr.bf16.mxu0 0
      %1339 = vmatpush1.bf16.msra.mxu0 0
      %1340 = vmatprep.subr.bf16.mxu0 0
      %1341 = vmatpush1.bf16.msra.mxu0 0
      %1342 = vmatprep.subr.bf16.mxu0 0
      %1343 = vmatpush1.bf16.msra.mxu0 0
      %1344 = vmatprep.subr.bf16.mxu0 0
      %1345 = vmatpush1.bf16.msra.mxu0 0
      %1346 = vmatprep.subr.bf16.mxu0 0
      %1347 = vmatpush1.bf16.msra.mxu0 0
      %1348 = vmatprep.subr.bf16.mxu0 0
      %1349 = vmatpush1.bf16.msra.mxu0 0
      %1350 = vmatprep.subr.bf16.mxu0 0
      %1351 = vmatpush1.bf16.msra.mxu0 0
      %1352 = vmatprep.subr.bf16.mxu0 0
      %1353 = vmatpush1.bf16.msra.mxu0 0
      %1354 = vmatprep.subr.bf16.mxu0 0
      %1355 = vmatpush1.bf16.msra.mxu0 0
      %1356 = vmatprep.subr.bf16.mxu0 0
      %1357 = vmatpush1.bf16.msra.mxu0 0
      %1358 = vmatprep.subr.bf16.mxu0 0
      %1359 = vmatpush1.bf16.msra.mxu0 0
      %1360 = vmatprep.subr.bf16.mxu0 0
      %1361 = vmatpush1.bf16.msra.mxu0 0
      %1362 = vmatprep.subr.bf16.mxu0 0
      %1363 = vmatpush1.bf16.msra.mxu0 0
      %1364 = vmatprep.subr.bf16.mxu0 0
      %1365 = vmatpush1.bf16.msra.mxu0 0
      %1366 = vmatprep.mubr.bf16.mxu0 0
      %1367 = vmatmul.mubr.bf16.gmra.mrb[0].mxu0 %v1332
      %v1368 = vpop.f32.mrb[0].mxu0
      %v1369 = vadd.f32 0.0, %v1368
      %v1370 = vpop.f32.mrb[0].mxu0
      %v1371 = vpop.f32.mrb[0].mxu0
      %v1372 = vadd.f32 0.0, %v1371
      %v1373 = vpop.f32.mrb[0].mxu0
      %1374 = vdwg.mxu0
      %1377 = vrot.lane.b32.xlu0 %v1281, 8
      %v1378 = vpop.permute.xlu0 %1377
      %1379 = vrot.lane.b32.xlu0 %v1284, 8
      %v1380 = vpop.permute.xlu0 %1379
      %1385 = vrot.lane.b32.xlu0 %v1325, 16
      %v1386 = vpop.permute.xlu0 %1385
      %1387 = vrot.lane.b32.xlu0 %v1328, 16
      %v1388 = vpop.permute.xlu0 %1387
      %1393 = vrot.lane.b32.xlu0 %v1369, 24
      %v1394 = vpop.permute.xlu0 %1393
      %1395 = vrot.lane.b32.xlu0 %v1372, 24
      %v1396 = vpop.permute.xlu0 %1395
      %v1399 = vsel %vm909, %v1237, %v1378
      %v1400 = vsel %vm909, %v1240, %v1380
      %v1401 = vsel %vm1106, %v1399, %v1386
      %v1402 = vsel %vm1106, %v1400, %v1388
      %vm1403 = vcmask 195584
      %v1404 = vsel %vm1403, %v1401, %v1394
      %v1405 = vsel %vm1403, %v1402, %v1396
      %v1406 = vpack.c.bf16 %v1405, %v1404
      %v1407 = vld [vmem:[%s6] sm:$0xf]
      %v1408 = vld [vmem:[%s6 + $0x4] sm:$0xf]
      %v1409 = vld [vmem:[%s6 + $0x8] sm:$0xf]
      %v1410 = vld [vmem:[%s6 + $0xc] sm:$0xf]
      %v1411 = vld [vmem:[%s7] sm:$0x1]
      %v1413 = vlaneseq
      %v1414 = vshrl.u32 %v1413, 7
      %v1415 = vsub.s32 0, %v1414
      %v1416 = vrot.slane %v1411, %v1415
      %v1422 = vunpack.c.l.b16 %v1407
      %v1423 = vunpack.c.l.b16 %v1408
      %v1424 = vunpack.c.l.b16 %v1409
      %v1425 = vunpack.c.l.b16 %v1410
      %v1426 = vpack.c.b16 %v1423, %v1422
      %v1427 = vpack.c.b16 %v1425, %v1424
      %v1431 = vsel %vm660, %v1406, 0
      %1433 = vmatprep.subr.bf16.mxu0 0
      %1434 = vmatpush1.bf16.msra.mxu0 %v1426
      %1435 = vmatprep.subr.bf16.mxu0 0
      %1436 = vmatpush1.bf16.msra.mxu0 %v1427
      %1437 = vmatprep.subr.bf16.mxu0 0
      %1438 = vmatpush1.bf16.msra.mxu0 0
      %1439 = vmatprep.subr.bf16.mxu0 0
      %1440 = vmatpush1.bf16.msra.mxu0 0
      %1441 = vmatprep.subr.bf16.mxu0 0
      %1442 = vmatpush1.bf16.msra.mxu0 0
      %1443 = vmatprep.subr.bf16.mxu0 0
      %1444 = vmatpush1.bf16.msra.mxu0 0
      %1445 = vmatprep.subr.bf16.mxu0 0
      %1446 = vmatpush1.bf16.msra.mxu0 0
      %1447 = vmatprep.subr.bf16.mxu0 0
      %1448 = vmatpush1.bf16.msra.mxu0 0
      %1449 = vmatprep.subr.bf16.mxu0 0
      %1450 = vmatpush1.bf16.msra.mxu0 0
      %1451 = vmatprep.subr.bf16.mxu0 0
      %1452 = vmatpush1.bf16.msra.mxu0 0
      %1453 = vmatprep.subr.bf16.mxu0 0
      %1454 = vmatpush1.bf16.msra.mxu0 0
      %1455 = vmatprep.subr.bf16.mxu0 0
      %1456 = vmatpush1.bf16.msra.mxu0 0
      %1457 = vmatprep.subr.bf16.mxu0 0
      %1458 = vmatpush1.bf16.msra.mxu0 0
      %1459 = vmatprep.subr.bf16.mxu0 0
      %1460 = vmatpush1.bf16.msra.mxu0 0
      %1461 = vmatprep.subr.bf16.mxu0 0
      %1462 = vmatpush1.bf16.msra.mxu0 0
      %1463 = vmatprep.subr.bf16.mxu0 0
      %1464 = vmatpush1.bf16.msra.mxu0 0
      %1465 = vmatprep.mubr.bf16.mxu0 0
      %1466 = vmatmul.mubr.bf16.gmra.mrb[0].mxu0 %v1431
      %v1467 = vpop.f32.mrb[0].mxu0
      %v1468 = vadd.f32 %v1416, %v1467
      %v1469 = vpop.f32.mrb[0].mxu0
      %v1470 = vpop.f32.mrb[0].mxu0
      %v1471 = vadd.f32 %v1416, %v1470
      %v1472 = vpop.f32.mrb[0].mxu0
      %1473 = vdwg.mxu0
      %v1474 = vadd.f32 %v634, %v1468
      %v1475 = vadd.f32 %v635, %v1471
      %v1476 = vld [vmem:[%s8] sm:$0x1]
      %v1477 = vld [vmem:[%s8 + $0x1] sm:$0x1]
      %v1478 = vsel %vm660, %v1474, 0.0
      %1479 = vadd.xlane.f32.xlu0 %v1478
      %v1480 = vpop.xlane.xlu0 %1479
      %v1481 = vsel %vm660, %v1475, 0.0
      %1482 = vadd.xlane.f32.xlu0 %v1481
      %v1483 = vpop.xlane.xlu0 %1482
      %v1484 = vrcp.pop 32.0
      %v1485 = vmul.f32 %v1480, %v1484
      %v1486 = vmul.f32 %v1483, %v1484
      %v1487 = vsub.f32 %v1474, %v1485
      %v1488 = vsub.f32 %v1475, %v1486
      %v1489 = vmul.f32 %v1487, %v1487
      %v1490 = vmul.f32 %v1488, %v1488
      %v1491 = vsel %vm660, %v1489, 0.0
      %1492 = vadd.xlane.f32.xlu0 %v1491
      %v1493 = vpop.xlane.xlu0 %1492
      %v1494 = vsel %vm660, %v1490, 0.0
      %1495 = vadd.xlane.f32.xlu0 %v1494
      %v1496 = vpop.xlane.xlu0 %1495
      %v1497 = vmul.f32 %v1493, %v1484
      %v1498 = vmul.f32 %v1496, %v1484
      %v1499 = vadd.f32 %v1497, 1e-05
      %v1500 = vadd.f32 %v1498, 1e-05
      %v1501 = vrsqrt.pop %v1499
      %v1502 = vrsqrt.pop %v1500
      %v1503 = vmul.f32 %v1487, %v1501
      %v1504 = vmul.f32 %v1488, %v1502
      %v1505 = vlaneseq
      %v1506 = vshrl.u32 %v1505, 7
      %v1507 = vsub.s32 0, %v1506
      %v1508 = vrot.slane %v1476, %v1507
      %v1509 = vmul.f32 %v1503, %v1508
      %v1510 = vmul.f32 %v1504, %v1508
      %v1511 = vlaneseq
      %v1512 = vshrl.u32 %v1511, 7
      %v1513 = vsub.s32 0, %v1512
      %v1514 = vrot.slane %v1477, %v1513
      %v1515 = vadd.f32 %v1509, %v1514
      %v1516 = vadd.f32 %v1510, %v1514
      %v1517 = vpack.c.bf16 %v1516, %v1515
      %v1518 = vld [vmem:[%s9] sm:$0xff]
      %v1519 = vld [vmem:[%s9 + $0x40] sm:$0xff]
      %v1520 = vld [vmem:[%s9 + $0x80] sm:$0xff]
      %v1521 = vld [vmem:[%s9 + $0xc0] sm:$0xff]
      %v1522 = vld [vmem:[%s10] sm:$0x3]
      %v1524 = vlaneseq
      %v1525 = vshrl.u32 %v1524, 7
      %v1526 = vsub.s32 0, %v1525
      %v1527 = vrot.slane %v1522, %v1526
      %v1528 = vlaneseq
      %v1529 = vshrl.u32 %v1528, 7
      %v1530 = vsub.s32 1, %v1529
      %v1531 = vrot.slane %v1522, %v1530
      %v1538 = vunpack.c.l.b16 %v1518
      %v1539 = vunpack.c.h.b16 %v1518
      %v1540 = vunpack.c.l.b16 %v1519
      %v1541 = vunpack.c.h.b16 %v1519
      %v1542 = vunpack.c.l.b16 %v1520
      %v1543 = vunpack.c.h.b16 %v1520
      %v1544 = vunpack.c.l.b16 %v1521
      %v1545 = vunpack.c.h.b16 %v1521
      %v1546 = vpack.c.b16 %v1540, %v1538
      %v1547 = vpack.c.b16 %v1541, %v1539
      %v1548 = vpack.c.b16 %v1544, %v1542
      %v1549 = vpack.c.b16 %v1545, %v1543
      %v1555 = vsel %vm660, %v1517, 0
      %1557 = vmatprep.subr.bf16.mxu0 %v1547
      %1558 = vmatpush1.bf16.msra.mxu0 %v1546
      %1559 = vmatprep.subr.bf16.mxu0 %v1549
      %1560 = vmatpush1.bf16.msra.mxu0 %v1548
      %1561 = vmatprep.subr.bf16.mxu0 0
      %1562 = vmatpush1.bf16.msra.mxu0 0
      %1563 = vmatprep.subr.bf16.mxu0 0
      %1564 = vmatpush1.bf16.msra.mxu0 0
      %1565 = vmatprep.subr.bf16.mxu0 0
      %1566 = vmatpush1.bf16.msra.mxu0 0
      %1567 = vmatprep.subr.bf16.mxu0 0
      %1568 = vmatpush1.bf16.msra.mxu0 0
      %1569 = vmatprep.subr.bf16.mxu0 0
      %1570 = vmatpush1.bf16.msra.mxu0 0
      %1571 = vmatprep.subr.bf16.mxu0 0
      %1572 = vmatpush1.bf16.msra.mxu0 0
      %1573 = vmatprep.subr.bf16.mxu0 0
      %1574 = vmatpush1.bf16.msra.mxu0 0
      %1575 = vmatprep.subr.bf16.mxu0 0
      %1576 = vmatpush1.bf16.msra.mxu0 0
      %1577 = vmatprep.subr.bf16.mxu0 0
      %1578 = vmatpush1.bf16.msra.mxu0 0
      %1579 = vmatprep.subr.bf16.mxu0 0
      %1580 = vmatpush1.bf16.msra.mxu0 0
      %1581 = vmatprep.subr.bf16.mxu0 0
      %1582 = vmatpush1.bf16.msra.mxu0 0
      %1583 = vmatprep.subr.bf16.mxu0 0
      %1584 = vmatpush1.bf16.msra.mxu0 0
      %1585 = vmatprep.subr.bf16.mxu0 0
      %1586 = vmatpush1.bf16.msra.mxu0 0
      %1587 = vmatprep.subr.bf16.mxu0 0
      %1588 = vmatpush1.bf16.msra.mxu0 0
      %1589 = vmatprep.mubr.bf16.mxu0 0
      %1590 = vmatmul.mubr.bf16.gmra.mrb[0].mxu0 %v1555
      %v1591 = vpop.f32.mrb[0].mxu0
      %v1592 = vadd.f32 %v1527, %v1591
      %v1593 = vpop.f32.mrb[0].mxu0
      %v1594 = vadd.f32 %v1531, %v1593
      %v1595 = vpop.f32.mrb[0].mxu0
      %v1596 = vadd.f32 %v1527, %v1595
      %v1597 = vpop.f32.mrb[0].mxu0
      %v1598 = vadd.f32 %v1531, %v1597
      %1599 = vdwg.mxu0
      %v1600 = vmax.f32 %v1592, 0.0
      %v1601 = vmax.f32 %v1594, 0.0
      %v1602 = vmax.f32 %v1596, 0.0
      %v1603 = vmax.f32 %v1598, 0.0
      %v1604 = vpack.c.bf16 %v1602, %v1600
      %v1605 = vpack.c.bf16 %v1603, %v1601
      %v1606 = vld [vmem:[%s11] sm:$0xff]
      %v1607 = vld [vmem:[%s11 + $0x40] sm:$0xff]
      %v1608 = vld [vmem:[%s11 + $0x80] sm:$0xff]
      %v1609 = vld [vmem:[%s11 + $0xc0] sm:$0xff]
      %s1610 = scalar_lea.vmem %s9, 8
      %v1611 = vld [vmem:[%s1610] sm:$0xff]
      %v1612 = vld [vmem:[%s1610 + $0x40] sm:$0xff]
      %v1613 = vld [vmem:[%s1610 + $0x80] sm:$0xff]
      %v1614 = vld [vmem:[%s1610 + $0xc0] sm:$0xff]
      %s1615 = scalar_lea.vmem %s10, 2
      %v1616 = vld [vmem:[%s1615] sm:$0x3]
      %v1618 = vlaneseq
      %v1619 = vshrl.u32 %v1618, 7
      %v1620 = vsub.s32 0, %v1619
      %v1621 = vrot.slane %v1616, %v1620
      %v1622 = vlaneseq
      %v1623 = vshrl.u32 %v1622, 7
      %v1624 = vsub.s32 1, %v1623
      %v1625 = vrot.slane %v1616, %v1624
      %v1632 = vunpack.c.l.b16 %v1611
      %v1633 = vunpack.c.h.b16 %v1611
      %v1634 = vunpack.c.l.b16 %v1612
      %v1635 = vunpack.c.h.b16 %v1612
      %v1636 = vunpack.c.l.b16 %v1613
      %v1637 = vunpack.c.h.b16 %v1613
      %v1638 = vunpack.c.l.b16 %v1614
      %v1639 = vunpack.c.h.b16 %v1614
      %v1640 = vpack.c.b16 %v1634, %v1632
      %v1641 = vpack.c.b16 %v1635, %v1633
      %v1642 = vpack.c.b16 %v1638, %v1636
      %v1643 = vpack.c.b16 %v1639, %v1637
      %1648 = vmatprep.subr.bf16.mxu0 %v1641
      %1649 = vmatpush1.bf16.msra.mxu0 %v1640
      %1650 = vmatprep.subr.bf16.mxu0 %v1643
      %1651 = vmatpush1.bf16.msra.mxu0 %v1642
      %1652 = vmatprep.subr.bf16.mxu0 0
      %1653 = vmatpush1.bf16.msra.mxu0 0
      %1654 = vmatprep.subr.bf16.mxu0 0
      %1655 = vmatpush1.bf16.msra.mxu0 0
      %1656 = vmatprep.subr.bf16.mxu0 0
      %1657 = vmatpush1.bf16.msra.mxu0 0
      %1658 = vmatprep.subr.bf16.mxu0 0
      %1659 = vmatpush1.bf16.msra.mxu0 0
      %1660 = vmatprep.subr.bf16.mxu0 0
      %1661 = vmatpush1.bf16.msra.mxu0 0
      %1662 = vmatprep.subr.bf16.mxu0 0
      %1663 = vmatpush1.bf16.msra.mxu0 0
      %1664 = vmatprep.subr.bf16.mxu0 0
      %1665 = vmatpush1.bf16.msra.mxu0 0
      %1666 = vmatprep.subr.bf16.mxu0 0
      %1667 = vmatpush1.bf16.msra.mxu0 0
      %1668 = vmatprep.subr.bf16.mxu0 0
      %1669 = vmatpush1.bf16.msra.mxu0 0
      %1670 = vmatprep.subr.bf16.mxu0 0
      %1671 = vmatpush1.bf16.msra.mxu0 0
      %1672 = vmatprep.subr.bf16.mxu0 0
      %1673 = vmatpush1.bf16.msra.mxu0 0
      %1674 = vmatprep.subr.bf16.mxu0 0
      %1675 = vmatpush1.bf16.msra.mxu0 0
      %1676 = vmatprep.subr.bf16.mxu0 0
      %1677 = vmatpush1.bf16.msra.mxu0 0
      %1678 = vmatprep.subr.bf16.mxu0 0
      %1679 = vmatpush1.bf16.msra.mxu0 0
      %1680 = vmatprep.mubr.bf16.mxu0 0
      %1681 = vmatmul.mubr.bf16.gmra.mrb[0].mxu0 %v1555
      %v1682 = vpop.f32.mrb[0].mxu0
      %v1683 = vadd.f32 %v1621, %v1682
      %v1684 = vpop.f32.mrb[0].mxu0
      %v1685 = vadd.f32 %v1625, %v1684
      %v1686 = vpop.f32.mrb[0].mxu0
      %v1687 = vadd.f32 %v1621, %v1686
      %v1688 = vpop.f32.mrb[0].mxu0
      %v1689 = vadd.f32 %v1625, %v1688
      %1690 = vdwg.mxu0
      %v1691 = vmax.f32 %v1683, 0.0
      %v1692 = vmax.f32 %v1685, 0.0
      %v1693 = vmax.f32 %v1687, 0.0
      %v1694 = vmax.f32 %v1689, 0.0
      %v1695 = vpack.c.bf16 %v1693, %v1691
      %v1696 = vpack.c.bf16 %v1694, %v1692
      %s1697 = scalar_lea.vmem %s11, 8
      %v1698 = vld [vmem:[%s1697] sm:$0xff]
      %v1699 = vld [vmem:[%s1697 + $0x40] sm:$0xff]
      %v1700 = vld [vmem:[%s1697 + $0x80] sm:$0xff]
      %v1701 = vld [vmem:[%s1697 + $0xc0] sm:$0xff]
      %v1706 = vunpack.c.l.b16 %v1698
      %v1707 = vunpack.c.h.b16 %v1698
      %v1708 = vunpack.c.l.b16 %v1699
      %v1709 = vunpack.c.h.b16 %v1699
      %v1710 = vunpack.c.l.b16 %v1700
      %v1711 = vunpack.c.h.b16 %v1700
      %v1712 = vunpack.c.l.b16 %v1701
      %v1713 = vunpack.c.h.b16 %v1701
      %v1714 = vpack.c.b16 %v1708, %v1706
      %v1715 = vpack.c.b16 %v1709, %v1707
      %v1716 = vpack.c.b16 %v1712, %v1710
      %v1717 = vpack.c.b16 %v1713, %v1711
      %1722 = vmatprep.subr.bf16.mxu0 %v1715
      %1723 = vmatpush1.bf16.xpose.msra.mxu0 %v1714
      %1724 = vmatprep.subr.bf16.mxu0 %v1717
      %1725 = vmatpush1.bf16.xpose.msra.mxu0 %v1716
      %1726 = vmatprep.subr.bf16.mxu0 0
      %1727 = vmatpush1.bf16.xpose.msra.mxu0 0
      %1728 = vmatprep.subr.bf16.mxu0 0
      %1729 = vmatpush1.bf16.xpose.msra.mxu0 0
      %1730 = vmatprep.subr.bf16.mxu0 0
      %1731 = vmatpush1.bf16.xpose.msra.mxu0 0
      %1732 = vmatprep.subr.bf16.mxu0 0
      %1733 = vmatpush1.bf16.xpose.msra.mxu0 0
      %1734 = vmatprep.subr.bf16.mxu0 0
      %1735 = vmatpush1.bf16.xpose.msra.mxu0 0
      %1736 = vmatprep.subr.bf16.mxu0 0
      %1737 = vmatpush1.bf16.xpose.msra.mxu0 0
      %1738 = vmatprep.subr.bf16.mxu0 0
      %1739 = vmatpush1.bf16.xpose.msra.mxu0 0
      %1740 = vmatprep.subr.bf16.mxu0 0
      %1741 = vmatpush1.bf16.xpose.msra.mxu0 0
      %1742 = vmatprep.subr.bf16.mxu0 0
      %1743 = vmatpush1.bf16.xpose.msra.mxu0 0
      %1744 = vmatprep.subr.bf16.mxu0 0
      %1745 = vmatpush1.bf16.xpose.msra.mxu0 0
      %1746 = vmatprep.subr.bf16.mxu0 0
      %1747 = vmatpush1.bf16.xpose.msra.mxu0 0
      %1748 = vmatprep.subr.bf16.mxu0 0
      %1749 = vmatpush1.bf16.xpose.msra.mxu0 0
      %1750 = vmatprep.subr.bf16.mxu0 0
      %1751 = vmatpush1.bf16.xpose.msra.mxu0 0
      %1752 = vmatprep.subr.bf16.mxu0 0
      %1753 = vmatpush1.bf16.xpose.msra.mxu0 0
      %1754 = vmatprep.mubr.bf16.mxu0 %v1696
      %1755 = vmatmul.mubr.bf16.gmra.mrb[0].mxu0 %v1695
      %v1756 = vpop.f32.mrb[0].mxu0
      %v1757 = vadd.f32 0.0, %v1756
      %v1758 = vpop.f32.mrb[0].mxu0
      %v1759 = vpop.f32.mrb[0].mxu0
      %v1760 = vadd.f32 0.0, %v1759
      %v1761 = vpop.f32.mrb[0].mxu0
      %1762 = vdwg.mxu0
      %v1767 = vunpack.c.l.b16 %v1606
      %v1768 = vunpack.c.h.b16 %v1606
      %v1769 = vunpack.c.l.b16 %v1607
      %v1770 = vunpack.c.h.b16 %v1607
      %v1771 = vunpack.c.l.b16 %v1608
      %v1772 = vunpack.c.h.b16 %v1608
      %v1773 = vunpack.c.l.b16 %v1609
      %v1774 = vunpack.c.h.b16 %v1609
      %v1775 = vpack.c.b16 %v1769, %v1767
      %v1776 = vpack.c.b16 %v1770, %v1768
      %v1777 = vpack.c.b16 %v1773, %v1771
      %v1778 = vpack.c.b16 %v1774, %v1772
      %1783 = vmatprep.subr.bf16.mxu0 %v1776
      %1784 = vmatpush1.bf16.xpose.msra.mxu0 %v1775
      %1785 = vmatprep.subr.bf16.mxu0 %v1778
      %1786 = vmatpush1.bf16.xpose.msra.mxu0 %v1777
      %1787 = vmatprep.subr.bf16.mxu0 0
      %1788 = vmatpush1.bf16.xpose.msra.mxu0 0
      %1789 = vmatprep.subr.bf16.mxu0 0
      %1790 = vmatpush1.bf16.xpose.msra.mxu0 0
      %1791 = vmatprep.subr.bf16.mxu0 0
      %1792 = vmatpush1.bf16.xpose.msra.mxu0 0
      %1793 = vmatprep.subr.bf16.mxu0 0
      %1794 = vmatpush1.bf16.xpose.msra.mxu0 0
      %1795 = vmatprep.subr.bf16.mxu0 0
      %1796 = vmatpush1.bf16.xpose.msra.mxu0 0
      %1797 = vmatprep.subr.bf16.mxu0 0
      %1798 = vmatpush1.bf16.xpose.msra.mxu0 0
      %1799 = vmatprep.subr.bf16.mxu0 0
      %1800 = vmatpush1.bf16.xpose.msra.mxu0 0
      %1801 = vmatprep.subr.bf16.mxu0 0
      %1802 = vmatpush1.bf16.xpose.msra.mxu0 0
      %1803 = vmatprep.subr.bf16.mxu0 0
      %1804 = vmatpush1.bf16.xpose.msra.mxu0 0
      %1805 = vmatprep.subr.bf16.mxu0 0
      %1806 = vmatpush1.bf16.xpose.msra.mxu0 0
      %1807 = vmatprep.subr.bf16.mxu0 0
      %1808 = vmatpush1.bf16.xpose.msra.mxu0 0
      %1809 = vmatprep.subr.bf16.mxu0 0
      %1810 = vmatpush1.bf16.xpose.msra.mxu0 0
      %1811 = vmatprep.subr.bf16.mxu0 0
      %1812 = vmatpush1.bf16.xpose.msra.mxu0 0
      %1813 = vmatprep.subr.bf16.mxu0 0
      %1814 = vmatpush1.bf16.xpose.msra.mxu0 0
      %1815 = vmatprep.mubr.bf16.mxu0 %v1605
      %1816 = vmatmul.mubr.bf16.gmra.mrb[0].mxu0 %v1604
      %v1817 = vpop.f32.mrb[0].mxu0
      %v1818 = vadd.f32 %v1757, %v1817
      %v1819 = vpop.f32.mrb[0].mxu0
      %v1820 = vpop.f32.mrb[0].mxu0
      %v1821 = vadd.f32 %v1760, %v1820
      %v1822 = vpop.f32.mrb[0].mxu0
      %1823 = vdwg.mxu0
      %s1824 = scalar_lea.vmem %s9, 16
      %v1825 = vld [vmem:[%s1824] sm:$0xff]
      %v1826 = vld [vmem:[%s1824 + $0x40] sm:$0xff]
      %v1827 = vld [vmem:[%s1824 + $0x80] sm:$0xff]
      %v1828 = vld [vmem:[%s1824 + $0xc0] sm:$0xff]
      %s1829 = scalar_lea.vmem %s10, 4
      %v1830 = vld [vmem:[%s1829] sm:$0x3]
      %v1832 = vlaneseq
      %v1833 = vshrl.u32 %v1832, 7
      %v1834 = vsub.s32 0, %v1833
      %v1835 = vrot.slane %v1830, %v1834
      %v1836 = vlaneseq
      %v1837 = vshrl.u32 %v1836, 7
      %v1838 = vsub.s32 1, %v1837
      %v1839 = vrot.slane %v1830, %v1838
      %v1846 = vunpack.c.l.b16 %v1825
      %v1847 = vunpack.c.h.b16 %v1825
      %v1848 = vunpack.c.l.b16 %v1826
      %v1849 = vunpack.c.h.b16 %v1826
      %v1850 = vunpack.c.l.b16 %v1827
      %v1851 = vunpack.c.h.b16 %v1827
      %v1852 = vunpack.c.l.b16 %v1828
      %v1853 = vunpack.c.h.b16 %v1828
      %v1854 = vpack.c.b16 %v1848, %v1846
      %v1855 = vpack.c.b16 %v1849, %v1847
      %v1856 = vpack.c.b16 %v1852, %v1850
      %v1857 = vpack.c.b16 %v1853, %v1851
      %1862 = vmatprep.subr.bf16.mxu0 %v1855
      %1863 = vmatpush1.bf16.msra.mxu0 %v1854
      %1864 = vmatprep.subr.bf16.mxu0 %v1857
      %1865 = vmatpush1.bf16.msra.mxu0 %v1856
      %1866 = vmatprep.subr.bf16.mxu0 0
      %1867 = vmatpush1.bf16.msra.mxu0 0
      %1868 = vmatprep.subr.bf16.mxu0 0
      %1869 = vmatpush1.bf16.msra.mxu0 0
      %1870 = vmatprep.subr.bf16.mxu0 0
      %1871 = vmatpush1.bf16.msra.mxu0 0
      %1872 = vmatprep.subr.bf16.mxu0 0
      %1873 = vmatpush1.bf16.msra.mxu0 0
      %1874 = vmatprep.subr.bf16.mxu0 0
      %1875 = vmatpush1.bf16.msra.mxu0 0
      %1876 = vmatprep.subr.bf16.mxu0 0
      %1877 = vmatpush1.bf16.msra.mxu0 0
      %1878 = vmatprep.subr.bf16.mxu0 0
      %1879 = vmatpush1.bf16.msra.mxu0 0
      %1880 = vmatprep.subr.bf16.mxu0 0
      %1881 = vmatpush1.bf16.msra.mxu0 0
      %1882 = vmatprep.subr.bf16.mxu0 0
      %1883 = vmatpush1.bf16.msra.mxu0 0
      %1884 = vmatprep.subr.bf16.mxu0 0
      %1885 = vmatpush1.bf16.msra.mxu0 0
      %1886 = vmatprep.subr.bf16.mxu0 0
      %1887 = vmatpush1.bf16.msra.mxu0 0
      %1888 = vmatprep.subr.bf16.mxu0 0
      %1889 = vmatpush1.bf16.msra.mxu0 0
      %1890 = vmatprep.subr.bf16.mxu0 0
      %1891 = vmatpush1.bf16.msra.mxu0 0
      %1892 = vmatprep.subr.bf16.mxu0 0
      %1893 = vmatpush1.bf16.msra.mxu0 0
      %1894 = vmatprep.mubr.bf16.mxu0 0
      %1895 = vmatmul.mubr.bf16.gmra.mrb[0].mxu0 %v1555
      %v1896 = vpop.f32.mrb[0].mxu0
      %v1897 = vadd.f32 %v1835, %v1896
      %v1898 = vpop.f32.mrb[0].mxu0
      %v1899 = vadd.f32 %v1839, %v1898
      %v1900 = vpop.f32.mrb[0].mxu0
      %v1901 = vadd.f32 %v1835, %v1900
      %v1902 = vpop.f32.mrb[0].mxu0
      %v1903 = vadd.f32 %v1839, %v1902
      %1904 = vdwg.mxu0
      %v1905 = vmax.f32 %v1897, 0.0
      %v1906 = vmax.f32 %v1899, 0.0
      %v1907 = vmax.f32 %v1901, 0.0
      %v1908 = vmax.f32 %v1903, 0.0
      %v1909 = vpack.c.bf16 %v1907, %v1905
      %v1910 = vpack.c.bf16 %v1908, %v1906
      %s1911 = scalar_lea.vmem %s11, 16
      %v1912 = vld [vmem:[%s1911] sm:$0xff]
      %v1913 = vld [vmem:[%s1911 + $0x40] sm:$0xff]
      %v1914 = vld [vmem:[%s1911 + $0x80] sm:$0xff]
      %v1915 = vld [vmem:[%s1911 + $0xc0] sm:$0xff]
      %v1920 = vunpack.c.l.b16 %v1912
      %v1921 = vunpack.c.h.b16 %v1912
      %v1922 = vunpack.c.l.b16 %v1913
      %v1923 = vunpack.c.h.b16 %v1913
      %v1924 = vunpack.c.l.b16 %v1914
      %v1925 = vunpack.c.h.b16 %v1914
      %v1926 = vunpack.c.l.b16 %v1915
      %v1927 = vunpack.c.h.b16 %v1915
      %v1928 = vpack.c.b16 %v1922, %v1920
      %v1929 = vpack.c.b16 %v1923, %v1921
      %v1930 = vpack.c.b16 %v1926, %v1924
      %v1931 = vpack.c.b16 %v1927, %v1925
      %1936 = vmatprep.subr.bf16.mxu0 %v1929
      %1937 = vmatpush1.bf16.xpose.msra.mxu0 %v1928
      %1938 = vmatprep.subr.bf16.mxu0 %v1931
      %1939 = vmatpush1.bf16.xpose.msra.mxu0 %v1930
      %1940 = vmatprep.subr.bf16.mxu0 0
      %1941 = vmatpush1.bf16.xpose.msra.mxu0 0
      %1942 = vmatprep.subr.bf16.mxu0 0
      %1943 = vmatpush1.bf16.xpose.msra.mxu0 0
      %1944 = vmatprep.subr.bf16.mxu0 0
      %1945 = vmatpush1.bf16.xpose.msra.mxu0 0
      %1946 = vmatprep.subr.bf16.mxu0 0
      %1947 = vmatpush1.bf16.xpose.msra.mxu0 0
      %1948 = vmatprep.subr.bf16.mxu0 0
      %1949 = vmatpush1.bf16.xpose.msra.mxu0 0
      %1950 = vmatprep.subr.bf16.mxu0 0
      %1951 = vmatpush1.bf16.xpose.msra.mxu0 0
      %1952 = vmatprep.subr.bf16.mxu0 0
      %1953 = vmatpush1.bf16.xpose.msra.mxu0 0
      %1954 = vmatprep.subr.bf16.mxu0 0
      %1955 = vmatpush1.bf16.xpose.msra.mxu0 0
      %1956 = vmatprep.subr.bf16.mxu0 0
      %1957 = vmatpush1.bf16.xpose.msra.mxu0 0
      %1958 = vmatprep.subr.bf16.mxu0 0
      %1959 = vmatpush1.bf16.xpose.msra.mxu0 0
      %1960 = vmatprep.subr.bf16.mxu0 0
      %1961 = vmatpush1.bf16.xpose.msra.mxu0 0
      %1962 = vmatprep.subr.bf16.mxu0 0
      %1963 = vmatpush1.bf16.xpose.msra.mxu0 0
      %1964 = vmatprep.subr.bf16.mxu0 0
      %1965 = vmatpush1.bf16.xpose.msra.mxu0 0
      %1966 = vmatprep.subr.bf16.mxu0 0
      %1967 = vmatpush1.bf16.xpose.msra.mxu0 0
      %1968 = vmatprep.mubr.bf16.mxu0 %v1910
      %1969 = vmatmul.mubr.bf16.gmra.mrb[0].mxu0 %v1909
      %v1970 = vpop.f32.mrb[0].mxu0
      %v1971 = vadd.f32 0.0, %v1970
      %v1972 = vpop.f32.mrb[0].mxu0
      %v1973 = vpop.f32.mrb[0].mxu0
      %v1974 = vadd.f32 0.0, %v1973
      %v1975 = vpop.f32.mrb[0].mxu0
      %1976 = vdwg.mxu0
      %v1977 = vadd.f32 %v1818, %v1971
      %v1978 = vadd.f32 %v1821, %v1974
      %s1979 = scalar_lea.vmem %s9, 24
      %v1980 = vld [vmem:[%s1979] sm:$0xff]
      %v1981 = vld [vmem:[%s1979 + $0x40] sm:$0xff]
      %v1982 = vld [vmem:[%s1979 + $0x80] sm:$0xff]
      %v1983 = vld [vmem:[%s1979 + $0xc0] sm:$0xff]
      %s1984 = scalar_lea.vmem %s10, 6
      %v1985 = vld [vmem:[%s1984] sm:$0x3]
      %v1987 = vlaneseq
      %v1988 = vshrl.u32 %v1987, 7
      %v1989 = vsub.s32 0, %v1988
      %v1990 = vrot.slane %v1985, %v1989
      %v1991 = vlaneseq
      %v1992 = vshrl.u32 %v1991, 7
      %v1993 = vsub.s32 1, %v1992
      %v1994 = vrot.slane %v1985, %v1993
      %v2001 = vunpack.c.l.b16 %v1980
      %v2002 = vunpack.c.h.b16 %v1980
      %v2003 = vunpack.c.l.b16 %v1981
      %v2004 = vunpack.c.h.b16 %v1981
      %v2005 = vunpack.c.l.b16 %v1982
      %v2006 = vunpack.c.h.b16 %v1982
      %v2007 = vunpack.c.l.b16 %v1983
      %v2008 = vunpack.c.h.b16 %v1983
      %v2009 = vpack.c.b16 %v2003, %v2001
      %v2010 = vpack.c.b16 %v2004, %v2002
      %v2011 = vpack.c.b16 %v2007, %v2005
      %v2012 = vpack.c.b16 %v2008, %v2006
      %2017 = vmatprep.subr.bf16.mxu0 %v2010
      %2018 = vmatpush1.bf16.msra.mxu0 %v2009
      %2019 = vmatprep.subr.bf16.mxu0 %v2012
      %2020 = vmatpush1.bf16.msra.mxu0 %v2011
      %2021 = vmatprep.subr.bf16.mxu0 0
      %2022 = vmatpush1.bf16.msra.mxu0 0
      %2023 = vmatprep.subr.bf16.mxu0 0
      %2024 = vmatpush1.bf16.msra.mxu0 0
      %2025 = vmatprep.subr.bf16.mxu0 0
      %2026 = vmatpush1.bf16.msra.mxu0 0
      %2027 = vmatprep.subr.bf16.mxu0 0
      %2028 = vmatpush1.bf16.msra.mxu0 0
      %2029 = vmatprep.subr.bf16.mxu0 0
      %2030 = vmatpush1.bf16.msra.mxu0 0
      %2031 = vmatprep.subr.bf16.mxu0 0
      %2032 = vmatpush1.bf16.msra.mxu0 0
      %2033 = vmatprep.subr.bf16.mxu0 0
      %2034 = vmatpush1.bf16.msra.mxu0 0
      %2035 = vmatprep.subr.bf16.mxu0 0
      %2036 = vmatpush1.bf16.msra.mxu0 0
      %2037 = vmatprep.subr.bf16.mxu0 0
      %2038 = vmatpush1.bf16.msra.mxu0 0
      %2039 = vmatprep.subr.bf16.mxu0 0
      %2040 = vmatpush1.bf16.msra.mxu0 0
      %2041 = vmatprep.subr.bf16.mxu0 0
      %2042 = vmatpush1.bf16.msra.mxu0 0
      %2043 = vmatprep.subr.bf16.mxu0 0
      %2044 = vmatpush1.bf16.msra.mxu0 0
      %2045 = vmatprep.subr.bf16.mxu0 0
      %2046 = vmatpush1.bf16.msra.mxu0 0
      %2047 = vmatprep.subr.bf16.mxu0 0
      %2048 = vmatpush1.bf16.msra.mxu0 0
      %2049 = vmatprep.mubr.bf16.mxu0 0
      %2050 = vmatmul.mubr.bf16.gmra.mrb[0].mxu0 %v1555
      %v2051 = vpop.f32.mrb[0].mxu0
      %v2052 = vadd.f32 %v1990, %v2051
      %v2053 = vpop.f32.mrb[0].mxu0
      %v2054 = vadd.f32 %v1994, %v2053
      %v2055 = vpop.f32.mrb[0].mxu0
      %v2056 = vadd.f32 %v1990, %v2055
      %v2057 = vpop.f32.mrb[0].mxu0
      %v2058 = vadd.f32 %v1994, %v2057
      %2059 = vdwg.mxu0
      %v2060 = vmax.f32 %v2052, 0.0
      %v2061 = vmax.f32 %v2054, 0.0
      %v2062 = vmax.f32 %v2056, 0.0
      %v2063 = vmax.f32 %v2058, 0.0
      %v2064 = vpack.c.bf16 %v2062, %v2060
      %v2065 = vpack.c.bf16 %v2063, %v2061
      %s2066 = scalar_lea.vmem %s11, 24
      %v2067 = vld [vmem:[%s2066] sm:$0xff]
      %v2068 = vld [vmem:[%s2066 + $0x40] sm:$0xff]
      %v2069 = vld [vmem:[%s2066 + $0x80] sm:$0xff]
      %v2070 = vld [vmem:[%s2066 + $0xc0] sm:$0xff]
      %v2075 = vunpack.c.l.b16 %v2067
      %v2076 = vunpack.c.h.b16 %v2067
      %v2077 = vunpack.c.l.b16 %v2068
      %v2078 = vunpack.c.h.b16 %v2068
      %v2079 = vunpack.c.l.b16 %v2069
      %v2080 = vunpack.c.h.b16 %v2069
      %v2081 = vunpack.c.l.b16 %v2070
      %v2082 = vunpack.c.h.b16 %v2070
      %v2083 = vpack.c.b16 %v2077, %v2075
      %v2084 = vpack.c.b16 %v2078, %v2076
      %v2085 = vpack.c.b16 %v2081, %v2079
      %v2086 = vpack.c.b16 %v2082, %v2080
      %2091 = vmatprep.subr.bf16.mxu0 %v2084
      %2092 = vmatpush1.bf16.xpose.msra.mxu0 %v2083
      %2093 = vmatprep.subr.bf16.mxu0 %v2086
      %2094 = vmatpush1.bf16.xpose.msra.mxu0 %v2085
      %2095 = vmatprep.subr.bf16.mxu0 0
      %2096 = vmatpush1.bf16.xpose.msra.mxu0 0
      %2097 = vmatprep.subr.bf16.mxu0 0
      %2098 = vmatpush1.bf16.xpose.msra.mxu0 0
      %2099 = vmatprep.subr.bf16.mxu0 0
      %2100 = vmatpush1.bf16.xpose.msra.mxu0 0
      %2101 = vmatprep.subr.bf16.mxu0 0
      %2102 = vmatpush1.bf16.xpose.msra.mxu0 0
      %2103 = vmatprep.subr.bf16.mxu0 0
      %2104 = vmatpush1.bf16.xpose.msra.mxu0 0
      %2105 = vmatprep.subr.bf16.mxu0 0
      %2106 = vmatpush1.bf16.xpose.msra.mxu0 0
      %2107 = vmatprep.subr.bf16.mxu0 0
      %2108 = vmatpush1.bf16.xpose.msra.mxu0 0
      %2109 = vmatprep.subr.bf16.mxu0 0
      %2110 = vmatpush1.bf16.xpose.msra.mxu0 0
      %2111 = vmatprep.subr.bf16.mxu0 0
      %2112 = vmatpush1.bf16.xpose.msra.mxu0 0
      %2113 = vmatprep.subr.bf16.mxu0 0
      %2114 = vmatpush1.bf16.xpose.msra.mxu0 0
      %2115 = vmatprep.subr.bf16.mxu0 0
      %2116 = vmatpush1.bf16.xpose.msra.mxu0 0
      %2117 = vmatprep.subr.bf16.mxu0 0
      %2118 = vmatpush1.bf16.xpose.msra.mxu0 0
      %2119 = vmatprep.subr.bf16.mxu0 0
      %2120 = vmatpush1.bf16.xpose.msra.mxu0 0
      %2121 = vmatprep.subr.bf16.mxu0 0
      %2122 = vmatpush1.bf16.xpose.msra.mxu0 0
      %2123 = vmatprep.mubr.bf16.mxu0 %v2065
      %2124 = vmatmul.mubr.bf16.gmra.mrb[0].mxu0 %v2064
      %v2125 = vpop.f32.mrb[0].mxu0
      %v2126 = vadd.f32 0.0, %v2125
      %v2127 = vpop.f32.mrb[0].mxu0
      %v2128 = vpop.f32.mrb[0].mxu0
      %v2129 = vadd.f32 0.0, %v2128
      %v2130 = vpop.f32.mrb[0].mxu0
      %2131 = vdwg.mxu0
      %v2132 = vadd.f32 %v1977, %v2126
      %v2133 = vadd.f32 %v1978, %v2129
      %s2134 = scalar_lea.vmem %s9, 32
      %v2135 = vld [vmem:[%s2134] sm:$0xff]
      %v2136 = vld [vmem:[%s2134 + $0x40] sm:$0xff]
      %v2137 = vld [vmem:[%s2134 + $0x80] sm:$0xff]
      %v2138 = vld [vmem:[%s2134 + $0xc0] sm:$0xff]
      %s2139 = scalar_lea.vmem %s10, 8
      %v2140 = vld [vmem:[%s2139] sm:$0x3]
      %v2142 = vlaneseq
      %v2143 = vshrl.u32 %v2142, 7
      %v2144 = vsub.s32 0, %v2143
      %v2145 = vrot.slane %v2140, %v2144
      %v2146 = vlaneseq
      %v2147 = vshrl.u32 %v2146, 7
      %v2148 = vsub.s32 1, %v2147
      %v2149 = vrot.slane %v2140, %v2148
      %v2156 = vunpack.c.l.b16 %v2135
      %v2157 = vunpack.c.h.b16 %v2135
      %v2158 = vunpack.c.l.b16 %v2136
      %v2159 = vunpack.c.h.b16 %v2136
      %v2160 = vunpack.c.l.b16 %v2137
      %v2161 = vunpack.c.h.b16 %v2137
      %v2162 = vunpack.c.l.b16 %v2138
      %v2163 = vunpack.c.h.b16 %v2138
      %v2164 = vpack.c.b16 %v2158, %v2156
      %v2165 = vpack.c.b16 %v2159, %v2157
      %v2166 = vpack.c.b16 %v2162, %v2160
      %v2167 = vpack.c.b16 %v2163, %v2161
      %2172 = vmatprep.subr.bf16.mxu0 %v2165
      %2173 = vmatpush1.bf16.msra.mxu0 %v2164
      %2174 = vmatprep.subr.bf16.mxu0 %v2167
      %2175 = vmatpush1.bf16.msra.mxu0 %v2166
      %2176 = vmatprep.subr.bf16.mxu0 0
      %2177 = vmatpush1.bf16.msra.mxu0 0
      %2178 = vmatprep.subr.bf16.mxu0 0
      %2179 = vmatpush1.bf16.msra.mxu0 0
      %2180 = vmatprep.subr.bf16.mxu0 0
      %2181 = vmatpush1.bf16.msra.mxu0 0
      %2182 = vmatprep.subr.bf16.mxu0 0
      %2183 = vmatpush1.bf16.msra.mxu0 0
      %2184 = vmatprep.subr.bf16.mxu0 0
      %2185 = vmatpush1.bf16.msra.mxu0 0
      %2186 = vmatprep.subr.bf16.mxu0 0
      %2187 = vmatpush1.bf16.msra.mxu0 0
      %2188 = vmatprep.subr.bf16.mxu0 0
      %2189 = vmatpush1.bf16.msra.mxu0 0
      %2190 = vmatprep.subr.bf16.mxu0 0
      %2191 = vmatpush1.bf16.msra.mxu0 0
      %2192 = vmatprep.subr.bf16.mxu0 0
      %2193 = vmatpush1.bf16.msra.mxu0 0
      %2194 = vmatprep.subr.bf16.mxu0 0
      %2195 = vmatpush1.bf16.msra.mxu0 0
      %2196 = vmatprep.subr.bf16.mxu0 0
      %2197 = vmatpush1.bf16.msra.mxu0 0
      %2198 = vmatprep.subr.bf16.mxu0 0
      %2199 = vmatpush1.bf16.msra.mxu0 0
      %2200 = vmatprep.subr.bf16.mxu0 0
      %2201 = vmatpush1.bf16.msra.mxu0 0
      %2202 = vmatprep.subr.bf16.mxu0 0
      %2203 = vmatpush1.bf16.msra.mxu0 0
      %2204 = vmatprep.mubr.bf16.mxu0 0
      %2205 = vmatmul.mubr.bf16.gmra.mrb[0].mxu0 %v1555
      %v2206 = vpop.f32.mrb[0].mxu0
      %v2207 = vadd.f32 %v2145, %v2206
      %v2208 = vpop.f32.mrb[0].mxu0
      %v2209 = vadd.f32 %v2149, %v2208
      %v2210 = vpop.f32.mrb[0].mxu0
      %v2211 = vadd.f32 %v2145, %v2210
      %v2212 = vpop.f32.mrb[0].mxu0
      %v2213 = vadd.f32 %v2149, %v2212
      %2214 = vdwg.mxu0
      %v2215 = vmax.f32 %v2207, 0.0
      %v2216 = vmax.f32 %v2209, 0.0
      %v2217 = vmax.f32 %v2211, 0.0
      %v2218 = vmax.f32 %v2213, 0.0
      %v2219 = vpack.c.bf16 %v2217, %v2215
      %v2220 = vpack.c.bf16 %v2218, %v2216
      %s2221 = scalar_lea.vmem %s11, 32
      %v2222 = vld [vmem:[%s2221] sm:$0xff]
      %v2223 = vld [vmem:[%s2221 + $0x40] sm:$0xff]
      %v2224 = vld [vmem:[%s2221 + $0x80] sm:$0xff]
      %v2225 = vld [vmem:[%s2221 + $0xc0] sm:$0xff]
      %v2230 = vunpack.c.l.b16 %v2222
      %v2231 = vunpack.c.h.b16 %v2222
      %v2232 = vunpack.c.l.b16 %v2223
      %v2233 = vunpack.c.h.b16 %v2223
      %v2234 = vunpack.c.l.b16 %v2224
      %v2235 = vunpack.c.h.b16 %v2224
      %v2236 = vunpack.c.l.b16 %v2225
      %v2237 = vunpack.c.h.b16 %v2225
      %v2238 = vpack.c.b16 %v2232, %v2230
      %v2239 = vpack.c.b16 %v2233, %v2231
      %v2240 = vpack.c.b16 %v2236, %v2234
      %v2241 = vpack.c.b16 %v2237, %v2235
      %2246 = vmatprep.subr.bf16.mxu0 %v2239
      %2247 = vmatpush1.bf16.xpose.msra.mxu0 %v2238
      %2248 = vmatprep.subr.bf16.mxu0 %v2241
      %2249 = vmatpush1.bf16.xpose.msra.mxu0 %v2240
      %2250 = vmatprep.subr.bf16.mxu0 0
      %2251 = vmatpush1.bf16.xpose.msra.mxu0 0
      %2252 = vmatprep.subr.bf16.mxu0 0
      %2253 = vmatpush1.bf16.xpose.msra.mxu0 0
      %2254 = vmatprep.subr.bf16.mxu0 0
      %2255 = vmatpush1.bf16.xpose.msra.mxu0 0
      %2256 = vmatprep.subr.bf16.mxu0 0
      %2257 = vmatpush1.bf16.xpose.msra.mxu0 0
      %2258 = vmatprep.subr.bf16.mxu0 0
      %2259 = vmatpush1.bf16.xpose.msra.mxu0 0
      %2260 = vmatprep.subr.bf16.mxu0 0
      %2261 = vmatpush1.bf16.xpose.msra.mxu0 0
      %2262 = vmatprep.subr.bf16.mxu0 0
      %2263 = vmatpush1.bf16.xpose.msra.mxu0 0
      %2264 = vmatprep.subr.bf16.mxu0 0
      %2265 = vmatpush1.bf16.xpose.msra.mxu0 0
      %2266 = vmatprep.subr.bf16.mxu0 0
      %2267 = vmatpush1.bf16.xpose.msra.mxu0 0
      %2268 = vmatprep.subr.bf16.mxu0 0
      %2269 = vmatpush1.bf16.xpose.msra.mxu0 0
      %2270 = vmatprep.subr.bf16.mxu0 0
      %2271 = vmatpush1.bf16.xpose.msra.mxu0 0
      %2272 = vmatprep.subr.bf16.mxu0 0
      %2273 = vmatpush1.bf16.xpose.msra.mxu0 0
      %2274 = vmatprep.subr.bf16.mxu0 0
      %2275 = vmatpush1.bf16.xpose.msra.mxu0 0
      %2276 = vmatprep.subr.bf16.mxu0 0
      %2277 = vmatpush1.bf16.xpose.msra.mxu0 0
      %2278 = vmatprep.mubr.bf16.mxu0 %v2220
      %2279 = vmatmul.mubr.bf16.gmra.mrb[0].mxu0 %v2219
      %v2280 = vpop.f32.mrb[0].mxu0
      %v2281 = vadd.f32 0.0, %v2280
      %v2282 = vpop.f32.mrb[0].mxu0
      %v2283 = vpop.f32.mrb[0].mxu0
      %v2284 = vadd.f32 0.0, %v2283
      %v2285 = vpop.f32.mrb[0].mxu0
      %2286 = vdwg.mxu0
      %v2287 = vadd.f32 %v2132, %v2281
      %v2288 = vadd.f32 %v2133, %v2284
      %s2289 = scalar_lea.vmem %s9, 40
      %v2290 = vld [vmem:[%s2289] sm:$0xff]
      %v2291 = vld [vmem:[%s2289 + $0x40] sm:$0xff]
      %v2292 = vld [vmem:[%s2289 + $0x80] sm:$0xff]
      %v2293 = vld [vmem:[%s2289 + $0xc0] sm:$0xff]
      %s2294 = scalar_lea.vmem %s10, 10
      %v2295 = vld [vmem:[%s2294] sm:$0x3]
      %v2297 = vlaneseq
      %v2298 = vshrl.u32 %v2297, 7
      %v2299 = vsub.s32 0, %v2298
      %v2300 = vrot.slane %v2295, %v2299
      %v2301 = vlaneseq
      %v2302 = vshrl.u32 %v2301, 7
      %v2303 = vsub.s32 1, %v2302
      %v2304 = vrot.slane %v2295, %v2303
      %v2311 = vunpack.c.l.b16 %v2290
      %v2312 = vunpack.c.h.b16 %v2290
      %v2313 = vunpack.c.l.b16 %v2291
      %v2314 = vunpack.c.h.b16 %v2291
      %v2315 = vunpack.c.l.b16 %v2292
      %v2316 = vunpack.c.h.b16 %v2292
      %v2317 = vunpack.c.l.b16 %v2293
      %v2318 = vunpack.c.h.b16 %v2293
      %v2319 = vpack.c.b16 %v2313, %v2311
      %v2320 = vpack.c.b16 %v2314, %v2312
      %v2321 = vpack.c.b16 %v2317, %v2315
      %v2322 = vpack.c.b16 %v2318, %v2316
      %2327 = vmatprep.subr.bf16.mxu0 %v2320
      %2328 = vmatpush1.bf16.msra.mxu0 %v2319
      %2329 = vmatprep.subr.bf16.mxu0 %v2322
      %2330 = vmatpush1.bf16.msra.mxu0 %v2321
      %2331 = vmatprep.subr.bf16.mxu0 0
      %2332 = vmatpush1.bf16.msra.mxu0 0
      %2333 = vmatprep.subr.bf16.mxu0 0
      %2334 = vmatpush1.bf16.msra.mxu0 0
      %2335 = vmatprep.subr.bf16.mxu0 0
      %2336 = vmatpush1.bf16.msra.mxu0 0
      %2337 = vmatprep.subr.bf16.mxu0 0
      %2338 = vmatpush1.bf16.msra.mxu0 0
      %2339 = vmatprep.subr.bf16.mxu0 0
      %2340 = vmatpush1.bf16.msra.mxu0 0
      %2341 = vmatprep.subr.bf16.mxu0 0
      %2342 = vmatpush1.bf16.msra.mxu0 0
      %2343 = vmatprep.subr.bf16.mxu0 0
      %2344 = vmatpush1.bf16.msra.mxu0 0
      %2345 = vmatprep.subr.bf16.mxu0 0
      %2346 = vmatpush1.bf16.msra.mxu0 0
      %2347 = vmatprep.subr.bf16.mxu0 0
      %2348 = vmatpush1.bf16.msra.mxu0 0
      %2349 = vmatprep.subr.bf16.mxu0 0
      %2350 = vmatpush1.bf16.msra.mxu0 0
      %2351 = vmatprep.subr.bf16.mxu0 0
      %2352 = vmatpush1.bf16.msra.mxu0 0
      %2353 = vmatprep.subr.bf16.mxu0 0
      %2354 = vmatpush1.bf16.msra.mxu0 0
      %2355 = vmatprep.subr.bf16.mxu0 0
      %2356 = vmatpush1.bf16.msra.mxu0 0
      %2357 = vmatprep.subr.bf16.mxu0 0
      %2358 = vmatpush1.bf16.msra.mxu0 0
      %2359 = vmatprep.mubr.bf16.mxu0 0
      %2360 = vmatmul.mubr.bf16.gmra.mrb[0].mxu0 %v1555
      %v2361 = vpop.f32.mrb[0].mxu0
      %v2362 = vadd.f32 %v2300, %v2361
      %v2363 = vpop.f32.mrb[0].mxu0
      %v2364 = vadd.f32 %v2304, %v2363
      %v2365 = vpop.f32.mrb[0].mxu0
      %v2366 = vadd.f32 %v2300, %v2365
      %v2367 = vpop.f32.mrb[0].mxu0
      %v2368 = vadd.f32 %v2304, %v2367
      %2369 = vdwg.mxu0
      %v2370 = vmax.f32 %v2362, 0.0
      %v2371 = vmax.f32 %v2364, 0.0
      %v2372 = vmax.f32 %v2366, 0.0
      %v2373 = vmax.f32 %v2368, 0.0
      %v2374 = vpack.c.bf16 %v2372, %v2370
      %v2375 = vpack.c.bf16 %v2373, %v2371
      %s2376 = scalar_lea.vmem %s11, 40
      %v2377 = vld [vmem:[%s2376] sm:$0xff]
      %v2378 = vld [vmem:[%s2376 + $0x40] sm:$0xff]
      %v2379 = vld [vmem:[%s2376 + $0x80] sm:$0xff]
      %v2380 = vld [vmem:[%s2376 + $0xc0] sm:$0xff]
      %v2385 = vunpack.c.l.b16 %v2377
      %v2386 = vunpack.c.h.b16 %v2377
      %v2387 = vunpack.c.l.b16 %v2378
      %v2388 = vunpack.c.h.b16 %v2378
      %v2389 = vunpack.c.l.b16 %v2379
      %v2390 = vunpack.c.h.b16 %v2379
      %v2391 = vunpack.c.l.b16 %v2380
      %v2392 = vunpack.c.h.b16 %v2380
      %v2393 = vpack.c.b16 %v2387, %v2385
      %v2394 = vpack.c.b16 %v2388, %v2386
      %v2395 = vpack.c.b16 %v2391, %v2389
      %v2396 = vpack.c.b16 %v2392, %v2390
      %2401 = vmatprep.subr.bf16.mxu0 %v2394
      %2402 = vmatpush1.bf16.xpose.msra.mxu0 %v2393
      %2403 = vmatprep.subr.bf16.mxu0 %v2396
      %2404 = vmatpush1.bf16.xpose.msra.mxu0 %v2395
      %2405 = vmatprep.subr.bf16.mxu0 0
      %2406 = vmatpush1.bf16.xpose.msra.mxu0 0
      %2407 = vmatprep.subr.bf16.mxu0 0
      %2408 = vmatpush1.bf16.xpose.msra.mxu0 0
      %2409 = vmatprep.subr.bf16.mxu0 0
      %2410 = vmatpush1.bf16.xpose.msra.mxu0 0
      %2411 = vmatprep.subr.bf16.mxu0 0
      %2412 = vmatpush1.bf16.xpose.msra.mxu0 0
      %2413 = vmatprep.subr.bf16.mxu0 0
      %2414 = vmatpush1.bf16.xpose.msra.mxu0 0
      %2415 = vmatprep.subr.bf16.mxu0 0
      %2416 = vmatpush1.bf16.xpose.msra.mxu0 0
      %2417 = vmatprep.subr.bf16.mxu0 0
      %2418 = vmatpush1.bf16.xpose.msra.mxu0 0
      %2419 = vmatprep.subr.bf16.mxu0 0
      %2420 = vmatpush1.bf16.xpose.msra.mxu0 0
      %2421 = vmatprep.subr.bf16.mxu0 0
      %2422 = vmatpush1.bf16.xpose.msra.mxu0 0
      %2423 = vmatprep.subr.bf16.mxu0 0
      %2424 = vmatpush1.bf16.xpose.msra.mxu0 0
      %2425 = vmatprep.subr.bf16.mxu0 0
      %2426 = vmatpush1.bf16.xpose.msra.mxu0 0
      %2427 = vmatprep.subr.bf16.mxu0 0
      %2428 = vmatpush1.bf16.xpose.msra.mxu0 0
      %2429 = vmatprep.subr.bf16.mxu0 0
      %2430 = vmatpush1.bf16.xpose.msra.mxu0 0
      %2431 = vmatprep.subr.bf16.mxu0 0
      %2432 = vmatpush1.bf16.xpose.msra.mxu0 0
      %2433 = vmatprep.mubr.bf16.mxu0 %v2375
      %2434 = vmatmul.mubr.bf16.gmra.mrb[0].mxu0 %v2374
      %v2435 = vpop.f32.mrb[0].mxu0
      %v2436 = vadd.f32 0.0, %v2435
      %v2437 = vpop.f32.mrb[0].mxu0
      %v2438 = vpop.f32.mrb[0].mxu0
      %v2439 = vadd.f32 0.0, %v2438
      %v2440 = vpop.f32.mrb[0].mxu0
      %2441 = vdwg.mxu0
      %v2442 = vadd.f32 %v2287, %v2436
      %v2443 = vadd.f32 %v2288, %v2439
      %s2444 = scalar_lea.vmem %s9, 48
      %v2445 = vld [vmem:[%s2444] sm:$0xff]
      %v2446 = vld [vmem:[%s2444 + $0x40] sm:$0xff]
      %v2447 = vld [vmem:[%s2444 + $0x80] sm:$0xff]
      %v2448 = vld [vmem:[%s2444 + $0xc0] sm:$0xff]
      %s2449 = scalar_lea.vmem %s10, 12
      %v2450 = vld [vmem:[%s2449] sm:$0x3]
      %v2452 = vlaneseq
      %v2453 = vshrl.u32 %v2452, 7
      %v2454 = vsub.s32 0, %v2453
      %v2455 = vrot.slane %v2450, %v2454
      %v2456 = vlaneseq
      %v2457 = vshrl.u32 %v2456, 7
      %v2458 = vsub.s32 1, %v2457
      %v2459 = vrot.slane %v2450, %v2458
      %v2466 = vunpack.c.l.b16 %v2445
      %v2467 = vunpack.c.h.b16 %v2445
      %v2468 = vunpack.c.l.b16 %v2446
      %v2469 = vunpack.c.h.b16 %v2446
      %v2470 = vunpack.c.l.b16 %v2447
      %v2471 = vunpack.c.h.b16 %v2447
      %v2472 = vunpack.c.l.b16 %v2448
      %v2473 = vunpack.c.h.b16 %v2448
      %v2474 = vpack.c.b16 %v2468, %v2466
      %v2475 = vpack.c.b16 %v2469, %v2467
      %v2476 = vpack.c.b16 %v2472, %v2470
      %v2477 = vpack.c.b16 %v2473, %v2471
      %2482 = vmatprep.subr.bf16.mxu0 %v2475
      %2483 = vmatpush1.bf16.msra.mxu0 %v2474
      %2484 = vmatprep.subr.bf16.mxu0 %v2477
      %2485 = vmatpush1.bf16.msra.mxu0 %v2476
      %2486 = vmatprep.subr.bf16.mxu0 0
      %2487 = vmatpush1.bf16.msra.mxu0 0
      %2488 = vmatprep.subr.bf16.mxu0 0
      %2489 = vmatpush1.bf16.msra.mxu0 0
      %2490 = vmatprep.subr.bf16.mxu0 0
      %2491 = vmatpush1.bf16.msra.mxu0 0
      %2492 = vmatprep.subr.bf16.mxu0 0
      %2493 = vmatpush1.bf16.msra.mxu0 0
      %2494 = vmatprep.subr.bf16.mxu0 0
      %2495 = vmatpush1.bf16.msra.mxu0 0
      %2496 = vmatprep.subr.bf16.mxu0 0
      %2497 = vmatpush1.bf16.msra.mxu0 0
      %2498 = vmatprep.subr.bf16.mxu0 0
      %2499 = vmatpush1.bf16.msra.mxu0 0
      %2500 = vmatprep.subr.bf16.mxu0 0
      %2501 = vmatpush1.bf16.msra.mxu0 0
      %2502 = vmatprep.subr.bf16.mxu0 0
      %2503 = vmatpush1.bf16.msra.mxu0 0
      %2504 = vmatprep.subr.bf16.mxu0 0
      %2505 = vmatpush1.bf16.msra.mxu0 0
      %2506 = vmatprep.subr.bf16.mxu0 0
      %2507 = vmatpush1.bf16.msra.mxu0 0
      %2508 = vmatprep.subr.bf16.mxu0 0
      %2509 = vmatpush1.bf16.msra.mxu0 0
      %2510 = vmatprep.subr.bf16.mxu0 0
      %2511 = vmatpush1.bf16.msra.mxu0 0
      %2512 = vmatprep.subr.bf16.mxu0 0
      %2513 = vmatpush1.bf16.msra.mxu0 0
      %2514 = vmatprep.mubr.bf16.mxu0 0
      %2515 = vmatmul.mubr.bf16.gmra.mrb[0].mxu0 %v1555
      %v2516 = vpop.f32.mrb[0].mxu0
      %v2517 = vadd.f32 %v2455, %v2516
      %v2518 = vpop.f32.mrb[0].mxu0
      %v2519 = vadd.f32 %v2459, %v2518
      %v2520 = vpop.f32.mrb[0].mxu0
      %v2521 = vadd.f32 %v2455, %v2520
      %v2522 = vpop.f32.mrb[0].mxu0
      %v2523 = vadd.f32 %v2459, %v2522
      %2524 = vdwg.mxu0
      %v2525 = vmax.f32 %v2517, 0.0
      %v2526 = vmax.f32 %v2519, 0.0
      %v2527 = vmax.f32 %v2521, 0.0
      %v2528 = vmax.f32 %v2523, 0.0
      %v2529 = vpack.c.bf16 %v2527, %v2525
      %v2530 = vpack.c.bf16 %v2528, %v2526
      %s2531 = scalar_lea.vmem %s11, 48
      %v2532 = vld [vmem:[%s2531] sm:$0xff]
      %v2533 = vld [vmem:[%s2531 + $0x40] sm:$0xff]
      %v2534 = vld [vmem:[%s2531 + $0x80] sm:$0xff]
      %v2535 = vld [vmem:[%s2531 + $0xc0] sm:$0xff]
      %v2540 = vunpack.c.l.b16 %v2532
      %v2541 = vunpack.c.h.b16 %v2532
      %v2542 = vunpack.c.l.b16 %v2533
      %v2543 = vunpack.c.h.b16 %v2533
      %v2544 = vunpack.c.l.b16 %v2534
      %v2545 = vunpack.c.h.b16 %v2534
      %v2546 = vunpack.c.l.b16 %v2535
      %v2547 = vunpack.c.h.b16 %v2535
      %v2548 = vpack.c.b16 %v2542, %v2540
      %v2549 = vpack.c.b16 %v2543, %v2541
      %v2550 = vpack.c.b16 %v2546, %v2544
      %v2551 = vpack.c.b16 %v2547, %v2545
      %2556 = vmatprep.subr.bf16.mxu0 %v2549
      %2557 = vmatpush1.bf16.xpose.msra.mxu0 %v2548
      %2558 = vmatprep.subr.bf16.mxu0 %v2551
      %2559 = vmatpush1.bf16.xpose.msra.mxu0 %v2550
      %2560 = vmatprep.subr.bf16.mxu0 0
      %2561 = vmatpush1.bf16.xpose.msra.mxu0 0
      %2562 = vmatprep.subr.bf16.mxu0 0
      %2563 = vmatpush1.bf16.xpose.msra.mxu0 0
      %2564 = vmatprep.subr.bf16.mxu0 0
      %2565 = vmatpush1.bf16.xpose.msra.mxu0 0
      %2566 = vmatprep.subr.bf16.mxu0 0
      %2567 = vmatpush1.bf16.xpose.msra.mxu0 0
      %2568 = vmatprep.subr.bf16.mxu0 0
      %2569 = vmatpush1.bf16.xpose.msra.mxu0 0
      %2570 = vmatprep.subr.bf16.mxu0 0
      %2571 = vmatpush1.bf16.xpose.msra.mxu0 0
      %2572 = vmatprep.subr.bf16.mxu0 0
      %2573 = vmatpush1.bf16.xpose.msra.mxu0 0
      %2574 = vmatprep.subr.bf16.mxu0 0
      %2575 = vmatpush1.bf16.xpose.msra.mxu0 0
      %2576 = vmatprep.subr.bf16.mxu0 0
      %2577 = vmatpush1.bf16.xpose.msra.mxu0 0
      %2578 = vmatprep.subr.bf16.mxu0 0
      %2579 = vmatpush1.bf16.xpose.msra.mxu0 0
      %2580 = vmatprep.subr.bf16.mxu0 0
      %2581 = vmatpush1.bf16.xpose.msra.mxu0 0
      %2582 = vmatprep.subr.bf16.mxu0 0
      %2583 = vmatpush1.bf16.xpose.msra.mxu0 0
      %2584 = vmatprep.subr.bf16.mxu0 0
      %2585 = vmatpush1.bf16.xpose.msra.mxu0 0
      %2586 = vmatprep.subr.bf16.mxu0 0
      %2587 = vmatpush1.bf16.xpose.msra.mxu0 0
      %2588 = vmatprep.mubr.bf16.mxu0 %v2530
      %2589 = vmatmul.mubr.bf16.gmra.mrb[0].mxu0 %v2529
      %v2590 = vpop.f32.mrb[0].mxu0
      %v2591 = vadd.f32 0.0, %v2590
      %v2592 = vpop.f32.mrb[0].mxu0
      %v2593 = vpop.f32.mrb[0].mxu0
      %v2594 = vadd.f32 0.0, %v2593
      %v2595 = vpop.f32.mrb[0].mxu0
      %2596 = vdwg.mxu0
      %v2597 = vadd.f32 %v2442, %v2591
      %v2598 = vadd.f32 %v2443, %v2594
      %s2599 = scalar_lea.vmem %s9, 56
      %v2600 = vld [vmem:[%s2599] sm:$0xff]
      %v2601 = vld [vmem:[%s2599 + $0x40] sm:$0xff]
      %v2602 = vld [vmem:[%s2599 + $0x80] sm:$0xff]
      %v2603 = vld [vmem:[%s2599 + $0xc0] sm:$0xff]
      %s2604 = scalar_lea.vmem %s10, 14
      %v2605 = vld [vmem:[%s2604] sm:$0x3]
      %v2607 = vlaneseq
      %v2608 = vshrl.u32 %v2607, 7
      %v2609 = vsub.s32 0, %v2608
      %v2610 = vrot.slane %v2605, %v2609
      %v2611 = vlaneseq
      %v2612 = vshrl.u32 %v2611, 7
      %v2613 = vsub.s32 1, %v2612
      %v2614 = vrot.slane %v2605, %v2613
      %v2621 = vunpack.c.l.b16 %v2600
      %v2622 = vunpack.c.h.b16 %v2600
      %v2623 = vunpack.c.l.b16 %v2601
      %v2624 = vunpack.c.h.b16 %v2601
      %v2625 = vunpack.c.l.b16 %v2602
      %v2626 = vunpack.c.h.b16 %v2602
      %v2627 = vunpack.c.l.b16 %v2603
      %v2628 = vunpack.c.h.b16 %v2603
      %v2629 = vpack.c.b16 %v2623, %v2621
      %v2630 = vpack.c.b16 %v2624, %v2622
      %v2631 = vpack.c.b16 %v2627, %v2625
      %v2632 = vpack.c.b16 %v2628, %v2626
      %2637 = vmatprep.subr.bf16.mxu0 %v2630
      %2638 = vmatpush1.bf16.msra.mxu0 %v2629
      %2639 = vmatprep.subr.bf16.mxu0 %v2632
      %2640 = vmatpush1.bf16.msra.mxu0 %v2631
      %2641 = vmatprep.subr.bf16.mxu0 0
      %2642 = vmatpush1.bf16.msra.mxu0 0
      %2643 = vmatprep.subr.bf16.mxu0 0
      %2644 = vmatpush1.bf16.msra.mxu0 0
      %2645 = vmatprep.subr.bf16.mxu0 0
      %2646 = vmatpush1.bf16.msra.mxu0 0
      %2647 = vmatprep.subr.bf16.mxu0 0
      %2648 = vmatpush1.bf16.msra.mxu0 0
      %2649 = vmatprep.subr.bf16.mxu0 0
      %2650 = vmatpush1.bf16.msra.mxu0 0
      %2651 = vmatprep.subr.bf16.mxu0 0
      %2652 = vmatpush1.bf16.msra.mxu0 0
      %2653 = vmatprep.subr.bf16.mxu0 0
      %2654 = vmatpush1.bf16.msra.mxu0 0
      %2655 = vmatprep.subr.bf16.mxu0 0
      %2656 = vmatpush1.bf16.msra.mxu0 0
      %2657 = vmatprep.subr.bf16.mxu0 0
      %2658 = vmatpush1.bf16.msra.mxu0 0
      %2659 = vmatprep.subr.bf16.mxu0 0
      %2660 = vmatpush1.bf16.msra.mxu0 0
      %2661 = vmatprep.subr.bf16.mxu0 0
      %2662 = vmatpush1.bf16.msra.mxu0 0
      %2663 = vmatprep.subr.bf16.mxu0 0
      %2664 = vmatpush1.bf16.msra.mxu0 0
      %2665 = vmatprep.subr.bf16.mxu0 0
      %2666 = vmatpush1.bf16.msra.mxu0 0
      %2667 = vmatprep.subr.bf16.mxu0 0
      %2668 = vmatpush1.bf16.msra.mxu0 0
      %2669 = vmatprep.mubr.bf16.mxu0 0
      %2670 = vmatmul.mubr.bf16.gmra.mrb[0].mxu0 %v1555
      %v2671 = vpop.f32.mrb[0].mxu0
      %v2672 = vadd.f32 %v2610, %v2671
      %v2673 = vpop.f32.mrb[0].mxu0
      %v2674 = vadd.f32 %v2614, %v2673
      %v2675 = vpop.f32.mrb[0].mxu0
      %v2676 = vadd.f32 %v2610, %v2675
      %v2677 = vpop.f32.mrb[0].mxu0
      %v2678 = vadd.f32 %v2614, %v2677
      %2679 = vdwg.mxu0
      %v2680 = vmax.f32 %v2672, 0.0
      %v2681 = vmax.f32 %v2674, 0.0
      %v2682 = vmax.f32 %v2676, 0.0
      %v2683 = vmax.f32 %v2678, 0.0
      %v2684 = vpack.c.bf16 %v2682, %v2680
      %v2685 = vpack.c.bf16 %v2683, %v2681
      %s2686 = scalar_lea.vmem %s11, 56
      %v2687 = vld [vmem:[%s2686] sm:$0xff]
      %v2688 = vld [vmem:[%s2686 + $0x40] sm:$0xff]
      %v2689 = vld [vmem:[%s2686 + $0x80] sm:$0xff]
      %v2690 = vld [vmem:[%s2686 + $0xc0] sm:$0xff]
      %v2695 = vunpack.c.l.b16 %v2687
      %v2696 = vunpack.c.h.b16 %v2687
      %v2697 = vunpack.c.l.b16 %v2688
      %v2698 = vunpack.c.h.b16 %v2688
      %v2699 = vunpack.c.l.b16 %v2689
      %v2700 = vunpack.c.h.b16 %v2689
      %v2701 = vunpack.c.l.b16 %v2690
      %v2702 = vunpack.c.h.b16 %v2690
      %v2703 = vpack.c.b16 %v2697, %v2695
      %v2704 = vpack.c.b16 %v2698, %v2696
      %v2705 = vpack.c.b16 %v2701, %v2699
      %v2706 = vpack.c.b16 %v2702, %v2700
      %2711 = vmatprep.subr.bf16.mxu0 %v2704
      %2712 = vmatpush1.bf16.xpose.msra.mxu0 %v2703
      %2713 = vmatprep.subr.bf16.mxu0 %v2706
      %2714 = vmatpush1.bf16.xpose.msra.mxu0 %v2705
      %2715 = vmatprep.subr.bf16.mxu0 0
      %2716 = vmatpush1.bf16.xpose.msra.mxu0 0
      %2717 = vmatprep.subr.bf16.mxu0 0
      %2718 = vmatpush1.bf16.xpose.msra.mxu0 0
      %2719 = vmatprep.subr.bf16.mxu0 0
      %2720 = vmatpush1.bf16.xpose.msra.mxu0 0
      %2721 = vmatprep.subr.bf16.mxu0 0
      %2722 = vmatpush1.bf16.xpose.msra.mxu0 0
      %2723 = vmatprep.subr.bf16.mxu0 0
      %2724 = vmatpush1.bf16.xpose.msra.mxu0 0
      %2725 = vmatprep.subr.bf16.mxu0 0
      %2726 = vmatpush1.bf16.xpose.msra.mxu0 0
      %2727 = vmatprep.subr.bf16.mxu0 0
      %2728 = vmatpush1.bf16.xpose.msra.mxu0 0
      %2729 = vmatprep.subr.bf16.mxu0 0
      %2730 = vmatpush1.bf16.xpose.msra.mxu0 0
      %2731 = vmatprep.subr.bf16.mxu0 0
      %2732 = vmatpush1.bf16.xpose.msra.mxu0 0
      %2733 = vmatprep.subr.bf16.mxu0 0
      %2734 = vmatpush1.bf16.xpose.msra.mxu0 0
      %2735 = vmatprep.subr.bf16.mxu0 0
      %2736 = vmatpush1.bf16.xpose.msra.mxu0 0
      %2737 = vmatprep.subr.bf16.mxu0 0
      %2738 = vmatpush1.bf16.xpose.msra.mxu0 0
      %2739 = vmatprep.subr.bf16.mxu0 0
      %2740 = vmatpush1.bf16.xpose.msra.mxu0 0
      %2741 = vmatprep.subr.bf16.mxu0 0
      %2742 = vmatpush1.bf16.xpose.msra.mxu0 0
      %2743 = vmatprep.mubr.bf16.mxu0 %v2685
      %2744 = vmatmul.mubr.bf16.gmra.mrb[0].mxu0 %v2684
      %v2745 = vpop.f32.mrb[0].mxu0
      %v2746 = vadd.f32 0.0, %v2745
      %v2747 = vpop.f32.mrb[0].mxu0
      %v2748 = vpop.f32.mrb[0].mxu0
      %v2749 = vadd.f32 0.0, %v2748
      %v2750 = vpop.f32.mrb[0].mxu0
      %2751 = vdwg.mxu0
      %v2752 = vadd.f32 %v2597, %v2746
      %v2753 = vadd.f32 %v2598, %v2749
      %v2754 = vld [vmem:[%s12] sm:$0x1]
      %v2756 = vlaneseq
      %v2757 = vshrl.u32 %v2756, 7
      %v2758 = vsub.s32 0, %v2757
      %v2759 = vrot.slane %v2754, %v2758
      %v2761 = vadd.f32 %v2752, %v2759
      %v2762 = vadd.f32 %v2753, %v2759
      %v2763 = vadd.f32 %v1515, %v2761
      %v2764 = vadd.f32 %v1516, %v2762
      %v2765 = vld [vmem:[%s13] sm:$0x1]
      %v2766 = vld [vmem:[%s13 + $0x1] sm:$0x1]
      %v2767 = vsel %vm660, %v2763, 0.0
      %2768 = vadd.xlane.f32.xlu0 %v2767
      %v2769 = vpop.xlane.xlu0 %2768
      %v2770 = vsel %vm660, %v2764, 0.0
      %2771 = vadd.xlane.f32.xlu0 %v2770
      %v2772 = vpop.xlane.xlu0 %2771
      %v2773 = vmul.f32 %v2769, %v1484
      %v2774 = vmul.f32 %v2772, %v1484
      %v2775 = vsub.f32 %v2763, %v2773
      %v2776 = vsub.f32 %v2764, %v2774
      %v2777 = vmul.f32 %v2775, %v2775
      %v2778 = vmul.f32 %v2776, %v2776
      %v2779 = vsel %vm660, %v2777, 0.0
      %2780 = vadd.xlane.f32.xlu0 %v2779
      %v2781 = vpop.xlane.xlu0 %2780
      %v2782 = vsel %vm660, %v2778, 0.0
      %2783 = vadd.xlane.f32.xlu0 %v2782
      %v2784 = vpop.xlane.xlu0 %2783
      %v2785 = vmul.f32 %v2781, %v1484
      %v2786 = vmul.f32 %v2784, %v1484
      %v2787 = vadd.f32 %v2785, 1e-05
      %v2788 = vadd.f32 %v2786, 1e-05
      %v2789 = vrsqrt.pop %v2787
      %v2790 = vrsqrt.pop %v2788
      %v2791 = vmul.f32 %v2775, %v2789
      %v2792 = vmul.f32 %v2776, %v2790
      %v2793 = vlaneseq
      %v2794 = vshrl.u32 %v2793, 7
      %v2795 = vsub.s32 0, %v2794
      %v2796 = vrot.slane %v2765, %v2795
      %v2797 = vmul.f32 %v2791, %v2796
      %v2798 = vmul.f32 %v2792, %v2796
      %v2799 = vlaneseq
      %v2800 = vshrl.u32 %v2799, 7
      %v2801 = vsub.s32 0, %v2800
      %v2802 = vrot.slane %v2766, %v2801
      %v2803 = vadd.f32 %v2797, %v2802
      %v2804 = vadd.f32 %v2798, %v2802
      %v2805 = vpack.c.bf16 %v2804, %v2803
      %s2806 = scalar_lea.vmem %s4, 48
      %v2807 = vld [vmem:[%s2806] sm:$0xf]
      %v2808 = vld [vmem:[%s2806 + $0x4] sm:$0xf]
      %v2809 = vld [vmem:[%s2806 + $0x8] sm:$0xf]
      %v2810 = vld [vmem:[%s2806 + $0xc] sm:$0xf]
      %s2811 = scalar_lea.vmem %s5, 3
      %v2812 = vld [vmem:[%s2811] sm:$0x1]
      %v2814 = vlaneseq
      %v2815 = vshrl.u32 %v2814, 7
      %v2816 = vsub.s32 0, %v2815
      %v2817 = vrot.slane %v2812, %v2816
      %v2823 = vunpack.c.l.b16 %v2807
      %v2824 = vunpack.c.l.b16 %v2808
      %v2825 = vunpack.c.l.b16 %v2809
      %v2826 = vunpack.c.l.b16 %v2810
      %v2827 = vpack.c.b16 %v2824, %v2823
      %v2828 = vpack.c.b16 %v2826, %v2825
      %v2832 = vsel %vm660, %v2805, 0
      %2834 = vmatprep.subr.bf16.mxu0 0
      %2835 = vmatpush1.bf16.msra.mxu0 %v2827
      %2836 = vmatprep.subr.bf16.mxu0 0
      %2837 = vmatpush1.bf16.msra.mxu0 %v2828
      %2838 = vmatprep.subr.bf16.mxu0 0
      %2839 = vmatpush1.bf16.msra.mxu0 0
      %2840 = vmatprep.subr.bf16.mxu0 0
      %2841 = vmatpush1.bf16.msra.mxu0 0
      %2842 = vmatprep.subr.bf16.mxu0 0
      %2843 = vmatpush1.bf16.msra.mxu0 0
      %2844 = vmatprep.subr.bf16.mxu0 0
      %2845 = vmatpush1.bf16.msra.mxu0 0
      %2846 = vmatprep.subr.bf16.mxu0 0
      %2847 = vmatpush1.bf16.msra.mxu0 0
      %2848 = vmatprep.subr.bf16.mxu0 0
      %2849 = vmatpush1.bf16.msra.mxu0 0
      %2850 = vmatprep.subr.bf16.mxu0 0
      %2851 = vmatpush1.bf16.msra.mxu0 0
      %2852 = vmatprep.subr.bf16.mxu0 0
      %2853 = vmatpush1.bf16.msra.mxu0 0
      %2854 = vmatprep.subr.bf16.mxu0 0
      %2855 = vmatpush1.bf16.msra.mxu0 0
      %2856 = vmatprep.subr.bf16.mxu0 0
      %2857 = vmatpush1.bf16.msra.mxu0 0
      %2858 = vmatprep.subr.bf16.mxu0 0
      %2859 = vmatpush1.bf16.msra.mxu0 0
      %2860 = vmatprep.subr.bf16.mxu0 0
      %2861 = vmatpush1.bf16.msra.mxu0 0
      %2862 = vmatprep.subr.bf16.mxu0 0
      %2863 = vmatpush1.bf16.msra.mxu0 0
      %2864 = vmatprep.subr.bf16.mxu0 0
      %2865 = vmatpush1.bf16.msra.mxu0 0
      %2866 = vmatprep.mubr.bf16.mxu0 0
      %2867 = vmatmul.mubr.bf16.gmra.mrb[0].mxu0 %v2832
      %v2868 = vpop.f32.mrb[0].mxu0
      %v2869 = vadd.f32 %v2817, %v2868
      %v2870 = vpop.f32.mrb[0].mxu0
      %v2871 = vpop.f32.mrb[0].mxu0
      %v2872 = vadd.f32 %v2817, %v2871
      %v2873 = vpop.f32.mrb[0].mxu0
      %2874 = vdwg.mxu0
      %s2875 = scalar_lea.vmem %s4, 64
      %v2876 = vld [vmem:[%s2875] sm:$0xf]
      %v2877 = vld [vmem:[%s2875 + $0x4] sm:$0xf]
      %v2878 = vld [vmem:[%s2875 + $0x8] sm:$0xf]
      %v2879 = vld [vmem:[%s2875 + $0xc] sm:$0xf]
      %s2880 = scalar_lea.vmem %s5, 4
      %v2881 = vld [vmem:[%s2880] sm:$0x1]
      %v2883 = vlaneseq
      %v2884 = vshrl.u32 %v2883, 7
      %v2885 = vsub.s32 0, %v2884
      %v2886 = vrot.slane %v2881, %v2885
      %v2892 = vunpack.c.l.b16 %v2876
      %v2893 = vunpack.c.l.b16 %v2877
      %v2894 = vunpack.c.l.b16 %v2878
      %v2895 = vunpack.c.l.b16 %v2879
      %v2896 = vpack.c.b16 %v2893, %v2892
      %v2897 = vpack.c.b16 %v2895, %v2894
      %2900 = vmatprep.subr.bf16.mxu0 0
      %2901 = vmatpush1.bf16.msra.mxu0 %v2896
      %2902 = vmatprep.subr.bf16.mxu0 0
      %2903 = vmatpush1.bf16.msra.mxu0 %v2897
      %2904 = vmatprep.subr.bf16.mxu0 0
      %2905 = vmatpush1.bf16.msra.mxu0 0
      %2906 = vmatprep.subr.bf16.mxu0 0
      %2907 = vmatpush1.bf16.msra.mxu0 0
      %2908 = vmatprep.subr.bf16.mxu0 0
      %2909 = vmatpush1.bf16.msra.mxu0 0
      %2910 = vmatprep.subr.bf16.mxu0 0
      %2911 = vmatpush1.bf16.msra.mxu0 0
      %2912 = vmatprep.subr.bf16.mxu0 0
      %2913 = vmatpush1.bf16.msra.mxu0 0
      %2914 = vmatprep.subr.bf16.mxu0 0
      %2915 = vmatpush1.bf16.msra.mxu0 0
      %2916 = vmatprep.subr.bf16.mxu0 0
      %2917 = vmatpush1.bf16.msra.mxu0 0
      %2918 = vmatprep.subr.bf16.mxu0 0
      %2919 = vmatpush1.bf16.msra.mxu0 0
      %2920 = vmatprep.subr.bf16.mxu0 0
      %2921 = vmatpush1.bf16.msra.mxu0 0
      %2922 = vmatprep.subr.bf16.mxu0 0
      %2923 = vmatpush1.bf16.msra.mxu0 0
      %2924 = vmatprep.subr.bf16.mxu0 0
      %2925 = vmatpush1.bf16.msra.mxu0 0
      %2926 = vmatprep.subr.bf16.mxu0 0
      %2927 = vmatpush1.bf16.msra.mxu0 0
      %2928 = vmatprep.subr.bf16.mxu0 0
      %2929 = vmatpush1.bf16.msra.mxu0 0
      %2930 = vmatprep.subr.bf16.mxu0 0
      %2931 = vmatpush1.bf16.msra.mxu0 0
      %2932 = vmatprep.mubr.bf16.mxu0 0
      %2933 = vmatmul.mubr.bf16.gmra.mrb[0].mxu0 %v2832
      %v2934 = vpop.f32.mrb[0].mxu0
      %v2935 = vadd.f32 %v2886, %v2934
      %v2936 = vpop.f32.mrb[0].mxu0
      %v2937 = vpop.f32.mrb[0].mxu0
      %v2938 = vadd.f32 %v2886, %v2937
      %v2939 = vpop.f32.mrb[0].mxu0
      %2940 = vdwg.mxu0
      %s2941 = scalar_lea.vmem %s4, 80
      %v2942 = vld [vmem:[%s2941] sm:$0xf]
      %v2943 = vld [vmem:[%s2941 + $0x4] sm:$0xf]
      %v2944 = vld [vmem:[%s2941 + $0x8] sm:$0xf]
      %v2945 = vld [vmem:[%s2941 + $0xc] sm:$0xf]
      %s2946 = scalar_lea.vmem %s5, 5
      %v2947 = vld [vmem:[%s2946] sm:$0x1]
      %v2949 = vlaneseq
      %v2950 = vshrl.u32 %v2949, 7
      %v2951 = vsub.s32 0, %v2950
      %v2952 = vrot.slane %v2947, %v2951
      %v2958 = vunpack.c.l.b16 %v2942
      %v2959 = vunpack.c.l.b16 %v2943
      %v2960 = vunpack.c.l.b16 %v2944
      %v2961 = vunpack.c.l.b16 %v2945
      %v2962 = vpack.c.b16 %v2959, %v2958
      %v2963 = vpack.c.b16 %v2961, %v2960
      %2966 = vmatprep.subr.bf16.mxu0 0
      %2967 = vmatpush1.bf16.msra.mxu0 %v2962
      %2968 = vmatprep.subr.bf16.mxu0 0
      %2969 = vmatpush1.bf16.msra.mxu0 %v2963
      %2970 = vmatprep.subr.bf16.mxu0 0
      %2971 = vmatpush1.bf16.msra.mxu0 0
      %2972 = vmatprep.subr.bf16.mxu0 0
      %2973 = vmatpush1.bf16.msra.mxu0 0
      %2974 = vmatprep.subr.bf16.mxu0 0
      %2975 = vmatpush1.bf16.msra.mxu0 0
      %2976 = vmatprep.subr.bf16.mxu0 0
      %2977 = vmatpush1.bf16.msra.mxu0 0
      %2978 = vmatprep.subr.bf16.mxu0 0
      %2979 = vmatpush1.bf16.msra.mxu0 0
      %2980 = vmatprep.subr.bf16.mxu0 0
      %2981 = vmatpush1.bf16.msra.mxu0 0
      %2982 = vmatprep.subr.bf16.mxu0 0
      %2983 = vmatpush1.bf16.msra.mxu0 0
      %2984 = vmatprep.subr.bf16.mxu0 0
      %2985 = vmatpush1.bf16.msra.mxu0 0
      %2986 = vmatprep.subr.bf16.mxu0 0
      %2987 = vmatpush1.bf16.msra.mxu0 0
      %2988 = vmatprep.subr.bf16.mxu0 0
      %2989 = vmatpush1.bf16.msra.mxu0 0
      %2990 = vmatprep.subr.bf16.mxu0 0
      %2991 = vmatpush1.bf16.msra.mxu0 0
      %2992 = vmatprep.subr.bf16.mxu0 0
      %2993 = vmatpush1.bf16.msra.mxu0 0
      %2994 = vmatprep.subr.bf16.mxu0 0
      %2995 = vmatpush1.bf16.msra.mxu0 0
      %2996 = vmatprep.subr.bf16.mxu0 0
      %2997 = vmatpush1.bf16.msra.mxu0 0
      %2998 = vmatprep.mubr.bf16.mxu0 0
      %2999 = vmatmul.mubr.bf16.gmra.mrb[0].mxu0 %v2832
      %v3000 = vpop.f32.mrb[0].mxu0
      %v3001 = vadd.f32 %v2952, %v3000
      %v3002 = vpop.f32.mrb[0].mxu0
      %v3003 = vpop.f32.mrb[0].mxu0
      %v3004 = vadd.f32 %v2952, %v3003
      %v3005 = vpop.f32.mrb[0].mxu0
      %3006 = vdwg.mxu0
      %3009 = vrot.lane.b32.xlu0 %v2869, 120
      %v3010 = vpop.permute.xlu0 %3009
      %3011 = vrot.lane.b32.xlu0 %v2872, 120
      %v3012 = vpop.permute.xlu0 %3011
      %3015 = vrot.lane.b32.xlu0 %v2869, 112
      %v3016 = vpop.permute.xlu0 %3015
      %3017 = vrot.lane.b32.xlu0 %v2872, 112
      %v3018 = vpop.permute.xlu0 %3017
      %3021 = vrot.lane.b32.xlu0 %v2869, 104
      %v3022 = vpop.permute.xlu0 %3021
      %3023 = vrot.lane.b32.xlu0 %v2872, 104
      %v3024 = vpop.permute.xlu0 %3023
      %v3027 = vpack.c.bf16 %v2872, %v2869
      %v3028 = vpack.c.bf16 %v3012, %v3010
      %v3029 = vpack.c.bf16 %v3018, %v3016
      %v3030 = vpack.c.bf16 %v3024, %v3022
      %3033 = vrot.lane.b32.xlu0 %v2935, 120
      %v3034 = vpop.permute.xlu0 %3033
      %3035 = vrot.lane.b32.xlu0 %v2938, 120
      %v3036 = vpop.permute.xlu0 %3035
      %3039 = vrot.lane.b32.xlu0 %v2935, 112
      %v3040 = vpop.permute.xlu0 %3039
      %3041 = vrot.lane.b32.xlu0 %v2938, 112
      %v3042 = vpop.permute.xlu0 %3041
      %3045 = vrot.lane.b32.xlu0 %v2935, 104
      %v3046 = vpop.permute.xlu0 %3045
      %3047 = vrot.lane.b32.xlu0 %v2938, 104
      %v3048 = vpop.permute.xlu0 %3047
      %v3051 = vpack.c.bf16 %v2938, %v2935
      %v3052 = vpack.c.bf16 %v3036, %v3034
      %v3053 = vpack.c.bf16 %v3042, %v3040
      %v3054 = vpack.c.bf16 %v3048, %v3046
      %3057 = vrot.lane.b32.xlu0 %v3001, 120
      %v3058 = vpop.permute.xlu0 %3057
      %3059 = vrot.lane.b32.xlu0 %v3004, 120
      %v3060 = vpop.permute.xlu0 %3059
      %3063 = vrot.lane.b32.xlu0 %v3001, 112
      %v3064 = vpop.permute.xlu0 %3063
      %3065 = vrot.lane.b32.xlu0 %v3004, 112
      %v3066 = vpop.permute.xlu0 %3065
      %3069 = vrot.lane.b32.xlu0 %v3001, 104
      %v3070 = vpop.permute.xlu0 %3069
      %3071 = vrot.lane.b32.xlu0 %v3004, 104
      %v3072 = vpop.permute.xlu0 %3071
      %v3075 = vpack.c.bf16 %v3004, %v3001
      %v3076 = vpack.c.bf16 %v3060, %v3058
      %v3077 = vpack.c.bf16 %v3066, %v3064
      %v3078 = vpack.c.bf16 %v3072, %v3070
      %v3080 = vsel %vm909, %v3027, 0
      %v3083 = vsel %vm909, %v3051, 0
      %3085 = vmatprep.subr.bf16.mxu0 0
      %3086 = vmatpush1.bf16.xpose.msra.mxu0 %v3083
      %3087 = vmatprep.subr.bf16.mxu0 0
      %3088 = vmatpush1.bf16.xpose.msra.mxu0 0
      %3089 = vmatprep.subr.bf16.mxu0 0
      %3090 = vmatpush1.bf16.xpose.msra.mxu0 0
      %3091 = vmatprep.subr.bf16.mxu0 0
      %3092 = vmatpush1.bf16.xpose.msra.mxu0 0
      %3093 = vmatprep.subr.bf16.mxu0 0
      %3094 = vmatpush1.bf16.xpose.msra.mxu0 0
      %3095 = vmatprep.subr.bf16.mxu0 0
      %3096 = vmatpush1.bf16.xpose.msra.mxu0 0
      %3097 = vmatprep.subr.bf16.mxu0 0
      %3098 = vmatpush1.bf16.xpose.msra.mxu0 0
      %3099 = vmatprep.subr.bf16.mxu0 0
      %3100 = vmatpush1.bf16.xpose.msra.mxu0 0
      %3101 = vmatprep.subr.bf16.mxu0 0
      %3102 = vmatpush1.bf16.xpose.msra.mxu0 0
      %3103 = vmatprep.subr.bf16.mxu0 0
      %3104 = vmatpush1.bf16.xpose.msra.mxu0 0
      %3105 = vmatprep.subr.bf16.mxu0 0
      %3106 = vmatpush1.bf16.xpose.msra.mxu0 0
      %3107 = vmatprep.subr.bf16.mxu0 0
      %3108 = vmatpush1.bf16.xpose.msra.mxu0 0
      %3109 = vmatprep.subr.bf16.mxu0 0
      %3110 = vmatpush1.bf16.xpose.msra.mxu0 0
      %3111 = vmatprep.subr.bf16.mxu0 0
      %3112 = vmatpush1.bf16.xpose.msra.mxu0 0
      %3113 = vmatprep.subr.bf16.mxu0 0
      %3114 = vmatpush1.bf16.xpose.msra.mxu0 0
      %3115 = vmatprep.subr.bf16.mxu0 0
      %3116 = vmatpush1.bf16.xpose.msra.mxu0 0
      %3117 = vmatprep.mubr.bf16.mxu0 0
      %3118 = vmatmul.mubr.bf16.gmra.mrb[0].mxu0 %v3080
      %v3119 = vpop.f32.mrb[0].mxu0
      %v3120 = vadd.f32 0.0, %v3119
      %v3121 = vpop.f32.mrb[0].mxu0
      %v3122 = vpop.f32.mrb[0].mxu0
      %v3123 = vadd.f32 0.0, %v3122
      %v3124 = vpop.f32.mrb[0].mxu0
      %3125 = vdwg.mxu0
      %v3127 = vsel %vm909, %v3028, 0
      %v3130 = vsel %vm909, %v3052, 0
      %3132 = vmatprep.subr.bf16.mxu0 0
      %3133 = vmatpush1.bf16.xpose.msra.mxu0 %v3130
      %3134 = vmatprep.subr.bf16.mxu0 0
      %3135 = vmatpush1.bf16.xpose.msra.mxu0 0
      %3136 = vmatprep.subr.bf16.mxu0 0
      %3137 = vmatpush1.bf16.xpose.msra.mxu0 0
      %3138 = vmatprep.subr.bf16.mxu0 0
      %3139 = vmatpush1.bf16.xpose.msra.mxu0 0
      %3140 = vmatprep.subr.bf16.mxu0 0
      %3141 = vmatpush1.bf16.xpose.msra.mxu0 0
      %3142 = vmatprep.subr.bf16.mxu0 0
      %3143 = vmatpush1.bf16.xpose.msra.mxu0 0
      %3144 = vmatprep.subr.bf16.mxu0 0
      %3145 = vmatpush1.bf16.xpose.msra.mxu0 0
      %3146 = vmatprep.subr.bf16.mxu0 0
      %3147 = vmatpush1.bf16.xpose.msra.mxu0 0
      %3148 = vmatprep.subr.bf16.mxu0 0
      %3149 = vmatpush1.bf16.xpose.msra.mxu0 0
      %3150 = vmatprep.subr.bf16.mxu0 0
      %3151 = vmatpush1.bf16.xpose.msra.mxu0 0
      %3152 = vmatprep.subr.bf16.mxu0 0
      %3153 = vmatpush1.bf16.xpose.msra.mxu0 0
      %3154 = vmatprep.subr.bf16.mxu0 0
      %3155 = vmatpush1.bf16.xpose.msra.mxu0 0
      %3156 = vmatprep.subr.bf16.mxu0 0
      %3157 = vmatpush1.bf16.xpose.msra.mxu0 0
      %3158 = vmatprep.subr.bf16.mxu0 0
      %3159 = vmatpush1.bf16.xpose.msra.mxu0 0
      %3160 = vmatprep.subr.bf16.mxu0 0
      %3161 = vmatpush1.bf16.xpose.msra.mxu0 0
      %3162 = vmatprep.subr.bf16.mxu0 0
      %3163 = vmatpush1.bf16.xpose.msra.mxu0 0
      %3164 = vmatprep.mubr.bf16.mxu0 0
      %3165 = vmatmul.mubr.bf16.gmra.mrb[0].mxu0 %v3127
      %v3166 = vpop.f32.mrb[0].mxu0
      %v3167 = vadd.f32 0.0, %v3166
      %v3168 = vpop.f32.mrb[0].mxu0
      %v3169 = vpop.f32.mrb[0].mxu0
      %v3170 = vadd.f32 0.0, %v3169
      %v3171 = vpop.f32.mrb[0].mxu0
      %3172 = vdwg.mxu0
      %v3174 = vsel %vm909, %v3029, 0
      %v3177 = vsel %vm909, %v3053, 0
      %3179 = vmatprep.subr.bf16.mxu0 0
      %3180 = vmatpush1.bf16.xpose.msra.mxu0 %v3177
      %3181 = vmatprep.subr.bf16.mxu0 0
      %3182 = vmatpush1.bf16.xpose.msra.mxu0 0
      %3183 = vmatprep.subr.bf16.mxu0 0
      %3184 = vmatpush1.bf16.xpose.msra.mxu0 0
      %3185 = vmatprep.subr.bf16.mxu0 0
      %3186 = vmatpush1.bf16.xpose.msra.mxu0 0
      %3187 = vmatprep.subr.bf16.mxu0 0
      %3188 = vmatpush1.bf16.xpose.msra.mxu0 0
      %3189 = vmatprep.subr.bf16.mxu0 0
      %3190 = vmatpush1.bf16.xpose.msra.mxu0 0
      %3191 = vmatprep.subr.bf16.mxu0 0
      %3192 = vmatpush1.bf16.xpose.msra.mxu0 0
      %3193 = vmatprep.subr.bf16.mxu0 0
      %3194 = vmatpush1.bf16.xpose.msra.mxu0 0
      %3195 = vmatprep.subr.bf16.mxu0 0
      %3196 = vmatpush1.bf16.xpose.msra.mxu0 0
      %3197 = vmatprep.subr.bf16.mxu0 0
      %3198 = vmatpush1.bf16.xpose.msra.mxu0 0
      %3199 = vmatprep.subr.bf16.mxu0 0
      %3200 = vmatpush1.bf16.xpose.msra.mxu0 0
      %3201 = vmatprep.subr.bf16.mxu0 0
      %3202 = vmatpush1.bf16.xpose.msra.mxu0 0
      %3203 = vmatprep.subr.bf16.mxu0 0
      %3204 = vmatpush1.bf16.xpose.msra.mxu0 0
      %3205 = vmatprep.subr.bf16.mxu0 0
      %3206 = vmatpush1.bf16.xpose.msra.mxu0 0
      %3207 = vmatprep.subr.bf16.mxu0 0
      %3208 = vmatpush1.bf16.xpose.msra.mxu0 0
      %3209 = vmatprep.subr.bf16.mxu0 0
      %3210 = vmatpush1.bf16.xpose.msra.mxu0 0
      %3211 = vmatprep.mubr.bf16.mxu0 0
      %3212 = vmatmul.mubr.bf16.gmra.mrb[0].mxu0 %v3174
      %v3213 = vpop.f32.mrb[0].mxu0
      %v3214 = vadd.f32 0.0, %v3213
      %v3215 = vpop.f32.mrb[0].mxu0
      %v3216 = vpop.f32.mrb[0].mxu0
      %v3217 = vadd.f32 0.0, %v3216
      %v3218 = vpop.f32.mrb[0].mxu0
      %3219 = vdwg.mxu0
      %v3221 = vsel %vm909, %v3030, 0
      %v3224 = vsel %vm909, %v3054, 0
      %3226 = vmatprep.subr.bf16.mxu0 0
      %3227 = vmatpush1.bf16.xpose.msra.mxu0 %v3224
      %3228 = vmatprep.subr.bf16.mxu0 0
      %3229 = vmatpush1.bf16.xpose.msra.mxu0 0
      %3230 = vmatprep.subr.bf16.mxu0 0
      %3231 = vmatpush1.bf16.xpose.msra.mxu0 0
      %3232 = vmatprep.subr.bf16.mxu0 0
      %3233 = vmatpush1.bf16.xpose.msra.mxu0 0
      %3234 = vmatprep.subr.bf16.mxu0 0
      %3235 = vmatpush1.bf16.xpose.msra.mxu0 0
      %3236 = vmatprep.subr.bf16.mxu0 0
      %3237 = vmatpush1.bf16.xpose.msra.mxu0 0
      %3238 = vmatprep.subr.bf16.mxu0 0
      %3239 = vmatpush1.bf16.xpose.msra.mxu0 0
      %3240 = vmatprep.subr.bf16.mxu0 0
      %3241 = vmatpush1.bf16.xpose.msra.mxu0 0
      %3242 = vmatprep.subr.bf16.mxu0 0
      %3243 = vmatpush1.bf16.xpose.msra.mxu0 0
      %3244 = vmatprep.subr.bf16.mxu0 0
      %3245 = vmatpush1.bf16.xpose.msra.mxu0 0
      %3246 = vmatprep.subr.bf16.mxu0 0
      %3247 = vmatpush1.bf16.xpose.msra.mxu0 0
      %3248 = vmatprep.subr.bf16.mxu0 0
      %3249 = vmatpush1.bf16.xpose.msra.mxu0 0
      %3250 = vmatprep.subr.bf16.mxu0 0
      %3251 = vmatpush1.bf16.xpose.msra.mxu0 0
      %3252 = vmatprep.subr.bf16.mxu0 0
      %3253 = vmatpush1.bf16.xpose.msra.mxu0 0
      %3254 = vmatprep.subr.bf16.mxu0 0
      %3255 = vmatpush1.bf16.xpose.msra.mxu0 0
      %3256 = vmatprep.subr.bf16.mxu0 0
      %3257 = vmatpush1.bf16.xpose.msra.mxu0 0
      %3258 = vmatprep.mubr.bf16.mxu0 0
      %3259 = vmatmul.mubr.bf16.gmra.mrb[0].mxu0 %v3221
      %v3260 = vpop.f32.mrb[0].mxu0
      %v3261 = vadd.f32 0.0, %v3260
      %v3262 = vpop.f32.mrb[0].mxu0
      %v3263 = vpop.f32.mrb[0].mxu0
      %v3264 = vadd.f32 0.0, %v3263
      %v3265 = vpop.f32.mrb[0].mxu0
      %3266 = vdwg.mxu0
      %v3267 = vmul.f32 %v3120, 0.35355338
      %v3268 = vmul.f32 %v3123, 0.35355338
      %v3269 = vmul.f32 %v3167, 0.35355338
      %v3270 = vmul.f32 %v3170, 0.35355338
      %v3271 = vmul.f32 %v3214, 0.35355338
      %v3272 = vmul.f32 %v3217, 0.35355338
      %v3273 = vmul.f32 %v3261, 0.35355338
      %v3274 = vmul.f32 %v3264, 0.35355338
      %v3275 = vsel %vm1106, %v3267, -inf
      %3276 = vmax.xlane.f32.xlu0 %v3275
      %v3277 = vpop.xlane.xlu0 %3276
      %v3278 = vsel %vm1106, %v3268, -inf
      %3279 = vmax.xlane.f32.xlu0 %v3278
      %v3280 = vpop.xlane.xlu0 %3279
      %v3281 = vsel %vm1106, %v3269, -inf
      %3282 = vmax.xlane.f32.xlu0 %v3281
      %v3283 = vpop.xlane.xlu0 %3282
      %v3284 = vsel %vm1106, %v3270, -inf
      %3285 = vmax.xlane.f32.xlu0 %v3284
      %v3286 = vpop.xlane.xlu0 %3285
      %v3287 = vsel %vm1106, %v3271, -inf
      %3288 = vmax.xlane.f32.xlu0 %v3287
      %v3289 = vpop.xlane.xlu0 %3288
      %v3290 = vsel %vm1106, %v3272, -inf
      %3291 = vmax.xlane.f32.xlu0 %v3290
      %v3292 = vpop.xlane.xlu0 %3291
      %v3293 = vsel %vm1106, %v3273, -inf
      %3294 = vmax.xlane.f32.xlu0 %v3293
      %v3295 = vpop.xlane.xlu0 %3294
      %v3296 = vsel %vm1106, %v3274, -inf
      %3297 = vmax.xlane.f32.xlu0 %v3296
      %v3298 = vpop.xlane.xlu0 %3297
      %v3299 = vsub.f32 %v3267, %v3277
      %v3300 = vsub.f32 %v3268, %v3280
      %v3301 = vsub.f32 %v3269, %v3283
      %v3302 = vsub.f32 %v3270, %v3286
      %v3303 = vsub.f32 %v3271, %v3289
      %v3304 = vsub.f32 %v3272, %v3292
      %v3305 = vsub.f32 %v3273, %v3295
      %v3306 = vsub.f32 %v3274, %v3298
      %v3307 = vmul.f32 %v3299, 1.442695
      %v3308 = vpow.pop %v3307
      %v3309 = vmul.f32 %v3300, 1.442695
      %v3310 = vpow.pop %v3309
      %v3311 = vmul.f32 %v3301, 1.442695
      %v3312 = vpow.pop %v3311
      %v3313 = vmul.f32 %v3302, 1.442695
      %v3314 = vpow.pop %v3313
      %v3315 = vmul.f32 %v3303, 1.442695
      %v3316 = vpow.pop %v3315
      %v3317 = vmul.f32 %v3304, 1.442695
      %v3318 = vpow.pop %v3317
      %v3319 = vmul.f32 %v3305, 1.442695
      %v3320 = vpow.pop %v3319
      %v3321 = vmul.f32 %v3306, 1.442695
      %v3322 = vpow.pop %v3321
      %v3323 = vsel %vm1106, %v3308, 0.0
      %3324 = vadd.xlane.f32.xlu0 %v3323
      %v3325 = vpop.xlane.xlu0 %3324
      %v3326 = vsel %vm1106, %v3310, 0.0
      %3327 = vadd.xlane.f32.xlu0 %v3326
      %v3328 = vpop.xlane.xlu0 %3327
      %v3329 = vsel %vm1106, %v3312, 0.0
      %3330 = vadd.xlane.f32.xlu0 %v3329
      %v3331 = vpop.xlane.xlu0 %3330
      %v3332 = vsel %vm1106, %v3314, 0.0
      %3333 = vadd.xlane.f32.xlu0 %v3332
      %v3334 = vpop.xlane.xlu0 %3333
      %v3335 = vsel %vm1106, %v3316, 0.0
      %3336 = vadd.xlane.f32.xlu0 %v3335
      %v3337 = vpop.xlane.xlu0 %3336
      %v3338 = vsel %vm1106, %v3318, 0.0
      %3339 = vadd.xlane.f32.xlu0 %v3338
      %v3340 = vpop.xlane.xlu0 %3339
      %v3341 = vsel %vm1106, %v3320, 0.0
      %3342 = vadd.xlane.f32.xlu0 %v3341
      %v3343 = vpop.xlane.xlu0 %3342
      %v3344 = vsel %vm1106, %v3322, 0.0
      %3345 = vadd.xlane.f32.xlu0 %v3344
      %v3346 = vpop.xlane.xlu0 %3345
      %v3347 = vrcp.pop %v3325
      %v3348 = vrcp.pop %v3328
      %v3349 = vrcp.pop %v3331
      %v3350 = vrcp.pop %v3334
      %v3351 = vrcp.pop %v3337
      %v3352 = vrcp.pop %v3340
      %v3353 = vrcp.pop %v3343
      %v3354 = vrcp.pop %v3346
      %v3355 = vmul.f32 %v3308, %v3347
      %v3356 = vmul.f32 %v3310, %v3348
      %v3357 = vmul.f32 %v3312, %v3349
      %v3358 = vmul.f32 %v3314, %v3350
      %v3359 = vmul.f32 %v3316, %v3351
      %v3360 = vmul.f32 %v3318, %v3352
      %v3361 = vmul.f32 %v3320, %v3353
      %v3362 = vmul.f32 %v3322, %v3354
      %v3363 = vpack.c.bf16 %v3356, %v3355
      %v3364 = vpack.c.bf16 %v3358, %v3357
      %v3365 = vpack.c.bf16 %v3360, %v3359
      %v3366 = vpack.c.bf16 %v3362, %v3361
      %v3368 = vsel %vm1106, %v3363, 0
      %3370 = vmatprep.subr.bf16.mxu0 0
      %3371 = vmatpush1.bf16.msra.mxu0 %v3075
      %3372 = vmatprep.subr.bf16.mxu0 0
      %3373 = vmatpush1.bf16.msra.mxu0 0
      %3374 = vmatprep.subr.bf16.mxu0 0
      %3375 = vmatpush1.bf16.msra.mxu0 0
      %3376 = vmatprep.subr.bf16.mxu0 0
      %3377 = vmatpush1.bf16.msra.mxu0 0
      %3378 = vmatprep.subr.bf16.mxu0 0
      %3379 = vmatpush1.bf16.msra.mxu0 0
      %3380 = vmatprep.subr.bf16.mxu0 0
      %3381 = vmatpush1.bf16.msra.mxu0 0
      %3382 = vmatprep.subr.bf16.mxu0 0
      %3383 = vmatpush1.bf16.msra.mxu0 0
      %3384 = vmatprep.subr.bf16.mxu0 0
      %3385 = vmatpush1.bf16.msra.mxu0 0
      %3386 = vmatprep.subr.bf16.mxu0 0
      %3387 = vmatpush1.bf16.msra.mxu0 0
      %3388 = vmatprep.subr.bf16.mxu0 0
      %3389 = vmatpush1.bf16.msra.mxu0 0
      %3390 = vmatprep.subr.bf16.mxu0 0
      %3391 = vmatpush1.bf16.msra.mxu0 0
      %3392 = vmatprep.subr.bf16.mxu0 0
      %3393 = vmatpush1.bf16.msra.mxu0 0
      %3394 = vmatprep.subr.bf16.mxu0 0
      %3395 = vmatpush1.bf16.msra.mxu0 0
      %3396 = vmatprep.subr.bf16.mxu0 0
      %3397 = vmatpush1.bf16.msra.mxu0 0
      %3398 = vmatprep.subr.bf16.mxu0 0
      %3399 = vmatpush1.bf16.msra.mxu0 0
      %3400 = vmatprep.subr.bf16.mxu0 0
      %3401 = vmatpush1.bf16.msra.mxu0 0
      %3402 = vmatprep.mubr.bf16.mxu0 0
      %3403 = vmatmul.mubr.bf16.gmra.mrb[0].mxu0 %v3368
      %v3404 = vpop.f32.mrb[0].mxu0
      %v3405 = vadd.f32 0.0, %v3404
      %v3406 = vpop.f32.mrb[0].mxu0
      %v3407 = vpop.f32.mrb[0].mxu0
      %v3408 = vadd.f32 0.0, %v3407
      %v3409 = vpop.f32.mrb[0].mxu0
      %3410 = vdwg.mxu0
      %v3412 = vsel %vm1106, %v3364, 0
      %3414 = vmatprep.subr.bf16.mxu0 0
      %3415 = vmatpush1.bf16.msra.mxu0 %v3076
      %3416 = vmatprep.subr.bf16.mxu0 0
      %3417 = vmatpush1.bf16.msra.mxu0 0
      %3418 = vmatprep.subr.bf16.mxu0 0
      %3419 = vmatpush1.bf16.msra.mxu0 0
      %3420 = vmatprep.subr.bf16.mxu0 0
      %3421 = vmatpush1.bf16.msra.mxu0 0
      %3422 = vmatprep.subr.bf16.mxu0 0
      %3423 = vmatpush1.bf16.msra.mxu0 0
      %3424 = vmatprep.subr.bf16.mxu0 0
      %3425 = vmatpush1.bf16.msra.mxu0 0
      %3426 = vmatprep.subr.bf16.mxu0 0
      %3427 = vmatpush1.bf16.msra.mxu0 0
      %3428 = vmatprep.subr.bf16.mxu0 0
      %3429 = vmatpush1.bf16.msra.mxu0 0
      %3430 = vmatprep.subr.bf16.mxu0 0
      %3431 = vmatpush1.bf16.msra.mxu0 0
      %3432 = vmatprep.subr.bf16.mxu0 0
      %3433 = vmatpush1.bf16.msra.mxu0 0
      %3434 = vmatprep.subr.bf16.mxu0 0
      %3435 = vmatpush1.bf16.msra.mxu0 0
      %3436 = vmatprep.subr.bf16.mxu0 0
      %3437 = vmatpush1.bf16.msra.mxu0 0
      %3438 = vmatprep.subr.bf16.mxu0 0
      %3439 = vmatpush1.bf16.msra.mxu0 0
      %3440 = vmatprep.subr.bf16.mxu0 0
      %3441 = vmatpush1.bf16.msra.mxu0 0
      %3442 = vmatprep.subr.bf16.mxu0 0
      %3443 = vmatpush1.bf16.msra.mxu0 0
      %3444 = vmatprep.subr.bf16.mxu0 0
      %3445 = vmatpush1.bf16.msra.mxu0 0
      %3446 = vmatprep.mubr.bf16.mxu0 0
      %3447 = vmatmul.mubr.bf16.gmra.mrb[0].mxu0 %v3412
      %v3448 = vpop.f32.mrb[0].mxu0
      %v3449 = vadd.f32 0.0, %v3448
      %v3450 = vpop.f32.mrb[0].mxu0
      %v3451 = vpop.f32.mrb[0].mxu0
      %v3452 = vadd.f32 0.0, %v3451
      %v3453 = vpop.f32.mrb[0].mxu0
      %3454 = vdwg.mxu0
      %v3456 = vsel %vm1106, %v3365, 0
      %3458 = vmatprep.subr.bf16.mxu0 0
      %3459 = vmatpush1.bf16.msra.mxu0 %v3077
      %3460 = vmatprep.subr.bf16.mxu0 0
      %3461 = vmatpush1.bf16.msra.mxu0 0
      %3462 = vmatprep.subr.bf16.mxu0 0
      %3463 = vmatpush1.bf16.msra.mxu0 0
      %3464 = vmatprep.subr.bf16.mxu0 0
      %3465 = vmatpush1.bf16.msra.mxu0 0
      %3466 = vmatprep.subr.bf16.mxu0 0
      %3467 = vmatpush1.bf16.msra.mxu0 0
      %3468 = vmatprep.subr.bf16.mxu0 0
      %3469 = vmatpush1.bf16.msra.mxu0 0
      %3470 = vmatprep.subr.bf16.mxu0 0
      %3471 = vmatpush1.bf16.msra.mxu0 0
      %3472 = vmatprep.subr.bf16.mxu0 0
      %3473 = vmatpush1.bf16.msra.mxu0 0
      %3474 = vmatprep.subr.bf16.mxu0 0
      %3475 = vmatpush1.bf16.msra.mxu0 0
      %3476 = vmatprep.subr.bf16.mxu0 0
      %3477 = vmatpush1.bf16.msra.mxu0 0
      %3478 = vmatprep.subr.bf16.mxu0 0
      %3479 = vmatpush1.bf16.msra.mxu0 0
      %3480 = vmatprep.subr.bf16.mxu0 0
      %3481 = vmatpush1.bf16.msra.mxu0 0
      %3482 = vmatprep.subr.bf16.mxu0 0
      %3483 = vmatpush1.bf16.msra.mxu0 0
      %3484 = vmatprep.subr.bf16.mxu0 0
      %3485 = vmatpush1.bf16.msra.mxu0 0
      %3486 = vmatprep.subr.bf16.mxu0 0
      %3487 = vmatpush1.bf16.msra.mxu0 0
      %3488 = vmatprep.subr.bf16.mxu0 0
      %3489 = vmatpush1.bf16.msra.mxu0 0
      %3490 = vmatprep.mubr.bf16.mxu0 0
      %3491 = vmatmul.mubr.bf16.gmra.mrb[0].mxu0 %v3456
      %v3492 = vpop.f32.mrb[0].mxu0
      %v3493 = vadd.f32 0.0, %v3492
      %v3494 = vpop.f32.mrb[0].mxu0
      %v3495 = vpop.f32.mrb[0].mxu0
      %v3496 = vadd.f32 0.0, %v3495
      %v3497 = vpop.f32.mrb[0].mxu0
      %3498 = vdwg.mxu0
      %v3500 = vsel %vm1106, %v3366, 0
      %3502 = vmatprep.subr.bf16.mxu0 0
      %3503 = vmatpush1.bf16.msra.mxu0 %v3078
      %3504 = vmatprep.subr.bf16.mxu0 0
      %3505 = vmatpush1.bf16.msra.mxu0 0
      %3506 = vmatprep.subr.bf16.mxu0 0
      %3507 = vmatpush1.bf16.msra.mxu0 0
      %3508 = vmatprep.subr.bf16.mxu0 0
      %3509 = vmatpush1.bf16.msra.mxu0 0
      %3510 = vmatprep.subr.bf16.mxu0 0
      %3511 = vmatpush1.bf16.msra.mxu0 0
      %3512 = vmatprep.subr.bf16.mxu0 0
      %3513 = vmatpush1.bf16.msra.mxu0 0
      %3514 = vmatprep.subr.bf16.mxu0 0
      %3515 = vmatpush1.bf16.msra.mxu0 0
      %3516 = vmatprep.subr.bf16.mxu0 0
      %3517 = vmatpush1.bf16.msra.mxu0 0
      %3518 = vmatprep.subr.bf16.mxu0 0
      %3519 = vmatpush1.bf16.msra.mxu0 0
      %3520 = vmatprep.subr.bf16.mxu0 0
      %3521 = vmatpush1.bf16.msra.mxu0 0
      %3522 = vmatprep.subr.bf16.mxu0 0
      %3523 = vmatpush1.bf16.msra.mxu0 0
      %3524 = vmatprep.subr.bf16.mxu0 0
      %3525 = vmatpush1.bf16.msra.mxu0 0
      %3526 = vmatprep.subr.bf16.mxu0 0
      %3527 = vmatpush1.bf16.msra.mxu0 0
      %3528 = vmatprep.subr.bf16.mxu0 0
      %3529 = vmatpush1.bf16.msra.mxu0 0
      %3530 = vmatprep.subr.bf16.mxu0 0
      %3531 = vmatpush1.bf16.msra.mxu0 0
      %3532 = vmatprep.subr.bf16.mxu0 0
      %3533 = vmatpush1.bf16.msra.mxu0 0
      %3534 = vmatprep.mubr.bf16.mxu0 0
      %3535 = vmatmul.mubr.bf16.gmra.mrb[0].mxu0 %v3500
      %v3536 = vpop.f32.mrb[0].mxu0
      %v3537 = vadd.f32 0.0, %v3536
      %v3538 = vpop.f32.mrb[0].mxu0
      %v3539 = vpop.f32.mrb[0].mxu0
      %v3540 = vadd.f32 0.0, %v3539
      %v3541 = vpop.f32.mrb[0].mxu0
      %3542 = vdwg.mxu0
      %3545 = vrot.lane.b32.xlu0 %v3449, 8
      %v3546 = vpop.permute.xlu0 %3545
      %3547 = vrot.lane.b32.xlu0 %v3452, 8
      %v3548 = vpop.permute.xlu0 %3547
      %3553 = vrot.lane.b32.xlu0 %v3493, 16
      %v3554 = vpop.permute.xlu0 %3553
      %3555 = vrot.lane.b32.xlu0 %v3496, 16
      %v3556 = vpop.permute.xlu0 %3555
      %3561 = vrot.lane.b32.xlu0 %v3537, 24
      %v3562 = vpop.permute.xlu0 %3561
      %3563 = vrot.lane.b32.xlu0 %v3540, 24
      %v3564 = vpop.permute.xlu0 %3563
      %v3567 = vsel %vm909, %v3405, %v3546
      %v3568 = vsel %vm909, %v3408, %v3548
      %v3569 = vsel %vm1106, %v3567, %v3554
      %v3570 = vsel %vm1106, %v3568, %v3556
      %v3571 = vsel %vm1403, %v3569, %v3562
      %v3572 = vsel %vm1403, %v3570, %v3564
      %v3573 = vpack.c.bf16 %v3572, %v3571
      %s3574 = scalar_lea.vmem %s6, 16
      %v3575 = vld [vmem:[%s3574] sm:$0xf]
      %v3576 = vld [vmem:[%s3574 + $0x4] sm:$0xf]
      %v3577 = vld [vmem:[%s3574 + $0x8] sm:$0xf]
      %v3578 = vld [vmem:[%s3574 + $0xc] sm:$0xf]
      %s3579 = scalar_lea.vmem %s7, 1
      %v3580 = vld [vmem:[%s3579] sm:$0x1]
      %v3582 = vlaneseq
      %v3583 = vshrl.u32 %v3582, 7
      %v3584 = vsub.s32 0, %v3583
      %v3585 = vrot.slane %v3580, %v3584
      %v3591 = vunpack.c.l.b16 %v3575
      %v3592 = vunpack.c.l.b16 %v3576
      %v3593 = vunpack.c.l.b16 %v3577
      %v3594 = vunpack.c.l.b16 %v3578
      %v3595 = vpack.c.b16 %v3592, %v3591
      %v3596 = vpack.c.b16 %v3594, %v3593
      %v3600 = vsel %vm660, %v3573, 0
      %3602 = vmatprep.subr.bf16.mxu0 0
      %3603 = vmatpush1.bf16.msra.mxu0 %v3595
      %3604 = vmatprep.subr.bf16.mxu0 0
      %3605 = vmatpush1.bf16.msra.mxu0 %v3596
      %3606 = vmatprep.subr.bf16.mxu0 0
      %3607 = vmatpush1.bf16.msra.mxu0 0
      %3608 = vmatprep.subr.bf16.mxu0 0
      %3609 = vmatpush1.bf16.msra.mxu0 0
      %3610 = vmatprep.subr.bf16.mxu0 0
      %3611 = vmatpush1.bf16.msra.mxu0 0
      %3612 = vmatprep.subr.bf16.mxu0 0
      %3613 = vmatpush1.bf16.msra.mxu0 0
      %3614 = vmatprep.subr.bf16.mxu0 0
      %3615 = vmatpush1.bf16.msra.mxu0 0
      %3616 = vmatprep.subr.bf16.mxu0 0
      %3617 = vmatpush1.bf16.msra.mxu0 0
      %3618 = vmatprep.subr.bf16.mxu0 0
      %3619 = vmatpush1.bf16.msra.mxu0 0
      %3620 = vmatprep.subr.bf16.mxu0 0
      %3621 = vmatpush1.bf16.msra.mxu0 0
      %3622 = vmatprep.subr.bf16.mxu0 0
      %3623 = vmatpush1.bf16.msra.mxu0 0
      %3624 = vmatprep.subr.bf16.mxu0 0
      %3625 = vmatpush1.bf16.msra.mxu0 0
      %3626 = vmatprep.subr.bf16.mxu0 0
      %3627 = vmatpush1.bf16.msra.mxu0 0
      %3628 = vmatprep.subr.bf16.mxu0 0
      %3629 = vmatpush1.bf16.msra.mxu0 0
      %3630 = vmatprep.subr.bf16.mxu0 0
      %3631 = vmatpush1.bf16.msra.mxu0 0
      %3632 = vmatprep.subr.bf16.mxu0 0
      %3633 = vmatpush1.bf16.msra.mxu0 0
      %3634 = vmatprep.mubr.bf16.mxu0 0
      %3635 = vmatmul.mubr.bf16.gmra.mrb[0].mxu0 %v3600
      %v3636 = vpop.f32.mrb[0].mxu0
      %v3637 = vadd.f32 %v3585, %v3636
      %v3638 = vpop.f32.mrb[0].mxu0
      %v3639 = vpop.f32.mrb[0].mxu0
      %v3640 = vadd.f32 %v3585, %v3639
      %v3641 = vpop.f32.mrb[0].mxu0
      %3642 = vdwg.mxu0
      %v3643 = vadd.f32 %v2803, %v3637
      %v3644 = vadd.f32 %v2804, %v3640
      %s3645 = scalar_lea.vmem %s8, 2
      %v3646 = vld [vmem:[%s3645] sm:$0x1]
      %v3647 = vld [vmem:[%s3645 + $0x1] sm:$0x1]
      %v3648 = vsel %vm660, %v3643, 0.0
      %3649 = vadd.xlane.f32.xlu0 %v3648
      %v3650 = vpop.xlane.xlu0 %3649
      %v3651 = vsel %vm660, %v3644, 0.0
      %3652 = vadd.xlane.f32.xlu0 %v3651
      %v3653 = vpop.xlane.xlu0 %3652
      %v3654 = vmul.f32 %v3650, %v1484
      %v3655 = vmul.f32 %v3653, %v1484
      %v3656 = vsub.f32 %v3643, %v3654
      %v3657 = vsub.f32 %v3644, %v3655
      %v3658 = vmul.f32 %v3656, %v3656
      %v3659 = vmul.f32 %v3657, %v3657
      %v3660 = vsel %vm660, %v3658, 0.0
      %3661 = vadd.xlane.f32.xlu0 %v3660
      %v3662 = vpop.xlane.xlu0 %3661
      %v3663 = vsel %vm660, %v3659, 0.0
      %3664 = vadd.xlane.f32.xlu0 %v3663
      %v3665 = vpop.xlane.xlu0 %3664
      %v3666 = vmul.f32 %v3662, %v1484
      %v3667 = vmul.f32 %v3665, %v1484
      %v3668 = vadd.f32 %v3666, 1e-05
      %v3669 = vadd.f32 %v3667, 1e-05
      %v3670 = vrsqrt.pop %v3668
      %v3671 = vrsqrt.pop %v3669
      %v3672 = vmul.f32 %v3656, %v3670
      %v3673 = vmul.f32 %v3657, %v3671
      %v3674 = vlaneseq
      %v3675 = vshrl.u32 %v3674, 7
      %v3676 = vsub.s32 0, %v3675
      %v3677 = vrot.slane %v3646, %v3676
      %v3678 = vmul.f32 %v3672, %v3677
      %v3679 = vmul.f32 %v3673, %v3677
      %v3680 = vlaneseq
      %v3681 = vshrl.u32 %v3680, 7
      %v3682 = vsub.s32 0, %v3681
      %v3683 = vrot.slane %v3647, %v3682
      %v3684 = vadd.f32 %v3678, %v3683
      %v3685 = vadd.f32 %v3679, %v3683
      %v3686 = vpack.c.bf16 %v3685, %v3684
      %s3687 = sadd.s32 0, 64
      %s3688 = smul.addr %s3687, 4
      %s3689 = scalar_lea.vmem %s9, %s3688
      %v3690 = vld [vmem:[%s3689] sm:$0xff]
      %v3691 = vld [vmem:[%s3689 + $0x40] sm:$0xff]
      %v3692 = vld [vmem:[%s3689 + $0x80] sm:$0xff]
      %v3693 = vld [vmem:[%s3689 + $0xc0] sm:$0xff]
      %s3694 = sadd.s32 0, 16
      %s3695 = scalar_lea.vmem %s10, %s3694
      %v3696 = vld [vmem:[%s3695] sm:$0x3]
      %v3698 = vlaneseq
      %v3699 = vshrl.u32 %v3698, 7
      %v3700 = vsub.s32 0, %v3699
      %v3701 = vrot.slane %v3696, %v3700
      %v3702 = vlaneseq
      %v3703 = vshrl.u32 %v3702, 7
      %v3704 = vsub.s32 1, %v3703
      %v3705 = vrot.slane %v3696, %v3704
      %v3712 = vunpack.c.l.b16 %v3690
      %v3713 = vunpack.c.h.b16 %v3690
      %v3714 = vunpack.c.l.b16 %v3691
      %v3715 = vunpack.c.h.b16 %v3691
      %v3716 = vunpack.c.l.b16 %v3692
      %v3717 = vunpack.c.h.b16 %v3692
      %v3718 = vunpack.c.l.b16 %v3693
      %v3719 = vunpack.c.h.b16 %v3693
      %v3720 = vpack.c.b16 %v3714, %v3712
      %v3721 = vpack.c.b16 %v3715, %v3713
      %v3722 = vpack.c.b16 %v3718, %v3716
      %v3723 = vpack.c.b16 %v3719, %v3717
      %v3729 = vsel %vm660, %v3686, 0
      %3731 = vmatprep.subr.bf16.mxu0 %v3721
      %3732 = vmatpush1.bf16.msra.mxu0 %v3720
      %3733 = vmatprep.subr.bf16.mxu0 %v3723
      %3734 = vmatpush1.bf16.msra.mxu0 %v3722
      %3735 = vmatprep.subr.bf16.mxu0 0
      %3736 = vmatpush1.bf16.msra.mxu0 0
      %3737 = vmatprep.subr.bf16.mxu0 0
      %3738 = vmatpush1.bf16.msra.mxu0 0
      %3739 = vmatprep.subr.bf16.mxu0 0
      %3740 = vmatpush1.bf16.msra.mxu0 0
      %3741 = vmatprep.subr.bf16.mxu0 0
      %3742 = vmatpush1.bf16.msra.mxu0 0
      %3743 = vmatprep.subr.bf16.mxu0 0
      %3744 = vmatpush1.bf16.msra.mxu0 0
      %3745 = vmatprep.subr.bf16.mxu0 0
      %3746 = vmatpush1.bf16.msra.mxu0 0
      %3747 = vmatprep.subr.bf16.mxu0 0
      %3748 = vmatpush1.bf16.msra.mxu0 0
      %3749 = vmatprep.subr.bf16.mxu0 0
      %3750 = vmatpush1.bf16.msra.mxu0 0
      %3751 = vmatprep.subr.bf16.mxu0 0
      %3752 = vmatpush1.bf16.msra.mxu0 0
      %3753 = vmatprep.subr.bf16.mxu0 0
      %3754 = vmatpush1.bf16.msra.mxu0 0
      %3755 = vmatprep.subr.bf16.mxu0 0
      %3756 = vmatpush1.bf16.msra.mxu0 0
      %3757 = vmatprep.subr.bf16.mxu0 0
      %3758 = vmatpush1.bf16.msra.mxu0 0
      %3759 = vmatprep.subr.bf16.mxu0 0
      %3760 = vmatpush1.bf16.msra.mxu0 0
      %3761 = vmatprep.subr.bf16.mxu0 0
      %3762 = vmatpush1.bf16.msra.mxu0 0
      %3763 = vmatprep.mubr.bf16.mxu0 0
      %3764 = vmatmul.mubr.bf16.gmra.mrb[0].mxu0 %v3729
      %v3765 = vpop.f32.mrb[0].mxu0
      %v3766 = vadd.f32 %v3701, %v3765
      %v3767 = vpop.f32.mrb[0].mxu0
      %v3768 = vadd.f32 %v3705, %v3767
      %v3769 = vpop.f32.mrb[0].mxu0
      %v3770 = vadd.f32 %v3701, %v3769
      %v3771 = vpop.f32.mrb[0].mxu0
      %v3772 = vadd.f32 %v3705, %v3771
      %3773 = vdwg.mxu0
      %v3774 = vmax.f32 %v3766, 0.0
      %v3775 = vmax.f32 %v3768, 0.0
      %v3776 = vmax.f32 %v3770, 0.0
      %v3777 = vmax.f32 %v3772, 0.0
      %v3778 = vpack.c.bf16 %v3776, %v3774
      %v3779 = vpack.c.bf16 %v3777, %v3775
      %s3780 = smul.addr %s3687, 4
      %s3781 = scalar_lea.vmem %s11, %s3780
      %v3782 = vld [vmem:[%s3781] sm:$0xff]
      %v3783 = vld [vmem:[%s3781 + $0x40] sm:$0xff]
      %v3784 = vld [vmem:[%s3781 + $0x80] sm:$0xff]
      %v3785 = vld [vmem:[%s3781 + $0xc0] sm:$0xff]
      %s3786 = sadd.s32 2, 64
      %s3787 = smul.addr %s3786, 4
      %s3788 = scalar_lea.vmem %s9, %s3787
      %v3789 = vld [vmem:[%s3788] sm:$0xff]
      %v3790 = vld [vmem:[%s3788 + $0x40] sm:$0xff]
      %v3791 = vld [vmem:[%s3788 + $0x80] sm:$0xff]
      %v3792 = vld [vmem:[%s3788 + $0xc0] sm:$0xff]
      %s3793 = sadd.s32 2, 16
      %s3794 = scalar_lea.vmem %s10, %s3793
      %v3795 = vld [vmem:[%s3794] sm:$0x3]
      %v3797 = vlaneseq
      %v3798 = vshrl.u32 %v3797, 7
      %v3799 = vsub.s32 0, %v3798
      %v3800 = vrot.slane %v3795, %v3799
      %v3801 = vlaneseq
      %v3802 = vshrl.u32 %v3801, 7
      %v3803 = vsub.s32 1, %v3802
      %v3804 = vrot.slane %v3795, %v3803
      %v3811 = vunpack.c.l.b16 %v3789
      %v3812 = vunpack.c.h.b16 %v3789
      %v3813 = vunpack.c.l.b16 %v3790
      %v3814 = vunpack.c.h.b16 %v3790
      %v3815 = vunpack.c.l.b16 %v3791
      %v3816 = vunpack.c.h.b16 %v3791
      %v3817 = vunpack.c.l.b16 %v3792
      %v3818 = vunpack.c.h.b16 %v3792
      %v3819 = vpack.c.b16 %v3813, %v3811
      %v3820 = vpack.c.b16 %v3814, %v3812
      %v3821 = vpack.c.b16 %v3817, %v3815
      %v3822 = vpack.c.b16 %v3818, %v3816
      %3827 = vmatprep.subr.bf16.mxu0 %v3820
      %3828 = vmatpush1.bf16.msra.mxu0 %v3819
      %3829 = vmatprep.subr.bf16.mxu0 %v3822
      %3830 = vmatpush1.bf16.msra.mxu0 %v3821
      %3831 = vmatprep.subr.bf16.mxu0 0
      %3832 = vmatpush1.bf16.msra.mxu0 0
      %3833 = vmatprep.subr.bf16.mxu0 0
      %3834 = vmatpush1.bf16.msra.mxu0 0
      %3835 = vmatprep.subr.bf16.mxu0 0
      %3836 = vmatpush1.bf16.msra.mxu0 0
      %3837 = vmatprep.subr.bf16.mxu0 0
      %3838 = vmatpush1.bf16.msra.mxu0 0
      %3839 = vmatprep.subr.bf16.mxu0 0
      %3840 = vmatpush1.bf16.msra.mxu0 0
      %3841 = vmatprep.subr.bf16.mxu0 0
      %3842 = vmatpush1.bf16.msra.mxu0 0
      %3843 = vmatprep.subr.bf16.mxu0 0
      %3844 = vmatpush1.bf16.msra.mxu0 0
      %3845 = vmatprep.subr.bf16.mxu0 0
      %3846 = vmatpush1.bf16.msra.mxu0 0
      %3847 = vmatprep.subr.bf16.mxu0 0
      %3848 = vmatpush1.bf16.msra.mxu0 0
      %3849 = vmatprep.subr.bf16.mxu0 0
      %3850 = vmatpush1.bf16.msra.mxu0 0
      %3851 = vmatprep.subr.bf16.mxu0 0
      %3852 = vmatpush1.bf16.msra.mxu0 0
      %3853 = vmatprep.subr.bf16.mxu0 0
      %3854 = vmatpush1.bf16.msra.mxu0 0
      %3855 = vmatprep.subr.bf16.mxu0 0
      %3856 = vmatpush1.bf16.msra.mxu0 0
      %3857 = vmatprep.subr.bf16.mxu0 0
      %3858 = vmatpush1.bf16.msra.mxu0 0
      %3859 = vmatprep.mubr.bf16.mxu0 0
      %3860 = vmatmul.mubr.bf16.gmra.mrb[0].mxu0 %v3729
      %v3861 = vpop.f32.mrb[0].mxu0
      %v3862 = vadd.f32 %v3800, %v3861
      %v3863 = vpop.f32.mrb[0].mxu0
      %v3864 = vadd.f32 %v3804, %v3863
      %v3865 = vpop.f32.mrb[0].mxu0
      %v3866 = vadd.f32 %v3800, %v3865
      %v3867 = vpop.f32.mrb[0].mxu0
      %v3868 = vadd.f32 %v3804, %v3867
      %3869 = vdwg.mxu0
      %v3870 = vmax.f32 %v3862, 0.0
      %v3871 = vmax.f32 %v3864, 0.0
      %v3872 = vmax.f32 %v3866, 0.0
      %v3873 = vmax.f32 %v3868, 0.0
      %v3874 = vpack.c.bf16 %v3872, %v3870
      %v3875 = vpack.c.bf16 %v3873, %v3871
      %s3876 = smul.addr %s3786, 4
      %s3877 = scalar_lea.vmem %s11, %s3876
      %v3878 = vld [vmem:[%s3877] sm:$0xff]
      %v3879 = vld [vmem:[%s3877 + $0x40] sm:$0xff]
      %v3880 = vld [vmem:[%s3877 + $0x80] sm:$0xff]
      %v3881 = vld [vmem:[%s3877 + $0xc0] sm:$0xff]
      %v3886 = vunpack.c.l.b16 %v3878
      %v3887 = vunpack.c.h.b16 %v3878
      %v3888 = vunpack.c.l.b16 %v3879
      %v3889 = vunpack.c.h.b16 %v3879
      %v3890 = vunpack.c.l.b16 %v3880
      %v3891 = vunpack.c.h.b16 %v3880
      %v3892 = vunpack.c.l.b16 %v3881
      %v3893 = vunpack.c.h.b16 %v3881
      %v3894 = vpack.c.b16 %v3888, %v3886
      %v3895 = vpack.c.b16 %v3889, %v3887
      %v3896 = vpack.c.b16 %v3892, %v3890
      %v3897 = vpack.c.b16 %v3893, %v3891
      %3902 = vmatprep.subr.bf16.mxu0 %v3895
      %3903 = vmatpush1.bf16.xpose.msra.mxu0 %v3894
      %3904 = vmatprep.subr.bf16.mxu0 %v3897
      %3905 = vmatpush1.bf16.xpose.msra.mxu0 %v3896
      %3906 = vmatprep.subr.bf16.mxu0 0
      %3907 = vmatpush1.bf16.xpose.msra.mxu0 0
      %3908 = vmatprep.subr.bf16.mxu0 0
      %3909 = vmatpush1.bf16.xpose.msra.mxu0 0
      %3910 = vmatprep.subr.bf16.mxu0 0
      %3911 = vmatpush1.bf16.xpose.msra.mxu0 0
      %3912 = vmatprep.subr.bf16.mxu0 0
      %3913 = vmatpush1.bf16.xpose.msra.mxu0 0
      %3914 = vmatprep.subr.bf16.mxu0 0
      %3915 = vmatpush1.bf16.xpose.msra.mxu0 0
      %3916 = vmatprep.subr.bf16.mxu0 0
      %3917 = vmatpush1.bf16.xpose.msra.mxu0 0
      %3918 = vmatprep.subr.bf16.mxu0 0
      %3919 = vmatpush1.bf16.xpose.msra.mxu0 0
      %3920 = vmatprep.subr.bf16.mxu0 0
      %3921 = vmatpush1.bf16.xpose.msra.mxu0 0
      %3922 = vmatprep.subr.bf16.mxu0 0
      %3923 = vmatpush1.bf16.xpose.msra.mxu0 0
      %3924 = vmatprep.subr.bf16.mxu0 0
      %3925 = vmatpush1.bf16.xpose.msra.mxu0 0
      %3926 = vmatprep.subr.bf16.mxu0 0
      %3927 = vmatpush1.bf16.xpose.msra.mxu0 0
      %3928 = vmatprep.subr.bf16.mxu0 0
      %3929 = vmatpush1.bf16.xpose.msra.mxu0 0
      %3930 = vmatprep.subr.bf16.mxu0 0
      %3931 = vmatpush1.bf16.xpose.msra.mxu0 0
      %3932 = vmatprep.subr.bf16.mxu0 0
      %3933 = vmatpush1.bf16.xpose.msra.mxu0 0
      %3934 = vmatprep.mubr.bf16.mxu0 %v3875
      %3935 = vmatmul.mubr.bf16.gmra.mrb[0].mxu0 %v3874
      %v3936 = vpop.f32.mrb[0].mxu0
      %v3937 = vadd.f32 0.0, %v3936
      %v3938 = vpop.f32.mrb[0].mxu0
      %v3939 = vpop.f32.mrb[0].mxu0
      %v3940 = vadd.f32 0.0, %v3939
      %v3941 = vpop.f32.mrb[0].mxu0
      %3942 = vdwg.mxu0
      %v3947 = vunpack.c.l.b16 %v3782
      %v3948 = vunpack.c.h.b16 %v3782
      %v3949 = vunpack.c.l.b16 %v3783
      %v3950 = vunpack.c.h.b16 %v3783
      %v3951 = vunpack.c.l.b16 %v3784
      %v3952 = vunpack.c.h.b16 %v3784
      %v3953 = vunpack.c.l.b16 %v3785
      %v3954 = vunpack.c.h.b16 %v3785
      %v3955 = vpack.c.b16 %v3949, %v3947
      %v3956 = vpack.c.b16 %v3950, %v3948
      %v3957 = vpack.c.b16 %v3953, %v3951
      %v3958 = vpack.c.b16 %v3954, %v3952
      %3963 = vmatprep.subr.bf16.mxu0 %v3956
      %3964 = vmatpush1.bf16.xpose.msra.mxu0 %v3955
      %3965 = vmatprep.subr.bf16.mxu0 %v3958
      %3966 = vmatpush1.bf16.xpose.msra.mxu0 %v3957
      %3967 = vmatprep.subr.bf16.mxu0 0
      %3968 = vmatpush1.bf16.xpose.msra.mxu0 0
      %3969 = vmatprep.subr.bf16.mxu0 0
      %3970 = vmatpush1.bf16.xpose.msra.mxu0 0
      %3971 = vmatprep.subr.bf16.mxu0 0
      %3972 = vmatpush1.bf16.xpose.msra.mxu0 0
      %3973 = vmatprep.subr.bf16.mxu0 0
      %3974 = vmatpush1.bf16.xpose.msra.mxu0 0
      %3975 = vmatprep.subr.bf16.mxu0 0
      %3976 = vmatpush1.bf16.xpose.msra.mxu0 0
      %3977 = vmatprep.subr.bf16.mxu0 0
      %3978 = vmatpush1.bf16.xpose.msra.mxu0 0
      %3979 = vmatprep.subr.bf16.mxu0 0
      %3980 = vmatpush1.bf16.xpose.msra.mxu0 0
      %3981 = vmatprep.subr.bf16.mxu0 0
      %3982 = vmatpush1.bf16.xpose.msra.mxu0 0
      %3983 = vmatprep.subr.bf16.mxu0 0
      %3984 = vmatpush1.bf16.xpose.msra.mxu0 0
      %3985 = vmatprep.subr.bf16.mxu0 0
      %3986 = vmatpush1.bf16.xpose.msra.mxu0 0
      %3987 = vmatprep.subr.bf16.mxu0 0
      %3988 = vmatpush1.bf16.xpose.msra.mxu0 0
      %3989 = vmatprep.subr.bf16.mxu0 0
      %3990 = vmatpush1.bf16.xpose.msra.mxu0 0
      %3991 = vmatprep.subr.bf16.mxu0 0
      %3992 = vmatpush1.bf16.xpose.msra.mxu0 0
      %3993 = vmatprep.subr.bf16.mxu0 0
      %3994 = vmatpush1.bf16.xpose.msra.mxu0 0
      %3995 = vmatprep.mubr.bf16.mxu0 %v3779
      %3996 = vmatmul.mubr.bf16.gmra.mrb[0].mxu0 %v3778
      %v3997 = vpop.f32.mrb[0].mxu0
      %v3998 = vadd.f32 %v3937, %v3997
      %v3999 = vpop.f32.mrb[0].mxu0
      %v4000 = vpop.f32.mrb[0].mxu0
      %v4001 = vadd.f32 %v3940, %v4000
      %v4002 = vpop.f32.mrb[0].mxu0
      %4003 = vdwg.mxu0
      %s4004 = sadd.s32 4, 64
      %s4005 = smul.addr %s4004, 4
      %s4006 = scalar_lea.vmem %s9, %s4005
      %v4007 = vld [vmem:[%s4006] sm:$0xff]
      %v4008 = vld [vmem:[%s4006 + $0x40] sm:$0xff]
      %v4009 = vld [vmem:[%s4006 + $0x80] sm:$0xff]
      %v4010 = vld [vmem:[%s4006 + $0xc0] sm:$0xff]
      %s4011 = sadd.s32 4, 16
      %s4012 = scalar_lea.vmem %s10, %s4011
      %v4013 = vld [vmem:[%s4012] sm:$0x3]
      %v4015 = vlaneseq
      %v4016 = vshrl.u32 %v4015, 7
      %v4017 = vsub.s32 0, %v4016
      %v4018 = vrot.slane %v4013, %v4017
      %v4019 = vlaneseq
      %v4020 = vshrl.u32 %v4019, 7
      %v4021 = vsub.s32 1, %v4020
      %v4022 = vrot.slane %v4013, %v4021
      %v4029 = vunpack.c.l.b16 %v4007
      %v4030 = vunpack.c.h.b16 %v4007
      %v4031 = vunpack.c.l.b16 %v4008
      %v4032 = vunpack.c.h.b16 %v4008
      %v4033 = vunpack.c.l.b16 %v4009
      %v4034 = vunpack.c.h.b16 %v4009
      %v4035 = vunpack.c.l.b16 %v4010
      %v4036 = vunpack.c.h.b16 %v4010
      %v4037 = vpack.c.b16 %v4031, %v4029
      %v4038 = vpack.c.b16 %v4032, %v4030
      %v4039 = vpack.c.b16 %v4035, %v4033
      %v4040 = vpack.c.b16 %v4036, %v4034
      %4045 = vmatprep.subr.bf16.mxu0 %v4038
      %4046 = vmatpush1.bf16.msra.mxu0 %v4037
      %4047 = vmatprep.subr.bf16.mxu0 %v4040
      %4048 = vmatpush1.bf16.msra.mxu0 %v4039
      %4049 = vmatprep.subr.bf16.mxu0 0
      %4050 = vmatpush1.bf16.msra.mxu0 0
      %4051 = vmatprep.subr.bf16.mxu0 0
      %4052 = vmatpush1.bf16.msra.mxu0 0
      %4053 = vmatprep.subr.bf16.mxu0 0
      %4054 = vmatpush1.bf16.msra.mxu0 0
      %4055 = vmatprep.subr.bf16.mxu0 0
      %4056 = vmatpush1.bf16.msra.mxu0 0
      %4057 = vmatprep.subr.bf16.mxu0 0
      %4058 = vmatpush1.bf16.msra.mxu0 0
      %4059 = vmatprep.subr.bf16.mxu0 0
      %4060 = vmatpush1.bf16.msra.mxu0 0
      %4061 = vmatprep.subr.bf16.mxu0 0
      %4062 = vmatpush1.bf16.msra.mxu0 0
      %4063 = vmatprep.subr.bf16.mxu0 0
      %4064 = vmatpush1.bf16.msra.mxu0 0
      %4065 = vmatprep.subr.bf16.mxu0 0
      %4066 = vmatpush1.bf16.msra.mxu0 0
      %4067 = vmatprep.subr.bf16.mxu0 0
      %4068 = vmatpush1.bf16.msra.mxu0 0
      %4069 = vmatprep.subr.bf16.mxu0 0
      %4070 = vmatpush1.bf16.msra.mxu0 0
      %4071 = vmatprep.subr.bf16.mxu0 0
      %4072 = vmatpush1.bf16.msra.mxu0 0
      %4073 = vmatprep.subr.bf16.mxu0 0
      %4074 = vmatpush1.bf16.msra.mxu0 0
      %4075 = vmatprep.subr.bf16.mxu0 0
      %4076 = vmatpush1.bf16.msra.mxu0 0
      %4077 = vmatprep.mubr.bf16.mxu0 0
      %4078 = vmatmul.mubr.bf16.gmra.mrb[0].mxu0 %v3729
      %v4079 = vpop.f32.mrb[0].mxu0
      %v4080 = vadd.f32 %v4018, %v4079
      %v4081 = vpop.f32.mrb[0].mxu0
      %v4082 = vadd.f32 %v4022, %v4081
      %v4083 = vpop.f32.mrb[0].mxu0
      %v4084 = vadd.f32 %v4018, %v4083
      %v4085 = vpop.f32.mrb[0].mxu0
      %v4086 = vadd.f32 %v4022, %v4085
      %4087 = vdwg.mxu0
      %v4088 = vmax.f32 %v4080, 0.0
      %v4089 = vmax.f32 %v4082, 0.0
      %v4090 = vmax.f32 %v4084, 0.0
      %v4091 = vmax.f32 %v4086, 0.0
      %v4092 = vpack.c.bf16 %v4090, %v4088
      %v4093 = vpack.c.bf16 %v4091, %v4089
      %s4094 = smul.addr %s4004, 4
      %s4095 = scalar_lea.vmem %s11, %s4094
      %v4096 = vld [vmem:[%s4095] sm:$0xff]
      %v4097 = vld [vmem:[%s4095 + $0x40] sm:$0xff]
      %v4098 = vld [vmem:[%s4095 + $0x80] sm:$0xff]
      %v4099 = vld [vmem:[%s4095 + $0xc0] sm:$0xff]
      %v4104 = vunpack.c.l.b16 %v4096
      %v4105 = vunpack.c.h.b16 %v4096
      %v4106 = vunpack.c.l.b16 %v4097
      %v4107 = vunpack.c.h.b16 %v4097
      %v4108 = vunpack.c.l.b16 %v4098
      %v4109 = vunpack.c.h.b16 %v4098
      %v4110 = vunpack.c.l.b16 %v4099
      %v4111 = vunpack.c.h.b16 %v4099
      %v4112 = vpack.c.b16 %v4106, %v4104
      %v4113 = vpack.c.b16 %v4107, %v4105
      %v4114 = vpack.c.b16 %v4110, %v4108
      %v4115 = vpack.c.b16 %v4111, %v4109
      %4120 = vmatprep.subr.bf16.mxu0 %v4113
      %4121 = vmatpush1.bf16.xpose.msra.mxu0 %v4112
      %4122 = vmatprep.subr.bf16.mxu0 %v4115
      %4123 = vmatpush1.bf16.xpose.msra.mxu0 %v4114
      %4124 = vmatprep.subr.bf16.mxu0 0
      %4125 = vmatpush1.bf16.xpose.msra.mxu0 0
      %4126 = vmatprep.subr.bf16.mxu0 0
      %4127 = vmatpush1.bf16.xpose.msra.mxu0 0
      %4128 = vmatprep.subr.bf16.mxu0 0
      %4129 = vmatpush1.bf16.xpose.msra.mxu0 0
      %4130 = vmatprep.subr.bf16.mxu0 0
      %4131 = vmatpush1.bf16.xpose.msra.mxu0 0
      %4132 = vmatprep.subr.bf16.mxu0 0
      %4133 = vmatpush1.bf16.xpose.msra.mxu0 0
      %4134 = vmatprep.subr.bf16.mxu0 0
      %4135 = vmatpush1.bf16.xpose.msra.mxu0 0
      %4136 = vmatprep.subr.bf16.mxu0 0
      %4137 = vmatpush1.bf16.xpose.msra.mxu0 0
      %4138 = vmatprep.subr.bf16.mxu0 0
      %4139 = vmatpush1.bf16.xpose.msra.mxu0 0
      %4140 = vmatprep.subr.bf16.mxu0 0
      %4141 = vmatpush1.bf16.xpose.msra.mxu0 0
      %4142 = vmatprep.subr.bf16.mxu0 0
      %4143 = vmatpush1.bf16.xpose.msra.mxu0 0
      %4144 = vmatprep.subr.bf16.mxu0 0
      %4145 = vmatpush1.bf16.xpose.msra.mxu0 0
      %4146 = vmatprep.subr.bf16.mxu0 0
      %4147 = vmatpush1.bf16.xpose.msra.mxu0 0
      %4148 = vmatprep.subr.bf16.mxu0 0
      %4149 = vmatpush1.bf16.xpose.msra.mxu0 0
      %4150 = vmatprep.subr.bf16.mxu0 0
      %4151 = vmatpush1.bf16.xpose.msra.mxu0 0
      %4152 = vmatprep.mubr.bf16.mxu0 %v4093
      %4153 = vmatmul.mubr.bf16.gmra.mrb[0].mxu0 %v4092
      %v4154 = vpop.f32.mrb[0].mxu0
      %v4155 = vadd.f32 0.0, %v4154
      %v4156 = vpop.f32.mrb[0].mxu0
      %v4157 = vpop.f32.mrb[0].mxu0
      %v4158 = vadd.f32 0.0, %v4157
      %v4159 = vpop.f32.mrb[0].mxu0
      %4160 = vdwg.mxu0
      %v4161 = vadd.f32 %v3998, %v4155
      %v4162 = vadd.f32 %v4001, %v4158
      %s4163 = sadd.s32 6, 64
      %s4164 = smul.addr %s4163, 4
      %s4165 = scalar_lea.vmem %s9, %s4164
      %v4166 = vld [vmem:[%s4165] sm:$0xff]
      %v4167 = vld [vmem:[%s4165 + $0x40] sm:$0xff]
      %v4168 = vld [vmem:[%s4165 + $0x80] sm:$0xff]
      %v4169 = vld [vmem:[%s4165 + $0xc0] sm:$0xff]
      %s4170 = sadd.s32 6, 16
      %s4171 = scalar_lea.vmem %s10, %s4170
      %v4172 = vld [vmem:[%s4171] sm:$0x3]
      %v4174 = vlaneseq
      %v4175 = vshrl.u32 %v4174, 7
      %v4176 = vsub.s32 0, %v4175
      %v4177 = vrot.slane %v4172, %v4176
      %v4178 = vlaneseq
      %v4179 = vshrl.u32 %v4178, 7
      %v4180 = vsub.s32 1, %v4179
      %v4181 = vrot.slane %v4172, %v4180
      %v4188 = vunpack.c.l.b16 %v4166
      %v4189 = vunpack.c.h.b16 %v4166
      %v4190 = vunpack.c.l.b16 %v4167
      %v4191 = vunpack.c.h.b16 %v4167
      %v4192 = vunpack.c.l.b16 %v4168
      %v4193 = vunpack.c.h.b16 %v4168
      %v4194 = vunpack.c.l.b16 %v4169
      %v4195 = vunpack.c.h.b16 %v4169
      %v4196 = vpack.c.b16 %v4190, %v4188
      %v4197 = vpack.c.b16 %v4191, %v4189
      %v4198 = vpack.c.b16 %v4194, %v4192
      %v4199 = vpack.c.b16 %v4195, %v4193
      %4204 = vmatprep.subr.bf16.mxu0 %v4197
      %4205 = vmatpush1.bf16.msra.mxu0 %v4196
      %4206 = vmatprep.subr.bf16.mxu0 %v4199
      %4207 = vmatpush1.bf16.msra.mxu0 %v4198
      %4208 = vmatprep.subr.bf16.mxu0 0
      %4209 = vmatpush1.bf16.msra.mxu0 0
      %4210 = vmatprep.subr.bf16.mxu0 0
      %4211 = vmatpush1.bf16.msra.mxu0 0
      %4212 = vmatprep.subr.bf16.mxu0 0
      %4213 = vmatpush1.bf16.msra.mxu0 0
      %4214 = vmatprep.subr.bf16.mxu0 0
      %4215 = vmatpush1.bf16.msra.mxu0 0
      %4216 = vmatprep.subr.bf16.mxu0 0
      %4217 = vmatpush1.bf16.msra.mxu0 0
      %4218 = vmatprep.subr.bf16.mxu0 0
      %4219 = vmatpush1.bf16.msra.mxu0 0
      %4220 = vmatprep.subr.bf16.mxu0 0
      %4221 = vmatpush1.bf16.msra.mxu0 0
      %4222 = vmatprep.subr.bf16.mxu0 0
      %4223 = vmatpush1.bf16.msra.mxu0 0
      %4224 = vmatprep.subr.bf16.mxu0 0
      %4225 = vmatpush1.bf16.msra.mxu0 0
      %4226 = vmatprep.subr.bf16.mxu0 0
      %4227 = vmatpush1.bf16.msra.mxu0 0
      %4228 = vmatprep.subr.bf16.mxu0 0
      %4229 = vmatpush1.bf16.msra.mxu0 0
      %4230 = vmatprep.subr.bf16.mxu0 0
      %4231 = vmatpush1.bf16.msra.mxu0 0
      %4232 = vmatprep.subr.bf16.mxu0 0
      %4233 = vmatpush1.bf16.msra.mxu0 0
      %4234 = vmatprep.subr.bf16.mxu0 0
      %4235 = vmatpush1.bf16.msra.mxu0 0
      %4236 = vmatprep.mubr.bf16.mxu0 0
      %4237 = vmatmul.mubr.bf16.gmra.mrb[0].mxu0 %v3729
      %v4238 = vpop.f32.mrb[0].mxu0
      %v4239 = vadd.f32 %v4177, %v4238
      %v4240 = vpop.f32.mrb[0].mxu0
      %v4241 = vadd.f32 %v4181, %v4240
      %v4242 = vpop.f32.mrb[0].mxu0
      %v4243 = vadd.f32 %v4177, %v4242
      %v4244 = vpop.f32.mrb[0].mxu0
      %v4245 = vadd.f32 %v4181, %v4244
      %4246 = vdwg.mxu0
      %v4247 = vmax.f32 %v4239, 0.0
      %v4248 = vmax.f32 %v4241, 0.0
      %v4249 = vmax.f32 %v4243, 0.0
      %v4250 = vmax.f32 %v4245, 0.0
      %v4251 = vpack.c.bf16 %v4249, %v4247
      %v4252 = vpack.c.bf16 %v4250, %v4248
      %s4253 = smul.addr %s4163, 4
      %s4254 = scalar_lea.vmem %s11, %s4253
      %v4255 = vld [vmem:[%s4254] sm:$0xff]
      %v4256 = vld [vmem:[%s4254 + $0x40] sm:$0xff]
      %v4257 = vld [vmem:[%s4254 + $0x80] sm:$0xff]
      %v4258 = vld [vmem:[%s4254 + $0xc0] sm:$0xff]
      %v4263 = vunpack.c.l.b16 %v4255
      %v4264 = vunpack.c.h.b16 %v4255
      %v4265 = vunpack.c.l.b16 %v4256
      %v4266 = vunpack.c.h.b16 %v4256
      %v4267 = vunpack.c.l.b16 %v4257
      %v4268 = vunpack.c.h.b16 %v4257
      %v4269 = vunpack.c.l.b16 %v4258
      %v4270 = vunpack.c.h.b16 %v4258
      %v4271 = vpack.c.b16 %v4265, %v4263
      %v4272 = vpack.c.b16 %v4266, %v4264
      %v4273 = vpack.c.b16 %v4269, %v4267
      %v4274 = vpack.c.b16 %v4270, %v4268
      %4279 = vmatprep.subr.bf16.mxu0 %v4272
      %4280 = vmatpush1.bf16.xpose.msra.mxu0 %v4271
      %4281 = vmatprep.subr.bf16.mxu0 %v4274
      %4282 = vmatpush1.bf16.xpose.msra.mxu0 %v4273
      %4283 = vmatprep.subr.bf16.mxu0 0
      %4284 = vmatpush1.bf16.xpose.msra.mxu0 0
      %4285 = vmatprep.subr.bf16.mxu0 0
      %4286 = vmatpush1.bf16.xpose.msra.mxu0 0
      %4287 = vmatprep.subr.bf16.mxu0 0
      %4288 = vmatpush1.bf16.xpose.msra.mxu0 0
      %4289 = vmatprep.subr.bf16.mxu0 0
      %4290 = vmatpush1.bf16.xpose.msra.mxu0 0
      %4291 = vmatprep.subr.bf16.mxu0 0
      %4292 = vmatpush1.bf16.xpose.msra.mxu0 0
      %4293 = vmatprep.subr.bf16.mxu0 0
      %4294 = vmatpush1.bf16.xpose.msra.mxu0 0
      %4295 = vmatprep.subr.bf16.mxu0 0
      %4296 = vmatpush1.bf16.xpose.msra.mxu0 0
      %4297 = vmatprep.subr.bf16.mxu0 0
      %4298 = vmatpush1.bf16.xpose.msra.mxu0 0
      %4299 = vmatprep.subr.bf16.mxu0 0
      %4300 = vmatpush1.bf16.xpose.msra.mxu0 0
      %4301 = vmatprep.subr.bf16.mxu0 0
      %4302 = vmatpush1.bf16.xpose.msra.mxu0 0
      %4303 = vmatprep.subr.bf16.mxu0 0
      %4304 = vmatpush1.bf16.xpose.msra.mxu0 0
      %4305 = vmatprep.subr.bf16.mxu0 0
      %4306 = vmatpush1.bf16.xpose.msra.mxu0 0
      %4307 = vmatprep.subr.bf16.mxu0 0
      %4308 = vmatpush1.bf16.xpose.msra.mxu0 0
      %4309 = vmatprep.subr.bf16.mxu0 0
      %4310 = vmatpush1.bf16.xpose.msra.mxu0 0
      %4311 = vmatprep.mubr.bf16.mxu0 %v4252
      %4312 = vmatmul.mubr.bf16.gmra.mrb[0].mxu0 %v4251
      %v4313 = vpop.f32.mrb[0].mxu0
      %v4314 = vadd.f32 0.0, %v4313
      %v4315 = vpop.f32.mrb[0].mxu0
      %v4316 = vpop.f32.mrb[0].mxu0
      %v4317 = vadd.f32 0.0, %v4316
      %v4318 = vpop.f32.mrb[0].mxu0
      %4319 = vdwg.mxu0
      %v4320 = vadd.f32 %v4161, %v4314
      %v4321 = vadd.f32 %v4162, %v4317
      %s4322 = sadd.s32 8, 64
      %s4323 = smul.addr %s4322, 4
      %s4324 = scalar_lea.vmem %s9, %s4323
      %v4325 = vld [vmem:[%s4324] sm:$0xff]
      %v4326 = vld [vmem:[%s4324 + $0x40] sm:$0xff]
      %v4327 = vld [vmem:[%s4324 + $0x80] sm:$0xff]
      %v4328 = vld [vmem:[%s4324 + $0xc0] sm:$0xff]
      %s4329 = sadd.s32 8, 16
      %s4330 = scalar_lea.vmem %s10, %s4329
      %v4331 = vld [vmem:[%s4330] sm:$0x3]
      %v4333 = vlaneseq
      %v4334 = vshrl.u32 %v4333, 7
      %v4335 = vsub.s32 0, %v4334
      %v4336 = vrot.slane %v4331, %v4335
      %v4337 = vlaneseq
      %v4338 = vshrl.u32 %v4337, 7
      %v4339 = vsub.s32 1, %v4338
      %v4340 = vrot.slane %v4331, %v4339
      %v4347 = vunpack.c.l.b16 %v4325
      %v4348 = vunpack.c.h.b16 %v4325
      %v4349 = vunpack.c.l.b16 %v4326
      %v4350 = vunpack.c.h.b16 %v4326
      %v4351 = vunpack.c.l.b16 %v4327
      %v4352 = vunpack.c.h.b16 %v4327
      %v4353 = vunpack.c.l.b16 %v4328
      %v4354 = vunpack.c.h.b16 %v4328
      %v4355 = vpack.c.b16 %v4349, %v4347
      %v4356 = vpack.c.b16 %v4350, %v4348
      %v4357 = vpack.c.b16 %v4353, %v4351
      %v4358 = vpack.c.b16 %v4354, %v4352
      %4363 = vmatprep.subr.bf16.mxu0 %v4356
      %4364 = vmatpush1.bf16.msra.mxu0 %v4355
      %4365 = vmatprep.subr.bf16.mxu0 %v4358
      %4366 = vmatpush1.bf16.msra.mxu0 %v4357
      %4367 = vmatprep.subr.bf16.mxu0 0
      %4368 = vmatpush1.bf16.msra.mxu0 0
      %4369 = vmatprep.subr.bf16.mxu0 0
      %4370 = vmatpush1.bf16.msra.mxu0 0
      %4371 = vmatprep.subr.bf16.mxu0 0
      %4372 = vmatpush1.bf16.msra.mxu0 0
      %4373 = vmatprep.subr.bf16.mxu0 0
      %4374 = vmatpush1.bf16.msra.mxu0 0
      %4375 = vmatprep.subr.bf16.mxu0 0
      %4376 = vmatpush1.bf16.msra.mxu0 0
      %4377 = vmatprep.subr.bf16.mxu0 0
      %4378 = vmatpush1.bf16.msra.mxu0 0
      %4379 = vmatprep.subr.bf16.mxu0 0
      %4380 = vmatpush1.bf16.msra.mxu0 0
      %4381 = vmatprep.subr.bf16.mxu0 0
      %4382 = vmatpush1.bf16.msra.mxu0 0
      %4383 = vmatprep.subr.bf16.mxu0 0
      %4384 = vmatpush1.bf16.msra.mxu0 0
      %4385 = vmatprep.subr.bf16.mxu0 0
      %4386 = vmatpush1.bf16.msra.mxu0 0
      %4387 = vmatprep.subr.bf16.mxu0 0
      %4388 = vmatpush1.bf16.msra.mxu0 0
      %4389 = vmatprep.subr.bf16.mxu0 0
      %4390 = vmatpush1.bf16.msra.mxu0 0
      %4391 = vmatprep.subr.bf16.mxu0 0
      %4392 = vmatpush1.bf16.msra.mxu0 0
      %4393 = vmatprep.subr.bf16.mxu0 0
      %4394 = vmatpush1.bf16.msra.mxu0 0
      %4395 = vmatprep.mubr.bf16.mxu0 0
      %4396 = vmatmul.mubr.bf16.gmra.mrb[0].mxu0 %v3729
      %v4397 = vpop.f32.mrb[0].mxu0
      %v4398 = vadd.f32 %v4336, %v4397
      %v4399 = vpop.f32.mrb[0].mxu0
      %v4400 = vadd.f32 %v4340, %v4399
      %v4401 = vpop.f32.mrb[0].mxu0
      %v4402 = vadd.f32 %v4336, %v4401
      %v4403 = vpop.f32.mrb[0].mxu0
      %v4404 = vadd.f32 %v4340, %v4403
      %4405 = vdwg.mxu0
      %v4406 = vmax.f32 %v4398, 0.0
      %v4407 = vmax.f32 %v4400, 0.0
      %v4408 = vmax.f32 %v4402, 0.0
      %v4409 = vmax.f32 %v4404, 0.0
      %v4410 = vpack.c.bf16 %v4408, %v4406
      %v4411 = vpack.c.bf16 %v4409, %v4407
      %s4412 = smul.addr %s4322, 4
      %s4413 = scalar_lea.vmem %s11, %s4412
      %v4414 = vld [vmem:[%s4413] sm:$0xff]
      %v4415 = vld [vmem:[%s4413 + $0x40] sm:$0xff]
      %v4416 = vld [vmem:[%s4413 + $0x80] sm:$0xff]
      %v4417 = vld [vmem:[%s4413 + $0xc0] sm:$0xff]
      %v4422 = vunpack.c.l.b16 %v4414
      %v4423 = vunpack.c.h.b16 %v4414
      %v4424 = vunpack.c.l.b16 %v4415
      %v4425 = vunpack.c.h.b16 %v4415
      %v4426 = vunpack.c.l.b16 %v4416
      %v4427 = vunpack.c.h.b16 %v4416
      %v4428 = vunpack.c.l.b16 %v4417
      %v4429 = vunpack.c.h.b16 %v4417
      %v4430 = vpack.c.b16 %v4424, %v4422
      %v4431 = vpack.c.b16 %v4425, %v4423
      %v4432 = vpack.c.b16 %v4428, %v4426
      %v4433 = vpack.c.b16 %v4429, %v4427
      %4438 = vmatprep.subr.bf16.mxu0 %v4431
      %4439 = vmatpush1.bf16.xpose.msra.mxu0 %v4430
      %4440 = vmatprep.subr.bf16.mxu0 %v4433
      %4441 = vmatpush1.bf16.xpose.msra.mxu0 %v4432
      %4442 = vmatprep.subr.bf16.mxu0 0
      %4443 = vmatpush1.bf16.xpose.msra.mxu0 0
      %4444 = vmatprep.subr.bf16.mxu0 0
      %4445 = vmatpush1.bf16.xpose.msra.mxu0 0
      %4446 = vmatprep.subr.bf16.mxu0 0
      %4447 = vmatpush1.bf16.xpose.msra.mxu0 0
      %4448 = vmatprep.subr.bf16.mxu0 0
      %4449 = vmatpush1.bf16.xpose.msra.mxu0 0
      %4450 = vmatprep.subr.bf16.mxu0 0
      %4451 = vmatpush1.bf16.xpose.msra.mxu0 0
      %4452 = vmatprep.subr.bf16.mxu0 0
      %4453 = vmatpush1.bf16.xpose.msra.mxu0 0
      %4454 = vmatprep.subr.bf16.mxu0 0
      %4455 = vmatpush1.bf16.xpose.msra.mxu0 0
      %4456 = vmatprep.subr.bf16.mxu0 0
      %4457 = vmatpush1.bf16.xpose.msra.mxu0 0
      %4458 = vmatprep.subr.bf16.mxu0 0
      %4459 = vmatpush1.bf16.xpose.msra.mxu0 0
      %4460 = vmatprep.subr.bf16.mxu0 0
      %4461 = vmatpush1.bf16.xpose.msra.mxu0 0
      %4462 = vmatprep.subr.bf16.mxu0 0
      %4463 = vmatpush1.bf16.xpose.msra.mxu0 0
      %4464 = vmatprep.subr.bf16.mxu0 0
      %4465 = vmatpush1.bf16.xpose.msra.mxu0 0
      %4466 = vmatprep.subr.bf16.mxu0 0
      %4467 = vmatpush1.bf16.xpose.msra.mxu0 0
      %4468 = vmatprep.subr.bf16.mxu0 0
      %4469 = vmatpush1.bf16.xpose.msra.mxu0 0
      %4470 = vmatprep.mubr.bf16.mxu0 %v4411
      %4471 = vmatmul.mubr.bf16.gmra.mrb[0].mxu0 %v4410
      %v4472 = vpop.f32.mrb[0].mxu0
      %v4473 = vadd.f32 0.0, %v4472
      %v4474 = vpop.f32.mrb[0].mxu0
      %v4475 = vpop.f32.mrb[0].mxu0
      %v4476 = vadd.f32 0.0, %v4475
      %v4477 = vpop.f32.mrb[0].mxu0
      %4478 = vdwg.mxu0
      %v4479 = vadd.f32 %v4320, %v4473
      %v4480 = vadd.f32 %v4321, %v4476
      %s4481 = sadd.s32 10, 64
      %s4482 = smul.addr %s4481, 4
      %s4483 = scalar_lea.vmem %s9, %s4482
      %v4484 = vld [vmem:[%s4483] sm:$0xff]
      %v4485 = vld [vmem:[%s4483 + $0x40] sm:$0xff]
      %v4486 = vld [vmem:[%s4483 + $0x80] sm:$0xff]
      %v4487 = vld [vmem:[%s4483 + $0xc0] sm:$0xff]
      %s4488 = sadd.s32 10, 16
      %s4489 = scalar_lea.vmem %s10, %s4488
      %v4490 = vld [vmem:[%s4489] sm:$0x3]
      %v4492 = vlaneseq
      %v4493 = vshrl.u32 %v4492, 7
      %v4494 = vsub.s32 0, %v4493
      %v4495 = vrot.slane %v4490, %v4494
      %v4496 = vlaneseq
      %v4497 = vshrl.u32 %v4496, 7
      %v4498 = vsub.s32 1, %v4497
      %v4499 = vrot.slane %v4490, %v4498
      %v4506 = vunpack.c.l.b16 %v4484
      %v4507 = vunpack.c.h.b16 %v4484
      %v4508 = vunpack.c.l.b16 %v4485
      %v4509 = vunpack.c.h.b16 %v4485
      %v4510 = vunpack.c.l.b16 %v4486
      %v4511 = vunpack.c.h.b16 %v4486
      %v4512 = vunpack.c.l.b16 %v4487
      %v4513 = vunpack.c.h.b16 %v4487
      %v4514 = vpack.c.b16 %v4508, %v4506
      %v4515 = vpack.c.b16 %v4509, %v4507
      %v4516 = vpack.c.b16 %v4512, %v4510
      %v4517 = vpack.c.b16 %v4513, %v4511
      %4522 = vmatprep.subr.bf16.mxu0 %v4515
      %4523 = vmatpush1.bf16.msra.mxu0 %v4514
      %4524 = vmatprep.subr.bf16.mxu0 %v4517
      %4525 = vmatpush1.bf16.msra.mxu0 %v4516
      %4526 = vmatprep.subr.bf16.mxu0 0
      %4527 = vmatpush1.bf16.msra.mxu0 0
      %4528 = vmatprep.subr.bf16.mxu0 0
      %4529 = vmatpush1.bf16.msra.mxu0 0
      %4530 = vmatprep.subr.bf16.mxu0 0
      %4531 = vmatpush1.bf16.msra.mxu0 0
      %4532 = vmatprep.subr.bf16.mxu0 0
      %4533 = vmatpush1.bf16.msra.mxu0 0
      %4534 = vmatprep.subr.bf16.mxu0 0
      %4535 = vmatpush1.bf16.msra.mxu0 0
      %4536 = vmatprep.subr.bf16.mxu0 0
      %4537 = vmatpush1.bf16.msra.mxu0 0
      %4538 = vmatprep.subr.bf16.mxu0 0
      %4539 = vmatpush1.bf16.msra.mxu0 0
      %4540 = vmatprep.subr.bf16.mxu0 0
      %4541 = vmatpush1.bf16.msra.mxu0 0
      %4542 = vmatprep.subr.bf16.mxu0 0
      %4543 = vmatpush1.bf16.msra.mxu0 0
      %4544 = vmatprep.subr.bf16.mxu0 0
      %4545 = vmatpush1.bf16.msra.mxu0 0
      %4546 = vmatprep.subr.bf16.mxu0 0
      %4547 = vmatpush1.bf16.msra.mxu0 0
      %4548 = vmatprep.subr.bf16.mxu0 0
      %4549 = vmatpush1.bf16.msra.mxu0 0
      %4550 = vmatprep.subr.bf16.mxu0 0
      %4551 = vmatpush1.bf16.msra.mxu0 0
      %4552 = vmatprep.subr.bf16.mxu0 0
      %4553 = vmatpush1.bf16.msra.mxu0 0
      %4554 = vmatprep.mubr.bf16.mxu0 0
      %4555 = vmatmul.mubr.bf16.gmra.mrb[0].mxu0 %v3729
      %v4556 = vpop.f32.mrb[0].mxu0
      %v4557 = vadd.f32 %v4495, %v4556
      %v4558 = vpop.f32.mrb[0].mxu0
      %v4559 = vadd.f32 %v4499, %v4558
      %v4560 = vpop.f32.mrb[0].mxu0
      %v4561 = vadd.f32 %v4495, %v4560
      %v4562 = vpop.f32.mrb[0].mxu0
      %v4563 = vadd.f32 %v4499, %v4562
      %4564 = vdwg.mxu0
      %v4565 = vmax.f32 %v4557, 0.0
      %v4566 = vmax.f32 %v4559, 0.0
      %v4567 = vmax.f32 %v4561, 0.0
      %v4568 = vmax.f32 %v4563, 0.0
      %v4569 = vpack.c.bf16 %v4567, %v4565
      %v4570 = vpack.c.bf16 %v4568, %v4566
      %s4571 = smul.addr %s4481, 4
      %s4572 = scalar_lea.vmem %s11, %s4571
      %v4573 = vld [vmem:[%s4572] sm:$0xff]
      %v4574 = vld [vmem:[%s4572 + $0x40] sm:$0xff]
      %v4575 = vld [vmem:[%s4572 + $0x80] sm:$0xff]
      %v4576 = vld [vmem:[%s4572 + $0xc0] sm:$0xff]
      %v4581 = vunpack.c.l.b16 %v4573
      %v4582 = vunpack.c.h.b16 %v4573
      %v4583 = vunpack.c.l.b16 %v4574
      %v4584 = vunpack.c.h.b16 %v4574
      %v4585 = vunpack.c.l.b16 %v4575
      %v4586 = vunpack.c.h.b16 %v4575
      %v4587 = vunpack.c.l.b16 %v4576
      %v4588 = vunpack.c.h.b16 %v4576
      %v4589 = vpack.c.b16 %v4583, %v4581
      %v4590 = vpack.c.b16 %v4584, %v4582
      %v4591 = vpack.c.b16 %v4587, %v4585
      %v4592 = vpack.c.b16 %v4588, %v4586
      %4597 = vmatprep.subr.bf16.mxu0 %v4590
      %4598 = vmatpush1.bf16.xpose.msra.mxu0 %v4589
      %4599 = vmatprep.subr.bf16.mxu0 %v4592
      %4600 = vmatpush1.bf16.xpose.msra.mxu0 %v4591
      %4601 = vmatprep.subr.bf16.mxu0 0
      %4602 = vmatpush1.bf16.xpose.msra.mxu0 0
      %4603 = vmatprep.subr.bf16.mxu0 0
      %4604 = vmatpush1.bf16.xpose.msra.mxu0 0
      %4605 = vmatprep.subr.bf16.mxu0 0
      %4606 = vmatpush1.bf16.xpose.msra.mxu0 0
      %4607 = vmatprep.subr.bf16.mxu0 0
      %4608 = vmatpush1.bf16.xpose.msra.mxu0 0
      %4609 = vmatprep.subr.bf16.mxu0 0
      %4610 = vmatpush1.bf16.xpose.msra.mxu0 0
      %4611 = vmatprep.subr.bf16.mxu0 0
      %4612 = vmatpush1.bf16.xpose.msra.mxu0 0
      %4613 = vmatprep.subr.bf16.mxu0 0
      %4614 = vmatpush1.bf16.xpose.msra.mxu0 0
      %4615 = vmatprep.subr.bf16.mxu0 0
      %4616 = vmatpush1.bf16.xpose.msra.mxu0 0
      %4617 = vmatprep.subr.bf16.mxu0 0
      %4618 = vmatpush1.bf16.xpose.msra.mxu0 0
      %4619 = vmatprep.subr.bf16.mxu0 0
      %4620 = vmatpush1.bf16.xpose.msra.mxu0 0
      %4621 = vmatprep.subr.bf16.mxu0 0
      %4622 = vmatpush1.bf16.xpose.msra.mxu0 0
      %4623 = vmatprep.subr.bf16.mxu0 0
      %4624 = vmatpush1.bf16.xpose.msra.mxu0 0
      %4625 = vmatprep.subr.bf16.mxu0 0
      %4626 = vmatpush1.bf16.xpose.msra.mxu0 0
      %4627 = vmatprep.subr.bf16.mxu0 0
      %4628 = vmatpush1.bf16.xpose.msra.mxu0 0
      %4629 = vmatprep.mubr.bf16.mxu0 %v4570
      %4630 = vmatmul.mubr.bf16.gmra.mrb[0].mxu0 %v4569
      %v4631 = vpop.f32.mrb[0].mxu0
      %v4632 = vadd.f32 0.0, %v4631
      %v4633 = vpop.f32.mrb[0].mxu0
      %v4634 = vpop.f32.mrb[0].mxu0
      %v4635 = vadd.f32 0.0, %v4634
      %v4636 = vpop.f32.mrb[0].mxu0
      %4637 = vdwg.mxu0
      %v4638 = vadd.f32 %v4479, %v4632
      %v4639 = vadd.f32 %v4480, %v4635
      %s4640 = sadd.s32 12, 64
      %s4641 = smul.addr %s4640, 4
      %s4642 = scalar_lea.vmem %s9, %s4641
      %v4643 = vld [vmem:[%s4642] sm:$0xff]
      %v4644 = vld [vmem:[%s4642 + $0x40] sm:$0xff]
      %v4645 = vld [vmem:[%s4642 + $0x80] sm:$0xff]
      %v4646 = vld [vmem:[%s4642 + $0xc0] sm:$0xff]
      %s4647 = sadd.s32 12, 16
      %s4648 = scalar_lea.vmem %s10, %s4647
      %v4649 = vld [vmem:[%s4648] sm:$0x3]
      %v4651 = vlaneseq
      %v4652 = vshrl.u32 %v4651, 7
      %v4653 = vsub.s32 0, %v4652
      %v4654 = vrot.slane %v4649, %v4653
      %v4655 = vlaneseq
      %v4656 = vshrl.u32 %v4655, 7
      %v4657 = vsub.s32 1, %v4656
      %v4658 = vrot.slane %v4649, %v4657
      %v4665 = vunpack.c.l.b16 %v4643
      %v4666 = vunpack.c.h.b16 %v4643
      %v4667 = vunpack.c.l.b16 %v4644
      %v4668 = vunpack.c.h.b16 %v4644
      %v4669 = vunpack.c.l.b16 %v4645
      %v4670 = vunpack.c.h.b16 %v4645
      %v4671 = vunpack.c.l.b16 %v4646
      %v4672 = vunpack.c.h.b16 %v4646
      %v4673 = vpack.c.b16 %v4667, %v4665
      %v4674 = vpack.c.b16 %v4668, %v4666
      %v4675 = vpack.c.b16 %v4671, %v4669
      %v4676 = vpack.c.b16 %v4672, %v4670
      %4681 = vmatprep.subr.bf16.mxu0 %v4674
      %4682 = vmatpush1.bf16.msra.mxu0 %v4673
      %4683 = vmatprep.subr.bf16.mxu0 %v4676
      %4684 = vmatpush1.bf16.msra.mxu0 %v4675
      %4685 = vmatprep.subr.bf16.mxu0 0
      %4686 = vmatpush1.bf16.msra.mxu0 0
      %4687 = vmatprep.subr.bf16.mxu0 0
      %4688 = vmatpush1.bf16.msra.mxu0 0
      %4689 = vmatprep.subr.bf16.mxu0 0
      %4690 = vmatpush1.bf16.msra.mxu0 0
      %4691 = vmatprep.subr.bf16.mxu0 0
      %4692 = vmatpush1.bf16.msra.mxu0 0
      %4693 = vmatprep.subr.bf16.mxu0 0
      %4694 = vmatpush1.bf16.msra.mxu0 0
      %4695 = vmatprep.subr.bf16.mxu0 0
      %4696 = vmatpush1.bf16.msra.mxu0 0
      %4697 = vmatprep.subr.bf16.mxu0 0
      %4698 = vmatpush1.bf16.msra.mxu0 0
      %4699 = vmatprep.subr.bf16.mxu0 0
      %4700 = vmatpush1.bf16.msra.mxu0 0
      %4701 = vmatprep.subr.bf16.mxu0 0
      %4702 = vmatpush1.bf16.msra.mxu0 0
      %4703 = vmatprep.subr.bf16.mxu0 0
      %4704 = vmatpush1.bf16.msra.mxu0 0
      %4705 = vmatprep.subr.bf16.mxu0 0
      %4706 = vmatpush1.bf16.msra.mxu0 0
      %4707 = vmatprep.subr.bf16.mxu0 0
      %4708 = vmatpush1.bf16.msra.mxu0 0
      %4709 = vmatprep.subr.bf16.mxu0 0
      %4710 = vmatpush1.bf16.msra.mxu0 0
      %4711 = vmatprep.subr.bf16.mxu0 0
      %4712 = vmatpush1.bf16.msra.mxu0 0
      %4713 = vmatprep.mubr.bf16.mxu0 0
      %4714 = vmatmul.mubr.bf16.gmra.mrb[0].mxu0 %v3729
      %v4715 = vpop.f32.mrb[0].mxu0
      %v4716 = vadd.f32 %v4654, %v4715
      %v4717 = vpop.f32.mrb[0].mxu0
      %v4718 = vadd.f32 %v4658, %v4717
      %v4719 = vpop.f32.mrb[0].mxu0
      %v4720 = vadd.f32 %v4654, %v4719
      %v4721 = vpop.f32.mrb[0].mxu0
      %v4722 = vadd.f32 %v4658, %v4721
      %4723 = vdwg.mxu0
      %v4724 = vmax.f32 %v4716, 0.0
      %v4725 = vmax.f32 %v4718, 0.0
      %v4726 = vmax.f32 %v4720, 0.0
      %v4727 = vmax.f32 %v4722, 0.0
      %v4728 = vpack.c.bf16 %v4726, %v4724
      %v4729 = vpack.c.bf16 %v4727, %v4725
      %s4730 = smul.addr %s4640, 4
      %s4731 = scalar_lea.vmem %s11, %s4730
      %v4732 = vld [vmem:[%s4731] sm:$0xff]
      %v4733 = vld [vmem:[%s4731 + $0x40] sm:$0xff]
      %v4734 = vld [vmem:[%s4731 + $0x80] sm:$0xff]
      %v4735 = vld [vmem:[%s4731 + $0xc0] sm:$0xff]
      %v4740 = vunpack.c.l.b16 %v4732
      %v4741 = vunpack.c.h.b16 %v4732
      %v4742 = vunpack.c.l.b16 %v4733
      %v4743 = vunpack.c.h.b16 %v4733
      %v4744 = vunpack.c.l.b16 %v4734
      %v4745 = vunpack.c.h.b16 %v4734
      %v4746 = vunpack.c.l.b16 %v4735
      %v4747 = vunpack.c.h.b16 %v4735
      %v4748 = vpack.c.b16 %v4742, %v4740
      %v4749 = vpack.c.b16 %v4743, %v4741
      %v4750 = vpack.c.b16 %v4746, %v4744
      %v4751 = vpack.c.b16 %v4747, %v4745
      %4756 = vmatprep.subr.bf16.mxu0 %v4749
      %4757 = vmatpush1.bf16.xpose.msra.mxu0 %v4748
      %4758 = vmatprep.subr.bf16.mxu0 %v4751
      %4759 = vmatpush1.bf16.xpose.msra.mxu0 %v4750
      %4760 = vmatprep.subr.bf16.mxu0 0
      %4761 = vmatpush1.bf16.xpose.msra.mxu0 0
      %4762 = vmatprep.subr.bf16.mxu0 0
      %4763 = vmatpush1.bf16.xpose.msra.mxu0 0
      %4764 = vmatprep.subr.bf16.mxu0 0
      %4765 = vmatpush1.bf16.xpose.msra.mxu0 0
      %4766 = vmatprep.subr.bf16.mxu0 0
      %4767 = vmatpush1.bf16.xpose.msra.mxu0 0
      %4768 = vmatprep.subr.bf16.mxu0 0
      %4769 = vmatpush1.bf16.xpose.msra.mxu0 0
      %4770 = vmatprep.subr.bf16.mxu0 0
      %4771 = vmatpush1.bf16.xpose.msra.mxu0 0
      %4772 = vmatprep.subr.bf16.mxu0 0
      %4773 = vmatpush1.bf16.xpose.msra.mxu0 0
      %4774 = vmatprep.subr.bf16.mxu0 0
      %4775 = vmatpush1.bf16.xpose.msra.mxu0 0
      %4776 = vmatprep.subr.bf16.mxu0 0
      %4777 = vmatpush1.bf16.xpose.msra.mxu0 0
      %4778 = vmatprep.subr.bf16.mxu0 0
      %4779 = vmatpush1.bf16.xpose.msra.mxu0 0
      %4780 = vmatprep.subr.bf16.mxu0 0
      %4781 = vmatpush1.bf16.xpose.msra.mxu0 0
      %4782 = vmatprep.subr.bf16.mxu0 0
      %4783 = vmatpush1.bf16.xpose.msra.mxu0 0
      %4784 = vmatprep.subr.bf16.mxu0 0
      %4785 = vmatpush1.bf16.xpose.msra.mxu0 0
      %4786 = vmatprep.subr.bf16.mxu0 0
      %4787 = vmatpush1.bf16.xpose.msra.mxu0 0
      %4788 = vmatprep.mubr.bf16.mxu0 %v4729
      %4789 = vmatmul.mubr.bf16.gmra.mrb[0].mxu0 %v4728
      %v4790 = vpop.f32.mrb[0].mxu0
      %v4791 = vadd.f32 0.0, %v4790
      %v4792 = vpop.f32.mrb[0].mxu0
      %v4793 = vpop.f32.mrb[0].mxu0
      %v4794 = vadd.f32 0.0, %v4793
      %v4795 = vpop.f32.mrb[0].mxu0
      %4796 = vdwg.mxu0
      %v4797 = vadd.f32 %v4638, %v4791
      %v4798 = vadd.f32 %v4639, %v4794
      %s4799 = sadd.s32 14, 64
      %s4800 = smul.addr %s4799, 4
      %s4801 = scalar_lea.vmem %s9, %s4800
      %v4802 = vld [vmem:[%s4801] sm:$0xff]
      %v4803 = vld [vmem:[%s4801 + $0x40] sm:$0xff]
      %v4804 = vld [vmem:[%s4801 + $0x80] sm:$0xff]
      %v4805 = vld [vmem:[%s4801 + $0xc0] sm:$0xff]
      %s4806 = sadd.s32 14, 16
      %s4807 = scalar_lea.vmem %s10, %s4806
      %v4808 = vld [vmem:[%s4807] sm:$0x3]
      %v4810 = vlaneseq
      %v4811 = vshrl.u32 %v4810, 7
      %v4812 = vsub.s32 0, %v4811
      %v4813 = vrot.slane %v4808, %v4812
      %v4814 = vlaneseq
      %v4815 = vshrl.u32 %v4814, 7
      %v4816 = vsub.s32 1, %v4815
      %v4817 = vrot.slane %v4808, %v4816
      %v4824 = vunpack.c.l.b16 %v4802
      %v4825 = vunpack.c.h.b16 %v4802
      %v4826 = vunpack.c.l.b16 %v4803
      %v4827 = vunpack.c.h.b16 %v4803
      %v4828 = vunpack.c.l.b16 %v4804
      %v4829 = vunpack.c.h.b16 %v4804
      %v4830 = vunpack.c.l.b16 %v4805
      %v4831 = vunpack.c.h.b16 %v4805
      %v4832 = vpack.c.b16 %v4826, %v4824
      %v4833 = vpack.c.b16 %v4827, %v4825
      %v4834 = vpack.c.b16 %v4830, %v4828
      %v4835 = vpack.c.b16 %v4831, %v4829
      %4840 = vmatprep.subr.bf16.mxu0 %v4833
      %4841 = vmatpush1.bf16.msra.mxu0 %v4832
      %4842 = vmatprep.subr.bf16.mxu0 %v4835
      %4843 = vmatpush1.bf16.msra.mxu0 %v4834
      %4844 = vmatprep.subr.bf16.mxu0 0
      %4845 = vmatpush1.bf16.msra.mxu0 0
      %4846 = vmatprep.subr.bf16.mxu0 0
      %4847 = vmatpush1.bf16.msra.mxu0 0
      %4848 = vmatprep.subr.bf16.mxu0 0
      %4849 = vmatpush1.bf16.msra.mxu0 0
      %4850 = vmatprep.subr.bf16.mxu0 0
      %4851 = vmatpush1.bf16.msra.mxu0 0
      %4852 = vmatprep.subr.bf16.mxu0 0
      %4853 = vmatpush1.bf16.msra.mxu0 0
      %4854 = vmatprep.subr.bf16.mxu0 0
      %4855 = vmatpush1.bf16.msra.mxu0 0
      %4856 = vmatprep.subr.bf16.mxu0 0
      %4857 = vmatpush1.bf16.msra.mxu0 0
      %4858 = vmatprep.subr.bf16.mxu0 0
      %4859 = vmatpush1.bf16.msra.mxu0 0
      %4860 = vmatprep.subr.bf16.mxu0 0
      %4861 = vmatpush1.bf16.msra.mxu0 0
      %4862 = vmatprep.subr.bf16.mxu0 0
      %4863 = vmatpush1.bf16.msra.mxu0 0
      %4864 = vmatprep.subr.bf16.mxu0 0
      %4865 = vmatpush1.bf16.msra.mxu0 0
      %4866 = vmatprep.subr.bf16.mxu0 0
      %4867 = vmatpush1.bf16.msra.mxu0 0
      %4868 = vmatprep.subr.bf16.mxu0 0
      %4869 = vmatpush1.bf16.msra.mxu0 0
      %4870 = vmatprep.subr.bf16.mxu0 0
      %4871 = vmatpush1.bf16.msra.mxu0 0
      %4872 = vmatprep.mubr.bf16.mxu0 0
      %4873 = vmatmul.mubr.bf16.gmra.mrb[0].mxu0 %v3729
      %v4874 = vpop.f32.mrb[0].mxu0
      %v4875 = vadd.f32 %v4813, %v4874
      %v4876 = vpop.f32.mrb[0].mxu0
      %v4877 = vadd.f32 %v4817, %v4876
      %v4878 = vpop.f32.mrb[0].mxu0
      %v4879 = vadd.f32 %v4813, %v4878
      %v4880 = vpop.f32.mrb[0].mxu0
      %v4881 = vadd.f32 %v4817, %v4880
      %4882 = vdwg.mxu0
      %v4883 = vmax.f32 %v4875, 0.0
      %v4884 = vmax.f32 %v4877, 0.0
      %v4885 = vmax.f32 %v4879, 0.0
      %v4886 = vmax.f32 %v4881, 0.0
      %v4887 = vpack.c.bf16 %v4885, %v4883
      %v4888 = vpack.c.bf16 %v4886, %v4884
      %s4889 = smul.addr %s4799, 4
      %s4890 = scalar_lea.vmem %s11, %s4889
      %v4891 = vld [vmem:[%s4890] sm:$0xff]
      %v4892 = vld [vmem:[%s4890 + $0x40] sm:$0xff]
      %v4893 = vld [vmem:[%s4890 + $0x80] sm:$0xff]
      %v4894 = vld [vmem:[%s4890 + $0xc0] sm:$0xff]
      %v4899 = vunpack.c.l.b16 %v4891
      %v4900 = vunpack.c.h.b16 %v4891
      %v4901 = vunpack.c.l.b16 %v4892
      %v4902 = vunpack.c.h.b16 %v4892
      %v4903 = vunpack.c.l.b16 %v4893
      %v4904 = vunpack.c.h.b16 %v4893
      %v4905 = vunpack.c.l.b16 %v4894
      %v4906 = vunpack.c.h.b16 %v4894
      %v4907 = vpack.c.b16 %v4901, %v4899
      %v4908 = vpack.c.b16 %v4902, %v4900
      %v4909 = vpack.c.b16 %v4905, %v4903
      %v4910 = vpack.c.b16 %v4906, %v4904
      %4915 = vmatprep.subr.bf16.mxu0 %v4908
      %4916 = vmatpush1.bf16.xpose.msra.mxu0 %v4907
      %4917 = vmatprep.subr.bf16.mxu0 %v4910
      %4918 = vmatpush1.bf16.xpose.msra.mxu0 %v4909
      %4919 = vmatprep.subr.bf16.mxu0 0
      %4920 = vmatpush1.bf16.xpose.msra.mxu0 0
      %4921 = vmatprep.subr.bf16.mxu0 0
      %4922 = vmatpush1.bf16.xpose.msra.mxu0 0
      %4923 = vmatprep.subr.bf16.mxu0 0
      %4924 = vmatpush1.bf16.xpose.msra.mxu0 0
      %4925 = vmatprep.subr.bf16.mxu0 0
      %4926 = vmatpush1.bf16.xpose.msra.mxu0 0
      %4927 = vmatprep.subr.bf16.mxu0 0
      %4928 = vmatpush1.bf16.xpose.msra.mxu0 0
      %4929 = vmatprep.subr.bf16.mxu0 0
      %4930 = vmatpush1.bf16.xpose.msra.mxu0 0
      %4931 = vmatprep.subr.bf16.mxu0 0
      %4932 = vmatpush1.bf16.xpose.msra.mxu0 0
      %4933 = vmatprep.subr.bf16.mxu0 0
      %4934 = vmatpush1.bf16.xpose.msra.mxu0 0
      %4935 = vmatprep.subr.bf16.mxu0 0
      %4936 = vmatpush1.bf16.xpose.msra.mxu0 0
      %4937 = vmatprep.subr.bf16.mxu0 0
      %4938 = vmatpush1.bf16.xpose.msra.mxu0 0
      %4939 = vmatprep.subr.bf16.mxu0 0
      %4940 = vmatpush1.bf16.xpose.msra.mxu0 0
      %4941 = vmatprep.subr.bf16.mxu0 0
      %4942 = vmatpush1.bf16.xpose.msra.mxu0 0
      %4943 = vmatprep.subr.bf16.mxu0 0
      %4944 = vmatpush1.bf16.xpose.msra.mxu0 0
      %4945 = vmatprep.subr.bf16.mxu0 0
      %4946 = vmatpush1.bf16.xpose.msra.mxu0 0
      %4947 = vmatprep.mubr.bf16.mxu0 %v4888
      %4948 = vmatmul.mubr.bf16.gmra.mrb[0].mxu0 %v4887
      %v4949 = vpop.f32.mrb[0].mxu0
      %v4950 = vadd.f32 0.0, %v4949
      %v4951 = vpop.f32.mrb[0].mxu0
      %v4952 = vpop.f32.mrb[0].mxu0
      %v4953 = vadd.f32 0.0, %v4952
      %v4954 = vpop.f32.mrb[0].mxu0
      %4955 = vdwg.mxu0
      %v4956 = vadd.f32 %v4797, %v4950
      %v4957 = vadd.f32 %v4798, %v4953
      %s4958 = scalar_lea.vmem %s12, 1
      %v4959 = vld [vmem:[%s4958] sm:$0x1]
      %v4961 = vlaneseq
      %v4962 = vshrl.u32 %v4961, 7
      %v4963 = vsub.s32 0, %v4962
      %v4964 = vrot.slane %v4959, %v4963
      %v4966 = vadd.f32 %v4956, %v4964
      %v4967 = vadd.f32 %v4957, %v4964
      %v4968 = vadd.f32 %v3684, %v4966
      %v4969 = vadd.f32 %v3685, %v4967
      %s4970 = scalar_lea.vmem %s13, 2
      %v4971 = vld [vmem:[%s4970] sm:$0x1]
      %v4972 = vld [vmem:[%s4970 + $0x1] sm:$0x1]
      %v4973 = vsel %vm660, %v4968, 0.0
      %4974 = vadd.xlane.f32.xlu0 %v4973
      %v4975 = vpop.xlane.xlu0 %4974
      %v4976 = vsel %vm660, %v4969, 0.0
      %4977 = vadd.xlane.f32.xlu0 %v4976
      %v4978 = vpop.xlane.xlu0 %4977
      %v4979 = vmul.f32 %v4975, %v1484
      %v4980 = vmul.f32 %v4978, %v1484
      %v4981 = vsub.f32 %v4968, %v4979
      %v4982 = vsub.f32 %v4969, %v4980
      %v4983 = vmul.f32 %v4981, %v4981
      %v4984 = vmul.f32 %v4982, %v4982
      %v4985 = vsel %vm660, %v4983, 0.0
      %4986 = vadd.xlane.f32.xlu0 %v4985
      %v4987 = vpop.xlane.xlu0 %4986
      %v4988 = vsel %vm660, %v4984, 0.0
      %4989 = vadd.xlane.f32.xlu0 %v4988
      %v4990 = vpop.xlane.xlu0 %4989
      %v4991 = vmul.f32 %v4987, %v1484
      %v4992 = vmul.f32 %v4990, %v1484
      %v4993 = vadd.f32 %v4991, 1e-05
      %v4994 = vadd.f32 %v4992, 1e-05
      %v4995 = vrsqrt.pop %v4993
      %v4996 = vrsqrt.pop %v4994
      %v4997 = vmul.f32 %v4981, %v4995
      %v4998 = vmul.f32 %v4982, %v4996
      %v4999 = vlaneseq
      %v5000 = vshrl.u32 %v4999, 7
      %v5001 = vsub.s32 0, %v5000
      %v5002 = vrot.slane %v4971, %v5001
      %v5003 = vmul.f32 %v4997, %v5002
      %v5004 = vmul.f32 %v4998, %v5002
      %v5005 = vlaneseq
      %v5006 = vshrl.u32 %v5005, 7
      %v5007 = vsub.s32 0, %v5006
      %v5008 = vrot.slane %v4972, %v5007
      %v5009 = vadd.f32 %v5003, %v5008
      %v5010 = vadd.f32 %v5004, %v5008
      %v5011 = vld [vmem:[%s14] sm:$0x1]
      %v5012 = vld [vmem:[%s14 + $0x1] sm:$0x1]
      %v5013 = vsel %vm660, %v5009, 0.0
      %5014 = vadd.xlane.f32.xlu0 %v5013
      %v5015 = vpop.xlane.xlu0 %5014
      %v5016 = vsel %vm660, %v5010, 0.0
      %5017 = vadd.xlane.f32.xlu0 %v5016
      %v5018 = vpop.xlane.xlu0 %5017
      %v5019 = vmul.f32 %v5015, %v1484
      %v5020 = vmul.f32 %v5018, %v1484
      %v5021 = vsub.f32 %v5009, %v5019
      %v5022 = vsub.f32 %v5010, %v5020
      %v5023 = vmul.f32 %v5021, %v5021
      %v5024 = vmul.f32 %v5022, %v5022
      %v5025 = vsel %vm660, %v5023, 0.0
      %5026 = vadd.xlane.f32.xlu0 %v5025
      %v5027 = vpop.xlane.xlu0 %5026
      %v5028 = vsel %vm660, %v5024, 0.0
      %5029 = vadd.xlane.f32.xlu0 %v5028
      %v5030 = vpop.xlane.xlu0 %5029
      %v5031 = vmul.f32 %v5027, %v1484
      %v5032 = vmul.f32 %v5030, %v1484
      %v5033 = vadd.f32 %v5031, 1e-05
      %v5034 = vadd.f32 %v5032, 1e-05
      %v5035 = vrsqrt.pop %v5033
      %v5036 = vrsqrt.pop %v5034
      %v5037 = vmul.f32 %v5021, %v5035
      %v5038 = vmul.f32 %v5022, %v5036
      %v5039 = vlaneseq
      %v5040 = vshrl.u32 %v5039, 7
      %v5041 = vsub.s32 0, %v5040
      %v5042 = vrot.slane %v5011, %v5041
      %v5043 = vmul.f32 %v5037, %v5042
      %v5044 = vmul.f32 %v5038, %v5042
      %v5045 = vlaneseq
      %v5046 = vshrl.u32 %v5045, 7
      %v5047 = vsub.s32 0, %v5046
      %v5048 = vrot.slane %v5012, %v5047
      %v5049 = vadd.f32 %v5043, %v5048
      %v5050 = vadd.f32 %v5044, %v5048
      %v5051 = vpack.c.bf16 %v5050, %v5049
      %v5052 = vld [vmem:[%s15] sm:$0xf]
      %v5053 = vld [vmem:[%s15 + $0x4] sm:$0xf]
      %v5054 = vld [vmem:[%s15 + $0x8] sm:$0xf]
      %v5055 = vld [vmem:[%s15 + $0xc] sm:$0xf]
      %v5056 = vld [vmem:[%s16] sm:$0x1]
      %v5058 = vlaneseq
      %v5059 = vshrl.u32 %v5058, 7
      %v5060 = vsub.s32 0, %v5059
      %v5061 = vrot.slane %v5056, %v5060
      %v5067 = vunpack.c.l.b16 %v5052
      %v5068 = vunpack.c.l.b16 %v5053
      %v5069 = vunpack.c.l.b16 %v5054
      %v5070 = vunpack.c.l.b16 %v5055
      %v5071 = vpack.c.b16 %v5068, %v5067
      %v5072 = vpack.c.b16 %v5070, %v5069
      %v5076 = vsel %vm660, %v5051, 0
      %5078 = vmatprep.subr.bf16.mxu0 0
      %5079 = vmatpush1.bf16.msra.mxu0 %v5071
      %5080 = vmatprep.subr.bf16.mxu0 0
      %5081 = vmatpush1.bf16.msra.mxu0 %v5072
      %5082 = vmatprep.subr.bf16.mxu0 0
      %5083 = vmatpush1.bf16.msra.mxu0 0
      %5084 = vmatprep.subr.bf16.mxu0 0
      %5085 = vmatpush1.bf16.msra.mxu0 0
      %5086 = vmatprep.subr.bf16.mxu0 0
      %5087 = vmatpush1.bf16.msra.mxu0 0
      %5088 = vmatprep.subr.bf16.mxu0 0
      %5089 = vmatpush1.bf16.msra.mxu0 0
      %5090 = vmatprep.subr.bf16.mxu0 0
      %5091 = vmatpush1.bf16.msra.mxu0 0
      %5092 = vmatprep.subr.bf16.mxu0 0
      %5093 = vmatpush1.bf16.msra.mxu0 0
      %5094 = vmatprep.subr.bf16.mxu0 0
      %5095 = vmatpush1.bf16.msra.mxu0 0
      %5096 = vmatprep.subr.bf16.mxu0 0
      %5097 = vmatpush1.bf16.msra.mxu0 0
      %5098 = vmatprep.subr.bf16.mxu0 0
      %5099 = vmatpush1.bf16.msra.mxu0 0
      %5100 = vmatprep.subr.bf16.mxu0 0
      %5101 = vmatpush1.bf16.msra.mxu0 0
      %5102 = vmatprep.subr.bf16.mxu0 0
      %5103 = vmatpush1.bf16.msra.mxu0 0
      %5104 = vmatprep.subr.bf16.mxu0 0
      %5105 = vmatpush1.bf16.msra.mxu0 0
      %5106 = vmatprep.subr.bf16.mxu0 0
      %5107 = vmatpush1.bf16.msra.mxu0 0
      %5108 = vmatprep.subr.bf16.mxu0 0
      %5109 = vmatpush1.bf16.msra.mxu0 0
      %5110 = vmatprep.mubr.bf16.mxu0 0
      %5111 = vmatmul.mubr.bf16.gmra.mrb[0].mxu0 %v5076
      %v5112 = vpop.f32.mrb[0].mxu0
      %v5113 = vadd.f32 %v5061, %v5112
      %v5114 = vpop.f32.mrb[0].mxu0
      %v5115 = vpop.f32.mrb[0].mxu0
      %v5116 = vadd.f32 %v5061, %v5115
      %v5117 = vpop.f32.mrb[0].mxu0
      %5118 = vdwg.mxu0
      %5119 = vst [vmem:[%s550] sm:$0xff] %v5113
      %5120 = vst [vmem:[%s550 + $0x8] sm:$0xff] %v5116
      %s5121 = smul.u32 2, %s28
      %p5122 = scmp.lt.s32.totalorder %s5121, 3
      %s5123 = scalar_select %p5122, %s5121, 3
      %s5124 = smul.addr %s5123, 8
      %s5125 = scalar_lea.vmem %s17, %s5124
      // Predicated region
      $region89: #{vit_diffusion_forward.1} parent=87 // pred_check
        %p5126 = pneg %p408
      $region90: #{vit_diffusion_forward.1} parent=87 // pred_check_branch
        %5128 = sbr.rel (%p5126) target = $region92
      $region91: #{vit_diffusion_forward.1} parent=87 // pred_region
        %s5129 = smul.u32 2, %s28
      $region92: #{vit_diffusion_forward.1} parent=87 // pred_fallthru
        _
    $region88: #{vit_diffusion_forward.1} parent=5 // pred_fallthru
      _
    %p5130 = scmp.le.s32.totalorder 2, %s23
    // Predicated region
    $region93: #{vit_diffusion_forward.1} parent=5 // pred_check
      %p5131 = pneg %p5130
    $region94: #{vit_diffusion_forward.1} parent=5 // pred_check_branch
      %5133 = sbr.rel (%p5131) target = $region96
    $region95: #{vit_diffusion_forward.1} parent=5 // pred_region
      %s5134 = ssub.s32 %s23, 2
      // Predicated region
      $region97: #{vit_diffusion_forward.1} parent=95 // pred_check
        %p5135 = pneg %p414
      $region98: #{vit_diffusion_forward.1} parent=95 // pred_check_branch
        %5137 = sbr.rel (%p5135) target = $region100
      $region99: #{vit_diffusion_forward.1} parent=95 // pred_region
        %s5138 = smul.u32 2, %s29
        %p5139 = scmp.lt.s32.totalorder %s5138, 3
        %s5140 = scalar_select %p5139, %s5138, 3
        %s5141 = smul.addr %s5140, 8
        %s5142 = scalar_lea.vmem %s17, %s5141
      $region100: #{vit_diffusion_forward.1} parent=95 // pred_fallthru
        _
    $region96: #{vit_diffusion_forward.1} parent=5 // pred_fallthru
      _
  $region6: #{vit_diffusion_forward.1} parent=0 // loop_footer
    %s27 = sadd.s32 1, %s23
  $region7: #{vit_diffusion_forward.1} parent=0 // loop_footer_branch
    %22 = sbr.rel target = $region3
  $region8: #{vit_diffusion_forward.1} parent=0 // loop_exit
    _

</llo_original>
